<compile_context>
chip_gen: v6e
topology: v6e:2x2x1
jax: 0.10.0
libtpu: 0.0.40
codegen_flags: <defaults>
</compile_context>

<pallas_src>
import functools

import jax
import jax.numpy as jnp
from jax.experimental import pallas as pl
from jax.experimental.pallas import tpu as pltpu


def _round_up(v, m):
    return ((v + m - 1) // m) * m


# ----------------------------------------------------------------------------
# Fused kernel: all RegularBlocks + suffix MLP + diagonal + similarity.
# ----------------------------------------------------------------------------

def _siamese_kernel(x_ref, wb_ref, bb_ref, wm_ref, bm_ref, o_ref, *,
                    num_blocks, depth, suffix_depth, n, c):
    """One program = one batch element.  Both siamese branches are carried in
    the lane (channel) dim: main stream (P, 2c), branch stack (P, 4c)."""
    c2, c4 = 2 * c, 4 * c
    p = n * n

    def mm(a, w):
        return jnp.dot(a, w, preferred_element_type=jnp.float32)

    x = x_ref[0]                                    # (P, 2c)  [x1 | x2]
    lb = lw = lbias = 0

    for _ in range(num_blocks):
        # ---- fused mlp1/mlp2 branch stack (both branches, both MLP paths) --
        h = x
        for d in range(depth):
            w = wb_ref[lb]                          # (4c, 4c) block-structured
            b = bb_ref[lb]                          # (1, 4c)
            k = c2 if d == 0 else c4                # layer 0 contracts main stream
            h = jnp.maximum(mm(h, w[:k, :]) + b, 0.0)
            lb += 1
        m1 = h[:, :c2]                              # (P, 2c)  [x1-mlp1 | x2-mlp1]
        m2 = h[:, c2:]                              # (P, 2c)  [x1-mlp2 | x2-mlp2]

        # ---- per-channel spatial matmul: mult[i,j,g] = sum_k m1[i,k,g]*m2[k,j,g]
        m1r = m1.reshape(n, n, c2)                  # [i, k, g]
        m2r = m2.reshape(n, n, c2)                  # [k, j, g]
        mult = m1r[:, 0:1, :] * m2r[0:1, :, :]
        for k in range(1, n):
            mult = mult + m1r[:, k:k + 1, :] * m2r[k:k + 1, :, :]
        multf = mult.reshape(p, c2)                 # (P, 2c)

        # ---- skip connection (no ReLU): x <- x @ Wx + mult @ Wm + b --------
        wx = wm_ref[lw]; lw += 1                    # (2c, 2c)
        wmu = wm_ref[lw]; lw += 1                   # (2c, 2c)
        bs = bm_ref[lbias]; lbias += 1              # (1, 2c)
        x = mm(x, wx) + mm(multf, wmu) + bs

    # ---- suffix MLP (ReLU on every layer, matching the in-file reference) --
    # TODO(synk): some Simple_Node_Embedding variants drop the ReLU on the last
    # suffix layer; kept here to match the previous reference behaviour.
    for _ in range(suffix_depth):
        w = wm_ref[lw]; lw += 1
        b = bm_ref[lbias]; lbias += 1
        x = jnp.maximum(mm(x, w) + b, 0.0)

    # ---- node embeddings = diagonal of the edge tensor, then similarity ----
    x3 = x.reshape(n, n, c2)
    ii = jax.lax.broadcasted_iota(jnp.int32, (n, n), 0)
    jj = jax.lax.broadcasted_iota(jnp.int32, (n, n), 1)
    mask = (ii == jj).astype(jnp.float32)
    emb = jnp.sum(x3 * mask[:, :, None], axis=1)    # (n, 2c)  [emb1 | emb2]
    e1 = emb[:, :c]
    e2 = emb[:, c:c2]
    o_ref[0] = jax.lax.dot_general(                 # raw_scores = e1 @ e2^T
        e1, e2, (((1,), (1,)), ((), ())),
        preferred_element_type=jnp.float32)


# ----------------------------------------------------------------------------
# Parameter packing: fold both branches (and both MLP paths) into
# block-diagonal weights so the kernel sees only 4 stacked arrays.
# ----------------------------------------------------------------------------

def _pack_params(params, c):
    f32 = jnp.float32
    z = jnp.zeros((c, c), f32)

    def pad_wt(w):                      # (Cout, Cin) -> (c, c), rows = in-chan
        wt = w.T
        return jnp.pad(wt, ((0, c - wt.shape[0]), (0, c - wt.shape[1])))

    def pad_b(b):
        return jnp.pad(b, (0, c - b.shape[0]))

    def bd2(a):                         # blockdiag(a, a): one copy per branch
        return jnp.concatenate(
            [jnp.concatenate([a, z], axis=1),
             jnp.concatenate([z, a], axis=1)], axis=0)

    wb, bb, wm, bm = [], [], [], []
    for blk in params["blocks"]:
        depth = len(blk["mlp1"])
        for d in range(depth):
            w1, b1 = blk["mlp1"][d]
            w2, b2 = blk["mlp2"][d]
            w1t, w2t = pad_wt(w1), pad_wt(w2)
            if d == 0:
                # rows = main stream [x1 | x2]; cols = [x1m1 | x2m1 | x1m2 | x2m2]
                top = jnp.concatenate([w1t, z, w2t, z], axis=1)
                bot = jnp.concatenate([z, w1t, z, w2t], axis=1)
                w4 = jnp.concatenate(
                    [top, bot, jnp.zeros((2 * c, 4 * c), f32)], axis=0)
            else:
                w4 = jnp.concatenate(
                    [jnp.concatenate([w1t, z, z, z], axis=1),
                     jnp.concatenate([z, w1t, z, z], axis=1),
                     jnp.concatenate([z, z, w2t, z], axis=1),
                     jnp.concatenate([z, z, z, w2t], axis=1)], axis=0)
            wb.append(w4)
            b1p, b2p = pad_b(b1), pad_b(b2)
            bb.append(jnp.concatenate([b1p, b1p, b2p, b2p])[None, :])

        w_skip, b_skip = blk["skip"]
        cf = w_skip.shape[0]
        cin_b = w_skip.shape[1] - cf    # concat([x, mult]) split point
        wm.append(bd2(pad_wt(w_skip[:, :cin_b])))   # acts on x
        wm.append(bd2(pad_wt(w_skip[:, cin_b:])))   # acts on mult
        bsp = pad_b(b_skip)
        bm.append(jnp.concatenate([bsp, bsp])[None, :])

    for w, b in params["suffix"]:
        wm.append(bd2(pad_wt(w)))
        bp = pad_b(b)
        bm.append(jnp.concatenate([bp, bp])[None, :])

    return (jnp.stack(wb),              # (L1, 4c, 4c)
            jnp.stack(bb),              # (L1, 1, 4c)
            jnp.stack(wm),              # (L2, 2c, 2c)
            jnp.stack(bm))              # (L2b, 1, 2c)


# ----------------------------------------------------------------------------
# Model glue.
# ----------------------------------------------------------------------------

def siamese_forward(x, params):
    """x: (B, 2, N, N, original_features) -> raw node similarities (B, N, N)."""
    assert x.shape[1] == 2, (
        f"Data given is not of the shape (x1,x2) => data.shape={x.shape}")
    B, _, N, _, cin0 = x.shape
    P = N * N
    num_blocks = len(params["blocks"])
    assert num_blocks >= 1
    depth = len(params["blocks"][0]["mlp1"])
    suffix_depth = len(params["suffix"])
    cf = params["blocks"][0]["skip"][0].shape[0]        # in_features
    co = params["suffix"][-1][0].shape[0]               # out_features
    c = _round_up(max(cin0, cf, co), 8)                 # padded per-branch width

    # Host-side prep (tiny: B*P*2c floats).  Interleaves the two branches along
    # the channel/lane dim and zero-pads channels to `c`; this reorders data
    # inside a block so it cannot be expressed by a BlockSpec index_map.
    xr = jnp.transpose(x.reshape(B, 2, P, cin0), (0, 2, 1, 3))   # (B, P, 2, cin0)
    xr = jnp.pad(xr, ((0, 0), (0, 0), (0, 0), (0, c - cin0)))
    x_in = xr.reshape(B, P, 2 * c)

    wb, bb, wm, bm = _pack_params(params, c)

    kernel = functools.partial(_siamese_kernel, num_blocks=num_blocks,
                               depth=depth, suffix_depth=suffix_depth, n=N, c=c)
    return pl.pallas_call(
        kernel,
        out_shape=jax.ShapeDtypeStruct((B, N, N), jnp.float32),
        grid=(B,),
        in_specs=[
            pl.BlockSpec((1, P, 2 * c), lambda i: (i, 0, 0)),
            pl.BlockSpec(wb.shape, lambda i: (0, 0, 0)),
            pl.BlockSpec(bb.shape, lambda i: (0, 0, 0)),
            pl.BlockSpec(wm.shape, lambda i: (0, 0, 0)),
            pl.BlockSpec(bm.shape, lambda i: (0, 0, 0)),
        ],
        out_specs=pl.BlockSpec((1, N, N), lambda i: (i, 0, 0)),
        compiler_params=pltpu.CompilerParams(
            dimension_semantics=("parallel",),
            vmem_limit_bytes=32 * 1024 * 1024),
    )(x_in, wb, bb, wm, bm)


# ----------------------------------------------------------------------------
# Parameter init (deterministic, synthetic).
# ----------------------------------------------------------------------------

def _init_mlp_block(key, cin, cout, depth):
    layers = []
    c = cin
    for _ in range(depth):
        key, k1, k2 = jax.random.split(key, 3)
        w = jax.random.normal(k1, (cout, c), jnp.float32) * (1.0 / jnp.sqrt(c))
        b = jax.random.normal(k2, (cout,), jnp.float32) * 0.01
        layers.append((w, b))
        c = cout
    return key, layers


def init_params(key, original_features_num, num_blocks, in_features,
                out_features, depth_of_mlp):
    params = {"blocks": []}
    cin = original_features_num
    for _ in range(num_blocks):
        key, mlp1 = _init_mlp_block(key, cin, in_features, depth_of_mlp)
        key, mlp2 = _init_mlp_block(key, cin, in_features, depth_of_mlp)
        key, k1, k2 = jax.random.split(key, 3)
        w_skip = jax.random.normal(
            k1, (in_features, cin + in_features), jnp.float32
        ) * (1.0 / jnp.sqrt(cin + in_features))
        b_skip = jax.random.normal(k2, (in_features,), jnp.float32) * 0.01
        params["blocks"].append({"mlp1": mlp1, "mlp2": mlp2,
                                 "skip": (w_skip, b_skip)})
        cin = in_features
    key, suffix = _init_mlp_block(key, in_features, out_features, depth_of_mlp)
    params["suffix"] = suffix
    return params


# ----------------------------------------------------------------------------
# Pure-JAX reference (NCHW, concat skip, jnp.diagonal) for validation.
# ----------------------------------------------------------------------------

def _reference_forward(x, params):
    hp = jax.lax.Precision.HIGHEST

    def conv(e, w, b, relu):
        y = jnp.einsum("oc,bcij->boij", w, e, precision=hp)
        y = y + b[None, :, None, None]
        return jnp.maximum(y, 0.0) if relu else y

    def embed(e):
        e = jnp.transpose(e, (0, 3, 1, 2))               # (B, C, N, N)
        for blk in params["blocks"]:
            m1 = e
            for w, b in blk["mlp1"]:
                m1 = conv(m1, w, b, True)
            m2 = e
            for w, b in blk["mlp2"]:
                m2 = conv(m2, w, b, True)
            mult = jnp.einsum("bcik,bckj->bcij", m1, m2, precision=hp)
            cat = jnp.concatenate([e, mult], axis=1)
            w_s, b_s = blk["skip"]
            e = conv(cat, w_s, b_s, False)
        for w, b in params["suffix"]:
            e = conv(e, w, b, True)
        d = jnp.diagonal(e, axis1=2, axis2=3)             # (B, C, N)
        return jnp.transpose(d, (0, 2, 1))                # (B, N, C)

    e1 = embed(x[:, 0])
    e2 = embed(x[:, 1])
    return jnp.einsum("bif,bjf->bij", e1, e2, precision=hp)


# ----------------------------------------------------------------------------
if __name__ == "__main__":
    B, N = 2, 16
    original_features_num = 4
    num_blocks = 2
    in_features = 32
    out_features = 32
    depth_of_mlp = 2

    key = jax.random.PRNGKey(0)
    kx, kp = jax.random.split(key)
    x = jax.random.normal(kx, (B, 2, N, N, original_features_num), jnp.float32)
    params = init_params(kp, original_features_num, num_blocks, in_features,
                         out_features, depth_of_mlp)

    out = jax.jit(siamese_forward)(x, params)
    out = jax.block_until_ready(out)
    assert out.shape == (B, N, N), out.shape
    assert bool(jnp.all(jnp.isfinite(out)))

    ref = _reference_forward(x, params)
    rel_err = float(jnp.max(jnp.abs(out - ref)) / (jnp.max(jnp.abs(ref)) + 1e-6))
    assert rel_err < 1e-3, f"mismatch vs reference: rel err {rel_err}"
    print("KERNEL_OK")
</pallas_src>

<mosaic_0001>
module attributes {stable_mosaic.version = 11 : i64} {
  func.func @_siamese_kernel(%arg0: i32, %arg1: memref<1x256x64xf32, #tpu.memory_space<vmem>>, %arg2: memref<4x128x128xf32, #tpu.memory_space<vmem>>, %arg3: memref<4x1x128xf32, #tpu.memory_space<vmem>>, %arg4: memref<6x64x64xf32, #tpu.memory_space<vmem>>, %arg5: memref<4x1x64xf32, #tpu.memory_space<vmem>>, %arg6: memref<1x16x16xf32, #tpu.memory_space<vmem>>) attributes {dimension_semantics = [#tpu.dimension_semantics<parallel>], iteration_bounds = array<i64: 2>, scalar_prefetch = 0 : i64, scratch_operands = 0 : i64, tpu.core_type = #tpu.core_type<tc>, window_params = [{transform_indices = @transform_0, window_bounds = array<i64: 1, 256, 64>}, {pipeline_mode = #tpu.pipeline_mode<synchronous>, transform_indices = @transform_1, window_bounds = array<i64: 4, 128, 128>}, {pipeline_mode = #tpu.pipeline_mode<synchronous>, transform_indices = @transform_2, window_bounds = array<i64: 4, 1, 128>}, {pipeline_mode = #tpu.pipeline_mode<synchronous>, transform_indices = @transform_3, window_bounds = array<i64: 6, 64, 64>}, {pipeline_mode = #tpu.pipeline_mode<synchronous>, transform_indices = @transform_4, window_bounds = array<i64: 4, 1, 64>}, {transform_indices = @transform_5, window_bounds = array<i64: 1, 16, 16>}]} {
    %c0 = arith.constant 0 : index
    %c0_0 = arith.constant 0 : index
    %c0_1 = arith.constant 0 : index
    %0 = vector.load %arg1[%c0, %c0_0, %c0_1] : memref<1x256x64xf32, #tpu.memory_space<vmem>>, vector<1x256x64xf32>
    %1 = vector.shape_cast %0 : vector<1x256x64xf32> to vector<256x64xf32>
    %c0_2 = arith.constant 0 : index
    %c0_3 = arith.constant 0 : index
    %c0_4 = arith.constant 0 : index
    %2 = vector.load %arg2[%c0_2, %c0_3, %c0_4] : memref<4x128x128xf32, #tpu.memory_space<vmem>>, vector<1x128x128xf32>
    %3 = vector.shape_cast %2 : vector<1x128x128xf32> to vector<128x128xf32>
    %c0_5 = arith.constant 0 : index
    %c0_6 = arith.constant 0 : index
    %c0_7 = arith.constant 0 : index
    %4 = vector.load %arg3[%c0_5, %c0_6, %c0_7] : memref<4x1x128xf32, #tpu.memory_space<vmem>>, vector<1x1x128xf32>
    %5 = vector.shape_cast %4 : vector<1x1x128xf32> to vector<1x128xf32>
    %6 = vector.extract_strided_slice %3 {offsets = [0, 0], sizes = [64, 128], strides = [1, 1]} : vector<128x128xf32> to vector<64x128xf32>
    %cst = arith.constant dense<0.000000e+00> : vector<256x128xf32>
    %7 = tpu.matmul %1, %6, %cst {dimension_numbers = #tpu.dot_dimension_numbers<[1], [0], [0], [1], [0, 0, 1, 1], [], []>} : vector<256x64xf32>, vector<64x128xf32>, vector<256x128xf32> -> vector<256x128xf32>
    %8 = vector.broadcast %5 : vector<1x128xf32> to vector<256x128xf32>
    %9 = arith.addf %7, %8 : vector<256x128xf32>
    %cst_8 = arith.constant 0.000000e+00 : f32
    %10 = vector.broadcast %cst_8 : f32 to vector<256x128xf32>
    %11 = arith.maximumf %9, %10 : vector<256x128xf32>
    %c1 = arith.constant 1 : index
    %c0_9 = arith.constant 0 : index
    %c0_10 = arith.constant 0 : index
    %12 = vector.load %arg2[%c1, %c0_9, %c0_10] : memref<4x128x128xf32, #tpu.memory_space<vmem>>, vector<1x128x128xf32>
    %13 = vector.shape_cast %12 : vector<1x128x128xf32> to vector<128x128xf32>
    %c1_11 = arith.constant 1 : index
    %c0_12 = arith.constant 0 : index
    %c0_13 = arith.constant 0 : index
    %14 = vector.load %arg3[%c1_11, %c0_12, %c0_13] : memref<4x1x128xf32, #tpu.memory_space<vmem>>, vector<1x1x128xf32>
    %15 = vector.shape_cast %14 : vector<1x1x128xf32> to vector<1x128xf32>
    %cst_14 = arith.constant dense<0.000000e+00> : vector<256x128xf32>
    %16 = tpu.matmul %11, %13, %cst_14 {dimension_numbers = #tpu.dot_dimension_numbers<[1], [0], [0], [1], [0, 0, 1, 1], [], []>} : vector<256x128xf32>, vector<128x128xf32>, vector<256x128xf32> -> vector<256x128xf32>
    %17 = vector.broadcast %15 : vector<1x128xf32> to vector<256x128xf32>
    %18 = arith.addf %16, %17 : vector<256x128xf32>
    %cst_15 = arith.constant 0.000000e+00 : f32
    %19 = vector.broadcast %cst_15 : f32 to vector<256x128xf32>
    %20 = arith.maximumf %18, %19 : vector<256x128xf32>
    %21 = vector.extract_strided_slice %20 {offsets = [0, 0], sizes = [256, 64], strides = [1, 1]} : vector<256x128xf32> to vector<256x64xf32>
    %22 = vector.extract_strided_slice %20 {offsets = [0, 64], sizes = [256, 64], strides = [1, 1]} : vector<256x128xf32> to vector<256x64xf32>
    %23 = vector.shape_cast %21 : vector<256x64xf32> to vector<16x16x64xf32>
    %24 = vector.shape_cast %22 : vector<256x64xf32> to vector<16x16x64xf32>
    %25 = vector.extract_strided_slice %23 {offsets = [0, 0, 0], sizes = [16, 1, 64], strides = [1, 1, 1]} : vector<16x16x64xf32> to vector<16x1x64xf32>
    %26 = vector.extract_strided_slice %24 {offsets = [0, 0, 0], sizes = [1, 16, 64], strides = [1, 1, 1]} : vector<16x16x64xf32> to vector<1x16x64xf32>
    %27 = vector.broadcast %25 : vector<16x1x64xf32> to vector<16x16x64xf32>
    %28 = vector.broadcast %26 : vector<1x16x64xf32> to vector<16x16x64xf32>
    %29 = arith.mulf %27, %28 : vector<16x16x64xf32>
    %30 = vector.extract_strided_slice %23 {offsets = [0, 1, 0], sizes = [16, 1, 64], strides = [1, 1, 1]} : vector<16x16x64xf32> to vector<16x1x64xf32>
    %31 = vector.extract_strided_slice %24 {offsets = [1, 0, 0], sizes = [1, 16, 64], strides = [1, 1, 1]} : vector<16x16x64xf32> to vector<1x16x64xf32>
    %32 = vector.broadcast %30 : vector<16x1x64xf32> to vector<16x16x64xf32>
    %33 = vector.broadcast %31 : vector<1x16x64xf32> to vector<16x16x64xf32>
    %34 = arith.mulf %32, %33 : vector<16x16x64xf32>
    %35 = arith.addf %29, %34 : vector<16x16x64xf32>
    %36 = vector.extract_strided_slice %23 {offsets = [0, 2, 0], sizes = [16, 1, 64], strides = [1, 1, 1]} : vector<16x16x64xf32> to vector<16x1x64xf32>
    %37 = vector.extract_strided_slice %24 {offsets = [2, 0, 0], sizes = [1, 16, 64], strides = [1, 1, 1]} : vector<16x16x64xf32> to vector<1x16x64xf32>
    %38 = vector.broadcast %36 : vector<16x1x64xf32> to vector<16x16x64xf32>
    %39 = vector.broadcast %37 : vector<1x16x64xf32> to vector<16x16x64xf32>
    %40 = arith.mulf %38, %39 : vector<16x16x64xf32>
    %41 = arith.addf %35, %40 : vector<16x16x64xf32>
    %42 = vector.extract_strided_slice %23 {offsets = [0, 3, 0], sizes = [16, 1, 64], strides = [1, 1, 1]} : vector<16x16x64xf32> to vector<16x1x64xf32>
    %43 = vector.extract_strided_slice %24 {offsets = [3, 0, 0], sizes = [1, 16, 64], strides = [1, 1, 1]} : vector<16x16x64xf32> to vector<1x16x64xf32>
    %44 = vector.broadcast %42 : vector<16x1x64xf32> to vector<16x16x64xf32>
    %45 = vector.broadcast %43 : vector<1x16x64xf32> to vector<16x16x64xf32>
    %46 = arith.mulf %44, %45 : vector<16x16x64xf32>
    %47 = arith.addf %41, %46 : vector<16x16x64xf32>
    %48 = vector.extract_strided_slice %23 {offsets = [0, 4, 0], sizes = [16, 1, 64], strides = [1, 1, 1]} : vector<16x16x64xf32> to vector<16x1x64xf32>
    %49 = vector.extract_strided_slice %24 {offsets = [4, 0, 0], sizes = [1, 16, 64], strides = [1, 1, 1]} : vector<16x16x64xf32> to vector<1x16x64xf32>
    %50 = vector.broadcast %48 : vector<16x1x64xf32> to vector<16x16x64xf32>
    %51 = vector.broadcast %49 : vector<1x16x64xf32> to vector<16x16x64xf32>
    %52 = arith.mulf %50, %51 : vector<16x16x64xf32>
    %53 = arith.addf %47, %52 : vector<16x16x64xf32>
    %54 = vector.extract_strided_slice %23 {offsets = [0, 5, 0], sizes = [16, 1, 64], strides = [1, 1, 1]} : vector<16x16x64xf32> to vector<16x1x64xf32>
    %55 = vector.extract_strided_slice %24 {offsets = [5, 0, 0], sizes = [1, 16, 64], strides = [1, 1, 1]} : vector<16x16x64xf32> to vector<1x16x64xf32>
    %56 = vector.broadcast %54 : vector<16x1x64xf32> to vector<16x16x64xf32>
    %57 = vector.broadcast %55 : vector<1x16x64xf32> to vector<16x16x64xf32>
    %58 = arith.mulf %56, %57 : vector<16x16x64xf32>
    %59 = arith.addf %53, %58 : vector<16x16x64xf32>
    %60 = vector.extract_strided_slice %23 {offsets = [0, 6, 0], sizes = [16, 1, 64], strides = [1, 1, 1]} : vector<16x16x64xf32> to vector<16x1x64xf32>
    %61 = vector.extract_strided_slice %24 {offsets = [6, 0, 0], sizes = [1, 16, 64], strides = [1, 1, 1]} : vector<16x16x64xf32> to vector<1x16x64xf32>
    %62 = vector.broadcast %60 : vector<16x1x64xf32> to vector<16x16x64xf32>
    %63 = vector.broadcast %61 : vector<1x16x64xf32> to vector<16x16x64xf32>
    %64 = arith.mulf %62, %63 : vector<16x16x64xf32>
    %65 = arith.addf %59, %64 : vector<16x16x64xf32>
    %66 = vector.extract_strided_slice %23 {offsets = [0, 7, 0], sizes = [16, 1, 64], strides = [1, 1, 1]} : vector<16x16x64xf32> to vector<16x1x64xf32>
    %67 = vector.extract_strided_slice %24 {offsets = [7, 0, 0], sizes = [1, 16, 64], strides = [1, 1, 1]} : vector<16x16x64xf32> to vector<1x16x64xf32>
    %68 = vector.broadcast %66 : vector<16x1x64xf32> to vector<16x16x64xf32>
    %69 = vector.broadcast %67 : vector<1x16x64xf32> to vector<16x16x64xf32>
    %70 = arith.mulf %68, %69 : vector<16x16x64xf32>
    %71 = arith.addf %65, %70 : vector<16x16x64xf32>
    %72 = vector.extract_strided_slice %23 {offsets = [0, 8, 0], sizes = [16, 1, 64], strides = [1, 1, 1]} : vector<16x16x64xf32> to vector<16x1x64xf32>
    %73 = vector.extract_strided_slice %24 {offsets = [8, 0, 0], sizes = [1, 16, 64], strides = [1, 1, 1]} : vector<16x16x64xf32> to vector<1x16x64xf32>
    %74 = vector.broadcast %72 : vector<16x1x64xf32> to vector<16x16x64xf32>
    %75 = vector.broadcast %73 : vector<1x16x64xf32> to vector<16x16x64xf32>
    %76 = arith.mulf %74, %75 : vector<16x16x64xf32>
    %77 = arith.addf %71, %76 : vector<16x16x64xf32>
    %78 = vector.extract_strided_slice %23 {offsets = [0, 9, 0], sizes = [16, 1, 64], strides = [1, 1, 1]} : vector<16x16x64xf32> to vector<16x1x64xf32>
    %79 = vector.extract_strided_slice %24 {offsets = [9, 0, 0], sizes = [1, 16, 64], strides = [1, 1, 1]} : vector<16x16x64xf32> to vector<1x16x64xf32>
    %80 = vector.broadcast %78 : vector<16x1x64xf32> to vector<16x16x64xf32>
    %81 = vector.broadcast %79 : vector<1x16x64xf32> to vector<16x16x64xf32>
    %82 = arith.mulf %80, %81 : vector<16x16x64xf32>
    %83 = arith.addf %77, %82 : vector<16x16x64xf32>
    %84 = vector.extract_strided_slice %23 {offsets = [0, 10, 0], sizes = [16, 1, 64], strides = [1, 1, 1]} : vector<16x16x64xf32> to vector<16x1x64xf32>
    %85 = vector.extract_strided_slice %24 {offsets = [10, 0, 0], sizes = [1, 16, 64], strides = [1, 1, 1]} : vector<16x16x64xf32> to vector<1x16x64xf32>
    %86 = vector.broadcast %84 : vector<16x1x64xf32> to vector<16x16x64xf32>
    %87 = vector.broadcast %85 : vector<1x16x64xf32> to vector<16x16x64xf32>
    %88 = arith.mulf %86, %87 : vector<16x16x64xf32>
    %89 = arith.addf %83, %88 : vector<16x16x64xf32>
    %90 = vector.extract_strided_slice %23 {offsets = [0, 11, 0], sizes = [16, 1, 64], strides = [1, 1, 1]} : vector<16x16x64xf32> to vector<16x1x64xf32>
    %91 = vector.extract_strided_slice %24 {offsets = [11, 0, 0], sizes = [1, 16, 64], strides = [1, 1, 1]} : vector<16x16x64xf32> to vector<1x16x64xf32>
    %92 = vector.broadcast %90 : vector<16x1x64xf32> to vector<16x16x64xf32>
    %93 = vector.broadcast %91 : vector<1x16x64xf32> to vector<16x16x64xf32>
    %94 = arith.mulf %92, %93 : vector<16x16x64xf32>
    %95 = arith.addf %89, %94 : vector<16x16x64xf32>
    %96 = vector.extract_strided_slice %23 {offsets = [0, 12, 0], sizes = [16, 1, 64], strides = [1, 1, 1]} : vector<16x16x64xf32> to vector<16x1x64xf32>
    %97 = vector.extract_strided_slice %24 {offsets = [12, 0, 0], sizes = [1, 16, 64], strides = [1, 1, 1]} : vector<16x16x64xf32> to vector<1x16x64xf32>
    %98 = vector.broadcast %96 : vector<16x1x64xf32> to vector<16x16x64xf32>
    %99 = vector.broadcast %97 : vector<1x16x64xf32> to vector<16x16x64xf32>
    %100 = arith.mulf %98, %99 : vector<16x16x64xf32>
    %101 = arith.addf %95, %100 : vector<16x16x64xf32>
    %102 = vector.extract_strided_slice %23 {offsets = [0, 13, 0], sizes = [16, 1, 64], strides = [1, 1, 1]} : vector<16x16x64xf32> to vector<16x1x64xf32>
    %103 = vector.extract_strided_slice %24 {offsets = [13, 0, 0], sizes = [1, 16, 64], strides = [1, 1, 1]} : vector<16x16x64xf32> to vector<1x16x64xf32>
    %104 = vector.broadcast %102 : vector<16x1x64xf32> to vector<16x16x64xf32>
    %105 = vector.broadcast %103 : vector<1x16x64xf32> to vector<16x16x64xf32>
    %106 = arith.mulf %104, %105 : vector<16x16x64xf32>
    %107 = arith.addf %101, %106 : vector<16x16x64xf32>
    %108 = vector.extract_strided_slice %23 {offsets = [0, 14, 0], sizes = [16, 1, 64], strides = [1, 1, 1]} : vector<16x16x64xf32> to vector<16x1x64xf32>
    %109 = vector.extract_strided_slice %24 {offsets = [14, 0, 0], sizes = [1, 16, 64], strides = [1, 1, 1]} : vector<16x16x64xf32> to vector<1x16x64xf32>
    %110 = vector.broadcast %108 : vector<16x1x64xf32> to vector<16x16x64xf32>
    %111 = vector.broadcast %109 : vector<1x16x64xf32> to vector<16x16x64xf32>
    %112 = arith.mulf %110, %111 : vector<16x16x64xf32>
    %113 = arith.addf %107, %112 : vector<16x16x64xf32>
    %114 = vector.extract_strided_slice %23 {offsets = [0, 15, 0], sizes = [16, 1, 64], strides = [1, 1, 1]} : vector<16x16x64xf32> to vector<16x1x64xf32>
    %115 = vector.extract_strided_slice %24 {offsets = [15, 0, 0], sizes = [1, 16, 64], strides = [1, 1, 1]} : vector<16x16x64xf32> to vector<1x16x64xf32>
    %116 = vector.broadcast %114 : vector<16x1x64xf32> to vector<16x16x64xf32>
    %117 = vector.broadcast %115 : vector<1x16x64xf32> to vector<16x16x64xf32>
    %118 = arith.mulf %116, %117 : vector<16x16x64xf32>
    %119 = arith.addf %113, %118 : vector<16x16x64xf32>
    %120 = vector.shape_cast %119 : vector<16x16x64xf32> to vector<256x64xf32>
    %c0_16 = arith.constant 0 : index
    %c0_17 = arith.constant 0 : index
    %c0_18 = arith.constant 0 : index
    %121 = vector.load %arg4[%c0_16, %c0_17, %c0_18] : memref<6x64x64xf32, #tpu.memory_space<vmem>>, vector<1x64x64xf32>
    %122 = vector.shape_cast %121 : vector<1x64x64xf32> to vector<64x64xf32>
    %c1_19 = arith.constant 1 : index
    %c0_20 = arith.constant 0 : index
    %c0_21 = arith.constant 0 : index
    %123 = vector.load %arg4[%c1_19, %c0_20, %c0_21] : memref<6x64x64xf32, #tpu.memory_space<vmem>>, vector<1x64x64xf32>
    %124 = vector.shape_cast %123 : vector<1x64x64xf32> to vector<64x64xf32>
    %c0_22 = arith.constant 0 : index
    %c0_23 = arith.constant 0 : index
    %c0_24 = arith.constant 0 : index
    %125 = vector.load %arg5[%c0_22, %c0_23, %c0_24] : memref<4x1x64xf32, #tpu.memory_space<vmem>>, vector<1x1x64xf32>
    %126 = vector.shape_cast %125 : vector<1x1x64xf32> to vector<1x64xf32>
    %cst_25 = arith.constant dense<0.000000e+00> : vector<256x64xf32>
    %127 = tpu.matmul %1, %122, %cst_25 {dimension_numbers = #tpu.dot_dimension_numbers<[1], [0], [0], [1], [0, 0, 1, 1], [], []>} : vector<256x64xf32>, vector<64x64xf32>, vector<256x64xf32> -> vector<256x64xf32>
    %cst_26 = arith.constant dense<0.000000e+00> : vector<256x64xf32>
    %128 = tpu.matmul %120, %124, %cst_26 {dimension_numbers = #tpu.dot_dimension_numbers<[1], [0], [0], [1], [0, 0, 1, 1], [], []>} : vector<256x64xf32>, vector<64x64xf32>, vector<256x64xf32> -> vector<256x64xf32>
    %129 = arith.addf %127, %128 : vector<256x64xf32>
    %130 = vector.broadcast %126 : vector<1x64xf32> to vector<256x64xf32>
    %131 = arith.addf %129, %130 : vector<256x64xf32>
    %c2 = arith.constant 2 : index
    %c0_27 = arith.constant 0 : index
    %c0_28 = arith.constant 0 : index
    %132 = vector.load %arg2[%c2, %c0_27, %c0_28] : memref<4x128x128xf32, #tpu.memory_space<vmem>>, vector<1x128x128xf32>
    %133 = vector.shape_cast %132 : vector<1x128x128xf32> to vector<128x128xf32>
    %c2_29 = arith.constant 2 : index
    %c0_30 = arith.constant 0 : index
    %c0_31 = arith.constant 0 : index
    %134 = vector.load %arg3[%c2_29, %c0_30, %c0_31] : memref<4x1x128xf32, #tpu.memory_space<vmem>>, vector<1x1x128xf32>
    %135 = vector.shape_cast %134 : vector<1x1x128xf32> to vector<1x128xf32>
    %136 = vector.extract_strided_slice %133 {offsets = [0, 0], sizes = [64, 128], strides = [1, 1]} : vector<128x128xf32> to vector<64x128xf32>
    %cst_32 = arith.constant dense<0.000000e+00> : vector<256x128xf32>
    %137 = tpu.matmul %131, %136, %cst_32 {dimension_numbers = #tpu.dot_dimension_numbers<[1], [0], [0], [1], [0, 0, 1, 1], [], []>} : vector<256x64xf32>, vector<64x128xf32>, vector<256x128xf32> -> vector<256x128xf32>
    %138 = vector.broadcast %135 : vector<1x128xf32> to vector<256x128xf32>
    %139 = arith.addf %137, %138 : vector<256x128xf32>
    %cst_33 = arith.constant 0.000000e+00 : f32
    %140 = vector.broadcast %cst_33 : f32 to vector<256x128xf32>
    %141 = arith.maximumf %139, %140 : vector<256x128xf32>
    %c3 = arith.constant 3 : index
    %c0_34 = arith.constant 0 : index
    %c0_35 = arith.constant 0 : index
    %142 = vector.load %arg2[%c3, %c0_34, %c0_35] : memref<4x128x128xf32, #tpu.memory_space<vmem>>, vector<1x128x128xf32>
    %143 = vector.shape_cast %142 : vector<1x128x128xf32> to vector<128x128xf32>
    %c3_36 = arith.constant 3 : index
    %c0_37 = arith.constant 0 : index
    %c0_38 = arith.constant 0 : index
    %144 = vector.load %arg3[%c3_36, %c0_37, %c0_38] : memref<4x1x128xf32, #tpu.memory_space<vmem>>, vector<1x1x128xf32>
    %145 = vector.shape_cast %144 : vector<1x1x128xf32> to vector<1x128xf32>
    %cst_39 = arith.constant dense<0.000000e+00> : vector<256x128xf32>
    %146 = tpu.matmul %141, %143, %cst_39 {dimension_numbers = #tpu.dot_dimension_numbers<[1], [0], [0], [1], [0, 0, 1, 1], [], []>} : vector<256x128xf32>, vector<128x128xf32>, vector<256x128xf32> -> vector<256x128xf32>
    %147 = vector.broadcast %145 : vector<1x128xf32> to vector<256x128xf32>
    %148 = arith.addf %146, %147 : vector<256x128xf32>
    %cst_40 = arith.constant 0.000000e+00 : f32
    %149 = vector.broadcast %cst_40 : f32 to vector<256x128xf32>
    %150 = arith.maximumf %148, %149 : vector<256x128xf32>
    %151 = vector.extract_strided_slice %150 {offsets = [0, 0], sizes = [256, 64], strides = [1, 1]} : vector<256x128xf32> to vector<256x64xf32>
    %152 = vector.extract_strided_slice %150 {offsets = [0, 64], sizes = [256, 64], strides = [1, 1]} : vector<256x128xf32> to vector<256x64xf32>
    %153 = vector.shape_cast %151 : vector<256x64xf32> to vector<16x16x64xf32>
    %154 = vector.shape_cast %152 : vector<256x64xf32> to vector<16x16x64xf32>
    %155 = vector.extract_strided_slice %153 {offsets = [0, 0, 0], sizes = [16, 1, 64], strides = [1, 1, 1]} : vector<16x16x64xf32> to vector<16x1x64xf32>
    %156 = vector.extract_strided_slice %154 {offsets = [0, 0, 0], sizes = [1, 16, 64], strides = [1, 1, 1]} : vector<16x16x64xf32> to vector<1x16x64xf32>
    %157 = vector.broadcast %155 : vector<16x1x64xf32> to vector<16x16x64xf32>
    %158 = vector.broadcast %156 : vector<1x16x64xf32> to vector<16x16x64xf32>
    %159 = arith.mulf %157, %158 : vector<16x16x64xf32>
    %160 = vector.extract_strided_slice %153 {offsets = [0, 1, 0], sizes = [16, 1, 64], strides = [1, 1, 1]} : vector<16x16x64xf32> to vector<16x1x64xf32>
    %161 = vector.extract_strided_slice %154 {offsets = [1, 0, 0], sizes = [1, 16, 64], strides = [1, 1, 1]} : vector<16x16x64xf32> to vector<1x16x64xf32>
    %162 = vector.broadcast %160 : vector<16x1x64xf32> to vector<16x16x64xf32>
    %163 = vector.broadcast %161 : vector<1x16x64xf32> to vector<16x16x64xf32>
    %164 = arith.mulf %162, %163 : vector<16x16x64xf32>
    %165 = arith.addf %159, %164 : vector<16x16x64xf32>
    %166 = vector.extract_strided_slice %153 {offsets = [0, 2, 0], sizes = [16, 1, 64], strides = [1, 1, 1]} : vector<16x16x64xf32> to vector<16x1x64xf32>
    %167 = vector.extract_strided_slice %154 {offsets = [2, 0, 0], sizes = [1, 16, 64], strides = [1, 1, 1]} : vector<16x16x64xf32> to vector<1x16x64xf32>
    %168 = vector.broadcast %166 : vector<16x1x64xf32> to vector<16x16x64xf32>
    %169 = vector.broadcast %167 : vector<1x16x64xf32> to vector<16x16x64xf32>
    %170 = arith.mulf %168, %169 : vector<16x16x64xf32>
    %171 = arith.addf %165, %170 : vector<16x16x64xf32>
    %172 = vector.extract_strided_slice %153 {offsets = [0, 3, 0], sizes = [16, 1, 64], strides = [1, 1, 1]} : vector<16x16x64xf32> to vector<16x1x64xf32>
    %173 = vector.extract_strided_slice %154 {offsets = [3, 0, 0], sizes = [1, 16, 64], strides = [1, 1, 1]} : vector<16x16x64xf32> to vector<1x16x64xf32>
    %174 = vector.broadcast %172 : vector<16x1x64xf32> to vector<16x16x64xf32>
    %175 = vector.broadcast %173 : vector<1x16x64xf32> to vector<16x16x64xf32>
    %176 = arith.mulf %174, %175 : vector<16x16x64xf32>
    %177 = arith.addf %171, %176 : vector<16x16x64xf32>
    %178 = vector.extract_strided_slice %153 {offsets = [0, 4, 0], sizes = [16, 1, 64], strides = [1, 1, 1]} : vector<16x16x64xf32> to vector<16x1x64xf32>
    %179 = vector.extract_strided_slice %154 {offsets = [4, 0, 0], sizes = [1, 16, 64], strides = [1, 1, 1]} : vector<16x16x64xf32> to vector<1x16x64xf32>
    %180 = vector.broadcast %178 : vector<16x1x64xf32> to vector<16x16x64xf32>
    %181 = vector.broadcast %179 : vector<1x16x64xf32> to vector<16x16x64xf32>
    %182 = arith.mulf %180, %181 : vector<16x16x64xf32>
    %183 = arith.addf %177, %182 : vector<16x16x64xf32>
    %184 = vector.extract_strided_slice %153 {offsets = [0, 5, 0], sizes = [16, 1, 64], strides = [1, 1, 1]} : vector<16x16x64xf32> to vector<16x1x64xf32>
    %185 = vector.extract_strided_slice %154 {offsets = [5, 0, 0], sizes = [1, 16, 64], strides = [1, 1, 1]} : vector<16x16x64xf32> to vector<1x16x64xf32>
    %186 = vector.broadcast %184 : vector<16x1x64xf32> to vector<16x16x64xf32>
    %187 = vector.broadcast %185 : vector<1x16x64xf32> to vector<16x16x64xf32>
    %188 = arith.mulf %186, %187 : vector<16x16x64xf32>
    %189 = arith.addf %183, %188 : vector<16x16x64xf32>
    %190 = vector.extract_strided_slice %153 {offsets = [0, 6, 0], sizes = [16, 1, 64], strides = [1, 1, 1]} : vector<16x16x64xf32> to vector<16x1x64xf32>
    %191 = vector.extract_strided_slice %154 {offsets = [6, 0, 0], sizes = [1, 16, 64], strides = [1, 1, 1]} : vector<16x16x64xf32> to vector<1x16x64xf32>
    %192 = vector.broadcast %190 : vector<16x1x64xf32> to vector<16x16x64xf32>
    %193 = vector.broadcast %191 : vector<1x16x64xf32> to vector<16x16x64xf32>
    %194 = arith.mulf %192, %193 : vector<16x16x64xf32>
    %195 = arith.addf %189, %194 : vector<16x16x64xf32>
    %196 = vector.extract_strided_slice %153 {offsets = [0, 7, 0], sizes = [16, 1, 64], strides = [1, 1, 1]} : vector<16x16x64xf32> to vector<16x1x64xf32>
    %197 = vector.extract_strided_slice %154 {offsets = [7, 0, 0], sizes = [1, 16, 64], strides = [1, 1, 1]} : vector<16x16x64xf32> to vector<1x16x64xf32>
    %198 = vector.broadcast %196 : vector<16x1x64xf32> to vector<16x16x64xf32>
    %199 = vector.broadcast %197 : vector<1x16x64xf32> to vector<16x16x64xf32>
    %200 = arith.mulf %198, %199 : vector<16x16x64xf32>
    %201 = arith.addf %195, %200 : vector<16x16x64xf32>
    %202 = vector.extract_strided_slice %153 {offsets = [0, 8, 0], sizes = [16, 1, 64], strides = [1, 1, 1]} : vector<16x16x64xf32> to vector<16x1x64xf32>
    %203 = vector.extract_strided_slice %154 {offsets = [8, 0, 0], sizes = [1, 16, 64], strides = [1, 1, 1]} : vector<16x16x64xf32> to vector<1x16x64xf32>
    %204 = vector.broadcast %202 : vector<16x1x64xf32> to vector<16x16x64xf32>
    %205 = vector.broadcast %203 : vector<1x16x64xf32> to vector<16x16x64xf32>
    %206 = arith.mulf %204, %205 : vector<16x16x64xf32>
    %207 = arith.addf %201, %206 : vector<16x16x64xf32>
    %208 = vector.extract_strided_slice %153 {offsets = [0, 9, 0], sizes = [16, 1, 64], strides = [1, 1, 1]} : vector<16x16x64xf32> to vector<16x1x64xf32>
    %209 = vector.extract_strided_slice %154 {offsets = [9, 0, 0], sizes = [1, 16, 64], strides = [1, 1, 1]} : vector<16x16x64xf32> to vector<1x16x64xf32>
    %210 = vector.broadcast %208 : vector<16x1x64xf32> to vector<16x16x64xf32>
    %211 = vector.broadcast %209 : vector<1x16x64xf32> to vector<16x16x64xf32>
    %212 = arith.mulf %210, %211 : vector<16x16x64xf32>
    %213 = arith.addf %207, %212 : vector<16x16x64xf32>
    %214 = vector.extract_strided_slice %153 {offsets = [0, 10, 0], sizes = [16, 1, 64], strides = [1, 1, 1]} : vector<16x16x64xf32> to vector<16x1x64xf32>
    %215 = vector.extract_strided_slice %154 {offsets = [10, 0, 0], sizes = [1, 16, 64], strides = [1, 1, 1]} : vector<16x16x64xf32> to vector<1x16x64xf32>
    %216 = vector.broadcast %214 : vector<16x1x64xf32> to vector<16x16x64xf32>
    %217 = vector.broadcast %215 : vector<1x16x64xf32> to vector<16x16x64xf32>
    %218 = arith.mulf %216, %217 : vector<16x16x64xf32>
    %219 = arith.addf %213, %218 : vector<16x16x64xf32>
    %220 = vector.extract_strided_slice %153 {offsets = [0, 11, 0], sizes = [16, 1, 64], strides = [1, 1, 1]} : vector<16x16x64xf32> to vector<16x1x64xf32>
    %221 = vector.extract_strided_slice %154 {offsets = [11, 0, 0], sizes = [1, 16, 64], strides = [1, 1, 1]} : vector<16x16x64xf32> to vector<1x16x64xf32>
    %222 = vector.broadcast %220 : vector<16x1x64xf32> to vector<16x16x64xf32>
    %223 = vector.broadcast %221 : vector<1x16x64xf32> to vector<16x16x64xf32>
    %224 = arith.mulf %222, %223 : vector<16x16x64xf32>
    %225 = arith.addf %219, %224 : vector<16x16x64xf32>
    %226 = vector.extract_strided_slice %153 {offsets = [0, 12, 0], sizes = [16, 1, 64], strides = [1, 1, 1]} : vector<16x16x64xf32> to vector<16x1x64xf32>
    %227 = vector.extract_strided_slice %154 {offsets = [12, 0, 0], sizes = [1, 16, 64], strides = [1, 1, 1]} : vector<16x16x64xf32> to vector<1x16x64xf32>
    %228 = vector.broadcast %226 : vector<16x1x64xf32> to vector<16x16x64xf32>
    %229 = vector.broadcast %227 : vector<1x16x64xf32> to vector<16x16x64xf32>
    %230 = arith.mulf %228, %229 : vector<16x16x64xf32>
    %231 = arith.addf %225, %230 : vector<16x16x64xf32>
    %232 = vector.extract_strided_slice %153 {offsets = [0, 13, 0], sizes = [16, 1, 64], strides = [1, 1, 1]} : vector<16x16x64xf32> to vector<16x1x64xf32>
    %233 = vector.extract_strided_slice %154 {offsets = [13, 0, 0], sizes = [1, 16, 64], strides = [1, 1, 1]} : vector<16x16x64xf32> to vector<1x16x64xf32>
    %234 = vector.broadcast %232 : vector<16x1x64xf32> to vector<16x16x64xf32>
    %235 = vector.broadcast %233 : vector<1x16x64xf32> to vector<16x16x64xf32>
    %236 = arith.mulf %234, %235 : vector<16x16x64xf32>
    %237 = arith.addf %231, %236 : vector<16x16x64xf32>
    %238 = vector.extract_strided_slice %153 {offsets = [0, 14, 0], sizes = [16, 1, 64], strides = [1, 1, 1]} : vector<16x16x64xf32> to vector<16x1x64xf32>
    %239 = vector.extract_strided_slice %154 {offsets = [14, 0, 0], sizes = [1, 16, 64], strides = [1, 1, 1]} : vector<16x16x64xf32> to vector<1x16x64xf32>
    %240 = vector.broadcast %238 : vector<16x1x64xf32> to vector<16x16x64xf32>
    %241 = vector.broadcast %239 : vector<1x16x64xf32> to vector<16x16x64xf32>
    %242 = arith.mulf %240, %241 : vector<16x16x64xf32>
    %243 = arith.addf %237, %242 : vector<16x16x64xf32>
    %244 = vector.extract_strided_slice %153 {offsets = [0, 15, 0], sizes = [16, 1, 64], strides = [1, 1, 1]} : vector<16x16x64xf32> to vector<16x1x64xf32>
    %245 = vector.extract_strided_slice %154 {offsets = [15, 0, 0], sizes = [1, 16, 64], strides = [1, 1, 1]} : vector<16x16x64xf32> to vector<1x16x64xf32>
    %246 = vector.broadcast %244 : vector<16x1x64xf32> to vector<16x16x64xf32>
    %247 = vector.broadcast %245 : vector<1x16x64xf32> to vector<16x16x64xf32>
    %248 = arith.mulf %246, %247 : vector<16x16x64xf32>
    %249 = arith.addf %243, %248 : vector<16x16x64xf32>
    %250 = vector.shape_cast %249 : vector<16x16x64xf32> to vector<256x64xf32>
    %c2_41 = arith.constant 2 : index
    %c0_42 = arith.constant 0 : index
    %c0_43 = arith.constant 0 : index
    %251 = vector.load %arg4[%c2_41, %c0_42, %c0_43] : memref<6x64x64xf32, #tpu.memory_space<vmem>>, vector<1x64x64xf32>
    %252 = vector.shape_cast %251 : vector<1x64x64xf32> to vector<64x64xf32>
    %c3_44 = arith.constant 3 : index
    %c0_45 = arith.constant 0 : index
    %c0_46 = arith.constant 0 : index
    %253 = vector.load %arg4[%c3_44, %c0_45, %c0_46] : memref<6x64x64xf32, #tpu.memory_space<vmem>>, vector<1x64x64xf32>
    %254 = vector.shape_cast %253 : vector<1x64x64xf32> to vector<64x64xf32>
    %c1_47 = arith.constant 1 : index
    %c0_48 = arith.constant 0 : index
    %c0_49 = arith.constant 0 : index
    %255 = vector.load %arg5[%c1_47, %c0_48, %c0_49] : memref<4x1x64xf32, #tpu.memory_space<vmem>>, vector<1x1x64xf32>
    %256 = vector.shape_cast %255 : vector<1x1x64xf32> to vector<1x64xf32>
    %cst_50 = arith.constant dense<0.000000e+00> : vector<256x64xf32>
    %257 = tpu.matmul %131, %252, %cst_50 {dimension_numbers = #tpu.dot_dimension_numbers<[1], [0], [0], [1], [0, 0, 1, 1], [], []>} : vector<256x64xf32>, vector<64x64xf32>, vector<256x64xf32> -> vector<256x64xf32>
    %cst_51 = arith.constant dense<0.000000e+00> : vector<256x64xf32>
    %258 = tpu.matmul %250, %254, %cst_51 {dimension_numbers = #tpu.dot_dimension_numbers<[1], [0], [0], [1], [0, 0, 1, 1], [], []>} : vector<256x64xf32>, vector<64x64xf32>, vector<256x64xf32> -> vector<256x64xf32>
    %259 = arith.addf %257, %258 : vector<256x64xf32>
    %260 = vector.broadcast %256 : vector<1x64xf32> to vector<256x64xf32>
    %261 = arith.addf %259, %260 : vector<256x64xf32>
    %c4 = arith.constant 4 : index
    %c0_52 = arith.constant 0 : index
    %c0_53 = arith.constant 0 : index
    %262 = vector.load %arg4[%c4, %c0_52, %c0_53] : memref<6x64x64xf32, #tpu.memory_space<vmem>>, vector<1x64x64xf32>
    %263 = vector.shape_cast %262 : vector<1x64x64xf32> to vector<64x64xf32>
    %c2_54 = arith.constant 2 : index
    %c0_55 = arith.constant 0 : index
    %c0_56 = arith.constant 0 : index
    %264 = vector.load %arg5[%c2_54, %c0_55, %c0_56] : memref<4x1x64xf32, #tpu.memory_space<vmem>>, vector<1x1x64xf32>
    %265 = vector.shape_cast %264 : vector<1x1x64xf32> to vector<1x64xf32>
    %cst_57 = arith.constant dense<0.000000e+00> : vector<256x64xf32>
    %266 = tpu.matmul %261, %263, %cst_57 {dimension_numbers = #tpu.dot_dimension_numbers<[1], [0], [0], [1], [0, 0, 1, 1], [], []>} : vector<256x64xf32>, vector<64x64xf32>, vector<256x64xf32> -> vector<256x64xf32>
    %267 = vector.broadcast %265 : vector<1x64xf32> to vector<256x64xf32>
    %268 = arith.addf %266, %267 : vector<256x64xf32>
    %cst_58 = arith.constant 0.000000e+00 : f32
    %269 = vector.broadcast %cst_58 : f32 to vector<256x64xf32>
    %270 = arith.maximumf %268, %269 : vector<256x64xf32>
    %c5 = arith.constant 5 : index
    %c0_59 = arith.constant 0 : index
    %c0_60 = arith.constant 0 : index
    %271 = vector.load %arg4[%c5, %c0_59, %c0_60] : memref<6x64x64xf32, #tpu.memory_space<vmem>>, vector<1x64x64xf32>
    %272 = vector.shape_cast %271 : vector<1x64x64xf32> to vector<64x64xf32>
    %c3_61 = arith.constant 3 : index
    %c0_62 = arith.constant 0 : index
    %c0_63 = arith.constant 0 : index
    %273 = vector.load %arg5[%c3_61, %c0_62, %c0_63] : memref<4x1x64xf32, #tpu.memory_space<vmem>>, vector<1x1x64xf32>
    %274 = vector.shape_cast %273 : vector<1x1x64xf32> to vector<1x64xf32>
    %cst_64 = arith.constant dense<0.000000e+00> : vector<256x64xf32>
    %275 = tpu.matmul %270, %272, %cst_64 {dimension_numbers = #tpu.dot_dimension_numbers<[1], [0], [0], [1], [0, 0, 1, 1], [], []>} : vector<256x64xf32>, vector<64x64xf32>, vector<256x64xf32> -> vector<256x64xf32>
    %276 = vector.broadcast %274 : vector<1x64xf32> to vector<256x64xf32>
    %277 = arith.addf %275, %276 : vector<256x64xf32>
    %cst_65 = arith.constant 0.000000e+00 : f32
    %278 = vector.broadcast %cst_65 : f32 to vector<256x64xf32>
    %279 = arith.maximumf %277, %278 : vector<256x64xf32>
    %280 = vector.shape_cast %279 : vector<256x64xf32> to vector<16x16x64xf32>
    %281 = tpu.iota {dimensions = array<i32: 0>} : vector<16x16xi32>
    %282 = tpu.iota {dimensions = array<i32: 1>} : vector<16x16xi32>
    %283 = arith.cmpi eq, %281, %282 : vector<16x16xi32>
    %284 = arith.extui %283 : vector<16x16xi1> to vector<16x16xi32>
    %285 = arith.sitofp %284 : vector<16x16xi32> to vector<16x16xf32>
    %286 = vector.shape_cast %285 : vector<16x16xf32> to vector<16x16x1xf32>
    %287 = vector.broadcast %286 : vector<16x16x1xf32> to vector<16x16x64xf32>
    %288 = arith.mulf %280, %287 : vector<16x16x64xf32>
    %cst_66 = arith.constant dense<0.000000e+00> : vector<16x64xf32>
    %289 = vector.multi_reduction <add>, %288, %cst_66 [1] : vector<16x16x64xf32> to vector<16x64xf32>
    %290 = vector.extract_strided_slice %289 {offsets = [0, 0], sizes = [16, 32], strides = [1, 1]} : vector<16x64xf32> to vector<16x32xf32>
    %291 = vector.extract_strided_slice %289 {offsets = [0, 32], sizes = [16, 32], strides = [1, 1]} : vector<16x64xf32> to vector<16x32xf32>
    %cst_67 = arith.constant dense<0.000000e+00> : vector<16x16xf32>
    %292 = tpu.matmul %290, %291, %cst_67 {dimension_numbers = #tpu.dot_dimension_numbers<[1], [1], [0], [0], [0, 0, 1, 0], [], []>} : vector<16x32xf32>, vector<16x32xf32>, vector<16x16xf32> -> vector<16x16xf32>
    %c0_68 = arith.constant 0 : index
    %c0_69 = arith.constant 0 : index
    %c0_70 = arith.constant 0 : index
    %293 = vector.load %arg6[%c0_68, %c0_69, %c0_70] : memref<1x16x16xf32, #tpu.memory_space<vmem>>, vector<1x16x16xf32>
    %294 = vector.shape_cast %293 : vector<1x16x16xf32> to vector<16x16xf32>
    %295 = vector.shape_cast %292 : vector<16x16xf32> to vector<1x16x16xf32>
    tpu.vector_store %arg6[%c0_68, %c0_69, %c0_70], %295 {strides = array<i32>} : memref<1x16x16xf32, #tpu.memory_space<vmem>>, vector<1x16x16xf32>,
    return
  }
  func.func @transform_0(%arg0: i32) -> (i32, i32, i32) {
    %c0_i32 = arith.constant 0 : i32
    %c0_i32_0 = arith.constant 0 : i32
    %c0_i32_1 = arith.constant 0 : i32
    return %arg0, %c0_i32, %c0_i32_0 : i32, i32, i32
  }
  func.func @transform_1(%arg0: i32) -> (i32, i32, i32) {
    %c0_i32 = arith.constant 0 : i32
    %c0_i32_0 = arith.constant 0 : i32
    %c0_i32_1 = arith.constant 0 : i32
    %c0_i32_2 = arith.constant 0 : i32
    return %c0_i32, %c0_i32_0, %c0_i32_1 : i32, i32, i32
  }
  func.func @transform_2(%arg0: i32) -> (i32, i32, i32) {
    %c0_i32 = arith.constant 0 : i32
    %c0_i32_0 = arith.constant 0 : i32
    %c0_i32_1 = arith.constant 0 : i32
    %c0_i32_2 = arith.constant 0 : i32
    return %c0_i32, %c0_i32_0, %c0_i32_1 : i32, i32, i32
  }
  func.func @transform_3(%arg0: i32) -> (i32, i32, i32) {
    %c0_i32 = arith.constant 0 : i32
    %c0_i32_0 = arith.constant 0 : i32
    %c0_i32_1 = arith.constant 0 : i32
    %c0_i32_2 = arith.constant 0 : i32
    return %c0_i32, %c0_i32_0, %c0_i32_1 : i32, i32, i32
  }
  func.func @transform_4(%arg0: i32) -> (i32, i32, i32) {
    %c0_i32 = arith.constant 0 : i32
    %c0_i32_0 = arith.constant 0 : i32
    %c0_i32_1 = arith.constant 0 : i32
    %c0_i32_2 = arith.constant 0 : i32
    return %c0_i32, %c0_i32_0, %c0_i32_1 : i32, i32, i32
  }
  func.func @transform_5(%arg0: i32) -> (i32, i32, i32) {
    %c0_i32 = arith.constant 0 : i32
    %c0_i32_0 = arith.constant 0 : i32
    %c0_i32_1 = arith.constant 0 : i32
    return %arg0, %c0_i32, %c0_i32_0 : i32, i32, i32
  }
}

</mosaic_0001>

<llo_original>
// kernel: siamese_forward.1
$region0: #{siamese_forward.1}
  #allocation0 [shape = 'u32[]', space=smem, size = 0x4, offset = 0x4, fixed_abs, tag = 'smem constant byte address 0x4 - core index']
  #allocation1 [shape = 'u32[144,128]{1,0:T(1,128)}', space=vmem, size = 0x12000, scoped, tag = 'internal scratch']
  %s0 = inlined_call_operand.vmem [shape: f32[2,256,64], index: 0, kind: input, shape index: {}]
  %s1 = inlined_call_operand.vmem [shape: f32[4,128,128], index: 1, kind: input, shape index: {}]
  %s2 = inlined_call_operand.vmem [shape: f32[4,1,128], index: 2, kind: input, shape index: {}]
  %s3 = inlined_call_operand.vmem [shape: f32[6,64,64], index: 3, kind: input, shape index: {}]
  %s4 = inlined_call_operand.vmem [shape: f32[4,1,64], index: 4, kind: input, shape index: {}]
  %s5 = inlined_call_operand.hbm [shape: f32[2,16,16], index: 5, kind: output, shape index: {}]
  %s6 = sld [smem:[#allocation0]]
  $region53: #{siamese_forward.1} parent=0
    _
  %s8 = ssub.s32 1, %s6
  %s9 = scalar_select 0, %s8, %s6
  $region1: #{siamese_forward.1} parent=0
    #allocation2 [shape = 'u8[16384]{0}', space=vmem, size = 0x4000, scoped, tag = 'output window, operand 0']
    #allocation3 [shape = 's32[2]{0}', space=sflag, size = 0x8, scoped, tag = 'scoped memory for siamese_forward.1']
    %10 = vsyncpa [#allocation3], 0
    %s11 = scalar_lea.sflag [#allocation3], 1
    %12 = vsyncpa %s11, 0
    loop: start=0, step=1, limit=4
    $region2: #{siamese_forward.1} parent=1 // loop_pre_header
      _
    $region3: #{siamese_forward.1} parent=1 // loop_header
      %s14 = sphi 0, %s18
      %p15 = scmp.ge.s32.totalorder %s14, 4
      %s24 = sphi 0, %s26
      %s27 = sphi 0, %s24
      %s28 = sphi 0, %s27
      %s44 = sphi 0, %s28
      %s48 = sphi 0, %s48
      %s50 = sphi 0, %s48
      %s51 = sphi 0, %s50
      %s65 = sphi 0, %s51
      %s69 = sphi 0, %s69
      %s71 = sphi 0, %s69
      %s72 = sphi 0, %s71
      %s86 = sphi 0, %s72
      %s90 = sphi 0, %s90
      %s92 = sphi 0, %s90
      %s93 = sphi 0, %s92
      %s107 = sphi 0, %s93
      %s111 = sphi 0, %s111
      %s113 = sphi 0, %s111
      %s114 = sphi 0, %s113
      %s128 = sphi 0, %s114
      %s134 = sphi 0, %s136
      %s137 = sphi 0, %s134
      %s138 = sphi 0, %s137
      %s154 = sphi 0, %s138
    $region4: #{siamese_forward.1} parent=1 // loop_header_branch
      %17 = sbr.rel (%p15) target = $region8
    $region5: #{siamese_forward.1} parent=1 // loop_body
      %s19 = ssub.s32 %s14, 1
      %s20 = ssub.s32 %s14, 2
      %s21 = sadd.s32 %s14, 1
      %s22 = ssub.s32 %s14, %s21
      %p23 = scmp.eq.s32.totalorder %s22, 0
      %s25 = sadd.s32 %s24, 1
      %s26 = scalar_select %p23, %s24, %s25
      %p29 = pneg %p23
      %p30 = scmp.eq.s32.totalorder %s14, 1
      %p31 = por %p29, %p30
      %p32 = scmp.ne.s32.totalorder %s24, %s27
      %p33 = scmp.eq.s32.totalorder %s14, 0
      %p34 = por %p32, %p33
      %p35 = scmp.ne.s32.totalorder %s24, %s27
      %p36 = scmp.eq.s32.totalorder %s19, 1
      %p37 = por %p35, %p36
      %p38 = scmp.ne.s32.totalorder %s27, %s28
      %p39 = scmp.eq.s32.totalorder %s19, 0
      %p40 = por %p38, %p39
      %p41 = scmp.ne.s32.totalorder %s27, %s28
      %p42 = scmp.eq.s32.totalorder %s20, 1
      %p43 = por %p41, %p42
      %p45 = scmp.ne.s32.totalorder %s28, %s44
      %p46 = scmp.eq.s32.totalorder %s20, 0
      %p47 = por %p45, %p46
      %s49 = sadd.s32 %s48, 1
      %p52 = scmp.eq.s32.totalorder %s14, 1
      %p53 = scmp.ne.s32.totalorder %s48, %s50
      %p54 = scmp.eq.s32.totalorder %s14, 0
      %p55 = por %p53, %p54
      %p56 = scmp.ne.s32.totalorder %s48, %s50
      %p57 = scmp.eq.s32.totalorder %s19, 1
      %p58 = por %p56, %p57
      %p59 = scmp.ne.s32.totalorder %s50, %s51
      %p60 = scmp.eq.s32.totalorder %s19, 0
      %p61 = por %p59, %p60
      %p62 = scmp.ne.s32.totalorder %s50, %s51
      %p63 = scmp.eq.s32.totalorder %s20, 1
      %p64 = por %p62, %p63
      %p66 = scmp.ne.s32.totalorder %s51, %s65
      %p67 = scmp.eq.s32.totalorder %s20, 0
      %p68 = por %p66, %p67
      %s70 = sadd.s32 %s69, 1
      %p73 = scmp.eq.s32.totalorder %s14, 1
      %p74 = scmp.ne.s32.totalorder %s69, %s71
      %p75 = scmp.eq.s32.totalorder %s14, 0
      %p76 = por %p74, %p75
      %p77 = scmp.ne.s32.totalorder %s69, %s71
      %p78 = scmp.eq.s32.totalorder %s19, 1
      %p79 = por %p77, %p78
      %p80 = scmp.ne.s32.totalorder %s71, %s72
      %p81 = scmp.eq.s32.totalorder %s19, 0
      %p82 = por %p80, %p81
      %p83 = scmp.ne.s32.totalorder %s71, %s72
      %p84 = scmp.eq.s32.totalorder %s20, 1
      %p85 = por %p83, %p84
      %p87 = scmp.ne.s32.totalorder %s72, %s86
      %p88 = scmp.eq.s32.totalorder %s20, 0
      %p89 = por %p87, %p88
      %s91 = sadd.s32 %s90, 1
      %p94 = scmp.eq.s32.totalorder %s14, 1
      %p95 = scmp.ne.s32.totalorder %s90, %s92
      %p96 = scmp.eq.s32.totalorder %s14, 0
      %p97 = por %p95, %p96
      %p98 = scmp.ne.s32.totalorder %s90, %s92
      %p99 = scmp.eq.s32.totalorder %s19, 1
      %p100 = por %p98, %p99
      %p101 = scmp.ne.s32.totalorder %s92, %s93
      %p102 = scmp.eq.s32.totalorder %s19, 0
      %p103 = por %p101, %p102
      %p104 = scmp.ne.s32.totalorder %s92, %s93
      %p105 = scmp.eq.s32.totalorder %s20, 1
      %p106 = por %p104, %p105
      %p108 = scmp.ne.s32.totalorder %s93, %s107
      %p109 = scmp.eq.s32.totalorder %s20, 0
      %p110 = por %p108, %p109
      %s112 = sadd.s32 %s111, 1
      %p115 = scmp.eq.s32.totalorder %s14, 1
      %p116 = scmp.ne.s32.totalorder %s111, %s113
      %p117 = scmp.eq.s32.totalorder %s14, 0
      %p118 = por %p116, %p117
      %p119 = scmp.ne.s32.totalorder %s111, %s113
      %p120 = scmp.eq.s32.totalorder %s19, 1
      %p121 = por %p119, %p120
      %p122 = scmp.ne.s32.totalorder %s113, %s114
      %p123 = scmp.eq.s32.totalorder %s19, 0
      %p124 = por %p122, %p123
      %p125 = scmp.ne.s32.totalorder %s113, %s114
      %p126 = scmp.eq.s32.totalorder %s20, 1
      %p127 = por %p125, %p126
      %p129 = scmp.ne.s32.totalorder %s114, %s128
      %p130 = scmp.eq.s32.totalorder %s20, 0
      %p131 = por %p129, %p130
      %s132 = ssub.s32 %s14, %s21
      %p133 = scmp.eq.s32.totalorder %s132, 0
      %s135 = sadd.s32 %s134, 1
      %s136 = scalar_select %p133, %s134, %s135
      %p139 = pneg %p133
      %p140 = scmp.eq.s32.totalorder %s14, 1
      %p141 = por %p139, %p140
      %p142 = scmp.ne.s32.totalorder %s134, %s137
      %p143 = scmp.eq.s32.totalorder %s14, 0
      %p144 = por %p142, %p143
      %p145 = scmp.ne.s32.totalorder %s134, %s137
      %p146 = scmp.eq.s32.totalorder %s19, 1
      %p147 = por %p145, %p146
      %p148 = scmp.ne.s32.totalorder %s137, %s138
      %p149 = scmp.eq.s32.totalorder %s19, 0
      %p150 = por %p148, %p149
      %p151 = scmp.ne.s32.totalorder %s137, %s138
      %p152 = scmp.eq.s32.totalorder %s20, 1
      %p153 = por %p151, %p152
      %p155 = scmp.ne.s32.totalorder %s138, %s154
      %p156 = scmp.eq.s32.totalorder %s20, 0
      %p157 = por %p155, %p156
      %p158 = scmp.le.s32.totalorder 1, %s14
      %p159 = scmp.lt.s32.totalorder %s14, 3
      %p160 = pnand %p158, %p159
      %p161 = pneg %p160
      // Predicated region
      $region9: #{siamese_forward.1} parent=5 // pred_check
        _
      $region10: #{siamese_forward.1} parent=5 // pred_check_branch
        %163 = sbr.rel (%p160) target = $region12
      $region11: #{siamese_forward.1} parent=5 // pred_region
        %s164 = ssub.s32 %s14, 1
        // Predicated region
        $region13: #{siamese_forward.1} parent=11 // pred_check
          %p165 = pneg %p61
        $region14: #{siamese_forward.1} parent=11 // pred_check_branch
          %167 = sbr.rel (%p165) target = $region16
        $region15: #{siamese_forward.1} parent=11 // pred_region
          _
        $region16: #{siamese_forward.1} parent=11 // pred_fallthru
          _
        // Predicated region
        $region17: #{siamese_forward.1} parent=11 // pred_check
          %p168 = pneg %p82
        $region18: #{siamese_forward.1} parent=11 // pred_check_branch
          %170 = sbr.rel (%p168) target = $region20
        $region19: #{siamese_forward.1} parent=11 // pred_region
          _
        $region20: #{siamese_forward.1} parent=11 // pred_fallthru
          _
        // Predicated region
        $region21: #{siamese_forward.1} parent=11 // pred_check
          %p171 = pneg %p103
        $region22: #{siamese_forward.1} parent=11 // pred_check_branch
          %173 = sbr.rel (%p171) target = $region24
        $region23: #{siamese_forward.1} parent=11 // pred_region
          _
        $region24: #{siamese_forward.1} parent=11 // pred_fallthru
          _
        // Predicated region
        $region25: #{siamese_forward.1} parent=11 // pred_check
          %p174 = pneg %p124
        $region26: #{siamese_forward.1} parent=11 // pred_check_branch
          %176 = sbr.rel (%p174) target = $region28
        $region27: #{siamese_forward.1} parent=11 // pred_region
          _
        $region28: #{siamese_forward.1} parent=11 // pred_fallthru
          _
      $region12: #{siamese_forward.1} parent=5 // pred_fallthru
        _
      %p177 = scmp.lt.s32.totalorder %s14, 2
      // Predicated region
      $region29: #{siamese_forward.1} parent=5 // pred_check
        %p178 = pneg %p177
      $region30: #{siamese_forward.1} parent=5 // pred_check_branch
        %180 = sbr.rel (%p178) target = $region32
      $region31: #{siamese_forward.1} parent=5 // pred_region
        // Predicated region
        $region33: #{siamese_forward.1} parent=31 // pred_check
          %p181 = pneg %p34
        $region34: #{siamese_forward.1} parent=31 // pred_check_branch
          %183 = sbr.rel (%p181) target = $region36
        $region35: #{siamese_forward.1} parent=31 // pred_region
          %p184 = scmp.lt.s32.totalorder %s14, 1
          %s185 = scalar_select %p184, %s14, 1
          %s186 = smul.addr %s185, 32
          %s187 = smul.addr %s186, 8
          %s188 = scalar_lea.vmem %s0, %s187
        $region36: #{siamese_forward.1} parent=31 // pred_fallthru
          _
      $region32: #{siamese_forward.1} parent=5 // pred_fallthru
        _
      %p189 = scmp.le.s32.totalorder 1, %s14
      %p190 = scmp.lt.s32.totalorder %s14, 3
      %p191 = pnand %p189, %p190
      %p192 = pneg %p191
      // Predicated region
      $region37: #{siamese_forward.1} parent=5 // pred_check
        _
      $region38: #{siamese_forward.1} parent=5 // pred_check_branch
        %194 = sbr.rel (%p191) target = $region40
      $region39: #{siamese_forward.1} parent=5 // pred_region
        %s195 = ssub.s32 %s14, 1
        %p196 = scmp.lt.s32.totalorder %s19, 1
        %s197 = scalar_select %p196, %s19, 1
        %s198 = smul.addr %s197, 32
        %s199 = smul.addr %s198, 8
        %s200 = scalar_lea.vmem %s0, %s199
        %p201 = pneg %p40
        %p202 = pneg %p37
        %p203 = pneg %p61
        %p204 = pneg %p58
        %p205 = pneg %p82
        %p206 = pneg %p79
        %p207 = pneg %p103
        %p208 = pneg %p100
        %p209 = pneg %p124
        %p210 = pneg %p121
        %p211 = pneg %p150
        %p212 = pneg %p147
        %s213 = sand.u32 %s137, 1
        %s214 = scalar_lea.sflag [#allocation3], %s213
        %s215 = sand.u32 %s137, 1
        %s216 = smul.addr %s215, 16
        %s217 = scalar_lea.vmem [#allocation2], %s216
        %p218 = scmp.lt.s32.totalorder %s19, 1
        %s219 = scalar_select %p218, %s19, 1
        %s220 = smul.addr %s219, 32
        %s221 = smul.addr %s220, 8
        %s222 = scalar_lea.vmem %s0, %s221
        %v223 = vld [vmem:[%s222] sm:$0xff]
        %v224 = vld [vmem:[%s222 + $0x8] sm:$0xff]
        %v225 = vld [vmem:[%s222 + $0x10] sm:$0xff]
        %v226 = vld [vmem:[%s222 + $0x18] sm:$0xff]
        %v227 = vld [vmem:[%s222 + $0x20] sm:$0xff]
        %v228 = vld [vmem:[%s222 + $0x28] sm:$0xff]
        %v229 = vld [vmem:[%s222 + $0x30] sm:$0xff]
        %v230 = vld [vmem:[%s222 + $0x38] sm:$0xff]
        %v231 = vld [vmem:[%s222 + $0x40] sm:$0xff]
        %v232 = vld [vmem:[%s222 + $0x48] sm:$0xff]
        %v233 = vld [vmem:[%s222 + $0x50] sm:$0xff]
        %v234 = vld [vmem:[%s222 + $0x58] sm:$0xff]
        %v235 = vld [vmem:[%s222 + $0x60] sm:$0xff]
        %v236 = vld [vmem:[%s222 + $0x68] sm:$0xff]
        %v237 = vld [vmem:[%s222 + $0x70] sm:$0xff]
        %v238 = vld [vmem:[%s222 + $0x78] sm:$0xff]
        %v239 = vld [vmem:[%s222 + $0x80] sm:$0xff]
        %v240 = vld [vmem:[%s222 + $0x88] sm:$0xff]
        %v241 = vld [vmem:[%s222 + $0x90] sm:$0xff]
        %v242 = vld [vmem:[%s222 + $0x98] sm:$0xff]
        %v243 = vld [vmem:[%s222 + $0xa0] sm:$0xff]
        %v244 = vld [vmem:[%s222 + $0xa8] sm:$0xff]
        %v245 = vld [vmem:[%s222 + $0xb0] sm:$0xff]
        %v246 = vld [vmem:[%s222 + $0xb8] sm:$0xff]
        %v247 = vld [vmem:[%s222 + $0xc0] sm:$0xff]
        %v248 = vld [vmem:[%s222 + $0xc8] sm:$0xff]
        %v249 = vld [vmem:[%s222 + $0xd0] sm:$0xff]
        %v250 = vld [vmem:[%s222 + $0xd8] sm:$0xff]
        %v251 = vld [vmem:[%s222 + $0xe0] sm:$0xff]
        %v252 = vld [vmem:[%s222 + $0xe8] sm:$0xff]
        %v253 = vld [vmem:[%s222 + $0xf0] sm:$0xff]
        %v254 = vld [vmem:[%s222 + $0xf8] sm:$0xff]
        %v255 = vld [vmem:[%s1] sm:$0xff]
        %v256 = vld [vmem:[%s1 + $0x8] sm:$0xff]
        %v257 = vld [vmem:[%s1 + $0x10] sm:$0xff]
        %v258 = vld [vmem:[%s1 + $0x18] sm:$0xff]
        %v259 = vld [vmem:[%s1 + $0x20] sm:$0xff]
        %v260 = vld [vmem:[%s1 + $0x28] sm:$0xff]
        %v261 = vld [vmem:[%s1 + $0x30] sm:$0xff]
        %v262 = vld [vmem:[%s1 + $0x38] sm:$0xff]
        %v263 = vld [vmem:[%s2] sm:$0x1]
        %v265 = vlaneseq
        %v266 = vshrl.u32 %v265, 7
        %v267 = vsub.s32 0, %v266
        %v268 = vrot.slane %v263, %v267
        %vm270 = vcmask 523264
        %v272 = vsel %vm270, %v223, 0
        %v275 = vsel %vm270, %v224, 0
        %v278 = vsel %vm270, %v225, 0
        %v281 = vsel %vm270, %v226, 0
        %v284 = vsel %vm270, %v227, 0
        %v287 = vsel %vm270, %v228, 0
        %v290 = vsel %vm270, %v229, 0
        %v293 = vsel %vm270, %v230, 0
        %v296 = vsel %vm270, %v231, 0
        %v299 = vsel %vm270, %v232, 0
        %v302 = vsel %vm270, %v233, 0
        %v305 = vsel %vm270, %v234, 0
        %v308 = vsel %vm270, %v235, 0
        %v311 = vsel %vm270, %v236, 0
        %v314 = vsel %vm270, %v237, 0
        %v317 = vsel %vm270, %v238, 0
        %v320 = vsel %vm270, %v239, 0
        %v323 = vsel %vm270, %v240, 0
        %v326 = vsel %vm270, %v241, 0
        %v329 = vsel %vm270, %v242, 0
        %v332 = vsel %vm270, %v243, 0
        %v335 = vsel %vm270, %v244, 0
        %v338 = vsel %vm270, %v245, 0
        %v341 = vsel %vm270, %v246, 0
        %v344 = vsel %vm270, %v247, 0
        %v347 = vsel %vm270, %v248, 0
        %v350 = vsel %vm270, %v249, 0
        %v353 = vsel %vm270, %v250, 0
        %v356 = vsel %vm270, %v251, 0
        %v359 = vsel %vm270, %v252, 0
        %v362 = vsel %vm270, %v253, 0
        %v365 = vsel %vm270, %v254, 0
        %367 = vmatprep.subr.mxu0 0.0
        %368 = vmatpush1.msra.mxu0 0.0
        %369 = vmatprep.subr.mxu0 0.0
        %370 = vmatpush1.msra.mxu0 0.0
        %371 = vmatprep.subr.mxu0 0.0
        %372 = vmatpush1.msra.mxu0 0.0
        %373 = vmatprep.subr.mxu0 0.0
        %374 = vmatpush1.msra.mxu0 0.0
        %375 = vmatprep.subr.mxu0 0.0
        %376 = vmatpush1.msra.mxu0 0.0
        %377 = vmatprep.subr.mxu0 0.0
        %378 = vmatpush1.msra.mxu0 0.0
        %379 = vmatprep.subr.mxu0 0.0
        %380 = vmatpush1.msra.mxu0 0.0
        %381 = vmatprep.subr.mxu0 0.0
        %382 = vmatpush1.msra.mxu0 0.0
        %383 = vmatprep.subr.mxu0 0.0
        %384 = vmatpush1.msra.mxu0 %v262
        %385 = vmatprep.subr.mxu0 0.0
        %386 = vmatpush1.msra.mxu0 %v261
        %387 = vmatprep.subr.mxu0 0.0
        %388 = vmatpush1.msra.mxu0 %v260
        %389 = vmatprep.subr.mxu0 0.0
        %390 = vmatpush1.msra.mxu0 %v259
        %391 = vmatprep.subr.mxu0 0.0
        %392 = vmatpush1.msra.mxu0 %v258
        %393 = vmatprep.subr.mxu0 0.0
        %394 = vmatpush1.msra.mxu0 %v257
        %395 = vmatprep.subr.mxu0 0.0
        %396 = vmatpush1.msra.mxu0 %v256
        %397 = vmatprep.subr.mxu0 0.0
        %398 = vmatpush1.msra.mxu0 %v255
        %399 = vmatprep.subr.mxu0 0.0
        %400 = vmatpush2.msra.mxu0 0.0
        %401 = vmatprep.subr.mxu0 0.0
        %402 = vmatpush2.msra.mxu0 0.0
        %403 = vmatprep.subr.mxu0 0.0
        %404 = vmatpush2.msra.mxu0 0.0
        %405 = vmatprep.subr.mxu0 0.0
        %406 = vmatpush2.msra.mxu0 0.0
        %407 = vmatprep.subr.mxu0 0.0
        %408 = vmatpush2.msra.mxu0 0.0
        %409 = vmatprep.subr.mxu0 0.0
        %410 = vmatpush2.msra.mxu0 0.0
        %411 = vmatprep.subr.mxu0 0.0
        %412 = vmatpush2.msra.mxu0 0.0
        %413 = vmatprep.subr.mxu0 0.0
        %414 = vmatpush2.msra.mxu0 0.0
        %415 = vmatprep.subr.mxu0 0.0
        %416 = vmatpush2.msra.mxu0 0.0
        %417 = vmatprep.subr.mxu0 0.0
        %418 = vmatpush2.msra.mxu0 0.0
        %419 = vmatprep.subr.mxu0 0.0
        %420 = vmatpush2.msra.mxu0 0.0
        %421 = vmatprep.subr.mxu0 0.0
        %422 = vmatpush2.msra.mxu0 0.0
        %423 = vmatprep.subr.mxu0 0.0
        %424 = vmatpush2.msra.mxu0 0.0
        %425 = vmatprep.subr.mxu0 0.0
        %426 = vmatpush2.msra.mxu0 0.0
        %427 = vmatprep.subr.mxu0 0.0
        %428 = vmatpush2.msra.mxu0 0.0
        %429 = vmatprep.subr.mxu0 0.0
        %430 = vmatpush2.msra.mxu0 0.0
        %431 = vmatprep.mubr.f32.mxu0 0.0
        %432 = vmatmul.mubr.f32.gmra.mxu0 %v272
        %v433 = vpop.f32.mrf.mxu0
        %v434 = vadd.f32 %v268, %v433
        %v435 = vpop.f32.mrf.mxu0
        %436 = vmatprep.mubr.f32.mxu0 0.0
        %437 = vmatmul.mubr.f32.gmra.mxu0 %v275
        %v438 = vpop.f32.mrf.mxu0
        %v439 = vadd.f32 %v268, %v438
        %v440 = vpop.f32.mrf.mxu0
        %441 = vmatprep.mubr.f32.mxu0 0.0
        %442 = vmatmul.mubr.f32.gmra.mxu0 %v278
        %v443 = vpop.f32.mrf.mxu0
        %v444 = vadd.f32 %v268, %v443
        %v445 = vpop.f32.mrf.mxu0
        %446 = vmatprep.mubr.f32.mxu0 0.0
        %447 = vmatmul.mubr.f32.gmra.mxu0 %v281
        %v448 = vpop.f32.mrf.mxu0
        %v449 = vadd.f32 %v268, %v448
        %v450 = vpop.f32.mrf.mxu0
        %451 = vmatprep.mubr.f32.mxu0 0.0
        %452 = vmatmul.mubr.f32.gmra.mxu0 %v284
        %v453 = vpop.f32.mrf.mxu0
        %v454 = vadd.f32 %v268, %v453
        %v455 = vpop.f32.mrf.mxu0
        %456 = vmatprep.mubr.f32.mxu0 0.0
        %457 = vmatmul.mubr.f32.gmra.mxu0 %v287
        %v458 = vpop.f32.mrf.mxu0
        %v459 = vadd.f32 %v268, %v458
        %v460 = vpop.f32.mrf.mxu0
        %461 = vmatprep.mubr.f32.mxu0 0.0
        %462 = vmatmul.mubr.f32.gmra.mxu0 %v290
        %v463 = vpop.f32.mrf.mxu0
        %v464 = vadd.f32 %v268, %v463
        %v465 = vpop.f32.mrf.mxu0
        %466 = vmatprep.mubr.f32.mxu0 0.0
        %467 = vmatmul.mubr.f32.gmra.mxu0 %v293
        %v468 = vpop.f32.mrf.mxu0
        %v469 = vadd.f32 %v268, %v468
        %v470 = vpop.f32.mrf.mxu0
        %471 = vmatprep.mubr.f32.mxu0 0.0
        %472 = vmatmul.mubr.f32.gmra.mxu0 %v296
        %v473 = vpop.f32.mrf.mxu0
        %v474 = vadd.f32 %v268, %v473
        %v475 = vpop.f32.mrf.mxu0
        %476 = vmatprep.mubr.f32.mxu0 0.0
        %477 = vmatmul.mubr.f32.gmra.mxu0 %v299
        %v478 = vpop.f32.mrf.mxu0
        %v479 = vadd.f32 %v268, %v478
        %v480 = vpop.f32.mrf.mxu0
        %481 = vmatprep.mubr.f32.mxu0 0.0
        %482 = vmatmul.mubr.f32.gmra.mxu0 %v302
        %v483 = vpop.f32.mrf.mxu0
        %v484 = vadd.f32 %v268, %v483
        %v485 = vpop.f32.mrf.mxu0
        %486 = vmatprep.mubr.f32.mxu0 0.0
        %487 = vmatmul.mubr.f32.gmra.mxu0 %v305
        %v488 = vpop.f32.mrf.mxu0
        %v489 = vadd.f32 %v268, %v488
        %v490 = vpop.f32.mrf.mxu0
        %491 = vmatprep.mubr.f32.mxu0 0.0
        %492 = vmatmul.mubr.f32.gmra.mxu0 %v308
        %v493 = vpop.f32.mrf.mxu0
        %v494 = vadd.f32 %v268, %v493
        %v495 = vpop.f32.mrf.mxu0
        %496 = vmatprep.mubr.f32.mxu0 0.0
        %497 = vmatmul.mubr.f32.gmra.mxu0 %v311
        %v498 = vpop.f32.mrf.mxu0
        %v499 = vadd.f32 %v268, %v498
        %v500 = vpop.f32.mrf.mxu0
        %501 = vmatprep.mubr.f32.mxu0 0.0
        %502 = vmatmul.mubr.f32.gmra.mxu0 %v314
        %v503 = vpop.f32.mrf.mxu0
        %v504 = vadd.f32 %v268, %v503
        %v505 = vpop.f32.mrf.mxu0
        %506 = vmatprep.mubr.f32.mxu0 0.0
        %507 = vmatmul.mubr.f32.gmra.mxu0 %v317
        %v508 = vpop.f32.mrf.mxu0
        %v509 = vadd.f32 %v268, %v508
        %v510 = vpop.f32.mrf.mxu0
        %511 = vmatprep.mubr.f32.mxu0 0.0
        %512 = vmatmul.mubr.f32.gmra.mxu0 %v320
        %v513 = vpop.f32.mrf.mxu0
        %v514 = vadd.f32 %v268, %v513
        %v515 = vpop.f32.mrf.mxu0
        %516 = vmatprep.mubr.f32.mxu0 0.0
        %517 = vmatmul.mubr.f32.gmra.mxu0 %v323
        %v518 = vpop.f32.mrf.mxu0
        %v519 = vadd.f32 %v268, %v518
        %v520 = vpop.f32.mrf.mxu0
        %521 = vmatprep.mubr.f32.mxu0 0.0
        %522 = vmatmul.mubr.f32.gmra.mxu0 %v326
        %v523 = vpop.f32.mrf.mxu0
        %v524 = vadd.f32 %v268, %v523
        %v525 = vpop.f32.mrf.mxu0
        %526 = vmatprep.mubr.f32.mxu0 0.0
        %527 = vmatmul.mubr.f32.gmra.mxu0 %v329
        %v528 = vpop.f32.mrf.mxu0
        %v529 = vadd.f32 %v268, %v528
        %v530 = vpop.f32.mrf.mxu0
        %531 = vmatprep.mubr.f32.mxu0 0.0
        %532 = vmatmul.mubr.f32.gmra.mxu0 %v332
        %v533 = vpop.f32.mrf.mxu0
        %v534 = vadd.f32 %v268, %v533
        %v535 = vpop.f32.mrf.mxu0
        %536 = vmatprep.mubr.f32.mxu0 0.0
        %537 = vmatmul.mubr.f32.gmra.mxu0 %v335
        %v538 = vpop.f32.mrf.mxu0
        %v539 = vadd.f32 %v268, %v538
        %v540 = vpop.f32.mrf.mxu0
        %541 = vmatprep.mubr.f32.mxu0 0.0
        %542 = vmatmul.mubr.f32.gmra.mxu0 %v338
        %v543 = vpop.f32.mrf.mxu0
        %v544 = vadd.f32 %v268, %v543
        %v545 = vpop.f32.mrf.mxu0
        %546 = vmatprep.mubr.f32.mxu0 0.0
        %547 = vmatmul.mubr.f32.gmra.mxu0 %v341
        %v548 = vpop.f32.mrf.mxu0
        %v549 = vadd.f32 %v268, %v548
        %v550 = vpop.f32.mrf.mxu0
        %551 = vmatprep.mubr.f32.mxu0 0.0
        %552 = vmatmul.mubr.f32.gmra.mxu0 %v344
        %v553 = vpop.f32.mrf.mxu0
        %v554 = vadd.f32 %v268, %v553
        %v555 = vpop.f32.mrf.mxu0
        %556 = vmatprep.mubr.f32.mxu0 0.0
        %557 = vmatmul.mubr.f32.gmra.mxu0 %v347
        %v558 = vpop.f32.mrf.mxu0
        %v559 = vadd.f32 %v268, %v558
        %v560 = vpop.f32.mrf.mxu0
        %561 = vmatprep.mubr.f32.mxu0 0.0
        %562 = vmatmul.mubr.f32.gmra.mxu0 %v350
        %v563 = vpop.f32.mrf.mxu0
        %v564 = vadd.f32 %v268, %v563
        %v565 = vpop.f32.mrf.mxu0
        %566 = vmatprep.mubr.f32.mxu0 0.0
        %567 = vmatmul.mubr.f32.gmra.mxu0 %v353
        %v568 = vpop.f32.mrf.mxu0
        %v569 = vadd.f32 %v268, %v568
        %v570 = vpop.f32.mrf.mxu0
        %571 = vmatprep.mubr.f32.mxu0 0.0
        %572 = vmatmul.mubr.f32.gmra.mxu0 %v356
        %v573 = vpop.f32.mrf.mxu0
        %v574 = vadd.f32 %v268, %v573
        %v575 = vpop.f32.mrf.mxu0
        %576 = vmatprep.mubr.f32.mxu0 0.0
        %577 = vmatmul.mubr.f32.gmra.mxu0 %v359
        %v578 = vpop.f32.mrf.mxu0
        %v579 = vadd.f32 %v268, %v578
        %v580 = vpop.f32.mrf.mxu0
        %581 = vmatprep.mubr.f32.mxu0 0.0
        %582 = vmatmul.mubr.f32.gmra.mxu0 %v362
        %v583 = vpop.f32.mrf.mxu0
        %v584 = vadd.f32 %v268, %v583
        %v585 = vpop.f32.mrf.mxu0
        %586 = vmatprep.mubr.f32.mxu0 0.0
        %587 = vmatmul.mubr.f32.gmra.mxu0 %v365
        %v588 = vpop.f32.mrf.mxu0
        %v589 = vadd.f32 %v268, %v588
        %v590 = vpop.f32.mrf.mxu0
        %591 = vdwg.mxu0
        %v592 = vmax.f32 %v434, 0.0
        %v593 = vmax.f32 %v439, 0.0
        %v594 = vmax.f32 %v444, 0.0
        %v595 = vmax.f32 %v449, 0.0
        %v596 = vmax.f32 %v454, 0.0
        %v597 = vmax.f32 %v459, 0.0
        %v598 = vmax.f32 %v464, 0.0
        %v599 = vmax.f32 %v469, 0.0
        %v600 = vmax.f32 %v474, 0.0
        %v601 = vmax.f32 %v479, 0.0
        %v602 = vmax.f32 %v484, 0.0
        %v603 = vmax.f32 %v489, 0.0
        %v604 = vmax.f32 %v494, 0.0
        %v605 = vmax.f32 %v499, 0.0
        %v606 = vmax.f32 %v504, 0.0
        %v607 = vmax.f32 %v509, 0.0
        %v608 = vmax.f32 %v514, 0.0
        %v609 = vmax.f32 %v519, 0.0
        %v610 = vmax.f32 %v524, 0.0
        %v611 = vmax.f32 %v529, 0.0
        %v612 = vmax.f32 %v534, 0.0
        %v613 = vmax.f32 %v539, 0.0
        %v614 = vmax.f32 %v544, 0.0
        %v615 = vmax.f32 %v549, 0.0
        %v616 = vmax.f32 %v554, 0.0
        %v617 = vmax.f32 %v559, 0.0
        %v618 = vmax.f32 %v564, 0.0
        %v619 = vmax.f32 %v569, 0.0
        %v620 = vmax.f32 %v574, 0.0
        %v621 = vmax.f32 %v579, 0.0
        %v622 = vmax.f32 %v584, 0.0
        %v623 = vmax.f32 %v589, 0.0
        %s624 = scalar_lea.vmem %s1, 128
        %v625 = vld [vmem:[%s624] sm:$0xff]
        %v626 = vld [vmem:[%s624 + $0x8] sm:$0xff]
        %v627 = vld [vmem:[%s624 + $0x10] sm:$0xff]
        %v628 = vld [vmem:[%s624 + $0x18] sm:$0xff]
        %v629 = vld [vmem:[%s624 + $0x20] sm:$0xff]
        %v630 = vld [vmem:[%s624 + $0x28] sm:$0xff]
        %v631 = vld [vmem:[%s624 + $0x30] sm:$0xff]
        %v632 = vld [vmem:[%s624 + $0x38] sm:$0xff]
        %v633 = vld [vmem:[%s624 + $0x40] sm:$0xff]
        %v634 = vld [vmem:[%s624 + $0x48] sm:$0xff]
        %v635 = vld [vmem:[%s624 + $0x50] sm:$0xff]
        %v636 = vld [vmem:[%s624 + $0x58] sm:$0xff]
        %v637 = vld [vmem:[%s624 + $0x60] sm:$0xff]
        %v638 = vld [vmem:[%s624 + $0x68] sm:$0xff]
        %v639 = vld [vmem:[%s624 + $0x70] sm:$0xff]
        %v640 = vld [vmem:[%s624 + $0x78] sm:$0xff]
        %s641 = scalar_lea.vmem %s2, 1
        %v642 = vld [vmem:[%s641] sm:$0x1]
        %v644 = vlaneseq
        %v645 = vshrl.u32 %v644, 7
        %v646 = vsub.s32 0, %v645
        %v647 = vrot.slane %v642, %v646
        %649 = vmatprep.subr.mxu0 0.0
        %650 = vmatpush1.msra.mxu0 %v640
        %651 = vmatprep.subr.mxu0 0.0
        %652 = vmatpush1.msra.mxu0 %v639
        %653 = vmatprep.subr.mxu0 0.0
        %654 = vmatpush1.msra.mxu0 %v638
        %655 = vmatprep.subr.mxu0 0.0
        %656 = vmatpush1.msra.mxu0 %v637
        %657 = vmatprep.subr.mxu0 0.0
        %658 = vmatpush1.msra.mxu0 %v636
        %659 = vmatprep.subr.mxu0 0.0
        %660 = vmatpush1.msra.mxu0 %v635
        %661 = vmatprep.subr.mxu0 0.0
        %662 = vmatpush1.msra.mxu0 %v634
        %663 = vmatprep.subr.mxu0 0.0
        %664 = vmatpush1.msra.mxu0 %v633
        %665 = vmatprep.subr.mxu0 0.0
        %666 = vmatpush1.msra.mxu0 %v632
        %667 = vmatprep.subr.mxu0 0.0
        %668 = vmatpush1.msra.mxu0 %v631
        %669 = vmatprep.subr.mxu0 0.0
        %670 = vmatpush1.msra.mxu0 %v630
        %671 = vmatprep.subr.mxu0 0.0
        %672 = vmatpush1.msra.mxu0 %v629
        %673 = vmatprep.subr.mxu0 0.0
        %674 = vmatpush1.msra.mxu0 %v628
        %675 = vmatprep.subr.mxu0 0.0
        %676 = vmatpush1.msra.mxu0 %v627
        %677 = vmatprep.subr.mxu0 0.0
        %678 = vmatpush1.msra.mxu0 %v626
        %679 = vmatprep.subr.mxu0 0.0
        %680 = vmatpush1.msra.mxu0 %v625
        %681 = vmatprep.subr.mxu0 0.0
        %682 = vmatpush2.msra.mxu0 0.0
        %683 = vmatprep.subr.mxu0 0.0
        %684 = vmatpush2.msra.mxu0 0.0
        %685 = vmatprep.subr.mxu0 0.0
        %686 = vmatpush2.msra.mxu0 0.0
        %687 = vmatprep.subr.mxu0 0.0
        %688 = vmatpush2.msra.mxu0 0.0
        %689 = vmatprep.subr.mxu0 0.0
        %690 = vmatpush2.msra.mxu0 0.0
        %691 = vmatprep.subr.mxu0 0.0
        %692 = vmatpush2.msra.mxu0 0.0
        %693 = vmatprep.subr.mxu0 0.0
        %694 = vmatpush2.msra.mxu0 0.0
        %695 = vmatprep.subr.mxu0 0.0
        %696 = vmatpush2.msra.mxu0 0.0
        %697 = vmatprep.subr.mxu0 0.0
        %698 = vmatpush2.msra.mxu0 0.0
        %699 = vmatprep.subr.mxu0 0.0
        %700 = vmatpush2.msra.mxu0 0.0
        %701 = vmatprep.subr.mxu0 0.0
        %702 = vmatpush2.msra.mxu0 0.0
        %703 = vmatprep.subr.mxu0 0.0
        %704 = vmatpush2.msra.mxu0 0.0
        %705 = vmatprep.subr.mxu0 0.0
        %706 = vmatpush2.msra.mxu0 0.0
        %707 = vmatprep.subr.mxu0 0.0
        %708 = vmatpush2.msra.mxu0 0.0
        %709 = vmatprep.subr.mxu0 0.0
        %710 = vmatpush2.msra.mxu0 0.0
        %711 = vmatprep.subr.mxu0 0.0
        %712 = vmatpush2.msra.mxu0 0.0
        %713 = vmatprep.mubr.f32.mxu0 0.0
        %714 = vmatmul.mubr.f32.gmra.mxu0 %v592
        %v715 = vpop.f32.mrf.mxu0
        %v716 = vadd.f32 %v647, %v715
        %v717 = vpop.f32.mrf.mxu0
        %718 = vmatprep.mubr.f32.mxu0 0.0
        %719 = vmatmul.mubr.f32.gmra.mxu0 %v593
        %v720 = vpop.f32.mrf.mxu0
        %v721 = vadd.f32 %v647, %v720
        %v722 = vpop.f32.mrf.mxu0
        %723 = vmatprep.mubr.f32.mxu0 0.0
        %724 = vmatmul.mubr.f32.gmra.mxu0 %v594
        %v725 = vpop.f32.mrf.mxu0
        %v726 = vadd.f32 %v647, %v725
        %v727 = vpop.f32.mrf.mxu0
        %728 = vmatprep.mubr.f32.mxu0 0.0
        %729 = vmatmul.mubr.f32.gmra.mxu0 %v595
        %v730 = vpop.f32.mrf.mxu0
        %v731 = vadd.f32 %v647, %v730
        %v732 = vpop.f32.mrf.mxu0
        %733 = vmatprep.mubr.f32.mxu0 0.0
        %734 = vmatmul.mubr.f32.gmra.mxu0 %v596
        %v735 = vpop.f32.mrf.mxu0
        %v736 = vadd.f32 %v647, %v735
        %v737 = vpop.f32.mrf.mxu0
        %738 = vmatprep.mubr.f32.mxu0 0.0
        %739 = vmatmul.mubr.f32.gmra.mxu0 %v597
        %v740 = vpop.f32.mrf.mxu0
        %v741 = vadd.f32 %v647, %v740
        %v742 = vpop.f32.mrf.mxu0
        %743 = vmatprep.mubr.f32.mxu0 0.0
        %744 = vmatmul.mubr.f32.gmra.mxu0 %v598
        %v745 = vpop.f32.mrf.mxu0
        %v746 = vadd.f32 %v647, %v745
        %v747 = vpop.f32.mrf.mxu0
        %748 = vmatprep.mubr.f32.mxu0 0.0
        %749 = vmatmul.mubr.f32.gmra.mxu0 %v599
        %v750 = vpop.f32.mrf.mxu0
        %v751 = vadd.f32 %v647, %v750
        %v752 = vpop.f32.mrf.mxu0
        %753 = vmatprep.mubr.f32.mxu0 0.0
        %754 = vmatmul.mubr.f32.gmra.mxu0 %v600
        %v755 = vpop.f32.mrf.mxu0
        %v756 = vadd.f32 %v647, %v755
        %v757 = vpop.f32.mrf.mxu0
        %758 = vmatprep.mubr.f32.mxu0 0.0
        %759 = vmatmul.mubr.f32.gmra.mxu0 %v601
        %v760 = vpop.f32.mrf.mxu0
        %v761 = vadd.f32 %v647, %v760
        %v762 = vpop.f32.mrf.mxu0
        %763 = vmatprep.mubr.f32.mxu0 0.0
        %764 = vmatmul.mubr.f32.gmra.mxu0 %v602
        %v765 = vpop.f32.mrf.mxu0
        %v766 = vadd.f32 %v647, %v765
        %v767 = vpop.f32.mrf.mxu0
        %768 = vmatprep.mubr.f32.mxu0 0.0
        %769 = vmatmul.mubr.f32.gmra.mxu0 %v603
        %v770 = vpop.f32.mrf.mxu0
        %v771 = vadd.f32 %v647, %v770
        %v772 = vpop.f32.mrf.mxu0
        %773 = vmatprep.mubr.f32.mxu0 0.0
        %774 = vmatmul.mubr.f32.gmra.mxu0 %v604
        %v775 = vpop.f32.mrf.mxu0
        %v776 = vadd.f32 %v647, %v775
        %v777 = vpop.f32.mrf.mxu0
        %778 = vmatprep.mubr.f32.mxu0 0.0
        %779 = vmatmul.mubr.f32.gmra.mxu0 %v605
        %v780 = vpop.f32.mrf.mxu0
        %v781 = vadd.f32 %v647, %v780
        %v782 = vpop.f32.mrf.mxu0
        %783 = vmatprep.mubr.f32.mxu0 0.0
        %784 = vmatmul.mubr.f32.gmra.mxu0 %v606
        %v785 = vpop.f32.mrf.mxu0
        %v786 = vadd.f32 %v647, %v785
        %v787 = vpop.f32.mrf.mxu0
        %788 = vmatprep.mubr.f32.mxu0 0.0
        %789 = vmatmul.mubr.f32.gmra.mxu0 %v607
        %v790 = vpop.f32.mrf.mxu0
        %v791 = vadd.f32 %v647, %v790
        %v792 = vpop.f32.mrf.mxu0
        %793 = vmatprep.mubr.f32.mxu0 0.0
        %794 = vmatmul.mubr.f32.gmra.mxu0 %v608
        %v795 = vpop.f32.mrf.mxu0
        %v796 = vadd.f32 %v647, %v795
        %v797 = vpop.f32.mrf.mxu0
        %798 = vmatprep.mubr.f32.mxu0 0.0
        %799 = vmatmul.mubr.f32.gmra.mxu0 %v609
        %v800 = vpop.f32.mrf.mxu0
        %v801 = vadd.f32 %v647, %v800
        %v802 = vpop.f32.mrf.mxu0
        %803 = vmatprep.mubr.f32.mxu0 0.0
        %804 = vmatmul.mubr.f32.gmra.mxu0 %v610
        %v805 = vpop.f32.mrf.mxu0
        %v806 = vadd.f32 %v647, %v805
        %v807 = vpop.f32.mrf.mxu0
        %808 = vmatprep.mubr.f32.mxu0 0.0
        %809 = vmatmul.mubr.f32.gmra.mxu0 %v611
        %v810 = vpop.f32.mrf.mxu0
        %v811 = vadd.f32 %v647, %v810
        %v812 = vpop.f32.mrf.mxu0
        %813 = vmatprep.mubr.f32.mxu0 0.0
        %814 = vmatmul.mubr.f32.gmra.mxu0 %v612
        %v815 = vpop.f32.mrf.mxu0
        %v816 = vadd.f32 %v647, %v815
        %v817 = vpop.f32.mrf.mxu0
        %818 = vmatprep.mubr.f32.mxu0 0.0
        %819 = vmatmul.mubr.f32.gmra.mxu0 %v613
        %v820 = vpop.f32.mrf.mxu0
        %v821 = vadd.f32 %v647, %v820
        %v822 = vpop.f32.mrf.mxu0
        %823 = vmatprep.mubr.f32.mxu0 0.0
        %824 = vmatmul.mubr.f32.gmra.mxu0 %v614
        %v825 = vpop.f32.mrf.mxu0
        %v826 = vadd.f32 %v647, %v825
        %v827 = vpop.f32.mrf.mxu0
        %828 = vmatprep.mubr.f32.mxu0 0.0
        %829 = vmatmul.mubr.f32.gmra.mxu0 %v615
        %v830 = vpop.f32.mrf.mxu0
        %v831 = vadd.f32 %v647, %v830
        %v832 = vpop.f32.mrf.mxu0
        %833 = vmatprep.mubr.f32.mxu0 0.0
        %834 = vmatmul.mubr.f32.gmra.mxu0 %v616
        %v835 = vpop.f32.mrf.mxu0
        %v836 = vadd.f32 %v647, %v835
        %v837 = vpop.f32.mrf.mxu0
        %838 = vmatprep.mubr.f32.mxu0 0.0
        %839 = vmatmul.mubr.f32.gmra.mxu0 %v617
        %v840 = vpop.f32.mrf.mxu0
        %v841 = vadd.f32 %v647, %v840
        %v842 = vpop.f32.mrf.mxu0
        %843 = vmatprep.mubr.f32.mxu0 0.0
        %844 = vmatmul.mubr.f32.gmra.mxu0 %v618
        %v845 = vpop.f32.mrf.mxu0
        %v846 = vadd.f32 %v647, %v845
        %v847 = vpop.f32.mrf.mxu0
        %848 = vmatprep.mubr.f32.mxu0 0.0
        %849 = vmatmul.mubr.f32.gmra.mxu0 %v619
        %v850 = vpop.f32.mrf.mxu0
        %v851 = vadd.f32 %v647, %v850
        %v852 = vpop.f32.mrf.mxu0
        %853 = vmatprep.mubr.f32.mxu0 0.0
        %854 = vmatmul.mubr.f32.gmra.mxu0 %v620
        %v855 = vpop.f32.mrf.mxu0
        %v856 = vadd.f32 %v647, %v855
        %v857 = vpop.f32.mrf.mxu0
        %858 = vmatprep.mubr.f32.mxu0 0.0
        %859 = vmatmul.mubr.f32.gmra.mxu0 %v621
        %v860 = vpop.f32.mrf.mxu0
        %v861 = vadd.f32 %v647, %v860
        %v862 = vpop.f32.mrf.mxu0
        %863 = vmatprep.mubr.f32.mxu0 0.0
        %864 = vmatmul.mubr.f32.gmra.mxu0 %v622
        %v865 = vpop.f32.mrf.mxu0
        %v866 = vadd.f32 %v647, %v865
        %v867 = vpop.f32.mrf.mxu0
        %868 = vmatprep.mubr.f32.mxu0 0.0
        %869 = vmatmul.mubr.f32.gmra.mxu0 %v623
        %v870 = vpop.f32.mrf.mxu0
        %v871 = vadd.f32 %v647, %v870
        %v872 = vpop.f32.mrf.mxu0
        %873 = vdwg.mxu0
        %v874 = vmax.f32 %v716, 0.0
        %v875 = vmax.f32 %v721, 0.0
        %v876 = vmax.f32 %v726, 0.0
        %v877 = vmax.f32 %v731, 0.0
        %v878 = vmax.f32 %v736, 0.0
        %v879 = vmax.f32 %v741, 0.0
        %v880 = vmax.f32 %v746, 0.0
        %v881 = vmax.f32 %v751, 0.0
        %v882 = vmax.f32 %v756, 0.0
        %v883 = vmax.f32 %v761, 0.0
        %v884 = vmax.f32 %v766, 0.0
        %v885 = vmax.f32 %v771, 0.0
        %v886 = vmax.f32 %v776, 0.0
        %v887 = vmax.f32 %v781, 0.0
        %v888 = vmax.f32 %v786, 0.0
        %v889 = vmax.f32 %v791, 0.0
        %v890 = vmax.f32 %v796, 0.0
        %v891 = vmax.f32 %v801, 0.0
        %v892 = vmax.f32 %v806, 0.0
        %v893 = vmax.f32 %v811, 0.0
        %v894 = vmax.f32 %v816, 0.0
        %v895 = vmax.f32 %v821, 0.0
        %v896 = vmax.f32 %v826, 0.0
        %v897 = vmax.f32 %v831, 0.0
        %v898 = vmax.f32 %v836, 0.0
        %v899 = vmax.f32 %v841, 0.0
        %v900 = vmax.f32 %v846, 0.0
        %v901 = vmax.f32 %v851, 0.0
        %v902 = vmax.f32 %v856, 0.0
        %v903 = vmax.f32 %v861, 0.0
        %v904 = vmax.f32 %v866, 0.0
        %v905 = vmax.f32 %v871, 0.0
        %v906 = vlaneseq
        %v907 = vshrl.u32 %v906, 7
        %v908 = vsub.s32 0, %v907
        %v909 = vrot.slane %v874, %v908
        %v910 = vlaneseq
        %v911 = vshrl.u32 %v910, 7
        %v912 = vsub.s32 0, %v911
        %v913 = vrot.slane %v876, %v912
        %v914 = vlaneseq
        %v915 = vshrl.u32 %v914, 7
        %v916 = vsub.s32 0, %v915
        %v917 = vrot.slane %v878, %v916
        %v918 = vlaneseq
        %v919 = vshrl.u32 %v918, 7
        %v920 = vsub.s32 0, %v919
        %v921 = vrot.slane %v880, %v920
        %v922 = vlaneseq
        %v923 = vshrl.u32 %v922, 7
        %v924 = vsub.s32 0, %v923
        %v925 = vrot.slane %v882, %v924
        %v926 = vlaneseq
        %v927 = vshrl.u32 %v926, 7
        %v928 = vsub.s32 0, %v927
        %v929 = vrot.slane %v884, %v928
        %v930 = vlaneseq
        %v931 = vshrl.u32 %v930, 7
        %v932 = vsub.s32 0, %v931
        %v933 = vrot.slane %v886, %v932
        %v934 = vlaneseq
        %v935 = vshrl.u32 %v934, 7
        %v936 = vsub.s32 0, %v935
        %v937 = vrot.slane %v888, %v936
        %v938 = vlaneseq
        %v939 = vshrl.u32 %v938, 7
        %v940 = vsub.s32 0, %v939
        %v941 = vrot.slane %v890, %v940
        %v942 = vlaneseq
        %v943 = vshrl.u32 %v942, 7
        %v944 = vsub.s32 0, %v943
        %v945 = vrot.slane %v892, %v944
        %v946 = vlaneseq
        %v947 = vshrl.u32 %v946, 7
        %v948 = vsub.s32 0, %v947
        %v949 = vrot.slane %v894, %v948
        %v950 = vlaneseq
        %v951 = vshrl.u32 %v950, 7
        %v952 = vsub.s32 0, %v951
        %v953 = vrot.slane %v896, %v952
        %v954 = vlaneseq
        %v955 = vshrl.u32 %v954, 7
        %v956 = vsub.s32 0, %v955
        %v957 = vrot.slane %v898, %v956
        %v958 = vlaneseq
        %v959 = vshrl.u32 %v958, 7
        %v960 = vsub.s32 0, %v959
        %v961 = vrot.slane %v900, %v960
        %v962 = vlaneseq
        %v963 = vshrl.u32 %v962, 7
        %v964 = vsub.s32 0, %v963
        %v965 = vrot.slane %v902, %v964
        %v966 = vlaneseq
        %v967 = vshrl.u32 %v966, 7
        %v968 = vsub.s32 0, %v967
        %v969 = vrot.slane %v904, %v968
        %972 = vrot.lane.b32.xlu0 %v874, 64
        %v973 = vpop.permute.xlu0 %972
        %974 = vrot.lane.b32.xlu0 %v875, 64
        %v975 = vpop.permute.xlu0 %974
        %v978 = vmul.f32 %v909, %v973
        %v979 = vmul.f32 %v909, %v975
        %v980 = vmul.f32 %v913, %v973
        %v981 = vmul.f32 %v913, %v975
        %v982 = vmul.f32 %v917, %v973
        %v983 = vmul.f32 %v917, %v975
        %v984 = vmul.f32 %v921, %v973
        %v985 = vmul.f32 %v921, %v975
        %v986 = vmul.f32 %v925, %v973
        %v987 = vmul.f32 %v925, %v975
        %v988 = vmul.f32 %v929, %v973
        %v989 = vmul.f32 %v929, %v975
        %v990 = vmul.f32 %v933, %v973
        %v991 = vmul.f32 %v933, %v975
        %v992 = vmul.f32 %v937, %v973
        %v993 = vmul.f32 %v937, %v975
        %v994 = vmul.f32 %v941, %v973
        %v995 = vmul.f32 %v941, %v975
        %v996 = vmul.f32 %v945, %v973
        %v997 = vmul.f32 %v945, %v975
        %v998 = vmul.f32 %v949, %v973
        %v999 = vmul.f32 %v949, %v975
        %v1000 = vmul.f32 %v953, %v973
        %v1001 = vmul.f32 %v953, %v975
        %v1002 = vmul.f32 %v957, %v973
        %v1003 = vmul.f32 %v957, %v975
        %v1004 = vmul.f32 %v961, %v973
        %v1005 = vmul.f32 %v961, %v975
        %v1006 = vmul.f32 %v965, %v973
        %v1007 = vmul.f32 %v965, %v975
        %v1008 = vmul.f32 %v969, %v973
        %v1009 = vmul.f32 %v969, %v975
        %v1010 = vlaneseq
        %v1011 = vshrl.u32 %v1010, 7
        %v1012 = vsub.s32 1, %v1011
        %v1013 = vrot.slane %v874, %v1012
        %v1014 = vlaneseq
        %v1015 = vshrl.u32 %v1014, 7
        %v1016 = vsub.s32 1, %v1015
        %v1017 = vrot.slane %v876, %v1016
        %v1018 = vlaneseq
        %v1019 = vshrl.u32 %v1018, 7
        %v1020 = vsub.s32 1, %v1019
        %v1021 = vrot.slane %v878, %v1020
        %v1022 = vlaneseq
        %v1023 = vshrl.u32 %v1022, 7
        %v1024 = vsub.s32 1, %v1023
        %v1025 = vrot.slane %v880, %v1024
        %v1026 = vlaneseq
        %v1027 = vshrl.u32 %v1026, 7
        %v1028 = vsub.s32 1, %v1027
        %v1029 = vrot.slane %v882, %v1028
        %v1030 = vlaneseq
        %v1031 = vshrl.u32 %v1030, 7
        %v1032 = vsub.s32 1, %v1031
        %v1033 = vrot.slane %v884, %v1032
        %v1034 = vlaneseq
        %v1035 = vshrl.u32 %v1034, 7
        %v1036 = vsub.s32 1, %v1035
        %v1037 = vrot.slane %v886, %v1036
        %v1038 = vlaneseq
        %v1039 = vshrl.u32 %v1038, 7
        %v1040 = vsub.s32 1, %v1039
        %v1041 = vrot.slane %v888, %v1040
        %v1042 = vlaneseq
        %v1043 = vshrl.u32 %v1042, 7
        %v1044 = vsub.s32 1, %v1043
        %v1045 = vrot.slane %v890, %v1044
        %v1046 = vlaneseq
        %v1047 = vshrl.u32 %v1046, 7
        %v1048 = vsub.s32 1, %v1047
        %v1049 = vrot.slane %v892, %v1048
        %v1050 = vlaneseq
        %v1051 = vshrl.u32 %v1050, 7
        %v1052 = vsub.s32 1, %v1051
        %v1053 = vrot.slane %v894, %v1052
        %v1054 = vlaneseq
        %v1055 = vshrl.u32 %v1054, 7
        %v1056 = vsub.s32 1, %v1055
        %v1057 = vrot.slane %v896, %v1056
        %v1058 = vlaneseq
        %v1059 = vshrl.u32 %v1058, 7
        %v1060 = vsub.s32 1, %v1059
        %v1061 = vrot.slane %v898, %v1060
        %v1062 = vlaneseq
        %v1063 = vshrl.u32 %v1062, 7
        %v1064 = vsub.s32 1, %v1063
        %v1065 = vrot.slane %v900, %v1064
        %v1066 = vlaneseq
        %v1067 = vshrl.u32 %v1066, 7
        %v1068 = vsub.s32 1, %v1067
        %v1069 = vrot.slane %v902, %v1068
        %v1070 = vlaneseq
        %v1071 = vshrl.u32 %v1070, 7
        %v1072 = vsub.s32 1, %v1071
        %v1073 = vrot.slane %v904, %v1072
        %1076 = vrot.lane.b32.xlu0 %v876, 64
        %v1077 = vpop.permute.xlu0 %1076
        %1078 = vrot.lane.b32.xlu0 %v877, 64
        %v1079 = vpop.permute.xlu0 %1078
        %v1082 = vmul.f32 %v1013, %v1077
        %v1083 = vmul.f32 %v1013, %v1079
        %v1084 = vmul.f32 %v1017, %v1077
        %v1085 = vmul.f32 %v1017, %v1079
        %v1086 = vmul.f32 %v1021, %v1077
        %v1087 = vmul.f32 %v1021, %v1079
        %v1088 = vmul.f32 %v1025, %v1077
        %v1089 = vmul.f32 %v1025, %v1079
        %v1090 = vmul.f32 %v1029, %v1077
        %v1091 = vmul.f32 %v1029, %v1079
        %v1092 = vmul.f32 %v1033, %v1077
        %v1093 = vmul.f32 %v1033, %v1079
        %v1094 = vmul.f32 %v1037, %v1077
        %v1095 = vmul.f32 %v1037, %v1079
        %v1096 = vmul.f32 %v1041, %v1077
        %v1097 = vmul.f32 %v1041, %v1079
        %v1098 = vmul.f32 %v1045, %v1077
        %v1099 = vmul.f32 %v1045, %v1079
        %v1100 = vmul.f32 %v1049, %v1077
        %v1101 = vmul.f32 %v1049, %v1079
        %v1102 = vmul.f32 %v1053, %v1077
        %v1103 = vmul.f32 %v1053, %v1079
        %v1104 = vmul.f32 %v1057, %v1077
        %v1105 = vmul.f32 %v1057, %v1079
        %v1106 = vmul.f32 %v1061, %v1077
        %v1107 = vmul.f32 %v1061, %v1079
        %v1108 = vmul.f32 %v1065, %v1077
        %v1109 = vmul.f32 %v1065, %v1079
        %v1110 = vmul.f32 %v1069, %v1077
        %v1111 = vmul.f32 %v1069, %v1079
        %v1112 = vmul.f32 %v1073, %v1077
        %v1113 = vmul.f32 %v1073, %v1079
        %v1114 = vadd.f32 %v978, %v1082
        %v1115 = vadd.f32 %v979, %v1083
        %v1116 = vadd.f32 %v980, %v1084
        %v1117 = vadd.f32 %v981, %v1085
        %v1118 = vadd.f32 %v982, %v1086
        %v1119 = vadd.f32 %v983, %v1087
        %v1120 = vadd.f32 %v984, %v1088
        %v1121 = vadd.f32 %v985, %v1089
        %v1122 = vadd.f32 %v986, %v1090
        %v1123 = vadd.f32 %v987, %v1091
        %v1124 = vadd.f32 %v988, %v1092
        %v1125 = vadd.f32 %v989, %v1093
        %v1126 = vadd.f32 %v990, %v1094
        %v1127 = vadd.f32 %v991, %v1095
        %v1128 = vadd.f32 %v992, %v1096
        %v1129 = vadd.f32 %v993, %v1097
        %v1130 = vadd.f32 %v994, %v1098
        %v1131 = vadd.f32 %v995, %v1099
        %v1132 = vadd.f32 %v996, %v1100
        %v1133 = vadd.f32 %v997, %v1101
        %v1134 = vadd.f32 %v998, %v1102
        %v1135 = vadd.f32 %v999, %v1103
        %v1136 = vadd.f32 %v1000, %v1104
        %v1137 = vadd.f32 %v1001, %v1105
        %v1138 = vadd.f32 %v1002, %v1106
        %v1139 = vadd.f32 %v1003, %v1107
        %v1140 = vadd.f32 %v1004, %v1108
        %v1141 = vadd.f32 %v1005, %v1109
        %v1142 = vadd.f32 %v1006, %v1110
        %v1143 = vadd.f32 %v1007, %v1111
        %v1144 = vadd.f32 %v1008, %v1112
        %v1145 = vadd.f32 %v1009, %v1113
        %v1146 = vlaneseq
        %v1147 = vshrl.u32 %v1146, 7
        %v1148 = vsub.s32 2, %v1147
        %v1149 = vrot.slane %v874, %v1148
        %v1150 = vlaneseq
        %v1151 = vshrl.u32 %v1150, 7
        %v1152 = vsub.s32 2, %v1151
        %v1153 = vrot.slane %v876, %v1152
        %v1154 = vlaneseq
        %v1155 = vshrl.u32 %v1154, 7
        %v1156 = vsub.s32 2, %v1155
        %v1157 = vrot.slane %v878, %v1156
        %v1158 = vlaneseq
        %v1159 = vshrl.u32 %v1158, 7
        %v1160 = vsub.s32 2, %v1159
        %v1161 = vrot.slane %v880, %v1160
        %v1162 = vlaneseq
        %v1163 = vshrl.u32 %v1162, 7
        %v1164 = vsub.s32 2, %v1163
        %v1165 = vrot.slane %v882, %v1164
        %v1166 = vlaneseq
        %v1167 = vshrl.u32 %v1166, 7
        %v1168 = vsub.s32 2, %v1167
        %v1169 = vrot.slane %v884, %v1168
        %v1170 = vlaneseq
        %v1171 = vshrl.u32 %v1170, 7
        %v1172 = vsub.s32 2, %v1171
        %v1173 = vrot.slane %v886, %v1172
        %v1174 = vlaneseq
        %v1175 = vshrl.u32 %v1174, 7
        %v1176 = vsub.s32 2, %v1175
        %v1177 = vrot.slane %v888, %v1176
        %v1178 = vlaneseq
        %v1179 = vshrl.u32 %v1178, 7
        %v1180 = vsub.s32 2, %v1179
        %v1181 = vrot.slane %v890, %v1180
        %v1182 = vlaneseq
        %v1183 = vshrl.u32 %v1182, 7
        %v1184 = vsub.s32 2, %v1183
        %v1185 = vrot.slane %v892, %v1184
        %v1186 = vlaneseq
        %v1187 = vshrl.u32 %v1186, 7
        %v1188 = vsub.s32 2, %v1187
        %v1189 = vrot.slane %v894, %v1188
        %v1190 = vlaneseq
        %v1191 = vshrl.u32 %v1190, 7
        %v1192 = vsub.s32 2, %v1191
        %v1193 = vrot.slane %v896, %v1192
        %v1194 = vlaneseq
        %v1195 = vshrl.u32 %v1194, 7
        %v1196 = vsub.s32 2, %v1195
        %v1197 = vrot.slane %v898, %v1196
        %v1198 = vlaneseq
        %v1199 = vshrl.u32 %v1198, 7
        %v1200 = vsub.s32 2, %v1199
        %v1201 = vrot.slane %v900, %v1200
        %v1202 = vlaneseq
        %v1203 = vshrl.u32 %v1202, 7
        %v1204 = vsub.s32 2, %v1203
        %v1205 = vrot.slane %v902, %v1204
        %v1206 = vlaneseq
        %v1207 = vshrl.u32 %v1206, 7
        %v1208 = vsub.s32 2, %v1207
        %v1209 = vrot.slane %v904, %v1208
        %1212 = vrot.lane.b32.xlu0 %v878, 64
        %v1213 = vpop.permute.xlu0 %1212
        %1214 = vrot.lane.b32.xlu0 %v879, 64
        %v1215 = vpop.permute.xlu0 %1214
        %v1218 = vmul.f32 %v1149, %v1213
        %v1219 = vmul.f32 %v1149, %v1215
        %v1220 = vmul.f32 %v1153, %v1213
        %v1221 = vmul.f32 %v1153, %v1215
        %v1222 = vmul.f32 %v1157, %v1213
        %v1223 = vmul.f32 %v1157, %v1215
        %v1224 = vmul.f32 %v1161, %v1213
        %v1225 = vmul.f32 %v1161, %v1215
        %v1226 = vmul.f32 %v1165, %v1213
        %v1227 = vmul.f32 %v1165, %v1215
        %v1228 = vmul.f32 %v1169, %v1213
        %v1229 = vmul.f32 %v1169, %v1215
        %v1230 = vmul.f32 %v1173, %v1213
        %v1231 = vmul.f32 %v1173, %v1215
        %v1232 = vmul.f32 %v1177, %v1213
        %v1233 = vmul.f32 %v1177, %v1215
        %v1234 = vmul.f32 %v1181, %v1213
        %v1235 = vmul.f32 %v1181, %v1215
        %v1236 = vmul.f32 %v1185, %v1213
        %v1237 = vmul.f32 %v1185, %v1215
        %v1238 = vmul.f32 %v1189, %v1213
        %v1239 = vmul.f32 %v1189, %v1215
        %v1240 = vmul.f32 %v1193, %v1213
        %v1241 = vmul.f32 %v1193, %v1215
        %v1242 = vmul.f32 %v1197, %v1213
        %v1243 = vmul.f32 %v1197, %v1215
        %v1244 = vmul.f32 %v1201, %v1213
        %v1245 = vmul.f32 %v1201, %v1215
        %v1246 = vmul.f32 %v1205, %v1213
        %v1247 = vmul.f32 %v1205, %v1215
        %v1248 = vmul.f32 %v1209, %v1213
        %v1249 = vmul.f32 %v1209, %v1215
        %v1250 = vadd.f32 %v1114, %v1218
        %v1251 = vadd.f32 %v1115, %v1219
        %v1252 = vadd.f32 %v1116, %v1220
        %v1253 = vadd.f32 %v1117, %v1221
        %v1254 = vadd.f32 %v1118, %v1222
        %v1255 = vadd.f32 %v1119, %v1223
        %v1256 = vadd.f32 %v1120, %v1224
        %v1257 = vadd.f32 %v1121, %v1225
        %v1258 = vadd.f32 %v1122, %v1226
        %v1259 = vadd.f32 %v1123, %v1227
        %v1260 = vadd.f32 %v1124, %v1228
        %v1261 = vadd.f32 %v1125, %v1229
        %v1262 = vadd.f32 %v1126, %v1230
        %v1263 = vadd.f32 %v1127, %v1231
        %v1264 = vadd.f32 %v1128, %v1232
        %v1265 = vadd.f32 %v1129, %v1233
        %v1266 = vadd.f32 %v1130, %v1234
        %v1267 = vadd.f32 %v1131, %v1235
        %v1268 = vadd.f32 %v1132, %v1236
        %v1269 = vadd.f32 %v1133, %v1237
        %v1270 = vadd.f32 %v1134, %v1238
        %v1271 = vadd.f32 %v1135, %v1239
        %v1272 = vadd.f32 %v1136, %v1240
        %v1273 = vadd.f32 %v1137, %v1241
        %v1274 = vadd.f32 %v1138, %v1242
        %v1275 = vadd.f32 %v1139, %v1243
        %v1276 = vadd.f32 %v1140, %v1244
        %v1277 = vadd.f32 %v1141, %v1245
        %v1278 = vadd.f32 %v1142, %v1246
        %v1279 = vadd.f32 %v1143, %v1247
        %v1280 = vadd.f32 %v1144, %v1248
        %v1281 = vadd.f32 %v1145, %v1249
        %v1282 = vlaneseq
        %v1283 = vshrl.u32 %v1282, 7
        %v1284 = vsub.s32 3, %v1283
        %v1285 = vrot.slane %v874, %v1284
        %v1286 = vlaneseq
        %v1287 = vshrl.u32 %v1286, 7
        %v1288 = vsub.s32 3, %v1287
        %v1289 = vrot.slane %v876, %v1288
        %v1290 = vlaneseq
        %v1291 = vshrl.u32 %v1290, 7
        %v1292 = vsub.s32 3, %v1291
        %v1293 = vrot.slane %v878, %v1292
        %v1294 = vlaneseq
        %v1295 = vshrl.u32 %v1294, 7
        %v1296 = vsub.s32 3, %v1295
        %v1297 = vrot.slane %v880, %v1296
        %v1298 = vlaneseq
        %v1299 = vshrl.u32 %v1298, 7
        %v1300 = vsub.s32 3, %v1299
        %v1301 = vrot.slane %v882, %v1300
        %v1302 = vlaneseq
        %v1303 = vshrl.u32 %v1302, 7
        %v1304 = vsub.s32 3, %v1303
        %v1305 = vrot.slane %v884, %v1304
        %v1306 = vlaneseq
        %v1307 = vshrl.u32 %v1306, 7
        %v1308 = vsub.s32 3, %v1307
        %v1309 = vrot.slane %v886, %v1308
        %v1310 = vlaneseq
        %v1311 = vshrl.u32 %v1310, 7
        %v1312 = vsub.s32 3, %v1311
        %v1313 = vrot.slane %v888, %v1312
        %v1314 = vlaneseq
        %v1315 = vshrl.u32 %v1314, 7
        %v1316 = vsub.s32 3, %v1315
        %v1317 = vrot.slane %v890, %v1316
        %v1318 = vlaneseq
        %v1319 = vshrl.u32 %v1318, 7
        %v1320 = vsub.s32 3, %v1319
        %v1321 = vrot.slane %v892, %v1320
        %v1322 = vlaneseq
        %v1323 = vshrl.u32 %v1322, 7
        %v1324 = vsub.s32 3, %v1323
        %v1325 = vrot.slane %v894, %v1324
        %v1326 = vlaneseq
        %v1327 = vshrl.u32 %v1326, 7
        %v1328 = vsub.s32 3, %v1327
        %v1329 = vrot.slane %v896, %v1328
        %v1330 = vlaneseq
        %v1331 = vshrl.u32 %v1330, 7
        %v1332 = vsub.s32 3, %v1331
        %v1333 = vrot.slane %v898, %v1332
        %v1334 = vlaneseq
        %v1335 = vshrl.u32 %v1334, 7
        %v1336 = vsub.s32 3, %v1335
        %v1337 = vrot.slane %v900, %v1336
        %v1338 = vlaneseq
        %v1339 = vshrl.u32 %v1338, 7
        %v1340 = vsub.s32 3, %v1339
        %v1341 = vrot.slane %v902, %v1340
        %v1342 = vlaneseq
        %v1343 = vshrl.u32 %v1342, 7
        %v1344 = vsub.s32 3, %v1343
        %v1345 = vrot.slane %v904, %v1344
        %1348 = vrot.lane.b32.xlu0 %v880, 64
        %v1349 = vpop.permute.xlu0 %1348
        %1350 = vrot.lane.b32.xlu0 %v881, 64
        %v1351 = vpop.permute.xlu0 %1350
        %v1354 = vmul.f32 %v1285, %v1349
        %v1355 = vmul.f32 %v1285, %v1351
        %v1356 = vmul.f32 %v1289, %v1349
        %v1357 = vmul.f32 %v1289, %v1351
        %v1358 = vmul.f32 %v1293, %v1349
        %v1359 = vmul.f32 %v1293, %v1351
        %v1360 = vmul.f32 %v1297, %v1349
        %v1361 = vmul.f32 %v1297, %v1351
        %v1362 = vmul.f32 %v1301, %v1349
        %v1363 = vmul.f32 %v1301, %v1351
        %v1364 = vmul.f32 %v1305, %v1349
        %v1365 = vmul.f32 %v1305, %v1351
        %v1366 = vmul.f32 %v1309, %v1349
        %v1367 = vmul.f32 %v1309, %v1351
        %v1368 = vmul.f32 %v1313, %v1349
        %v1369 = vmul.f32 %v1313, %v1351
        %v1370 = vmul.f32 %v1317, %v1349
        %v1371 = vmul.f32 %v1317, %v1351
        %v1372 = vmul.f32 %v1321, %v1349
        %v1373 = vmul.f32 %v1321, %v1351
        %v1374 = vmul.f32 %v1325, %v1349
        %v1375 = vmul.f32 %v1325, %v1351
        %v1376 = vmul.f32 %v1329, %v1349
        %v1377 = vmul.f32 %v1329, %v1351
        %v1378 = vmul.f32 %v1333, %v1349
        %v1379 = vmul.f32 %v1333, %v1351
        %v1380 = vmul.f32 %v1337, %v1349
        %v1381 = vmul.f32 %v1337, %v1351
        %v1382 = vmul.f32 %v1341, %v1349
        %v1383 = vmul.f32 %v1341, %v1351
        %v1384 = vmul.f32 %v1345, %v1349
        %v1385 = vmul.f32 %v1345, %v1351
        %v1386 = vadd.f32 %v1250, %v1354
        %v1387 = vadd.f32 %v1251, %v1355
        %v1388 = vadd.f32 %v1252, %v1356
        %v1389 = vadd.f32 %v1253, %v1357
        %v1390 = vadd.f32 %v1254, %v1358
        %v1391 = vadd.f32 %v1255, %v1359
        %v1392 = vadd.f32 %v1256, %v1360
        %v1393 = vadd.f32 %v1257, %v1361
        %v1394 = vadd.f32 %v1258, %v1362
        %v1395 = vadd.f32 %v1259, %v1363
        %v1396 = vadd.f32 %v1260, %v1364
        %v1397 = vadd.f32 %v1261, %v1365
        %v1398 = vadd.f32 %v1262, %v1366
        %v1399 = vadd.f32 %v1263, %v1367
        %v1400 = vadd.f32 %v1264, %v1368
        %v1401 = vadd.f32 %v1265, %v1369
        %v1402 = vadd.f32 %v1266, %v1370
        %v1403 = vadd.f32 %v1267, %v1371
        %v1404 = vadd.f32 %v1268, %v1372
        %v1405 = vadd.f32 %v1269, %v1373
        %v1406 = vadd.f32 %v1270, %v1374
        %v1407 = vadd.f32 %v1271, %v1375
        %v1408 = vadd.f32 %v1272, %v1376
        %v1409 = vadd.f32 %v1273, %v1377
        %v1410 = vadd.f32 %v1274, %v1378
        %v1411 = vadd.f32 %v1275, %v1379
        %v1412 = vadd.f32 %v1276, %v1380
        %v1413 = vadd.f32 %v1277, %v1381
        %v1414 = vadd.f32 %v1278, %v1382
        %v1415 = vadd.f32 %v1279, %v1383
        %v1416 = vadd.f32 %v1280, %v1384
        %v1417 = vadd.f32 %v1281, %v1385
        %v1418 = vlaneseq
        %v1419 = vshrl.u32 %v1418, 7
        %v1420 = vsub.s32 4, %v1419
        %v1421 = vrot.slane %v874, %v1420
        %v1422 = vlaneseq
        %v1423 = vshrl.u32 %v1422, 7
        %v1424 = vsub.s32 4, %v1423
        %v1425 = vrot.slane %v876, %v1424
        %v1426 = vlaneseq
        %v1427 = vshrl.u32 %v1426, 7
        %v1428 = vsub.s32 4, %v1427
        %v1429 = vrot.slane %v878, %v1428
        %v1430 = vlaneseq
        %v1431 = vshrl.u32 %v1430, 7
        %v1432 = vsub.s32 4, %v1431
        %v1433 = vrot.slane %v880, %v1432
        %v1434 = vlaneseq
        %v1435 = vshrl.u32 %v1434, 7
        %v1436 = vsub.s32 4, %v1435
        %v1437 = vrot.slane %v882, %v1436
        %v1438 = vlaneseq
        %v1439 = vshrl.u32 %v1438, 7
        %v1440 = vsub.s32 4, %v1439
        %v1441 = vrot.slane %v884, %v1440
        %v1442 = vlaneseq
        %v1443 = vshrl.u32 %v1442, 7
        %v1444 = vsub.s32 4, %v1443
        %v1445 = vrot.slane %v886, %v1444
        %v1446 = vlaneseq
        %v1447 = vshrl.u32 %v1446, 7
        %v1448 = vsub.s32 4, %v1447
        %v1449 = vrot.slane %v888, %v1448
        %v1450 = vlaneseq
        %v1451 = vshrl.u32 %v1450, 7
        %v1452 = vsub.s32 4, %v1451
        %v1453 = vrot.slane %v890, %v1452
        %v1454 = vlaneseq
        %v1455 = vshrl.u32 %v1454, 7
        %v1456 = vsub.s32 4, %v1455
        %v1457 = vrot.slane %v892, %v1456
        %v1458 = vlaneseq
        %v1459 = vshrl.u32 %v1458, 7
        %v1460 = vsub.s32 4, %v1459
        %v1461 = vrot.slane %v894, %v1460
        %v1462 = vlaneseq
        %v1463 = vshrl.u32 %v1462, 7
        %v1464 = vsub.s32 4, %v1463
        %v1465 = vrot.slane %v896, %v1464
        %v1466 = vlaneseq
        %v1467 = vshrl.u32 %v1466, 7
        %v1468 = vsub.s32 4, %v1467
        %v1469 = vrot.slane %v898, %v1468
        %v1470 = vlaneseq
        %v1471 = vshrl.u32 %v1470, 7
        %v1472 = vsub.s32 4, %v1471
        %v1473 = vrot.slane %v900, %v1472
        %v1474 = vlaneseq
        %v1475 = vshrl.u32 %v1474, 7
        %v1476 = vsub.s32 4, %v1475
        %v1477 = vrot.slane %v902, %v1476
        %v1478 = vlaneseq
        %v1479 = vshrl.u32 %v1478, 7
        %v1480 = vsub.s32 4, %v1479
        %v1481 = vrot.slane %v904, %v1480
        %1484 = vrot.lane.b32.xlu0 %v882, 64
        %v1485 = vpop.permute.xlu0 %1484
        %1486 = vrot.lane.b32.xlu0 %v883, 64
        %v1487 = vpop.permute.xlu0 %1486
        %v1490 = vmul.f32 %v1421, %v1485
        %v1491 = vmul.f32 %v1421, %v1487
        %v1492 = vmul.f32 %v1425, %v1485
        %v1493 = vmul.f32 %v1425, %v1487
        %v1494 = vmul.f32 %v1429, %v1485
        %v1495 = vmul.f32 %v1429, %v1487
        %v1496 = vmul.f32 %v1433, %v1485
        %v1497 = vmul.f32 %v1433, %v1487
        %v1498 = vmul.f32 %v1437, %v1485
        %v1499 = vmul.f32 %v1437, %v1487
        %v1500 = vmul.f32 %v1441, %v1485
        %v1501 = vmul.f32 %v1441, %v1487
        %v1502 = vmul.f32 %v1445, %v1485
        %v1503 = vmul.f32 %v1445, %v1487
        %v1504 = vmul.f32 %v1449, %v1485
        %v1505 = vmul.f32 %v1449, %v1487
        %v1506 = vmul.f32 %v1453, %v1485
        %v1507 = vmul.f32 %v1453, %v1487
        %v1508 = vmul.f32 %v1457, %v1485
        %v1509 = vmul.f32 %v1457, %v1487
        %v1510 = vmul.f32 %v1461, %v1485
        %v1511 = vmul.f32 %v1461, %v1487
        %v1512 = vmul.f32 %v1465, %v1485
        %v1513 = vmul.f32 %v1465, %v1487
        %v1514 = vmul.f32 %v1469, %v1485
        %v1515 = vmul.f32 %v1469, %v1487
        %v1516 = vmul.f32 %v1473, %v1485
        %v1517 = vmul.f32 %v1473, %v1487
        %v1518 = vmul.f32 %v1477, %v1485
        %v1519 = vmul.f32 %v1477, %v1487
        %v1520 = vmul.f32 %v1481, %v1485
        %v1521 = vmul.f32 %v1481, %v1487
        %v1522 = vadd.f32 %v1386, %v1490
        %v1523 = vadd.f32 %v1387, %v1491
        %v1524 = vadd.f32 %v1388, %v1492
        %v1525 = vadd.f32 %v1389, %v1493
        %v1526 = vadd.f32 %v1390, %v1494
        %v1527 = vadd.f32 %v1391, %v1495
        %v1528 = vadd.f32 %v1392, %v1496
        %v1529 = vadd.f32 %v1393, %v1497
        %v1530 = vadd.f32 %v1394, %v1498
        %v1531 = vadd.f32 %v1395, %v1499
        %v1532 = vadd.f32 %v1396, %v1500
        %v1533 = vadd.f32 %v1397, %v1501
        %v1534 = vadd.f32 %v1398, %v1502
        %v1535 = vadd.f32 %v1399, %v1503
        %v1536 = vadd.f32 %v1400, %v1504
        %v1537 = vadd.f32 %v1401, %v1505
        %v1538 = vadd.f32 %v1402, %v1506
        %v1539 = vadd.f32 %v1403, %v1507
        %v1540 = vadd.f32 %v1404, %v1508
        %v1541 = vadd.f32 %v1405, %v1509
        %v1542 = vadd.f32 %v1406, %v1510
        %v1543 = vadd.f32 %v1407, %v1511
        %v1544 = vadd.f32 %v1408, %v1512
        %v1545 = vadd.f32 %v1409, %v1513
        %v1546 = vadd.f32 %v1410, %v1514
        %v1547 = vadd.f32 %v1411, %v1515
        %v1548 = vadd.f32 %v1412, %v1516
        %v1549 = vadd.f32 %v1413, %v1517
        %v1550 = vadd.f32 %v1414, %v1518
        %v1551 = vadd.f32 %v1415, %v1519
        %v1552 = vadd.f32 %v1416, %v1520
        %v1553 = vadd.f32 %v1417, %v1521
        %v1554 = vlaneseq
        %v1555 = vshrl.u32 %v1554, 7
        %v1556 = vsub.s32 5, %v1555
        %v1557 = vrot.slane %v874, %v1556
        %v1558 = vlaneseq
        %v1559 = vshrl.u32 %v1558, 7
        %v1560 = vsub.s32 5, %v1559
        %v1561 = vrot.slane %v876, %v1560
        %v1562 = vlaneseq
        %v1563 = vshrl.u32 %v1562, 7
        %v1564 = vsub.s32 5, %v1563
        %v1565 = vrot.slane %v878, %v1564
        %v1566 = vlaneseq
        %v1567 = vshrl.u32 %v1566, 7
        %v1568 = vsub.s32 5, %v1567
        %v1569 = vrot.slane %v880, %v1568
        %v1570 = vlaneseq
        %v1571 = vshrl.u32 %v1570, 7
        %v1572 = vsub.s32 5, %v1571
        %v1573 = vrot.slane %v882, %v1572
        %v1574 = vlaneseq
        %v1575 = vshrl.u32 %v1574, 7
        %v1576 = vsub.s32 5, %v1575
        %v1577 = vrot.slane %v884, %v1576
        %v1578 = vlaneseq
        %v1579 = vshrl.u32 %v1578, 7
        %v1580 = vsub.s32 5, %v1579
        %v1581 = vrot.slane %v886, %v1580
        %v1582 = vlaneseq
        %v1583 = vshrl.u32 %v1582, 7
        %v1584 = vsub.s32 5, %v1583
        %v1585 = vrot.slane %v888, %v1584
        %v1586 = vlaneseq
        %v1587 = vshrl.u32 %v1586, 7
        %v1588 = vsub.s32 5, %v1587
        %v1589 = vrot.slane %v890, %v1588
        %v1590 = vlaneseq
        %v1591 = vshrl.u32 %v1590, 7
        %v1592 = vsub.s32 5, %v1591
        %v1593 = vrot.slane %v892, %v1592
        %v1594 = vlaneseq
        %v1595 = vshrl.u32 %v1594, 7
        %v1596 = vsub.s32 5, %v1595
        %v1597 = vrot.slane %v894, %v1596
        %v1598 = vlaneseq
        %v1599 = vshrl.u32 %v1598, 7
        %v1600 = vsub.s32 5, %v1599
        %v1601 = vrot.slane %v896, %v1600
        %v1602 = vlaneseq
        %v1603 = vshrl.u32 %v1602, 7
        %v1604 = vsub.s32 5, %v1603
        %v1605 = vrot.slane %v898, %v1604
        %v1606 = vlaneseq
        %v1607 = vshrl.u32 %v1606, 7
        %v1608 = vsub.s32 5, %v1607
        %v1609 = vrot.slane %v900, %v1608
        %v1610 = vlaneseq
        %v1611 = vshrl.u32 %v1610, 7
        %v1612 = vsub.s32 5, %v1611
        %v1613 = vrot.slane %v902, %v1612
        %v1614 = vlaneseq
        %v1615 = vshrl.u32 %v1614, 7
        %v1616 = vsub.s32 5, %v1615
        %v1617 = vrot.slane %v904, %v1616
        %1620 = vrot.lane.b32.xlu0 %v884, 64
        %v1621 = vpop.permute.xlu0 %1620
        %1622 = vrot.lane.b32.xlu0 %v885, 64
        %v1623 = vpop.permute.xlu0 %1622
        %v1626 = vmul.f32 %v1557, %v1621
        %v1627 = vmul.f32 %v1557, %v1623
        %v1628 = vmul.f32 %v1561, %v1621
        %v1629 = vmul.f32 %v1561, %v1623
        %v1630 = vmul.f32 %v1565, %v1621
        %v1631 = vmul.f32 %v1565, %v1623
        %v1632 = vmul.f32 %v1569, %v1621
        %v1633 = vmul.f32 %v1569, %v1623
        %v1634 = vmul.f32 %v1573, %v1621
        %v1635 = vmul.f32 %v1573, %v1623
        %v1636 = vmul.f32 %v1577, %v1621
        %v1637 = vmul.f32 %v1577, %v1623
        %v1638 = vmul.f32 %v1581, %v1621
        %v1639 = vmul.f32 %v1581, %v1623
        %v1640 = vmul.f32 %v1585, %v1621
        %v1641 = vmul.f32 %v1585, %v1623
        %v1642 = vmul.f32 %v1589, %v1621
        %v1643 = vmul.f32 %v1589, %v1623
        %v1644 = vmul.f32 %v1593, %v1621
        %v1645 = vmul.f32 %v1593, %v1623
        %v1646 = vmul.f32 %v1597, %v1621
        %v1647 = vmul.f32 %v1597, %v1623
        %v1648 = vmul.f32 %v1601, %v1621
        %v1649 = vmul.f32 %v1601, %v1623
        %v1650 = vmul.f32 %v1605, %v1621
        %v1651 = vmul.f32 %v1605, %v1623
        %v1652 = vmul.f32 %v1609, %v1621
        %v1653 = vmul.f32 %v1609, %v1623
        %v1654 = vmul.f32 %v1613, %v1621
        %v1655 = vmul.f32 %v1613, %v1623
        %v1656 = vmul.f32 %v1617, %v1621
        %v1657 = vmul.f32 %v1617, %v1623
        %v1658 = vadd.f32 %v1522, %v1626
        %v1659 = vadd.f32 %v1523, %v1627
        %v1660 = vadd.f32 %v1524, %v1628
        %v1661 = vadd.f32 %v1525, %v1629
        %v1662 = vadd.f32 %v1526, %v1630
        %v1663 = vadd.f32 %v1527, %v1631
        %v1664 = vadd.f32 %v1528, %v1632
        %v1665 = vadd.f32 %v1529, %v1633
        %v1666 = vadd.f32 %v1530, %v1634
        %v1667 = vadd.f32 %v1531, %v1635
        %v1668 = vadd.f32 %v1532, %v1636
        %v1669 = vadd.f32 %v1533, %v1637
        %v1670 = vadd.f32 %v1534, %v1638
        %v1671 = vadd.f32 %v1535, %v1639
        %v1672 = vadd.f32 %v1536, %v1640
        %v1673 = vadd.f32 %v1537, %v1641
        %v1674 = vadd.f32 %v1538, %v1642
        %v1675 = vadd.f32 %v1539, %v1643
        %v1676 = vadd.f32 %v1540, %v1644
        %v1677 = vadd.f32 %v1541, %v1645
        %v1678 = vadd.f32 %v1542, %v1646
        %v1679 = vadd.f32 %v1543, %v1647
        %v1680 = vadd.f32 %v1544, %v1648
        %v1681 = vadd.f32 %v1545, %v1649
        %v1682 = vadd.f32 %v1546, %v1650
        %v1683 = vadd.f32 %v1547, %v1651
        %v1684 = vadd.f32 %v1548, %v1652
        %v1685 = vadd.f32 %v1549, %v1653
        %v1686 = vadd.f32 %v1550, %v1654
        %v1687 = vadd.f32 %v1551, %v1655
        %v1688 = vadd.f32 %v1552, %v1656
        %v1689 = vadd.f32 %v1553, %v1657
        %v1690 = vlaneseq
        %v1691 = vshrl.u32 %v1690, 7
        %v1692 = vsub.s32 6, %v1691
        %v1693 = vrot.slane %v874, %v1692
        %v1694 = vlaneseq
        %v1695 = vshrl.u32 %v1694, 7
        %v1696 = vsub.s32 6, %v1695
        %v1697 = vrot.slane %v876, %v1696
        %v1698 = vlaneseq
        %v1699 = vshrl.u32 %v1698, 7
        %v1700 = vsub.s32 6, %v1699
        %v1701 = vrot.slane %v878, %v1700
        %v1702 = vlaneseq
        %v1703 = vshrl.u32 %v1702, 7
        %v1704 = vsub.s32 6, %v1703
        %v1705 = vrot.slane %v880, %v1704
        %v1706 = vlaneseq
        %v1707 = vshrl.u32 %v1706, 7
        %v1708 = vsub.s32 6, %v1707
        %v1709 = vrot.slane %v882, %v1708
        %v1710 = vlaneseq
        %v1711 = vshrl.u32 %v1710, 7
        %v1712 = vsub.s32 6, %v1711
        %v1713 = vrot.slane %v884, %v1712
        %v1714 = vlaneseq
        %v1715 = vshrl.u32 %v1714, 7
        %v1716 = vsub.s32 6, %v1715
        %v1717 = vrot.slane %v886, %v1716
        %v1718 = vlaneseq
        %v1719 = vshrl.u32 %v1718, 7
        %v1720 = vsub.s32 6, %v1719
        %v1721 = vrot.slane %v888, %v1720
        %v1722 = vlaneseq
        %v1723 = vshrl.u32 %v1722, 7
        %v1724 = vsub.s32 6, %v1723
        %v1725 = vrot.slane %v890, %v1724
        %v1726 = vlaneseq
        %v1727 = vshrl.u32 %v1726, 7
        %v1728 = vsub.s32 6, %v1727
        %v1729 = vrot.slane %v892, %v1728
        %v1730 = vlaneseq
        %v1731 = vshrl.u32 %v1730, 7
        %v1732 = vsub.s32 6, %v1731
        %v1733 = vrot.slane %v894, %v1732
        %v1734 = vlaneseq
        %v1735 = vshrl.u32 %v1734, 7
        %v1736 = vsub.s32 6, %v1735
        %v1737 = vrot.slane %v896, %v1736
        %v1738 = vlaneseq
        %v1739 = vshrl.u32 %v1738, 7
        %v1740 = vsub.s32 6, %v1739
        %v1741 = vrot.slane %v898, %v1740
        %v1742 = vlaneseq
        %v1743 = vshrl.u32 %v1742, 7
        %v1744 = vsub.s32 6, %v1743
        %v1745 = vrot.slane %v900, %v1744
        %v1746 = vlaneseq
        %v1747 = vshrl.u32 %v1746, 7
        %v1748 = vsub.s32 6, %v1747
        %v1749 = vrot.slane %v902, %v1748
        %v1750 = vlaneseq
        %v1751 = vshrl.u32 %v1750, 7
        %v1752 = vsub.s32 6, %v1751
        %v1753 = vrot.slane %v904, %v1752
        %1756 = vrot.lane.b32.xlu0 %v886, 64
        %v1757 = vpop.permute.xlu0 %1756
        %1758 = vrot.lane.b32.xlu0 %v887, 64
        %v1759 = vpop.permute.xlu0 %1758
        %v1762 = vmul.f32 %v1693, %v1757
        %v1763 = vmul.f32 %v1693, %v1759
        %v1764 = vmul.f32 %v1697, %v1757
        %v1765 = vmul.f32 %v1697, %v1759
        %v1766 = vmul.f32 %v1701, %v1757
        %v1767 = vmul.f32 %v1701, %v1759
        %v1768 = vmul.f32 %v1705, %v1757
        %v1769 = vmul.f32 %v1705, %v1759
        %v1770 = vmul.f32 %v1709, %v1757
        %v1771 = vmul.f32 %v1709, %v1759
        %v1772 = vmul.f32 %v1713, %v1757
        %v1773 = vmul.f32 %v1713, %v1759
        %v1774 = vmul.f32 %v1717, %v1757
        %v1775 = vmul.f32 %v1717, %v1759
        %v1776 = vmul.f32 %v1721, %v1757
        %v1777 = vmul.f32 %v1721, %v1759
        %v1778 = vmul.f32 %v1725, %v1757
        %v1779 = vmul.f32 %v1725, %v1759
        %v1780 = vmul.f32 %v1729, %v1757
        %v1781 = vmul.f32 %v1729, %v1759
        %v1782 = vmul.f32 %v1733, %v1757
        %v1783 = vmul.f32 %v1733, %v1759
        %v1784 = vmul.f32 %v1737, %v1757
        %v1785 = vmul.f32 %v1737, %v1759
        %v1786 = vmul.f32 %v1741, %v1757
        %v1787 = vmul.f32 %v1741, %v1759
        %v1788 = vmul.f32 %v1745, %v1757
        %v1789 = vmul.f32 %v1745, %v1759
        %v1790 = vmul.f32 %v1749, %v1757
        %v1791 = vmul.f32 %v1749, %v1759
        %v1792 = vmul.f32 %v1753, %v1757
        %v1793 = vmul.f32 %v1753, %v1759
        %v1794 = vadd.f32 %v1658, %v1762
        %v1795 = vadd.f32 %v1659, %v1763
        %v1796 = vadd.f32 %v1660, %v1764
        %v1797 = vadd.f32 %v1661, %v1765
        %v1798 = vadd.f32 %v1662, %v1766
        %v1799 = vadd.f32 %v1663, %v1767
        %v1800 = vadd.f32 %v1664, %v1768
        %v1801 = vadd.f32 %v1665, %v1769
        %v1802 = vadd.f32 %v1666, %v1770
        %v1803 = vadd.f32 %v1667, %v1771
        %v1804 = vadd.f32 %v1668, %v1772
        %v1805 = vadd.f32 %v1669, %v1773
        %v1806 = vadd.f32 %v1670, %v1774
        %v1807 = vadd.f32 %v1671, %v1775
        %v1808 = vadd.f32 %v1672, %v1776
        %v1809 = vadd.f32 %v1673, %v1777
        %v1810 = vadd.f32 %v1674, %v1778
        %v1811 = vadd.f32 %v1675, %v1779
        %v1812 = vadd.f32 %v1676, %v1780
        %v1813 = vadd.f32 %v1677, %v1781
        %v1814 = vadd.f32 %v1678, %v1782
        %v1815 = vadd.f32 %v1679, %v1783
        %v1816 = vadd.f32 %v1680, %v1784
        %v1817 = vadd.f32 %v1681, %v1785
        %v1818 = vadd.f32 %v1682, %v1786
        %v1819 = vadd.f32 %v1683, %v1787
        %v1820 = vadd.f32 %v1684, %v1788
        %v1821 = vadd.f32 %v1685, %v1789
        %v1822 = vadd.f32 %v1686, %v1790
        %v1823 = vadd.f32 %v1687, %v1791
        %v1824 = vadd.f32 %v1688, %v1792
        %v1825 = vadd.f32 %v1689, %v1793
        %v1826 = vlaneseq
        %v1827 = vshrl.u32 %v1826, 7
        %v1828 = vsub.s32 7, %v1827
        %v1829 = vrot.slane %v874, %v1828
        %v1830 = vlaneseq
        %v1831 = vshrl.u32 %v1830, 7
        %v1832 = vsub.s32 7, %v1831
        %v1833 = vrot.slane %v876, %v1832
        %v1834 = vlaneseq
        %v1835 = vshrl.u32 %v1834, 7
        %v1836 = vsub.s32 7, %v1835
        %v1837 = vrot.slane %v878, %v1836
        %v1838 = vlaneseq
        %v1839 = vshrl.u32 %v1838, 7
        %v1840 = vsub.s32 7, %v1839
        %v1841 = vrot.slane %v880, %v1840
        %v1842 = vlaneseq
        %v1843 = vshrl.u32 %v1842, 7
        %v1844 = vsub.s32 7, %v1843
        %v1845 = vrot.slane %v882, %v1844
        %v1846 = vlaneseq
        %v1847 = vshrl.u32 %v1846, 7
        %v1848 = vsub.s32 7, %v1847
        %v1849 = vrot.slane %v884, %v1848
        %v1850 = vlaneseq
        %v1851 = vshrl.u32 %v1850, 7
        %v1852 = vsub.s32 7, %v1851
        %v1853 = vrot.slane %v886, %v1852
        %v1854 = vlaneseq
        %v1855 = vshrl.u32 %v1854, 7
        %v1856 = vsub.s32 7, %v1855
        %v1857 = vrot.slane %v888, %v1856
        %v1858 = vlaneseq
        %v1859 = vshrl.u32 %v1858, 7
        %v1860 = vsub.s32 7, %v1859
        %v1861 = vrot.slane %v890, %v1860
        %v1862 = vlaneseq
        %v1863 = vshrl.u32 %v1862, 7
        %v1864 = vsub.s32 7, %v1863
        %v1865 = vrot.slane %v892, %v1864
        %v1866 = vlaneseq
        %v1867 = vshrl.u32 %v1866, 7
        %v1868 = vsub.s32 7, %v1867
        %v1869 = vrot.slane %v894, %v1868
        %v1870 = vlaneseq
        %v1871 = vshrl.u32 %v1870, 7
        %v1872 = vsub.s32 7, %v1871
        %v1873 = vrot.slane %v896, %v1872
        %v1874 = vlaneseq
        %v1875 = vshrl.u32 %v1874, 7
        %v1876 = vsub.s32 7, %v1875
        %v1877 = vrot.slane %v898, %v1876
        %v1878 = vlaneseq
        %v1879 = vshrl.u32 %v1878, 7
        %v1880 = vsub.s32 7, %v1879
        %v1881 = vrot.slane %v900, %v1880
        %v1882 = vlaneseq
        %v1883 = vshrl.u32 %v1882, 7
        %v1884 = vsub.s32 7, %v1883
        %v1885 = vrot.slane %v902, %v1884
        %v1886 = vlaneseq
        %v1887 = vshrl.u32 %v1886, 7
        %v1888 = vsub.s32 7, %v1887
        %v1889 = vrot.slane %v904, %v1888
        %1892 = vrot.lane.b32.xlu0 %v888, 64
        %v1893 = vpop.permute.xlu0 %1892
        %1894 = vrot.lane.b32.xlu0 %v889, 64
        %v1895 = vpop.permute.xlu0 %1894
        %v1898 = vmul.f32 %v1829, %v1893
        %v1899 = vmul.f32 %v1829, %v1895
        %v1900 = vmul.f32 %v1833, %v1893
        %v1901 = vmul.f32 %v1833, %v1895
        %v1902 = vmul.f32 %v1837, %v1893
        %v1903 = vmul.f32 %v1837, %v1895
        %v1904 = vmul.f32 %v1841, %v1893
        %v1905 = vmul.f32 %v1841, %v1895
        %v1906 = vmul.f32 %v1845, %v1893
        %v1907 = vmul.f32 %v1845, %v1895
        %v1908 = vmul.f32 %v1849, %v1893
        %v1909 = vmul.f32 %v1849, %v1895
        %v1910 = vmul.f32 %v1853, %v1893
        %v1911 = vmul.f32 %v1853, %v1895
        %v1912 = vmul.f32 %v1857, %v1893
        %v1913 = vmul.f32 %v1857, %v1895
        %v1914 = vmul.f32 %v1861, %v1893
        %v1915 = vmul.f32 %v1861, %v1895
        %v1916 = vmul.f32 %v1865, %v1893
        %v1917 = vmul.f32 %v1865, %v1895
        %v1918 = vmul.f32 %v1869, %v1893
        %v1919 = vmul.f32 %v1869, %v1895
        %v1920 = vmul.f32 %v1873, %v1893
        %v1921 = vmul.f32 %v1873, %v1895
        %v1922 = vmul.f32 %v1877, %v1893
        %v1923 = vmul.f32 %v1877, %v1895
        %v1924 = vmul.f32 %v1881, %v1893
        %v1925 = vmul.f32 %v1881, %v1895
        %v1926 = vmul.f32 %v1885, %v1893
        %v1927 = vmul.f32 %v1885, %v1895
        %v1928 = vmul.f32 %v1889, %v1893
        %v1929 = vmul.f32 %v1889, %v1895
        %v1930 = vadd.f32 %v1794, %v1898
        %v1931 = vadd.f32 %v1795, %v1899
        %v1932 = vadd.f32 %v1796, %v1900
        %v1933 = vadd.f32 %v1797, %v1901
        %v1934 = vadd.f32 %v1798, %v1902
        %v1935 = vadd.f32 %v1799, %v1903
        %v1936 = vadd.f32 %v1800, %v1904
        %v1937 = vadd.f32 %v1801, %v1905
        %v1938 = vadd.f32 %v1802, %v1906
        %v1939 = vadd.f32 %v1803, %v1907
        %v1940 = vadd.f32 %v1804, %v1908
        %v1941 = vadd.f32 %v1805, %v1909
        %v1942 = vadd.f32 %v1806, %v1910
        %v1943 = vadd.f32 %v1807, %v1911
        %v1944 = vadd.f32 %v1808, %v1912
        %v1945 = vadd.f32 %v1809, %v1913
        %v1946 = vadd.f32 %v1810, %v1914
        %v1947 = vadd.f32 %v1811, %v1915
        %v1948 = vadd.f32 %v1812, %v1916
        %v1949 = vadd.f32 %v1813, %v1917
        %v1950 = vadd.f32 %v1814, %v1918
        %v1951 = vadd.f32 %v1815, %v1919
        %v1952 = vadd.f32 %v1816, %v1920
        %v1953 = vadd.f32 %v1817, %v1921
        %v1954 = vadd.f32 %v1818, %v1922
        %v1955 = vadd.f32 %v1819, %v1923
        %v1956 = vadd.f32 %v1820, %v1924
        %v1957 = vadd.f32 %v1821, %v1925
        %v1958 = vadd.f32 %v1822, %v1926
        %v1959 = vadd.f32 %v1823, %v1927
        %v1960 = vadd.f32 %v1824, %v1928
        %v1961 = vadd.f32 %v1825, %v1929
        %v1962 = vlaneseq
        %v1963 = vshrl.u32 %v1962, 7
        %v1964 = vsub.s32 0, %v1963
        %v1965 = vrot.slane %v875, %v1964
        %v1966 = vlaneseq
        %v1967 = vshrl.u32 %v1966, 7
        %v1968 = vsub.s32 0, %v1967
        %v1969 = vrot.slane %v877, %v1968
        %v1970 = vlaneseq
        %v1971 = vshrl.u32 %v1970, 7
        %v1972 = vsub.s32 0, %v1971
        %v1973 = vrot.slane %v879, %v1972
        %v1974 = vlaneseq
        %v1975 = vshrl.u32 %v1974, 7
        %v1976 = vsub.s32 0, %v1975
        %v1977 = vrot.slane %v881, %v1976
        %v1978 = vlaneseq
        %v1979 = vshrl.u32 %v1978, 7
        %v1980 = vsub.s32 0, %v1979
        %v1981 = vrot.slane %v883, %v1980
        %v1982 = vlaneseq
        %v1983 = vshrl.u32 %v1982, 7
        %v1984 = vsub.s32 0, %v1983
        %v1985 = vrot.slane %v885, %v1984
        %v1986 = vlaneseq
        %v1987 = vshrl.u32 %v1986, 7
        %v1988 = vsub.s32 0, %v1987
        %v1989 = vrot.slane %v887, %v1988
        %v1990 = vlaneseq
        %v1991 = vshrl.u32 %v1990, 7
        %v1992 = vsub.s32 0, %v1991
        %v1993 = vrot.slane %v889, %v1992
        %v1994 = vlaneseq
        %v1995 = vshrl.u32 %v1994, 7
        %v1996 = vsub.s32 0, %v1995
        %v1997 = vrot.slane %v891, %v1996
        %v1998 = vlaneseq
        %v1999 = vshrl.u32 %v1998, 7
        %v2000 = vsub.s32 0, %v1999
        %v2001 = vrot.slane %v893, %v2000
        %v2002 = vlaneseq
        %v2003 = vshrl.u32 %v2002, 7
        %v2004 = vsub.s32 0, %v2003
        %v2005 = vrot.slane %v895, %v2004
        %v2006 = vlaneseq
        %v2007 = vshrl.u32 %v2006, 7
        %v2008 = vsub.s32 0, %v2007
        %v2009 = vrot.slane %v897, %v2008
        %v2010 = vlaneseq
        %v2011 = vshrl.u32 %v2010, 7
        %v2012 = vsub.s32 0, %v2011
        %v2013 = vrot.slane %v899, %v2012
        %v2014 = vlaneseq
        %v2015 = vshrl.u32 %v2014, 7
        %v2016 = vsub.s32 0, %v2015
        %v2017 = vrot.slane %v901, %v2016
        %v2018 = vlaneseq
        %v2019 = vshrl.u32 %v2018, 7
        %v2020 = vsub.s32 0, %v2019
        %v2021 = vrot.slane %v903, %v2020
        %v2022 = vlaneseq
        %v2023 = vshrl.u32 %v2022, 7
        %v2024 = vsub.s32 0, %v2023
        %v2025 = vrot.slane %v905, %v2024
        %2028 = vrot.lane.b32.xlu0 %v890, 64
        %v2029 = vpop.permute.xlu0 %2028
        %2030 = vrot.lane.b32.xlu0 %v891, 64
        %v2031 = vpop.permute.xlu0 %2030
        %v2034 = vmul.f32 %v1965, %v2029
        %v2035 = vmul.f32 %v1965, %v2031
        %v2036 = vmul.f32 %v1969, %v2029
        %v2037 = vmul.f32 %v1969, %v2031
        %v2038 = vmul.f32 %v1973, %v2029
        %v2039 = vmul.f32 %v1973, %v2031
        %v2040 = vmul.f32 %v1977, %v2029
        %v2041 = vmul.f32 %v1977, %v2031
        %v2042 = vmul.f32 %v1981, %v2029
        %v2043 = vmul.f32 %v1981, %v2031
        %v2044 = vmul.f32 %v1985, %v2029
        %v2045 = vmul.f32 %v1985, %v2031
        %v2046 = vmul.f32 %v1989, %v2029
        %v2047 = vmul.f32 %v1989, %v2031
        %v2048 = vmul.f32 %v1993, %v2029
        %v2049 = vmul.f32 %v1993, %v2031
        %v2050 = vmul.f32 %v1997, %v2029
        %v2051 = vmul.f32 %v1997, %v2031
        %v2052 = vmul.f32 %v2001, %v2029
        %v2053 = vmul.f32 %v2001, %v2031
        %v2054 = vmul.f32 %v2005, %v2029
        %v2055 = vmul.f32 %v2005, %v2031
        %v2056 = vmul.f32 %v2009, %v2029
        %v2057 = vmul.f32 %v2009, %v2031
        %v2058 = vmul.f32 %v2013, %v2029
        %v2059 = vmul.f32 %v2013, %v2031
        %v2060 = vmul.f32 %v2017, %v2029
        %v2061 = vmul.f32 %v2017, %v2031
        %v2062 = vmul.f32 %v2021, %v2029
        %v2063 = vmul.f32 %v2021, %v2031
        %v2064 = vmul.f32 %v2025, %v2029
        %v2065 = vmul.f32 %v2025, %v2031
        %v2066 = vadd.f32 %v1930, %v2034
        %v2067 = vadd.f32 %v1931, %v2035
        %v2068 = vadd.f32 %v1932, %v2036
        %v2069 = vadd.f32 %v1933, %v2037
        %v2070 = vadd.f32 %v1934, %v2038
        %v2071 = vadd.f32 %v1935, %v2039
        %v2072 = vadd.f32 %v1936, %v2040
        %v2073 = vadd.f32 %v1937, %v2041
        %v2074 = vadd.f32 %v1938, %v2042
        %v2075 = vadd.f32 %v1939, %v2043
        %v2076 = vadd.f32 %v1940, %v2044
        %v2077 = vadd.f32 %v1941, %v2045
        %v2078 = vadd.f32 %v1942, %v2046
        %v2079 = vadd.f32 %v1943, %v2047
        %v2080 = vadd.f32 %v1944, %v2048
        %v2081 = vadd.f32 %v1945, %v2049
        %v2082 = vadd.f32 %v1946, %v2050
        %v2083 = vadd.f32 %v1947, %v2051
        %v2084 = vadd.f32 %v1948, %v2052
        %v2085 = vadd.f32 %v1949, %v2053
        %v2086 = vadd.f32 %v1950, %v2054
        %v2087 = vadd.f32 %v1951, %v2055
        %v2088 = vadd.f32 %v1952, %v2056
        %v2089 = vadd.f32 %v1953, %v2057
        %v2090 = vadd.f32 %v1954, %v2058
        %v2091 = vadd.f32 %v1955, %v2059
        %v2092 = vadd.f32 %v1956, %v2060
        %v2093 = vadd.f32 %v1957, %v2061
        %v2094 = vadd.f32 %v1958, %v2062
        %v2095 = vadd.f32 %v1959, %v2063
        %v2096 = vadd.f32 %v1960, %v2064
        %v2097 = vadd.f32 %v1961, %v2065
        %v2098 = vlaneseq
        %v2099 = vshrl.u32 %v2098, 7
        %v2100 = vsub.s32 1, %v2099
        %v2101 = vrot.slane %v875, %v2100
        %v2102 = vlaneseq
        %v2103 = vshrl.u32 %v2102, 7
        %v2104 = vsub.s32 1, %v2103
        %v2105 = vrot.slane %v877, %v2104
        %v2106 = vlaneseq
        %v2107 = vshrl.u32 %v2106, 7
        %v2108 = vsub.s32 1, %v2107
        %v2109 = vrot.slane %v879, %v2108
        %v2110 = vlaneseq
        %v2111 = vshrl.u32 %v2110, 7
        %v2112 = vsub.s32 1, %v2111
        %v2113 = vrot.slane %v881, %v2112
        %v2114 = vlaneseq
        %v2115 = vshrl.u32 %v2114, 7
        %v2116 = vsub.s32 1, %v2115
        %v2117 = vrot.slane %v883, %v2116
        %v2118 = vlaneseq
        %v2119 = vshrl.u32 %v2118, 7
        %v2120 = vsub.s32 1, %v2119
        %v2121 = vrot.slane %v885, %v2120
        %v2122 = vlaneseq
        %v2123 = vshrl.u32 %v2122, 7
        %v2124 = vsub.s32 1, %v2123
        %v2125 = vrot.slane %v887, %v2124
        %v2126 = vlaneseq
        %v2127 = vshrl.u32 %v2126, 7
        %v2128 = vsub.s32 1, %v2127
        %v2129 = vrot.slane %v889, %v2128
        %v2130 = vlaneseq
        %v2131 = vshrl.u32 %v2130, 7
        %v2132 = vsub.s32 1, %v2131
        %v2133 = vrot.slane %v891, %v2132
        %v2134 = vlaneseq
        %v2135 = vshrl.u32 %v2134, 7
        %v2136 = vsub.s32 1, %v2135
        %v2137 = vrot.slane %v893, %v2136
        %v2138 = vlaneseq
        %v2139 = vshrl.u32 %v2138, 7
        %v2140 = vsub.s32 1, %v2139
        %v2141 = vrot.slane %v895, %v2140
        %v2142 = vlaneseq
        %v2143 = vshrl.u32 %v2142, 7
        %v2144 = vsub.s32 1, %v2143
        %v2145 = vrot.slane %v897, %v2144
        %v2146 = vlaneseq
        %v2147 = vshrl.u32 %v2146, 7
        %v2148 = vsub.s32 1, %v2147
        %v2149 = vrot.slane %v899, %v2148
        %v2150 = vlaneseq
        %v2151 = vshrl.u32 %v2150, 7
        %v2152 = vsub.s32 1, %v2151
        %v2153 = vrot.slane %v901, %v2152
        %v2154 = vlaneseq
        %v2155 = vshrl.u32 %v2154, 7
        %v2156 = vsub.s32 1, %v2155
        %v2157 = vrot.slane %v903, %v2156
        %v2158 = vlaneseq
        %v2159 = vshrl.u32 %v2158, 7
        %v2160 = vsub.s32 1, %v2159
        %v2161 = vrot.slane %v905, %v2160
        %2164 = vrot.lane.b32.xlu0 %v892, 64
        %v2165 = vpop.permute.xlu0 %2164
        %2166 = vrot.lane.b32.xlu0 %v893, 64
        %v2167 = vpop.permute.xlu0 %2166
        %v2170 = vmul.f32 %v2101, %v2165
        %v2171 = vmul.f32 %v2101, %v2167
        %v2172 = vmul.f32 %v2105, %v2165
        %v2173 = vmul.f32 %v2105, %v2167
        %v2174 = vmul.f32 %v2109, %v2165
        %v2175 = vmul.f32 %v2109, %v2167
        %v2176 = vmul.f32 %v2113, %v2165
        %v2177 = vmul.f32 %v2113, %v2167
        %v2178 = vmul.f32 %v2117, %v2165
        %v2179 = vmul.f32 %v2117, %v2167
        %v2180 = vmul.f32 %v2121, %v2165
        %v2181 = vmul.f32 %v2121, %v2167
        %v2182 = vmul.f32 %v2125, %v2165
        %v2183 = vmul.f32 %v2125, %v2167
        %v2184 = vmul.f32 %v2129, %v2165
        %v2185 = vmul.f32 %v2129, %v2167
        %v2186 = vmul.f32 %v2133, %v2165
        %v2187 = vmul.f32 %v2133, %v2167
        %v2188 = vmul.f32 %v2137, %v2165
        %v2189 = vmul.f32 %v2137, %v2167
        %v2190 = vmul.f32 %v2141, %v2165
        %v2191 = vmul.f32 %v2141, %v2167
        %v2192 = vmul.f32 %v2145, %v2165
        %v2193 = vmul.f32 %v2145, %v2167
        %v2194 = vmul.f32 %v2149, %v2165
        %v2195 = vmul.f32 %v2149, %v2167
        %v2196 = vmul.f32 %v2153, %v2165
        %v2197 = vmul.f32 %v2153, %v2167
        %v2198 = vmul.f32 %v2157, %v2165
        %v2199 = vmul.f32 %v2157, %v2167
        %v2200 = vmul.f32 %v2161, %v2165
        %v2201 = vmul.f32 %v2161, %v2167
        %v2202 = vadd.f32 %v2066, %v2170
        %v2203 = vadd.f32 %v2067, %v2171
        %v2204 = vadd.f32 %v2068, %v2172
        %v2205 = vadd.f32 %v2069, %v2173
        %v2206 = vadd.f32 %v2070, %v2174
        %v2207 = vadd.f32 %v2071, %v2175
        %v2208 = vadd.f32 %v2072, %v2176
        %v2209 = vadd.f32 %v2073, %v2177
        %v2210 = vadd.f32 %v2074, %v2178
        %v2211 = vadd.f32 %v2075, %v2179
        %v2212 = vadd.f32 %v2076, %v2180
        %v2213 = vadd.f32 %v2077, %v2181
        %v2214 = vadd.f32 %v2078, %v2182
        %v2215 = vadd.f32 %v2079, %v2183
        %v2216 = vadd.f32 %v2080, %v2184
        %v2217 = vadd.f32 %v2081, %v2185
        %v2218 = vadd.f32 %v2082, %v2186
        %v2219 = vadd.f32 %v2083, %v2187
        %v2220 = vadd.f32 %v2084, %v2188
        %v2221 = vadd.f32 %v2085, %v2189
        %v2222 = vadd.f32 %v2086, %v2190
        %v2223 = vadd.f32 %v2087, %v2191
        %v2224 = vadd.f32 %v2088, %v2192
        %v2225 = vadd.f32 %v2089, %v2193
        %v2226 = vadd.f32 %v2090, %v2194
        %v2227 = vadd.f32 %v2091, %v2195
        %v2228 = vadd.f32 %v2092, %v2196
        %v2229 = vadd.f32 %v2093, %v2197
        %v2230 = vadd.f32 %v2094, %v2198
        %v2231 = vadd.f32 %v2095, %v2199
        %v2232 = vadd.f32 %v2096, %v2200
        %v2233 = vadd.f32 %v2097, %v2201
        %v2234 = vlaneseq
        %v2235 = vshrl.u32 %v2234, 7
        %v2236 = vsub.s32 2, %v2235
        %v2237 = vrot.slane %v875, %v2236
        %v2238 = vlaneseq
        %v2239 = vshrl.u32 %v2238, 7
        %v2240 = vsub.s32 2, %v2239
        %v2241 = vrot.slane %v877, %v2240
        %v2242 = vlaneseq
        %v2243 = vshrl.u32 %v2242, 7
        %v2244 = vsub.s32 2, %v2243
        %v2245 = vrot.slane %v879, %v2244
        %v2246 = vlaneseq
        %v2247 = vshrl.u32 %v2246, 7
        %v2248 = vsub.s32 2, %v2247
        %v2249 = vrot.slane %v881, %v2248
        %v2250 = vlaneseq
        %v2251 = vshrl.u32 %v2250, 7
        %v2252 = vsub.s32 2, %v2251
        %v2253 = vrot.slane %v883, %v2252
        %v2254 = vlaneseq
        %v2255 = vshrl.u32 %v2254, 7
        %v2256 = vsub.s32 2, %v2255
        %v2257 = vrot.slane %v885, %v2256
        %v2258 = vlaneseq
        %v2259 = vshrl.u32 %v2258, 7
        %v2260 = vsub.s32 2, %v2259
        %v2261 = vrot.slane %v887, %v2260
        %v2262 = vlaneseq
        %v2263 = vshrl.u32 %v2262, 7
        %v2264 = vsub.s32 2, %v2263
        %v2265 = vrot.slane %v889, %v2264
        %v2266 = vlaneseq
        %v2267 = vshrl.u32 %v2266, 7
        %v2268 = vsub.s32 2, %v2267
        %v2269 = vrot.slane %v891, %v2268
        %v2270 = vlaneseq
        %v2271 = vshrl.u32 %v2270, 7
        %v2272 = vsub.s32 2, %v2271
        %v2273 = vrot.slane %v893, %v2272
        %v2274 = vlaneseq
        %v2275 = vshrl.u32 %v2274, 7
        %v2276 = vsub.s32 2, %v2275
        %v2277 = vrot.slane %v895, %v2276
        %v2278 = vlaneseq
        %v2279 = vshrl.u32 %v2278, 7
        %v2280 = vsub.s32 2, %v2279
        %v2281 = vrot.slane %v897, %v2280
        %v2282 = vlaneseq
        %v2283 = vshrl.u32 %v2282, 7
        %v2284 = vsub.s32 2, %v2283
        %v2285 = vrot.slane %v899, %v2284
        %v2286 = vlaneseq
        %v2287 = vshrl.u32 %v2286, 7
        %v2288 = vsub.s32 2, %v2287
        %v2289 = vrot.slane %v901, %v2288
        %v2290 = vlaneseq
        %v2291 = vshrl.u32 %v2290, 7
        %v2292 = vsub.s32 2, %v2291
        %v2293 = vrot.slane %v903, %v2292
        %v2294 = vlaneseq
        %v2295 = vshrl.u32 %v2294, 7
        %v2296 = vsub.s32 2, %v2295
        %v2297 = vrot.slane %v905, %v2296
        %2300 = vrot.lane.b32.xlu0 %v894, 64
        %v2301 = vpop.permute.xlu0 %2300
        %2302 = vrot.lane.b32.xlu0 %v895, 64
        %v2303 = vpop.permute.xlu0 %2302
        %v2306 = vmul.f32 %v2237, %v2301
        %v2307 = vmul.f32 %v2237, %v2303
        %v2308 = vmul.f32 %v2241, %v2301
        %v2309 = vmul.f32 %v2241, %v2303
        %v2310 = vmul.f32 %v2245, %v2301
        %v2311 = vmul.f32 %v2245, %v2303
        %v2312 = vmul.f32 %v2249, %v2301
        %v2313 = vmul.f32 %v2249, %v2303
        %v2314 = vmul.f32 %v2253, %v2301
        %v2315 = vmul.f32 %v2253, %v2303
        %v2316 = vmul.f32 %v2257, %v2301
        %v2317 = vmul.f32 %v2257, %v2303
        %v2318 = vmul.f32 %v2261, %v2301
        %v2319 = vmul.f32 %v2261, %v2303
        %v2320 = vmul.f32 %v2265, %v2301
        %v2321 = vmul.f32 %v2265, %v2303
        %v2322 = vmul.f32 %v2269, %v2301
        %v2323 = vmul.f32 %v2269, %v2303
        %v2324 = vmul.f32 %v2273, %v2301
        %v2325 = vmul.f32 %v2273, %v2303
        %v2326 = vmul.f32 %v2277, %v2301
        %v2327 = vmul.f32 %v2277, %v2303
        %v2328 = vmul.f32 %v2281, %v2301
        %v2329 = vmul.f32 %v2281, %v2303
        %v2330 = vmul.f32 %v2285, %v2301
        %v2331 = vmul.f32 %v2285, %v2303
        %v2332 = vmul.f32 %v2289, %v2301
        %v2333 = vmul.f32 %v2289, %v2303
        %v2334 = vmul.f32 %v2293, %v2301
        %v2335 = vmul.f32 %v2293, %v2303
        %v2336 = vmul.f32 %v2297, %v2301
        %v2337 = vmul.f32 %v2297, %v2303
        %v2338 = vadd.f32 %v2202, %v2306
        %v2339 = vadd.f32 %v2203, %v2307
        %v2340 = vadd.f32 %v2204, %v2308
        %v2341 = vadd.f32 %v2205, %v2309
        %v2342 = vadd.f32 %v2206, %v2310
        %v2343 = vadd.f32 %v2207, %v2311
        %v2344 = vadd.f32 %v2208, %v2312
        %v2345 = vadd.f32 %v2209, %v2313
        %v2346 = vadd.f32 %v2210, %v2314
        %v2347 = vadd.f32 %v2211, %v2315
        %v2348 = vadd.f32 %v2212, %v2316
        %v2349 = vadd.f32 %v2213, %v2317
        %v2350 = vadd.f32 %v2214, %v2318
        %v2351 = vadd.f32 %v2215, %v2319
        %v2352 = vadd.f32 %v2216, %v2320
        %v2353 = vadd.f32 %v2217, %v2321
        %v2354 = vadd.f32 %v2218, %v2322
        %v2355 = vadd.f32 %v2219, %v2323
        %v2356 = vadd.f32 %v2220, %v2324
        %v2357 = vadd.f32 %v2221, %v2325
        %v2358 = vadd.f32 %v2222, %v2326
        %v2359 = vadd.f32 %v2223, %v2327
        %v2360 = vadd.f32 %v2224, %v2328
        %v2361 = vadd.f32 %v2225, %v2329
        %v2362 = vadd.f32 %v2226, %v2330
        %v2363 = vadd.f32 %v2227, %v2331
        %v2364 = vadd.f32 %v2228, %v2332
        %v2365 = vadd.f32 %v2229, %v2333
        %v2366 = vadd.f32 %v2230, %v2334
        %v2367 = vadd.f32 %v2231, %v2335
        %v2368 = vadd.f32 %v2232, %v2336
        %v2369 = vadd.f32 %v2233, %v2337
        %v2370 = vlaneseq
        %v2371 = vshrl.u32 %v2370, 7
        %v2372 = vsub.s32 3, %v2371
        %v2373 = vrot.slane %v875, %v2372
        %v2374 = vlaneseq
        %v2375 = vshrl.u32 %v2374, 7
        %v2376 = vsub.s32 3, %v2375
        %v2377 = vrot.slane %v877, %v2376
        %v2378 = vlaneseq
        %v2379 = vshrl.u32 %v2378, 7
        %v2380 = vsub.s32 3, %v2379
        %v2381 = vrot.slane %v879, %v2380
        %v2382 = vlaneseq
        %v2383 = vshrl.u32 %v2382, 7
        %v2384 = vsub.s32 3, %v2383
        %v2385 = vrot.slane %v881, %v2384
        %v2386 = vlaneseq
        %v2387 = vshrl.u32 %v2386, 7
        %v2388 = vsub.s32 3, %v2387
        %v2389 = vrot.slane %v883, %v2388
        %v2390 = vlaneseq
        %v2391 = vshrl.u32 %v2390, 7
        %v2392 = vsub.s32 3, %v2391
        %v2393 = vrot.slane %v885, %v2392
        %v2394 = vlaneseq
        %v2395 = vshrl.u32 %v2394, 7
        %v2396 = vsub.s32 3, %v2395
        %v2397 = vrot.slane %v887, %v2396
        %v2398 = vlaneseq
        %v2399 = vshrl.u32 %v2398, 7
        %v2400 = vsub.s32 3, %v2399
        %v2401 = vrot.slane %v889, %v2400
        %v2402 = vlaneseq
        %v2403 = vshrl.u32 %v2402, 7
        %v2404 = vsub.s32 3, %v2403
        %v2405 = vrot.slane %v891, %v2404
        %v2406 = vlaneseq
        %v2407 = vshrl.u32 %v2406, 7
        %v2408 = vsub.s32 3, %v2407
        %v2409 = vrot.slane %v893, %v2408
        %v2410 = vlaneseq
        %v2411 = vshrl.u32 %v2410, 7
        %v2412 = vsub.s32 3, %v2411
        %v2413 = vrot.slane %v895, %v2412
        %v2414 = vlaneseq
        %v2415 = vshrl.u32 %v2414, 7
        %v2416 = vsub.s32 3, %v2415
        %v2417 = vrot.slane %v897, %v2416
        %v2418 = vlaneseq
        %v2419 = vshrl.u32 %v2418, 7
        %v2420 = vsub.s32 3, %v2419
        %v2421 = vrot.slane %v899, %v2420
        %v2422 = vlaneseq
        %v2423 = vshrl.u32 %v2422, 7
        %v2424 = vsub.s32 3, %v2423
        %v2425 = vrot.slane %v901, %v2424
        %v2426 = vlaneseq
        %v2427 = vshrl.u32 %v2426, 7
        %v2428 = vsub.s32 3, %v2427
        %v2429 = vrot.slane %v903, %v2428
        %v2430 = vlaneseq
        %v2431 = vshrl.u32 %v2430, 7
        %v2432 = vsub.s32 3, %v2431
        %v2433 = vrot.slane %v905, %v2432
        %2436 = vrot.lane.b32.xlu0 %v896, 64
        %v2437 = vpop.permute.xlu0 %2436
        %2438 = vrot.lane.b32.xlu0 %v897, 64
        %v2439 = vpop.permute.xlu0 %2438
        %v2442 = vmul.f32 %v2373, %v2437
        %v2443 = vmul.f32 %v2373, %v2439
        %v2444 = vmul.f32 %v2377, %v2437
        %v2445 = vmul.f32 %v2377, %v2439
        %v2446 = vmul.f32 %v2381, %v2437
        %v2447 = vmul.f32 %v2381, %v2439
        %v2448 = vmul.f32 %v2385, %v2437
        %v2449 = vmul.f32 %v2385, %v2439
        %v2450 = vmul.f32 %v2389, %v2437
        %v2451 = vmul.f32 %v2389, %v2439
        %v2452 = vmul.f32 %v2393, %v2437
        %v2453 = vmul.f32 %v2393, %v2439
        %v2454 = vmul.f32 %v2397, %v2437
        %v2455 = vmul.f32 %v2397, %v2439
        %v2456 = vmul.f32 %v2401, %v2437
        %v2457 = vmul.f32 %v2401, %v2439
        %v2458 = vmul.f32 %v2405, %v2437
        %v2459 = vmul.f32 %v2405, %v2439
        %v2460 = vmul.f32 %v2409, %v2437
        %v2461 = vmul.f32 %v2409, %v2439
        %v2462 = vmul.f32 %v2413, %v2437
        %v2463 = vmul.f32 %v2413, %v2439
        %v2464 = vmul.f32 %v2417, %v2437
        %v2465 = vmul.f32 %v2417, %v2439
        %v2466 = vmul.f32 %v2421, %v2437
        %v2467 = vmul.f32 %v2421, %v2439
        %v2468 = vmul.f32 %v2425, %v2437
        %v2469 = vmul.f32 %v2425, %v2439
        %v2470 = vmul.f32 %v2429, %v2437
        %v2471 = vmul.f32 %v2429, %v2439
        %v2472 = vmul.f32 %v2433, %v2437
        %v2473 = vmul.f32 %v2433, %v2439
        %v2474 = vadd.f32 %v2338, %v2442
        %v2475 = vadd.f32 %v2339, %v2443
        %v2476 = vadd.f32 %v2340, %v2444
        %v2477 = vadd.f32 %v2341, %v2445
        %v2478 = vadd.f32 %v2342, %v2446
        %v2479 = vadd.f32 %v2343, %v2447
        %v2480 = vadd.f32 %v2344, %v2448
        %v2481 = vadd.f32 %v2345, %v2449
        %v2482 = vadd.f32 %v2346, %v2450
        %v2483 = vadd.f32 %v2347, %v2451
        %v2484 = vadd.f32 %v2348, %v2452
        %v2485 = vadd.f32 %v2349, %v2453
        %v2486 = vadd.f32 %v2350, %v2454
        %v2487 = vadd.f32 %v2351, %v2455
        %v2488 = vadd.f32 %v2352, %v2456
        %v2489 = vadd.f32 %v2353, %v2457
        %v2490 = vadd.f32 %v2354, %v2458
        %v2491 = vadd.f32 %v2355, %v2459
        %v2492 = vadd.f32 %v2356, %v2460
        %v2493 = vadd.f32 %v2357, %v2461
        %v2494 = vadd.f32 %v2358, %v2462
        %v2495 = vadd.f32 %v2359, %v2463
        %v2496 = vadd.f32 %v2360, %v2464
        %v2497 = vadd.f32 %v2361, %v2465
        %v2498 = vadd.f32 %v2362, %v2466
        %v2499 = vadd.f32 %v2363, %v2467
        %v2500 = vadd.f32 %v2364, %v2468
        %v2501 = vadd.f32 %v2365, %v2469
        %v2502 = vadd.f32 %v2366, %v2470
        %v2503 = vadd.f32 %v2367, %v2471
        %v2504 = vadd.f32 %v2368, %v2472
        %v2505 = vadd.f32 %v2369, %v2473
        %v2506 = vlaneseq
        %v2507 = vshrl.u32 %v2506, 7
        %v2508 = vsub.s32 4, %v2507
        %v2509 = vrot.slane %v875, %v2508
        %v2510 = vlaneseq
        %v2511 = vshrl.u32 %v2510, 7
        %v2512 = vsub.s32 4, %v2511
        %v2513 = vrot.slane %v877, %v2512
        %v2514 = vlaneseq
        %v2515 = vshrl.u32 %v2514, 7
        %v2516 = vsub.s32 4, %v2515
        %v2517 = vrot.slane %v879, %v2516
        %v2518 = vlaneseq
        %v2519 = vshrl.u32 %v2518, 7
        %v2520 = vsub.s32 4, %v2519
        %v2521 = vrot.slane %v881, %v2520
        %v2522 = vlaneseq
        %v2523 = vshrl.u32 %v2522, 7
        %v2524 = vsub.s32 4, %v2523
        %v2525 = vrot.slane %v883, %v2524
        %v2526 = vlaneseq
        %v2527 = vshrl.u32 %v2526, 7
        %v2528 = vsub.s32 4, %v2527
        %v2529 = vrot.slane %v885, %v2528
        %v2530 = vlaneseq
        %v2531 = vshrl.u32 %v2530, 7
        %v2532 = vsub.s32 4, %v2531
        %v2533 = vrot.slane %v887, %v2532
        %v2534 = vlaneseq
        %v2535 = vshrl.u32 %v2534, 7
        %v2536 = vsub.s32 4, %v2535
        %v2537 = vrot.slane %v889, %v2536
        %v2538 = vlaneseq
        %v2539 = vshrl.u32 %v2538, 7
        %v2540 = vsub.s32 4, %v2539
        %v2541 = vrot.slane %v891, %v2540
        %v2542 = vlaneseq
        %v2543 = vshrl.u32 %v2542, 7
        %v2544 = vsub.s32 4, %v2543
        %v2545 = vrot.slane %v893, %v2544
        %v2546 = vlaneseq
        %v2547 = vshrl.u32 %v2546, 7
        %v2548 = vsub.s32 4, %v2547
        %v2549 = vrot.slane %v895, %v2548
        %v2550 = vlaneseq
        %v2551 = vshrl.u32 %v2550, 7
        %v2552 = vsub.s32 4, %v2551
        %v2553 = vrot.slane %v897, %v2552
        %v2554 = vlaneseq
        %v2555 = vshrl.u32 %v2554, 7
        %v2556 = vsub.s32 4, %v2555
        %v2557 = vrot.slane %v899, %v2556
        %v2558 = vlaneseq
        %v2559 = vshrl.u32 %v2558, 7
        %v2560 = vsub.s32 4, %v2559
        %v2561 = vrot.slane %v901, %v2560
        %v2562 = vlaneseq
        %v2563 = vshrl.u32 %v2562, 7
        %v2564 = vsub.s32 4, %v2563
        %v2565 = vrot.slane %v903, %v2564
        %v2566 = vlaneseq
        %v2567 = vshrl.u32 %v2566, 7
        %v2568 = vsub.s32 4, %v2567
        %v2569 = vrot.slane %v905, %v2568
        %2572 = vrot.lane.b32.xlu0 %v898, 64
        %v2573 = vpop.permute.xlu0 %2572
        %2574 = vrot.lane.b32.xlu0 %v899, 64
        %v2575 = vpop.permute.xlu0 %2574
        %v2578 = vmul.f32 %v2509, %v2573
        %v2579 = vmul.f32 %v2509, %v2575
        %v2580 = vmul.f32 %v2513, %v2573
        %v2581 = vmul.f32 %v2513, %v2575
        %v2582 = vmul.f32 %v2517, %v2573
        %v2583 = vmul.f32 %v2517, %v2575
        %v2584 = vmul.f32 %v2521, %v2573
        %v2585 = vmul.f32 %v2521, %v2575
        %v2586 = vmul.f32 %v2525, %v2573
        %v2587 = vmul.f32 %v2525, %v2575
        %v2588 = vmul.f32 %v2529, %v2573
        %v2589 = vmul.f32 %v2529, %v2575
        %v2590 = vmul.f32 %v2533, %v2573
        %v2591 = vmul.f32 %v2533, %v2575
        %v2592 = vmul.f32 %v2537, %v2573
        %v2593 = vmul.f32 %v2537, %v2575
        %v2594 = vmul.f32 %v2541, %v2573
        %v2595 = vmul.f32 %v2541, %v2575
        %v2596 = vmul.f32 %v2545, %v2573
        %v2597 = vmul.f32 %v2545, %v2575
        %v2598 = vmul.f32 %v2549, %v2573
        %v2599 = vmul.f32 %v2549, %v2575
        %v2600 = vmul.f32 %v2553, %v2573
        %v2601 = vmul.f32 %v2553, %v2575
        %v2602 = vmul.f32 %v2557, %v2573
        %v2603 = vmul.f32 %v2557, %v2575
        %v2604 = vmul.f32 %v2561, %v2573
        %v2605 = vmul.f32 %v2561, %v2575
        %v2606 = vmul.f32 %v2565, %v2573
        %v2607 = vmul.f32 %v2565, %v2575
        %v2608 = vmul.f32 %v2569, %v2573
        %v2609 = vmul.f32 %v2569, %v2575
        %v2610 = vadd.f32 %v2474, %v2578
        %v2611 = vadd.f32 %v2475, %v2579
        %v2612 = vadd.f32 %v2476, %v2580
        %v2613 = vadd.f32 %v2477, %v2581
        %v2614 = vadd.f32 %v2478, %v2582
        %v2615 = vadd.f32 %v2479, %v2583
        %v2616 = vadd.f32 %v2480, %v2584
        %v2617 = vadd.f32 %v2481, %v2585
        %v2618 = vadd.f32 %v2482, %v2586
        %v2619 = vadd.f32 %v2483, %v2587
        %v2620 = vadd.f32 %v2484, %v2588
        %v2621 = vadd.f32 %v2485, %v2589
        %v2622 = vadd.f32 %v2486, %v2590
        %v2623 = vadd.f32 %v2487, %v2591
        %v2624 = vadd.f32 %v2488, %v2592
        %v2625 = vadd.f32 %v2489, %v2593
        %v2626 = vadd.f32 %v2490, %v2594
        %v2627 = vadd.f32 %v2491, %v2595
        %v2628 = vadd.f32 %v2492, %v2596
        %v2629 = vadd.f32 %v2493, %v2597
        %v2630 = vadd.f32 %v2494, %v2598
        %v2631 = vadd.f32 %v2495, %v2599
        %v2632 = vadd.f32 %v2496, %v2600
        %v2633 = vadd.f32 %v2497, %v2601
        %v2634 = vadd.f32 %v2498, %v2602
        %v2635 = vadd.f32 %v2499, %v2603
        %v2636 = vadd.f32 %v2500, %v2604
        %v2637 = vadd.f32 %v2501, %v2605
        %v2638 = vadd.f32 %v2502, %v2606
        %v2639 = vadd.f32 %v2503, %v2607
        %v2640 = vadd.f32 %v2504, %v2608
        %v2641 = vadd.f32 %v2505, %v2609
        %v2642 = vlaneseq
        %v2643 = vshrl.u32 %v2642, 7
        %v2644 = vsub.s32 5, %v2643
        %v2645 = vrot.slane %v875, %v2644
        %v2646 = vlaneseq
        %v2647 = vshrl.u32 %v2646, 7
        %v2648 = vsub.s32 5, %v2647
        %v2649 = vrot.slane %v877, %v2648
        %v2650 = vlaneseq
        %v2651 = vshrl.u32 %v2650, 7
        %v2652 = vsub.s32 5, %v2651
        %v2653 = vrot.slane %v879, %v2652
        %v2654 = vlaneseq
        %v2655 = vshrl.u32 %v2654, 7
        %v2656 = vsub.s32 5, %v2655
        %v2657 = vrot.slane %v881, %v2656
        %v2658 = vlaneseq
        %v2659 = vshrl.u32 %v2658, 7
        %v2660 = vsub.s32 5, %v2659
        %v2661 = vrot.slane %v883, %v2660
        %v2662 = vlaneseq
        %v2663 = vshrl.u32 %v2662, 7
        %v2664 = vsub.s32 5, %v2663
        %v2665 = vrot.slane %v885, %v2664
        %v2666 = vlaneseq
        %v2667 = vshrl.u32 %v2666, 7
        %v2668 = vsub.s32 5, %v2667
        %v2669 = vrot.slane %v887, %v2668
        %v2670 = vlaneseq
        %v2671 = vshrl.u32 %v2670, 7
        %v2672 = vsub.s32 5, %v2671
        %v2673 = vrot.slane %v889, %v2672
        %v2674 = vlaneseq
        %v2675 = vshrl.u32 %v2674, 7
        %v2676 = vsub.s32 5, %v2675
        %v2677 = vrot.slane %v891, %v2676
        %v2678 = vlaneseq
        %v2679 = vshrl.u32 %v2678, 7
        %v2680 = vsub.s32 5, %v2679
        %v2681 = vrot.slane %v893, %v2680
        %v2682 = vlaneseq
        %v2683 = vshrl.u32 %v2682, 7
        %v2684 = vsub.s32 5, %v2683
        %v2685 = vrot.slane %v895, %v2684
        %v2686 = vlaneseq
        %v2687 = vshrl.u32 %v2686, 7
        %v2688 = vsub.s32 5, %v2687
        %v2689 = vrot.slane %v897, %v2688
        %v2690 = vlaneseq
        %v2691 = vshrl.u32 %v2690, 7
        %v2692 = vsub.s32 5, %v2691
        %v2693 = vrot.slane %v899, %v2692
        %v2694 = vlaneseq
        %v2695 = vshrl.u32 %v2694, 7
        %v2696 = vsub.s32 5, %v2695
        %v2697 = vrot.slane %v901, %v2696
        %v2698 = vlaneseq
        %v2699 = vshrl.u32 %v2698, 7
        %v2700 = vsub.s32 5, %v2699
        %v2701 = vrot.slane %v903, %v2700
        %v2702 = vlaneseq
        %v2703 = vshrl.u32 %v2702, 7
        %v2704 = vsub.s32 5, %v2703
        %v2705 = vrot.slane %v905, %v2704
        %2708 = vrot.lane.b32.xlu0 %v900, 64
        %v2709 = vpop.permute.xlu0 %2708
        %2710 = vrot.lane.b32.xlu0 %v901, 64
        %v2711 = vpop.permute.xlu0 %2710
        %v2714 = vmul.f32 %v2645, %v2709
        %v2715 = vmul.f32 %v2645, %v2711
        %v2716 = vmul.f32 %v2649, %v2709
        %v2717 = vmul.f32 %v2649, %v2711
        %v2718 = vmul.f32 %v2653, %v2709
        %v2719 = vmul.f32 %v2653, %v2711
        %v2720 = vmul.f32 %v2657, %v2709
        %v2721 = vmul.f32 %v2657, %v2711
        %v2722 = vmul.f32 %v2661, %v2709
        %v2723 = vmul.f32 %v2661, %v2711
        %v2724 = vmul.f32 %v2665, %v2709
        %v2725 = vmul.f32 %v2665, %v2711
        %v2726 = vmul.f32 %v2669, %v2709
        %v2727 = vmul.f32 %v2669, %v2711
        %v2728 = vmul.f32 %v2673, %v2709
        %v2729 = vmul.f32 %v2673, %v2711
        %v2730 = vmul.f32 %v2677, %v2709
        %v2731 = vmul.f32 %v2677, %v2711
        %v2732 = vmul.f32 %v2681, %v2709
        %v2733 = vmul.f32 %v2681, %v2711
        %v2734 = vmul.f32 %v2685, %v2709
        %v2735 = vmul.f32 %v2685, %v2711
        %v2736 = vmul.f32 %v2689, %v2709
        %v2737 = vmul.f32 %v2689, %v2711
        %v2738 = vmul.f32 %v2693, %v2709
        %v2739 = vmul.f32 %v2693, %v2711
        %v2740 = vmul.f32 %v2697, %v2709
        %v2741 = vmul.f32 %v2697, %v2711
        %v2742 = vmul.f32 %v2701, %v2709
        %v2743 = vmul.f32 %v2701, %v2711
        %v2744 = vmul.f32 %v2705, %v2709
        %v2745 = vmul.f32 %v2705, %v2711
        %v2746 = vadd.f32 %v2610, %v2714
        %v2747 = vadd.f32 %v2611, %v2715
        %v2748 = vadd.f32 %v2612, %v2716
        %v2749 = vadd.f32 %v2613, %v2717
        %v2750 = vadd.f32 %v2614, %v2718
        %v2751 = vadd.f32 %v2615, %v2719
        %v2752 = vadd.f32 %v2616, %v2720
        %v2753 = vadd.f32 %v2617, %v2721
        %v2754 = vadd.f32 %v2618, %v2722
        %v2755 = vadd.f32 %v2619, %v2723
        %v2756 = vadd.f32 %v2620, %v2724
        %v2757 = vadd.f32 %v2621, %v2725
        %v2758 = vadd.f32 %v2622, %v2726
        %v2759 = vadd.f32 %v2623, %v2727
        %v2760 = vadd.f32 %v2624, %v2728
        %v2761 = vadd.f32 %v2625, %v2729
        %v2762 = vadd.f32 %v2626, %v2730
        %v2763 = vadd.f32 %v2627, %v2731
        %v2764 = vadd.f32 %v2628, %v2732
        %v2765 = vadd.f32 %v2629, %v2733
        %v2766 = vadd.f32 %v2630, %v2734
        %v2767 = vadd.f32 %v2631, %v2735
        %v2768 = vadd.f32 %v2632, %v2736
        %v2769 = vadd.f32 %v2633, %v2737
        %v2770 = vadd.f32 %v2634, %v2738
        %v2771 = vadd.f32 %v2635, %v2739
        %v2772 = vadd.f32 %v2636, %v2740
        %v2773 = vadd.f32 %v2637, %v2741
        %v2774 = vadd.f32 %v2638, %v2742
        %v2775 = vadd.f32 %v2639, %v2743
        %v2776 = vadd.f32 %v2640, %v2744
        %v2777 = vadd.f32 %v2641, %v2745
        %v2778 = vlaneseq
        %v2779 = vshrl.u32 %v2778, 7
        %v2780 = vsub.s32 6, %v2779
        %v2781 = vrot.slane %v875, %v2780
        %v2782 = vlaneseq
        %v2783 = vshrl.u32 %v2782, 7
        %v2784 = vsub.s32 6, %v2783
        %v2785 = vrot.slane %v877, %v2784
        %v2786 = vlaneseq
        %v2787 = vshrl.u32 %v2786, 7
        %v2788 = vsub.s32 6, %v2787
        %v2789 = vrot.slane %v879, %v2788
        %v2790 = vlaneseq
        %v2791 = vshrl.u32 %v2790, 7
        %v2792 = vsub.s32 6, %v2791
        %v2793 = vrot.slane %v881, %v2792
        %v2794 = vlaneseq
        %v2795 = vshrl.u32 %v2794, 7
        %v2796 = vsub.s32 6, %v2795
        %v2797 = vrot.slane %v883, %v2796
        %v2798 = vlaneseq
        %v2799 = vshrl.u32 %v2798, 7
        %v2800 = vsub.s32 6, %v2799
        %v2801 = vrot.slane %v885, %v2800
        %v2802 = vlaneseq
        %v2803 = vshrl.u32 %v2802, 7
        %v2804 = vsub.s32 6, %v2803
        %v2805 = vrot.slane %v887, %v2804
        %v2806 = vlaneseq
        %v2807 = vshrl.u32 %v2806, 7
        %v2808 = vsub.s32 6, %v2807
        %v2809 = vrot.slane %v889, %v2808
        %v2810 = vlaneseq
        %v2811 = vshrl.u32 %v2810, 7
        %v2812 = vsub.s32 6, %v2811
        %v2813 = vrot.slane %v891, %v2812
        %v2814 = vlaneseq
        %v2815 = vshrl.u32 %v2814, 7
        %v2816 = vsub.s32 6, %v2815
        %v2817 = vrot.slane %v893, %v2816
        %v2818 = vlaneseq
        %v2819 = vshrl.u32 %v2818, 7
        %v2820 = vsub.s32 6, %v2819
        %v2821 = vrot.slane %v895, %v2820
        %v2822 = vlaneseq
        %v2823 = vshrl.u32 %v2822, 7
        %v2824 = vsub.s32 6, %v2823
        %v2825 = vrot.slane %v897, %v2824
        %v2826 = vlaneseq
        %v2827 = vshrl.u32 %v2826, 7
        %v2828 = vsub.s32 6, %v2827
        %v2829 = vrot.slane %v899, %v2828
        %v2830 = vlaneseq
        %v2831 = vshrl.u32 %v2830, 7
        %v2832 = vsub.s32 6, %v2831
        %v2833 = vrot.slane %v901, %v2832
        %v2834 = vlaneseq
        %v2835 = vshrl.u32 %v2834, 7
        %v2836 = vsub.s32 6, %v2835
        %v2837 = vrot.slane %v903, %v2836
        %v2838 = vlaneseq
        %v2839 = vshrl.u32 %v2838, 7
        %v2840 = vsub.s32 6, %v2839
        %v2841 = vrot.slane %v905, %v2840
        %2844 = vrot.lane.b32.xlu0 %v902, 64
        %v2845 = vpop.permute.xlu0 %2844
        %2846 = vrot.lane.b32.xlu0 %v903, 64
        %v2847 = vpop.permute.xlu0 %2846
        %v2850 = vmul.f32 %v2781, %v2845
        %v2851 = vmul.f32 %v2781, %v2847
        %v2852 = vmul.f32 %v2785, %v2845
        %v2853 = vmul.f32 %v2785, %v2847
        %v2854 = vmul.f32 %v2789, %v2845
        %v2855 = vmul.f32 %v2789, %v2847
        %v2856 = vmul.f32 %v2793, %v2845
        %v2857 = vmul.f32 %v2793, %v2847
        %v2858 = vmul.f32 %v2797, %v2845
        %v2859 = vmul.f32 %v2797, %v2847
        %v2860 = vmul.f32 %v2801, %v2845
        %v2861 = vmul.f32 %v2801, %v2847
        %v2862 = vmul.f32 %v2805, %v2845
        %v2863 = vmul.f32 %v2805, %v2847
        %v2864 = vmul.f32 %v2809, %v2845
        %v2865 = vmul.f32 %v2809, %v2847
        %v2866 = vmul.f32 %v2813, %v2845
        %v2867 = vmul.f32 %v2813, %v2847
        %v2868 = vmul.f32 %v2817, %v2845
        %v2869 = vmul.f32 %v2817, %v2847
        %v2870 = vmul.f32 %v2821, %v2845
        %v2871 = vmul.f32 %v2821, %v2847
        %v2872 = vmul.f32 %v2825, %v2845
        %v2873 = vmul.f32 %v2825, %v2847
        %v2874 = vmul.f32 %v2829, %v2845
        %v2875 = vmul.f32 %v2829, %v2847
        %v2876 = vmul.f32 %v2833, %v2845
        %v2877 = vmul.f32 %v2833, %v2847
        %v2878 = vmul.f32 %v2837, %v2845
        %v2879 = vmul.f32 %v2837, %v2847
        %v2880 = vmul.f32 %v2841, %v2845
        %v2881 = vmul.f32 %v2841, %v2847
        %v2882 = vadd.f32 %v2746, %v2850
        %v2883 = vadd.f32 %v2747, %v2851
        %v2884 = vadd.f32 %v2748, %v2852
        %v2885 = vadd.f32 %v2749, %v2853
        %v2886 = vadd.f32 %v2750, %v2854
        %v2887 = vadd.f32 %v2751, %v2855
        %v2888 = vadd.f32 %v2752, %v2856
        %v2889 = vadd.f32 %v2753, %v2857
        %v2890 = vadd.f32 %v2754, %v2858
        %v2891 = vadd.f32 %v2755, %v2859
        %v2892 = vadd.f32 %v2756, %v2860
        %v2893 = vadd.f32 %v2757, %v2861
        %v2894 = vadd.f32 %v2758, %v2862
        %v2895 = vadd.f32 %v2759, %v2863
        %v2896 = vadd.f32 %v2760, %v2864
        %v2897 = vadd.f32 %v2761, %v2865
        %v2898 = vadd.f32 %v2762, %v2866
        %v2899 = vadd.f32 %v2763, %v2867
        %v2900 = vadd.f32 %v2764, %v2868
        %v2901 = vadd.f32 %v2765, %v2869
        %v2902 = vadd.f32 %v2766, %v2870
        %v2903 = vadd.f32 %v2767, %v2871
        %v2904 = vadd.f32 %v2768, %v2872
        %v2905 = vadd.f32 %v2769, %v2873
        %v2906 = vadd.f32 %v2770, %v2874
        %v2907 = vadd.f32 %v2771, %v2875
        %v2908 = vadd.f32 %v2772, %v2876
        %v2909 = vadd.f32 %v2773, %v2877
        %v2910 = vadd.f32 %v2774, %v2878
        %v2911 = vadd.f32 %v2775, %v2879
        %v2912 = vadd.f32 %v2776, %v2880
        %v2913 = vadd.f32 %v2777, %v2881
        %v2914 = vlaneseq
        %v2915 = vshrl.u32 %v2914, 7
        %v2916 = vsub.s32 7, %v2915
        %v2917 = vrot.slane %v875, %v2916
        %v2918 = vlaneseq
        %v2919 = vshrl.u32 %v2918, 7
        %v2920 = vsub.s32 7, %v2919
        %v2921 = vrot.slane %v877, %v2920
        %v2922 = vlaneseq
        %v2923 = vshrl.u32 %v2922, 7
        %v2924 = vsub.s32 7, %v2923
        %v2925 = vrot.slane %v879, %v2924
        %v2926 = vlaneseq
        %v2927 = vshrl.u32 %v2926, 7
        %v2928 = vsub.s32 7, %v2927
        %v2929 = vrot.slane %v881, %v2928
        %v2930 = vlaneseq
        %v2931 = vshrl.u32 %v2930, 7
        %v2932 = vsub.s32 7, %v2931
        %v2933 = vrot.slane %v883, %v2932
        %v2934 = vlaneseq
        %v2935 = vshrl.u32 %v2934, 7
        %v2936 = vsub.s32 7, %v2935
        %v2937 = vrot.slane %v885, %v2936
        %v2938 = vlaneseq
        %v2939 = vshrl.u32 %v2938, 7
        %v2940 = vsub.s32 7, %v2939
        %v2941 = vrot.slane %v887, %v2940
        %v2942 = vlaneseq
        %v2943 = vshrl.u32 %v2942, 7
        %v2944 = vsub.s32 7, %v2943
        %v2945 = vrot.slane %v889, %v2944
        %v2946 = vlaneseq
        %v2947 = vshrl.u32 %v2946, 7
        %v2948 = vsub.s32 7, %v2947
        %v2949 = vrot.slane %v891, %v2948
        %v2950 = vlaneseq
        %v2951 = vshrl.u32 %v2950, 7
        %v2952 = vsub.s32 7, %v2951
        %v2953 = vrot.slane %v893, %v2952
        %v2954 = vlaneseq
        %v2955 = vshrl.u32 %v2954, 7
        %v2956 = vsub.s32 7, %v2955
        %v2957 = vrot.slane %v895, %v2956
        %v2958 = vlaneseq
        %v2959 = vshrl.u32 %v2958, 7
        %v2960 = vsub.s32 7, %v2959
        %v2961 = vrot.slane %v897, %v2960
        %v2962 = vlaneseq
        %v2963 = vshrl.u32 %v2962, 7
        %v2964 = vsub.s32 7, %v2963
        %v2965 = vrot.slane %v899, %v2964
        %v2966 = vlaneseq
        %v2967 = vshrl.u32 %v2966, 7
        %v2968 = vsub.s32 7, %v2967
        %v2969 = vrot.slane %v901, %v2968
        %v2970 = vlaneseq
        %v2971 = vshrl.u32 %v2970, 7
        %v2972 = vsub.s32 7, %v2971
        %v2973 = vrot.slane %v903, %v2972
        %v2974 = vlaneseq
        %v2975 = vshrl.u32 %v2974, 7
        %v2976 = vsub.s32 7, %v2975
        %v2977 = vrot.slane %v905, %v2976
        %2980 = vrot.lane.b32.xlu0 %v904, 64
        %v2981 = vpop.permute.xlu0 %2980
        %2982 = vrot.lane.b32.xlu0 %v905, 64
        %v2983 = vpop.permute.xlu0 %2982
        %v2986 = vmul.f32 %v2917, %v2981
        %v2987 = vmul.f32 %v2917, %v2983
        %v2988 = vmul.f32 %v2921, %v2981
        %v2989 = vmul.f32 %v2921, %v2983
        %v2990 = vmul.f32 %v2925, %v2981
        %v2991 = vmul.f32 %v2925, %v2983
        %v2992 = vmul.f32 %v2929, %v2981
        %v2993 = vmul.f32 %v2929, %v2983
        %v2994 = vmul.f32 %v2933, %v2981
        %v2995 = vmul.f32 %v2933, %v2983
        %v2996 = vmul.f32 %v2937, %v2981
        %v2997 = vmul.f32 %v2937, %v2983
        %v2998 = vmul.f32 %v2941, %v2981
        %v2999 = vmul.f32 %v2941, %v2983
        %v3000 = vmul.f32 %v2945, %v2981
        %v3001 = vmul.f32 %v2945, %v2983
        %v3002 = vmul.f32 %v2949, %v2981
        %v3003 = vmul.f32 %v2949, %v2983
        %v3004 = vmul.f32 %v2953, %v2981
        %v3005 = vmul.f32 %v2953, %v2983
        %v3006 = vmul.f32 %v2957, %v2981
        %v3007 = vmul.f32 %v2957, %v2983
        %v3008 = vmul.f32 %v2961, %v2981
        %v3009 = vmul.f32 %v2961, %v2983
        %v3010 = vmul.f32 %v2965, %v2981
        %v3011 = vmul.f32 %v2965, %v2983
        %v3012 = vmul.f32 %v2969, %v2981
        %v3013 = vmul.f32 %v2969, %v2983
        %v3014 = vmul.f32 %v2973, %v2981
        %v3015 = vmul.f32 %v2973, %v2983
        %v3016 = vmul.f32 %v2977, %v2981
        %v3017 = vmul.f32 %v2977, %v2983
        %v3018 = vadd.f32 %v2882, %v2986
        %v3019 = vadd.f32 %v2883, %v2987
        %v3020 = vadd.f32 %v2884, %v2988
        %v3021 = vadd.f32 %v2885, %v2989
        %v3022 = vadd.f32 %v2886, %v2990
        %v3023 = vadd.f32 %v2887, %v2991
        %v3024 = vadd.f32 %v2888, %v2992
        %v3025 = vadd.f32 %v2889, %v2993
        %v3026 = vadd.f32 %v2890, %v2994
        %v3027 = vadd.f32 %v2891, %v2995
        %v3028 = vadd.f32 %v2892, %v2996
        %v3029 = vadd.f32 %v2893, %v2997
        %v3030 = vadd.f32 %v2894, %v2998
        %v3031 = vadd.f32 %v2895, %v2999
        %v3032 = vadd.f32 %v2896, %v3000
        %v3033 = vadd.f32 %v2897, %v3001
        %v3034 = vadd.f32 %v2898, %v3002
        %v3035 = vadd.f32 %v2899, %v3003
        %v3036 = vadd.f32 %v2900, %v3004
        %v3037 = vadd.f32 %v2901, %v3005
        %v3038 = vadd.f32 %v2902, %v3006
        %v3039 = vadd.f32 %v2903, %v3007
        %v3040 = vadd.f32 %v2904, %v3008
        %v3041 = vadd.f32 %v2905, %v3009
        %v3042 = vadd.f32 %v2906, %v3010
        %v3043 = vadd.f32 %v2907, %v3011
        %v3044 = vadd.f32 %v2908, %v3012
        %v3045 = vadd.f32 %v2909, %v3013
        %v3046 = vadd.f32 %v2910, %v3014
        %v3047 = vadd.f32 %v2911, %v3015
        %v3048 = vadd.f32 %v2912, %v3016
        %v3049 = vadd.f32 %v2913, %v3017
        %v3050 = vld [vmem:[%s3] sm:$0xff]
        %v3051 = vld [vmem:[%s3 + $0x8] sm:$0xff]
        %v3052 = vld [vmem:[%s3 + $0x10] sm:$0xff]
        %v3053 = vld [vmem:[%s3 + $0x18] sm:$0xff]
        %v3054 = vld [vmem:[%s3 + $0x20] sm:$0xff]
        %v3055 = vld [vmem:[%s3 + $0x28] sm:$0xff]
        %v3056 = vld [vmem:[%s3 + $0x30] sm:$0xff]
        %v3057 = vld [vmem:[%s3 + $0x38] sm:$0xff]
        %s3058 = scalar_lea.vmem %s3, 64
        %v3059 = vld [vmem:[%s3058] sm:$0xff]
        %v3060 = vld [vmem:[%s3058 + $0x8] sm:$0xff]
        %v3061 = vld [vmem:[%s3058 + $0x10] sm:$0xff]
        %v3062 = vld [vmem:[%s3058 + $0x18] sm:$0xff]
        %v3063 = vld [vmem:[%s3058 + $0x20] sm:$0xff]
        %v3064 = vld [vmem:[%s3058 + $0x28] sm:$0xff]
        %v3065 = vld [vmem:[%s3058 + $0x30] sm:$0xff]
        %v3066 = vld [vmem:[%s3058 + $0x38] sm:$0xff]
        %v3067 = vld [vmem:[%s4] sm:$0x1]
        %v3069 = vsel %vm270, %v3018, 0
        %v3072 = vsel %vm270, %v3019, 0
        %v3075 = vsel %vm270, %v3020, 0
        %v3078 = vsel %vm270, %v3021, 0
        %v3081 = vsel %vm270, %v3022, 0
        %v3084 = vsel %vm270, %v3023, 0
        %v3087 = vsel %vm270, %v3024, 0
        %v3090 = vsel %vm270, %v3025, 0
        %v3093 = vsel %vm270, %v3026, 0
        %v3096 = vsel %vm270, %v3027, 0
        %v3099 = vsel %vm270, %v3028, 0
        %v3102 = vsel %vm270, %v3029, 0
        %v3105 = vsel %vm270, %v3030, 0
        %v3108 = vsel %vm270, %v3031, 0
        %v3111 = vsel %vm270, %v3032, 0
        %v3114 = vsel %vm270, %v3033, 0
        %v3117 = vsel %vm270, %v3034, 0
        %v3120 = vsel %vm270, %v3035, 0
        %v3123 = vsel %vm270, %v3036, 0
        %v3126 = vsel %vm270, %v3037, 0
        %v3129 = vsel %vm270, %v3038, 0
        %v3132 = vsel %vm270, %v3039, 0
        %v3135 = vsel %vm270, %v3040, 0
        %v3138 = vsel %vm270, %v3041, 0
        %v3141 = vsel %vm270, %v3042, 0
        %v3144 = vsel %vm270, %v3043, 0
        %v3147 = vsel %vm270, %v3044, 0
        %v3150 = vsel %vm270, %v3045, 0
        %v3153 = vsel %vm270, %v3046, 0
        %v3156 = vsel %vm270, %v3047, 0
        %v3159 = vsel %vm270, %v3048, 0
        %v3162 = vsel %vm270, %v3049, 0
        %3164 = vmatprep.subr.mxu0 0.0
        %3165 = vmatpush1.msra.mxu0 0.0
        %3166 = vmatprep.subr.mxu0 0.0
        %3167 = vmatpush1.msra.mxu0 0.0
        %3168 = vmatprep.subr.mxu0 0.0
        %3169 = vmatpush1.msra.mxu0 0.0
        %3170 = vmatprep.subr.mxu0 0.0
        %3171 = vmatpush1.msra.mxu0 0.0
        %3172 = vmatprep.subr.mxu0 0.0
        %3173 = vmatpush1.msra.mxu0 0.0
        %3174 = vmatprep.subr.mxu0 0.0
        %3175 = vmatpush1.msra.mxu0 0.0
        %3176 = vmatprep.subr.mxu0 0.0
        %3177 = vmatpush1.msra.mxu0 0.0
        %3178 = vmatprep.subr.mxu0 0.0
        %3179 = vmatpush1.msra.mxu0 0.0
        %3180 = vmatprep.subr.mxu0 0.0
        %3181 = vmatpush1.msra.mxu0 %v3066
        %3182 = vmatprep.subr.mxu0 0.0
        %3183 = vmatpush1.msra.mxu0 %v3065
        %3184 = vmatprep.subr.mxu0 0.0
        %3185 = vmatpush1.msra.mxu0 %v3064
        %3186 = vmatprep.subr.mxu0 0.0
        %3187 = vmatpush1.msra.mxu0 %v3063
        %3188 = vmatprep.subr.mxu0 0.0
        %3189 = vmatpush1.msra.mxu0 %v3062
        %3190 = vmatprep.subr.mxu0 0.0
        %3191 = vmatpush1.msra.mxu0 %v3061
        %3192 = vmatprep.subr.mxu0 0.0
        %3193 = vmatpush1.msra.mxu0 %v3060
        %3194 = vmatprep.subr.mxu0 0.0
        %3195 = vmatpush1.msra.mxu0 %v3059
        %3196 = vmatprep.subr.mxu0 0.0
        %3197 = vmatpush2.msra.mxu0 0.0
        %3198 = vmatprep.subr.mxu0 0.0
        %3199 = vmatpush2.msra.mxu0 0.0
        %3200 = vmatprep.subr.mxu0 0.0
        %3201 = vmatpush2.msra.mxu0 0.0
        %3202 = vmatprep.subr.mxu0 0.0
        %3203 = vmatpush2.msra.mxu0 0.0
        %3204 = vmatprep.subr.mxu0 0.0
        %3205 = vmatpush2.msra.mxu0 0.0
        %3206 = vmatprep.subr.mxu0 0.0
        %3207 = vmatpush2.msra.mxu0 0.0
        %3208 = vmatprep.subr.mxu0 0.0
        %3209 = vmatpush2.msra.mxu0 0.0
        %3210 = vmatprep.subr.mxu0 0.0
        %3211 = vmatpush2.msra.mxu0 0.0
        %3212 = vmatprep.subr.mxu0 0.0
        %3213 = vmatpush2.msra.mxu0 0.0
        %3214 = vmatprep.subr.mxu0 0.0
        %3215 = vmatpush2.msra.mxu0 0.0
        %3216 = vmatprep.subr.mxu0 0.0
        %3217 = vmatpush2.msra.mxu0 0.0
        %3218 = vmatprep.subr.mxu0 0.0
        %3219 = vmatpush2.msra.mxu0 0.0
        %3220 = vmatprep.subr.mxu0 0.0
        %3221 = vmatpush2.msra.mxu0 0.0
        %3222 = vmatprep.subr.mxu0 0.0
        %3223 = vmatpush2.msra.mxu0 0.0
        %3224 = vmatprep.subr.mxu0 0.0
        %3225 = vmatpush2.msra.mxu0 0.0
        %3226 = vmatprep.subr.mxu0 0.0
        %3227 = vmatpush2.msra.mxu0 0.0
        %3228 = vmatprep.mubr.f32.mxu0 0.0
        %3229 = vmatmul.mubr.f32.gmra.mxu0 %v3069
        %v3230 = vpop.f32.mrf.mxu0
        %v3231 = vadd.f32 0.0, %v3230
        %v3232 = vpop.f32.mrf.mxu0
        %3233 = vmatprep.mubr.f32.mxu0 0.0
        %3234 = vmatmul.mubr.f32.gmra.mxu0 %v3072
        %v3235 = vpop.f32.mrf.mxu0
        %v3236 = vadd.f32 0.0, %v3235
        %v3237 = vpop.f32.mrf.mxu0
        %3238 = vmatprep.mubr.f32.mxu0 0.0
        %3239 = vmatmul.mubr.f32.gmra.mxu0 %v3075
        %v3240 = vpop.f32.mrf.mxu0
        %v3241 = vadd.f32 0.0, %v3240
        %v3242 = vpop.f32.mrf.mxu0
        %3243 = vmatprep.mubr.f32.mxu0 0.0
        %3244 = vmatmul.mubr.f32.gmra.mxu0 %v3078
        %v3245 = vpop.f32.mrf.mxu0
        %v3246 = vadd.f32 0.0, %v3245
        %v3247 = vpop.f32.mrf.mxu0
        %3248 = vmatprep.mubr.f32.mxu0 0.0
        %3249 = vmatmul.mubr.f32.gmra.mxu0 %v3081
        %v3250 = vpop.f32.mrf.mxu0
        %v3251 = vadd.f32 0.0, %v3250
        %v3252 = vpop.f32.mrf.mxu0
        %3253 = vmatprep.mubr.f32.mxu0 0.0
        %3254 = vmatmul.mubr.f32.gmra.mxu0 %v3084
        %v3255 = vpop.f32.mrf.mxu0
        %v3256 = vadd.f32 0.0, %v3255
        %v3257 = vpop.f32.mrf.mxu0
        %3258 = vmatprep.mubr.f32.mxu0 0.0
        %3259 = vmatmul.mubr.f32.gmra.mxu0 %v3087
        %v3260 = vpop.f32.mrf.mxu0
        %v3261 = vadd.f32 0.0, %v3260
        %v3262 = vpop.f32.mrf.mxu0
        %3263 = vmatprep.mubr.f32.mxu0 0.0
        %3264 = vmatmul.mubr.f32.gmra.mxu0 %v3090
        %v3265 = vpop.f32.mrf.mxu0
        %v3266 = vadd.f32 0.0, %v3265
        %v3267 = vpop.f32.mrf.mxu0
        %3268 = vmatprep.mubr.f32.mxu0 0.0
        %3269 = vmatmul.mubr.f32.gmra.mxu0 %v3093
        %v3270 = vpop.f32.mrf.mxu0
        %v3271 = vadd.f32 0.0, %v3270
        %v3272 = vpop.f32.mrf.mxu0
        %3273 = vmatprep.mubr.f32.mxu0 0.0
        %3274 = vmatmul.mubr.f32.gmra.mxu0 %v3096
        %v3275 = vpop.f32.mrf.mxu0
        %v3276 = vadd.f32 0.0, %v3275
        %v3277 = vpop.f32.mrf.mxu0
        %3278 = vmatprep.mubr.f32.mxu0 0.0
        %3279 = vmatmul.mubr.f32.gmra.mxu0 %v3099
        %v3280 = vpop.f32.mrf.mxu0
        %v3281 = vadd.f32 0.0, %v3280
        %v3282 = vpop.f32.mrf.mxu0
        %3283 = vmatprep.mubr.f32.mxu0 0.0
        %3284 = vmatmul.mubr.f32.gmra.mxu0 %v3102
        %v3285 = vpop.f32.mrf.mxu0
        %v3286 = vadd.f32 0.0, %v3285
        %v3287 = vpop.f32.mrf.mxu0
        %3288 = vmatprep.mubr.f32.mxu0 0.0
        %3289 = vmatmul.mubr.f32.gmra.mxu0 %v3105
        %v3290 = vpop.f32.mrf.mxu0
        %v3291 = vadd.f32 0.0, %v3290
        %v3292 = vpop.f32.mrf.mxu0
        %3293 = vmatprep.mubr.f32.mxu0 0.0
        %3294 = vmatmul.mubr.f32.gmra.mxu0 %v3108
        %v3295 = vpop.f32.mrf.mxu0
        %v3296 = vadd.f32 0.0, %v3295
        %v3297 = vpop.f32.mrf.mxu0
        %3298 = vmatprep.mubr.f32.mxu0 0.0
        %3299 = vmatmul.mubr.f32.gmra.mxu0 %v3111
        %v3300 = vpop.f32.mrf.mxu0
        %v3301 = vadd.f32 0.0, %v3300
        %v3302 = vpop.f32.mrf.mxu0
        %3303 = vmatprep.mubr.f32.mxu0 0.0
        %3304 = vmatmul.mubr.f32.gmra.mxu0 %v3114
        %v3305 = vpop.f32.mrf.mxu0
        %v3306 = vadd.f32 0.0, %v3305
        %v3307 = vpop.f32.mrf.mxu0
        %3308 = vmatprep.mubr.f32.mxu0 0.0
        %3309 = vmatmul.mubr.f32.gmra.mxu0 %v3117
        %v3310 = vpop.f32.mrf.mxu0
        %v3311 = vadd.f32 0.0, %v3310
        %v3312 = vpop.f32.mrf.mxu0
        %3313 = vmatprep.mubr.f32.mxu0 0.0
        %3314 = vmatmul.mubr.f32.gmra.mxu0 %v3120
        %v3315 = vpop.f32.mrf.mxu0
        %v3316 = vadd.f32 0.0, %v3315
        %v3317 = vpop.f32.mrf.mxu0
        %3318 = vmatprep.mubr.f32.mxu0 0.0
        %3319 = vmatmul.mubr.f32.gmra.mxu0 %v3123
        %v3320 = vpop.f32.mrf.mxu0
        %v3321 = vadd.f32 0.0, %v3320
        %v3322 = vpop.f32.mrf.mxu0
        %3323 = vmatprep.mubr.f32.mxu0 0.0
        %3324 = vmatmul.mubr.f32.gmra.mxu0 %v3126
        %v3325 = vpop.f32.mrf.mxu0
        %v3326 = vadd.f32 0.0, %v3325
        %v3327 = vpop.f32.mrf.mxu0
        %3328 = vmatprep.mubr.f32.mxu0 0.0
        %3329 = vmatmul.mubr.f32.gmra.mxu0 %v3129
        %v3330 = vpop.f32.mrf.mxu0
        %v3331 = vadd.f32 0.0, %v3330
        %v3332 = vpop.f32.mrf.mxu0
        %3333 = vmatprep.mubr.f32.mxu0 0.0
        %3334 = vmatmul.mubr.f32.gmra.mxu0 %v3132
        %v3335 = vpop.f32.mrf.mxu0
        %v3336 = vadd.f32 0.0, %v3335
        %v3337 = vpop.f32.mrf.mxu0
        %3338 = vmatprep.mubr.f32.mxu0 0.0
        %3339 = vmatmul.mubr.f32.gmra.mxu0 %v3135
        %v3340 = vpop.f32.mrf.mxu0
        %v3341 = vadd.f32 0.0, %v3340
        %v3342 = vpop.f32.mrf.mxu0
        %3343 = vmatprep.mubr.f32.mxu0 0.0
        %3344 = vmatmul.mubr.f32.gmra.mxu0 %v3138
        %v3345 = vpop.f32.mrf.mxu0
        %v3346 = vadd.f32 0.0, %v3345
        %v3347 = vpop.f32.mrf.mxu0
        %3348 = vmatprep.mubr.f32.mxu0 0.0
        %3349 = vmatmul.mubr.f32.gmra.mxu0 %v3141
        %v3350 = vpop.f32.mrf.mxu0
        %v3351 = vadd.f32 0.0, %v3350
        %v3352 = vpop.f32.mrf.mxu0
        %3353 = vmatprep.mubr.f32.mxu0 0.0
        %3354 = vmatmul.mubr.f32.gmra.mxu0 %v3144
        %v3355 = vpop.f32.mrf.mxu0
        %v3356 = vadd.f32 0.0, %v3355
        %v3357 = vpop.f32.mrf.mxu0
        %3358 = vmatprep.mubr.f32.mxu0 0.0
        %3359 = vmatmul.mubr.f32.gmra.mxu0 %v3147
        %v3360 = vpop.f32.mrf.mxu0
        %v3361 = vadd.f32 0.0, %v3360
        %v3362 = vpop.f32.mrf.mxu0
        %3363 = vmatprep.mubr.f32.mxu0 0.0
        %3364 = vmatmul.mubr.f32.gmra.mxu0 %v3150
        %v3365 = vpop.f32.mrf.mxu0
        %v3366 = vadd.f32 0.0, %v3365
        %v3367 = vpop.f32.mrf.mxu0
        %3368 = vmatprep.mubr.f32.mxu0 0.0
        %3369 = vmatmul.mubr.f32.gmra.mxu0 %v3153
        %v3370 = vpop.f32.mrf.mxu0
        %v3371 = vadd.f32 0.0, %v3370
        %v3372 = vpop.f32.mrf.mxu0
        %3373 = vmatprep.mubr.f32.mxu0 0.0
        %3374 = vmatmul.mubr.f32.gmra.mxu0 %v3156
        %v3375 = vpop.f32.mrf.mxu0
        %v3376 = vadd.f32 0.0, %v3375
        %v3377 = vpop.f32.mrf.mxu0
        %3378 = vmatprep.mubr.f32.mxu0 0.0
        %3379 = vmatmul.mubr.f32.gmra.mxu0 %v3159
        %v3380 = vpop.f32.mrf.mxu0
        %v3381 = vadd.f32 0.0, %v3380
        %v3382 = vpop.f32.mrf.mxu0
        %3383 = vmatprep.mubr.f32.mxu0 0.0
        %3384 = vmatmul.mubr.f32.gmra.mxu0 %v3162
        %v3385 = vpop.f32.mrf.mxu0
        %v3386 = vadd.f32 0.0, %v3385
        %v3387 = vpop.f32.mrf.mxu0
        %3388 = vdwg.mxu0
        %3389 = vmatprep.subr.mxu0 0.0
        %3390 = vmatpush1.msra.mxu0 0.0
        %3391 = vmatprep.subr.mxu0 0.0
        %3392 = vmatpush1.msra.mxu0 0.0
        %3393 = vmatprep.subr.mxu0 0.0
        %3394 = vmatpush1.msra.mxu0 0.0
        %3395 = vmatprep.subr.mxu0 0.0
        %3396 = vmatpush1.msra.mxu0 0.0
        %3397 = vmatprep.subr.mxu0 0.0
        %3398 = vmatpush1.msra.mxu0 0.0
        %3399 = vmatprep.subr.mxu0 0.0
        %3400 = vmatpush1.msra.mxu0 0.0
        %3401 = vmatprep.subr.mxu0 0.0
        %3402 = vmatpush1.msra.mxu0 0.0
        %3403 = vmatprep.subr.mxu0 0.0
        %3404 = vmatpush1.msra.mxu0 0.0
        %3405 = vmatprep.subr.mxu0 0.0
        %3406 = vmatpush1.msra.mxu0 %v3057
        %3407 = vmatprep.subr.mxu0 0.0
        %3408 = vmatpush1.msra.mxu0 %v3056
        %3409 = vmatprep.subr.mxu0 0.0
        %3410 = vmatpush1.msra.mxu0 %v3055
        %3411 = vmatprep.subr.mxu0 0.0
        %3412 = vmatpush1.msra.mxu0 %v3054
        %3413 = vmatprep.subr.mxu0 0.0
        %3414 = vmatpush1.msra.mxu0 %v3053
        %3415 = vmatprep.subr.mxu0 0.0
        %3416 = vmatpush1.msra.mxu0 %v3052
        %3417 = vmatprep.subr.mxu0 0.0
        %3418 = vmatpush1.msra.mxu0 %v3051
        %3419 = vmatprep.subr.mxu0 0.0
        %3420 = vmatpush1.msra.mxu0 %v3050
        %3421 = vmatprep.subr.mxu0 0.0
        %3422 = vmatpush2.msra.mxu0 0.0
        %3423 = vmatprep.subr.mxu0 0.0
        %3424 = vmatpush2.msra.mxu0 0.0
        %3425 = vmatprep.subr.mxu0 0.0
        %3426 = vmatpush2.msra.mxu0 0.0
        %3427 = vmatprep.subr.mxu0 0.0
        %3428 = vmatpush2.msra.mxu0 0.0
        %3429 = vmatprep.subr.mxu0 0.0
        %3430 = vmatpush2.msra.mxu0 0.0
        %3431 = vmatprep.subr.mxu0 0.0
        %3432 = vmatpush2.msra.mxu0 0.0
        %3433 = vmatprep.subr.mxu0 0.0
        %3434 = vmatpush2.msra.mxu0 0.0
        %3435 = vmatprep.subr.mxu0 0.0
        %3436 = vmatpush2.msra.mxu0 0.0
        %3437 = vmatprep.subr.mxu0 0.0
        %3438 = vmatpush2.msra.mxu0 0.0
        %3439 = vmatprep.subr.mxu0 0.0
        %3440 = vmatpush2.msra.mxu0 0.0
        %3441 = vmatprep.subr.mxu0 0.0
        %3442 = vmatpush2.msra.mxu0 0.0
        %3443 = vmatprep.subr.mxu0 0.0
        %3444 = vmatpush2.msra.mxu0 0.0
        %3445 = vmatprep.subr.mxu0 0.0
        %3446 = vmatpush2.msra.mxu0 0.0
        %3447 = vmatprep.subr.mxu0 0.0
        %3448 = vmatpush2.msra.mxu0 0.0
        %3449 = vmatprep.subr.mxu0 0.0
        %3450 = vmatpush2.msra.mxu0 0.0
        %3451 = vmatprep.subr.mxu0 0.0
        %3452 = vmatpush2.msra.mxu0 0.0
        %3453 = vmatprep.mubr.f32.mxu0 0.0
        %3454 = vmatmul.mubr.f32.gmra.mxu0 %v272
        %v3455 = vpop.f32.mrf.mxu0
        %v3456 = vadd.f32 %v3231, %v3455
        %v3457 = vpop.f32.mrf.mxu0
        %3458 = vmatprep.mubr.f32.mxu0 0.0
        %3459 = vmatmul.mubr.f32.gmra.mxu0 %v275
        %v3460 = vpop.f32.mrf.mxu0
        %v3461 = vadd.f32 %v3236, %v3460
        %v3462 = vpop.f32.mrf.mxu0
        %3463 = vmatprep.mubr.f32.mxu0 0.0
        %3464 = vmatmul.mubr.f32.gmra.mxu0 %v278
        %v3465 = vpop.f32.mrf.mxu0
        %v3466 = vadd.f32 %v3241, %v3465
        %v3467 = vpop.f32.mrf.mxu0
        %3468 = vmatprep.mubr.f32.mxu0 0.0
        %3469 = vmatmul.mubr.f32.gmra.mxu0 %v281
        %v3470 = vpop.f32.mrf.mxu0
        %v3471 = vadd.f32 %v3246, %v3470
        %v3472 = vpop.f32.mrf.mxu0
        %3473 = vmatprep.mubr.f32.mxu0 0.0
        %3474 = vmatmul.mubr.f32.gmra.mxu0 %v284
        %v3475 = vpop.f32.mrf.mxu0
        %v3476 = vadd.f32 %v3251, %v3475
        %v3477 = vpop.f32.mrf.mxu0
        %3478 = vmatprep.mubr.f32.mxu0 0.0
        %3479 = vmatmul.mubr.f32.gmra.mxu0 %v287
        %v3480 = vpop.f32.mrf.mxu0
        %v3481 = vadd.f32 %v3256, %v3480
        %v3482 = vpop.f32.mrf.mxu0
        %3483 = vmatprep.mubr.f32.mxu0 0.0
        %3484 = vmatmul.mubr.f32.gmra.mxu0 %v290
        %v3485 = vpop.f32.mrf.mxu0
        %v3486 = vadd.f32 %v3261, %v3485
        %v3487 = vpop.f32.mrf.mxu0
        %3488 = vmatprep.mubr.f32.mxu0 0.0
        %3489 = vmatmul.mubr.f32.gmra.mxu0 %v293
        %v3490 = vpop.f32.mrf.mxu0
        %v3491 = vadd.f32 %v3266, %v3490
        %v3492 = vpop.f32.mrf.mxu0
        %3493 = vmatprep.mubr.f32.mxu0 0.0
        %3494 = vmatmul.mubr.f32.gmra.mxu0 %v296
        %v3495 = vpop.f32.mrf.mxu0
        %v3496 = vadd.f32 %v3271, %v3495
        %v3497 = vpop.f32.mrf.mxu0
        %3498 = vmatprep.mubr.f32.mxu0 0.0
        %3499 = vmatmul.mubr.f32.gmra.mxu0 %v299
        %v3500 = vpop.f32.mrf.mxu0
        %v3501 = vadd.f32 %v3276, %v3500
        %v3502 = vpop.f32.mrf.mxu0
        %3503 = vmatprep.mubr.f32.mxu0 0.0
        %3504 = vmatmul.mubr.f32.gmra.mxu0 %v302
        %v3505 = vpop.f32.mrf.mxu0
        %v3506 = vadd.f32 %v3281, %v3505
        %v3507 = vpop.f32.mrf.mxu0
        %3508 = vmatprep.mubr.f32.mxu0 0.0
        %3509 = vmatmul.mubr.f32.gmra.mxu0 %v305
        %v3510 = vpop.f32.mrf.mxu0
        %v3511 = vadd.f32 %v3286, %v3510
        %v3512 = vpop.f32.mrf.mxu0
        %3513 = vmatprep.mubr.f32.mxu0 0.0
        %3514 = vmatmul.mubr.f32.gmra.mxu0 %v308
        %v3515 = vpop.f32.mrf.mxu0
        %v3516 = vadd.f32 %v3291, %v3515
        %v3517 = vpop.f32.mrf.mxu0
        %3518 = vmatprep.mubr.f32.mxu0 0.0
        %3519 = vmatmul.mubr.f32.gmra.mxu0 %v311
        %v3520 = vpop.f32.mrf.mxu0
        %v3521 = vadd.f32 %v3296, %v3520
        %v3522 = vpop.f32.mrf.mxu0
        %3523 = vmatprep.mubr.f32.mxu0 0.0
        %3524 = vmatmul.mubr.f32.gmra.mxu0 %v314
        %v3525 = vpop.f32.mrf.mxu0
        %v3526 = vadd.f32 %v3301, %v3525
        %v3527 = vpop.f32.mrf.mxu0
        %3528 = vmatprep.mubr.f32.mxu0 0.0
        %3529 = vmatmul.mubr.f32.gmra.mxu0 %v317
        %v3530 = vpop.f32.mrf.mxu0
        %v3531 = vadd.f32 %v3306, %v3530
        %v3532 = vpop.f32.mrf.mxu0
        %3533 = vmatprep.mubr.f32.mxu0 0.0
        %3534 = vmatmul.mubr.f32.gmra.mxu0 %v320
        %v3535 = vpop.f32.mrf.mxu0
        %v3536 = vadd.f32 %v3311, %v3535
        %v3537 = vpop.f32.mrf.mxu0
        %3538 = vmatprep.mubr.f32.mxu0 0.0
        %3539 = vmatmul.mubr.f32.gmra.mxu0 %v323
        %v3540 = vpop.f32.mrf.mxu0
        %v3541 = vadd.f32 %v3316, %v3540
        %v3542 = vpop.f32.mrf.mxu0
        %3543 = vmatprep.mubr.f32.mxu0 0.0
        %3544 = vmatmul.mubr.f32.gmra.mxu0 %v326
        %v3545 = vpop.f32.mrf.mxu0
        %v3546 = vadd.f32 %v3321, %v3545
        %v3547 = vpop.f32.mrf.mxu0
        %3548 = vmatprep.mubr.f32.mxu0 0.0
        %3549 = vmatmul.mubr.f32.gmra.mxu0 %v329
        %v3550 = vpop.f32.mrf.mxu0
        %v3551 = vadd.f32 %v3326, %v3550
        %v3552 = vpop.f32.mrf.mxu0
        %3553 = vmatprep.mubr.f32.mxu0 0.0
        %3554 = vmatmul.mubr.f32.gmra.mxu0 %v332
        %v3555 = vpop.f32.mrf.mxu0
        %v3556 = vadd.f32 %v3331, %v3555
        %v3557 = vpop.f32.mrf.mxu0
        %3558 = vmatprep.mubr.f32.mxu0 0.0
        %3559 = vmatmul.mubr.f32.gmra.mxu0 %v335
        %v3560 = vpop.f32.mrf.mxu0
        %v3561 = vadd.f32 %v3336, %v3560
        %v3562 = vpop.f32.mrf.mxu0
        %3563 = vmatprep.mubr.f32.mxu0 0.0
        %3564 = vmatmul.mubr.f32.gmra.mxu0 %v338
        %v3565 = vpop.f32.mrf.mxu0
        %v3566 = vadd.f32 %v3341, %v3565
        %v3567 = vpop.f32.mrf.mxu0
        %3568 = vmatprep.mubr.f32.mxu0 0.0
        %3569 = vmatmul.mubr.f32.gmra.mxu0 %v341
        %v3570 = vpop.f32.mrf.mxu0
        %v3571 = vadd.f32 %v3346, %v3570
        %v3572 = vpop.f32.mrf.mxu0
        %3573 = vmatprep.mubr.f32.mxu0 0.0
        %3574 = vmatmul.mubr.f32.gmra.mxu0 %v344
        %v3575 = vpop.f32.mrf.mxu0
        %v3576 = vadd.f32 %v3351, %v3575
        %v3577 = vpop.f32.mrf.mxu0
        %3578 = vmatprep.mubr.f32.mxu0 0.0
        %3579 = vmatmul.mubr.f32.gmra.mxu0 %v347
        %v3580 = vpop.f32.mrf.mxu0
        %v3581 = vadd.f32 %v3356, %v3580
        %v3582 = vpop.f32.mrf.mxu0
        %3583 = vmatprep.mubr.f32.mxu0 0.0
        %3584 = vmatmul.mubr.f32.gmra.mxu0 %v350
        %v3585 = vpop.f32.mrf.mxu0
        %v3586 = vadd.f32 %v3361, %v3585
        %v3587 = vpop.f32.mrf.mxu0
        %3588 = vmatprep.mubr.f32.mxu0 0.0
        %3589 = vmatmul.mubr.f32.gmra.mxu0 %v353
        %v3590 = vpop.f32.mrf.mxu0
        %v3591 = vadd.f32 %v3366, %v3590
        %v3592 = vpop.f32.mrf.mxu0
        %3593 = vmatprep.mubr.f32.mxu0 0.0
        %3594 = vmatmul.mubr.f32.gmra.mxu0 %v356
        %v3595 = vpop.f32.mrf.mxu0
        %v3596 = vadd.f32 %v3371, %v3595
        %v3597 = vpop.f32.mrf.mxu0
        %3598 = vmatprep.mubr.f32.mxu0 0.0
        %3599 = vmatmul.mubr.f32.gmra.mxu0 %v359
        %v3600 = vpop.f32.mrf.mxu0
        %v3601 = vadd.f32 %v3376, %v3600
        %v3602 = vpop.f32.mrf.mxu0
        %3603 = vmatprep.mubr.f32.mxu0 0.0
        %3604 = vmatmul.mubr.f32.gmra.mxu0 %v362
        %v3605 = vpop.f32.mrf.mxu0
        %v3606 = vadd.f32 %v3381, %v3605
        %v3607 = vpop.f32.mrf.mxu0
        %3608 = vmatprep.mubr.f32.mxu0 0.0
        %3609 = vmatmul.mubr.f32.gmra.mxu0 %v365
        %v3610 = vpop.f32.mrf.mxu0
        %v3611 = vadd.f32 %v3386, %v3610
        %v3612 = vpop.f32.mrf.mxu0
        %3613 = vdwg.mxu0
        %v3615 = vlaneseq
        %v3616 = vshrl.u32 %v3615, 7
        %v3617 = vsub.s32 0, %v3616
        %v3618 = vrot.slane %v3067, %v3617
        %v3620 = vadd.f32 %v3456, %v3618
        %v3621 = vadd.f32 %v3461, %v3618
        %v3622 = vadd.f32 %v3466, %v3618
        %v3623 = vadd.f32 %v3471, %v3618
        %v3624 = vadd.f32 %v3476, %v3618
        %v3625 = vadd.f32 %v3481, %v3618
        %v3626 = vadd.f32 %v3486, %v3618
        %v3627 = vadd.f32 %v3491, %v3618
        %v3628 = vadd.f32 %v3496, %v3618
        %v3629 = vadd.f32 %v3501, %v3618
        %v3630 = vadd.f32 %v3506, %v3618
        %v3631 = vadd.f32 %v3511, %v3618
        %v3632 = vadd.f32 %v3516, %v3618
        %v3633 = vadd.f32 %v3521, %v3618
        %v3634 = vadd.f32 %v3526, %v3618
        %v3635 = vadd.f32 %v3531, %v3618
        %v3636 = vadd.f32 %v3536, %v3618
        %v3637 = vadd.f32 %v3541, %v3618
        %v3638 = vadd.f32 %v3546, %v3618
        %v3639 = vadd.f32 %v3551, %v3618
        %v3640 = vadd.f32 %v3556, %v3618
        %v3641 = vadd.f32 %v3561, %v3618
        %v3642 = vadd.f32 %v3566, %v3618
        %v3643 = vadd.f32 %v3571, %v3618
        %v3644 = vadd.f32 %v3576, %v3618
        %v3645 = vadd.f32 %v3581, %v3618
        %v3646 = vadd.f32 %v3586, %v3618
        %v3647 = vadd.f32 %v3591, %v3618
        %v3648 = vadd.f32 %v3596, %v3618
        %v3649 = vadd.f32 %v3601, %v3618
        %v3650 = vadd.f32 %v3606, %v3618
        %v3651 = vadd.f32 %v3611, %v3618
        %s3652 = scalar_lea.vmem %s1, 256
        %v3653 = vld [vmem:[%s3652] sm:$0xff]
        %v3654 = vld [vmem:[%s3652 + $0x8] sm:$0xff]
        %v3655 = vld [vmem:[%s3652 + $0x10] sm:$0xff]
        %v3656 = vld [vmem:[%s3652 + $0x18] sm:$0xff]
        %v3657 = vld [vmem:[%s3652 + $0x20] sm:$0xff]
        %v3658 = vld [vmem:[%s3652 + $0x28] sm:$0xff]
        %v3659 = vld [vmem:[%s3652 + $0x30] sm:$0xff]
        %v3660 = vld [vmem:[%s3652 + $0x38] sm:$0xff]
        %s3661 = scalar_lea.vmem %s2, 2
        %v3662 = vld [vmem:[%s3661] sm:$0x1]
        %v3664 = vlaneseq
        %v3665 = vshrl.u32 %v3664, 7
        %v3666 = vsub.s32 0, %v3665
        %v3667 = vrot.slane %v3662, %v3666
        %v3670 = vsel %vm270, %v3620, 0
        %v3673 = vsel %vm270, %v3621, 0
        %v3676 = vsel %vm270, %v3622, 0
        %v3679 = vsel %vm270, %v3623, 0
        %v3682 = vsel %vm270, %v3624, 0
        %v3685 = vsel %vm270, %v3625, 0
        %v3688 = vsel %vm270, %v3626, 0
        %v3691 = vsel %vm270, %v3627, 0
        %v3694 = vsel %vm270, %v3628, 0
        %v3697 = vsel %vm270, %v3629, 0
        %v3700 = vsel %vm270, %v3630, 0
        %v3703 = vsel %vm270, %v3631, 0
        %v3706 = vsel %vm270, %v3632, 0
        %v3709 = vsel %vm270, %v3633, 0
        %v3712 = vsel %vm270, %v3634, 0
        %v3715 = vsel %vm270, %v3635, 0
        %v3718 = vsel %vm270, %v3636, 0
        %v3721 = vsel %vm270, %v3637, 0
        %v3724 = vsel %vm270, %v3638, 0
        %v3727 = vsel %vm270, %v3639, 0
        %v3730 = vsel %vm270, %v3640, 0
        %v3733 = vsel %vm270, %v3641, 0
        %v3736 = vsel %vm270, %v3642, 0
        %v3739 = vsel %vm270, %v3643, 0
        %v3742 = vsel %vm270, %v3644, 0
        %v3745 = vsel %vm270, %v3645, 0
        %v3748 = vsel %vm270, %v3646, 0
        %v3751 = vsel %vm270, %v3647, 0
        %v3754 = vsel %vm270, %v3648, 0
        %v3757 = vsel %vm270, %v3649, 0
        %v3760 = vsel %vm270, %v3650, 0
        %v3763 = vsel %vm270, %v3651, 0
        %3765 = vmatprep.subr.mxu0 0.0
        %3766 = vmatpush1.msra.mxu0 0.0
        %3767 = vmatprep.subr.mxu0 0.0
        %3768 = vmatpush1.msra.mxu0 0.0
        %3769 = vmatprep.subr.mxu0 0.0
        %3770 = vmatpush1.msra.mxu0 0.0
        %3771 = vmatprep.subr.mxu0 0.0
        %3772 = vmatpush1.msra.mxu0 0.0
        %3773 = vmatprep.subr.mxu0 0.0
        %3774 = vmatpush1.msra.mxu0 0.0
        %3775 = vmatprep.subr.mxu0 0.0
        %3776 = vmatpush1.msra.mxu0 0.0
        %3777 = vmatprep.subr.mxu0 0.0
        %3778 = vmatpush1.msra.mxu0 0.0
        %3779 = vmatprep.subr.mxu0 0.0
        %3780 = vmatpush1.msra.mxu0 0.0
        %3781 = vmatprep.subr.mxu0 0.0
        %3782 = vmatpush1.msra.mxu0 %v3660
        %3783 = vmatprep.subr.mxu0 0.0
        %3784 = vmatpush1.msra.mxu0 %v3659
        %3785 = vmatprep.subr.mxu0 0.0
        %3786 = vmatpush1.msra.mxu0 %v3658
        %3787 = vmatprep.subr.mxu0 0.0
        %3788 = vmatpush1.msra.mxu0 %v3657
        %3789 = vmatprep.subr.mxu0 0.0
        %3790 = vmatpush1.msra.mxu0 %v3656
        %3791 = vmatprep.subr.mxu0 0.0
        %3792 = vmatpush1.msra.mxu0 %v3655
        %3793 = vmatprep.subr.mxu0 0.0
        %3794 = vmatpush1.msra.mxu0 %v3654
        %3795 = vmatprep.subr.mxu0 0.0
        %3796 = vmatpush1.msra.mxu0 %v3653
        %3797 = vmatprep.subr.mxu0 0.0
        %3798 = vmatpush2.msra.mxu0 0.0
        %3799 = vmatprep.subr.mxu0 0.0
        %3800 = vmatpush2.msra.mxu0 0.0
        %3801 = vmatprep.subr.mxu0 0.0
        %3802 = vmatpush2.msra.mxu0 0.0
        %3803 = vmatprep.subr.mxu0 0.0
        %3804 = vmatpush2.msra.mxu0 0.0
        %3805 = vmatprep.subr.mxu0 0.0
        %3806 = vmatpush2.msra.mxu0 0.0
        %3807 = vmatprep.subr.mxu0 0.0
        %3808 = vmatpush2.msra.mxu0 0.0
        %3809 = vmatprep.subr.mxu0 0.0
        %3810 = vmatpush2.msra.mxu0 0.0
        %3811 = vmatprep.subr.mxu0 0.0
        %3812 = vmatpush2.msra.mxu0 0.0
        %3813 = vmatprep.subr.mxu0 0.0
        %3814 = vmatpush2.msra.mxu0 0.0
        %3815 = vmatprep.subr.mxu0 0.0
        %3816 = vmatpush2.msra.mxu0 0.0
        %3817 = vmatprep.subr.mxu0 0.0
        %3818 = vmatpush2.msra.mxu0 0.0
        %3819 = vmatprep.subr.mxu0 0.0
        %3820 = vmatpush2.msra.mxu0 0.0
        %3821 = vmatprep.subr.mxu0 0.0
        %3822 = vmatpush2.msra.mxu0 0.0
        %3823 = vmatprep.subr.mxu0 0.0
        %3824 = vmatpush2.msra.mxu0 0.0
        %3825 = vmatprep.subr.mxu0 0.0
        %3826 = vmatpush2.msra.mxu0 0.0
        %3827 = vmatprep.subr.mxu0 0.0
        %3828 = vmatpush2.msra.mxu0 0.0
        %3829 = vmatprep.mubr.f32.mxu0 0.0
        %3830 = vmatmul.mubr.f32.gmra.mxu0 %v3670
        %v3831 = vpop.f32.mrf.mxu0
        %v3832 = vadd.f32 %v3667, %v3831
        %v3833 = vpop.f32.mrf.mxu0
        %3834 = vmatprep.mubr.f32.mxu0 0.0
        %3835 = vmatmul.mubr.f32.gmra.mxu0 %v3673
        %v3836 = vpop.f32.mrf.mxu0
        %v3837 = vadd.f32 %v3667, %v3836
        %v3838 = vpop.f32.mrf.mxu0
        %3839 = vmatprep.mubr.f32.mxu0 0.0
        %3840 = vmatmul.mubr.f32.gmra.mxu0 %v3676
        %v3841 = vpop.f32.mrf.mxu0
        %v3842 = vadd.f32 %v3667, %v3841
        %v3843 = vpop.f32.mrf.mxu0
        %3844 = vmatprep.mubr.f32.mxu0 0.0
        %3845 = vmatmul.mubr.f32.gmra.mxu0 %v3679
        %v3846 = vpop.f32.mrf.mxu0
        %v3847 = vadd.f32 %v3667, %v3846
        %v3848 = vpop.f32.mrf.mxu0
        %3849 = vmatprep.mubr.f32.mxu0 0.0
        %3850 = vmatmul.mubr.f32.gmra.mxu0 %v3682
        %v3851 = vpop.f32.mrf.mxu0
        %v3852 = vadd.f32 %v3667, %v3851
        %v3853 = vpop.f32.mrf.mxu0
        %3854 = vmatprep.mubr.f32.mxu0 0.0
        %3855 = vmatmul.mubr.f32.gmra.mxu0 %v3685
        %v3856 = vpop.f32.mrf.mxu0
        %v3857 = vadd.f32 %v3667, %v3856
        %v3858 = vpop.f32.mrf.mxu0
        %3859 = vmatprep.mubr.f32.mxu0 0.0
        %3860 = vmatmul.mubr.f32.gmra.mxu0 %v3688
        %v3861 = vpop.f32.mrf.mxu0
        %v3862 = vadd.f32 %v3667, %v3861
        %v3863 = vpop.f32.mrf.mxu0
        %3864 = vmatprep.mubr.f32.mxu0 0.0
        %3865 = vmatmul.mubr.f32.gmra.mxu0 %v3691
        %v3866 = vpop.f32.mrf.mxu0
        %v3867 = vadd.f32 %v3667, %v3866
        %v3868 = vpop.f32.mrf.mxu0
        %3869 = vmatprep.mubr.f32.mxu0 0.0
        %3870 = vmatmul.mubr.f32.gmra.mxu0 %v3694
        %v3871 = vpop.f32.mrf.mxu0
        %v3872 = vadd.f32 %v3667, %v3871
        %v3873 = vpop.f32.mrf.mxu0
        %3874 = vmatprep.mubr.f32.mxu0 0.0
        %3875 = vmatmul.mubr.f32.gmra.mxu0 %v3697
        %v3876 = vpop.f32.mrf.mxu0
        %v3877 = vadd.f32 %v3667, %v3876
        %v3878 = vpop.f32.mrf.mxu0
        %3879 = vmatprep.mubr.f32.mxu0 0.0
        %3880 = vmatmul.mubr.f32.gmra.mxu0 %v3700
        %v3881 = vpop.f32.mrf.mxu0
        %v3882 = vadd.f32 %v3667, %v3881
        %v3883 = vpop.f32.mrf.mxu0
        %3884 = vmatprep.mubr.f32.mxu0 0.0
        %3885 = vmatmul.mubr.f32.gmra.mxu0 %v3703
        %v3886 = vpop.f32.mrf.mxu0
        %v3887 = vadd.f32 %v3667, %v3886
        %v3888 = vpop.f32.mrf.mxu0
        %3889 = vmatprep.mubr.f32.mxu0 0.0
        %3890 = vmatmul.mubr.f32.gmra.mxu0 %v3706
        %v3891 = vpop.f32.mrf.mxu0
        %v3892 = vadd.f32 %v3667, %v3891
        %v3893 = vpop.f32.mrf.mxu0
        %3894 = vmatprep.mubr.f32.mxu0 0.0
        %3895 = vmatmul.mubr.f32.gmra.mxu0 %v3709
        %v3896 = vpop.f32.mrf.mxu0
        %v3897 = vadd.f32 %v3667, %v3896
        %v3898 = vpop.f32.mrf.mxu0
        %3899 = vmatprep.mubr.f32.mxu0 0.0
        %3900 = vmatmul.mubr.f32.gmra.mxu0 %v3712
        %v3901 = vpop.f32.mrf.mxu0
        %v3902 = vadd.f32 %v3667, %v3901
        %v3903 = vpop.f32.mrf.mxu0
        %3904 = vmatprep.mubr.f32.mxu0 0.0
        %3905 = vmatmul.mubr.f32.gmra.mxu0 %v3715
        %v3906 = vpop.f32.mrf.mxu0
        %v3907 = vadd.f32 %v3667, %v3906
        %v3908 = vpop.f32.mrf.mxu0
        %3909 = vmatprep.mubr.f32.mxu0 0.0
        %3910 = vmatmul.mubr.f32.gmra.mxu0 %v3718
        %v3911 = vpop.f32.mrf.mxu0
        %v3912 = vadd.f32 %v3667, %v3911
        %v3913 = vpop.f32.mrf.mxu0
        %3914 = vmatprep.mubr.f32.mxu0 0.0
        %3915 = vmatmul.mubr.f32.gmra.mxu0 %v3721
        %v3916 = vpop.f32.mrf.mxu0
        %v3917 = vadd.f32 %v3667, %v3916
        %v3918 = vpop.f32.mrf.mxu0
        %3919 = vmatprep.mubr.f32.mxu0 0.0
        %3920 = vmatmul.mubr.f32.gmra.mxu0 %v3724
        %v3921 = vpop.f32.mrf.mxu0
        %v3922 = vadd.f32 %v3667, %v3921
        %v3923 = vpop.f32.mrf.mxu0
        %3924 = vmatprep.mubr.f32.mxu0 0.0
        %3925 = vmatmul.mubr.f32.gmra.mxu0 %v3727
        %v3926 = vpop.f32.mrf.mxu0
        %v3927 = vadd.f32 %v3667, %v3926
        %v3928 = vpop.f32.mrf.mxu0
        %3929 = vmatprep.mubr.f32.mxu0 0.0
        %3930 = vmatmul.mubr.f32.gmra.mxu0 %v3730
        %v3931 = vpop.f32.mrf.mxu0
        %v3932 = vadd.f32 %v3667, %v3931
        %v3933 = vpop.f32.mrf.mxu0
        %3934 = vmatprep.mubr.f32.mxu0 0.0
        %3935 = vmatmul.mubr.f32.gmra.mxu0 %v3733
        %v3936 = vpop.f32.mrf.mxu0
        %v3937 = vadd.f32 %v3667, %v3936
        %v3938 = vpop.f32.mrf.mxu0
        %3939 = vmatprep.mubr.f32.mxu0 0.0
        %3940 = vmatmul.mubr.f32.gmra.mxu0 %v3736
        %v3941 = vpop.f32.mrf.mxu0
        %v3942 = vadd.f32 %v3667, %v3941
        %v3943 = vpop.f32.mrf.mxu0
        %3944 = vmatprep.mubr.f32.mxu0 0.0
        %3945 = vmatmul.mubr.f32.gmra.mxu0 %v3739
        %v3946 = vpop.f32.mrf.mxu0
        %v3947 = vadd.f32 %v3667, %v3946
        %v3948 = vpop.f32.mrf.mxu0
        %3949 = vmatprep.mubr.f32.mxu0 0.0
        %3950 = vmatmul.mubr.f32.gmra.mxu0 %v3742
        %v3951 = vpop.f32.mrf.mxu0
        %v3952 = vadd.f32 %v3667, %v3951
        %v3953 = vpop.f32.mrf.mxu0
        %3954 = vmatprep.mubr.f32.mxu0 0.0
        %3955 = vmatmul.mubr.f32.gmra.mxu0 %v3745
        %v3956 = vpop.f32.mrf.mxu0
        %v3957 = vadd.f32 %v3667, %v3956
        %v3958 = vpop.f32.mrf.mxu0
        %3959 = vmatprep.mubr.f32.mxu0 0.0
        %3960 = vmatmul.mubr.f32.gmra.mxu0 %v3748
        %v3961 = vpop.f32.mrf.mxu0
        %v3962 = vadd.f32 %v3667, %v3961
        %v3963 = vpop.f32.mrf.mxu0
        %3964 = vmatprep.mubr.f32.mxu0 0.0
        %3965 = vmatmul.mubr.f32.gmra.mxu0 %v3751
        %v3966 = vpop.f32.mrf.mxu0
        %v3967 = vadd.f32 %v3667, %v3966
        %v3968 = vpop.f32.mrf.mxu0
        %3969 = vmatprep.mubr.f32.mxu0 0.0
        %3970 = vmatmul.mubr.f32.gmra.mxu0 %v3754
        %v3971 = vpop.f32.mrf.mxu0
        %v3972 = vadd.f32 %v3667, %v3971
        %v3973 = vpop.f32.mrf.mxu0
        %3974 = vmatprep.mubr.f32.mxu0 0.0
        %3975 = vmatmul.mubr.f32.gmra.mxu0 %v3757
        %v3976 = vpop.f32.mrf.mxu0
        %v3977 = vadd.f32 %v3667, %v3976
        %v3978 = vpop.f32.mrf.mxu0
        %3979 = vmatprep.mubr.f32.mxu0 0.0
        %3980 = vmatmul.mubr.f32.gmra.mxu0 %v3760
        %v3981 = vpop.f32.mrf.mxu0
        %v3982 = vadd.f32 %v3667, %v3981
        %v3983 = vpop.f32.mrf.mxu0
        %3984 = vmatprep.mubr.f32.mxu0 0.0
        %3985 = vmatmul.mubr.f32.gmra.mxu0 %v3763
        %v3986 = vpop.f32.mrf.mxu0
        %v3987 = vadd.f32 %v3667, %v3986
        %v3988 = vpop.f32.mrf.mxu0
        %3989 = vdwg.mxu0
        %v3990 = vmax.f32 %v3832, 0.0
        %v3991 = vmax.f32 %v3837, 0.0
        %v3992 = vmax.f32 %v3842, 0.0
        %v3993 = vmax.f32 %v3847, 0.0
        %v3994 = vmax.f32 %v3852, 0.0
        %v3995 = vmax.f32 %v3857, 0.0
        %v3996 = vmax.f32 %v3862, 0.0
        %v3997 = vmax.f32 %v3867, 0.0
        %v3998 = vmax.f32 %v3872, 0.0
        %v3999 = vmax.f32 %v3877, 0.0
        %v4000 = vmax.f32 %v3882, 0.0
        %v4001 = vmax.f32 %v3887, 0.0
        %v4002 = vmax.f32 %v3892, 0.0
        %v4003 = vmax.f32 %v3897, 0.0
        %v4004 = vmax.f32 %v3902, 0.0
        %v4005 = vmax.f32 %v3907, 0.0
        %v4006 = vmax.f32 %v3912, 0.0
        %v4007 = vmax.f32 %v3917, 0.0
        %v4008 = vmax.f32 %v3922, 0.0
        %v4009 = vmax.f32 %v3927, 0.0
        %v4010 = vmax.f32 %v3932, 0.0
        %v4011 = vmax.f32 %v3937, 0.0
        %v4012 = vmax.f32 %v3942, 0.0
        %v4013 = vmax.f32 %v3947, 0.0
        %v4014 = vmax.f32 %v3952, 0.0
        %v4015 = vmax.f32 %v3957, 0.0
        %v4016 = vmax.f32 %v3962, 0.0
        %v4017 = vmax.f32 %v3967, 0.0
        %v4018 = vmax.f32 %v3972, 0.0
        %v4019 = vmax.f32 %v3977, 0.0
        %v4020 = vmax.f32 %v3982, 0.0
        %v4021 = vmax.f32 %v3987, 0.0
        %s4022 = scalar_lea.vmem %s1, 384
        %v4023 = vld [vmem:[%s4022] sm:$0xff]
        %v4024 = vld [vmem:[%s4022 + $0x8] sm:$0xff]
        %v4025 = vld [vmem:[%s4022 + $0x10] sm:$0xff]
        %v4026 = vld [vmem:[%s4022 + $0x18] sm:$0xff]
        %v4027 = vld [vmem:[%s4022 + $0x20] sm:$0xff]
        %v4028 = vld [vmem:[%s4022 + $0x28] sm:$0xff]
        %v4029 = vld [vmem:[%s4022 + $0x30] sm:$0xff]
        %v4030 = vld [vmem:[%s4022 + $0x38] sm:$0xff]
        %v4031 = vld [vmem:[%s4022 + $0x40] sm:$0xff]
        %v4032 = vld [vmem:[%s4022 + $0x48] sm:$0xff]
        %v4033 = vld [vmem:[%s4022 + $0x50] sm:$0xff]
        %v4034 = vld [vmem:[%s4022 + $0x58] sm:$0xff]
        %v4035 = vld [vmem:[%s4022 + $0x60] sm:$0xff]
        %v4036 = vld [vmem:[%s4022 + $0x68] sm:$0xff]
        %v4037 = vld [vmem:[%s4022 + $0x70] sm:$0xff]
        %v4038 = vld [vmem:[%s4022 + $0x78] sm:$0xff]
        %s4039 = scalar_lea.vmem %s2, 3
        %v4040 = vld [vmem:[%s4039] sm:$0x1]
        %v4042 = vlaneseq
        %v4043 = vshrl.u32 %v4042, 7
        %v4044 = vsub.s32 0, %v4043
        %v4045 = vrot.slane %v4040, %v4044
        %4047 = vmatprep.subr.mxu0 0.0
        %4048 = vmatpush1.msra.mxu0 %v4038
        %4049 = vmatprep.subr.mxu0 0.0
        %4050 = vmatpush1.msra.mxu0 %v4037
        %4051 = vmatprep.subr.mxu0 0.0
        %4052 = vmatpush1.msra.mxu0 %v4036
        %4053 = vmatprep.subr.mxu0 0.0
        %4054 = vmatpush1.msra.mxu0 %v4035
        %4055 = vmatprep.subr.mxu0 0.0
        %4056 = vmatpush1.msra.mxu0 %v4034
        %4057 = vmatprep.subr.mxu0 0.0
        %4058 = vmatpush1.msra.mxu0 %v4033
        %4059 = vmatprep.subr.mxu0 0.0
        %4060 = vmatpush1.msra.mxu0 %v4032
        %4061 = vmatprep.subr.mxu0 0.0
        %4062 = vmatpush1.msra.mxu0 %v4031
        %4063 = vmatprep.subr.mxu0 0.0
        %4064 = vmatpush1.msra.mxu0 %v4030
        %4065 = vmatprep.subr.mxu0 0.0
        %4066 = vmatpush1.msra.mxu0 %v4029
        %4067 = vmatprep.subr.mxu0 0.0
        %4068 = vmatpush1.msra.mxu0 %v4028
        %4069 = vmatprep.subr.mxu0 0.0
        %4070 = vmatpush1.msra.mxu0 %v4027
        %4071 = vmatprep.subr.mxu0 0.0
        %4072 = vmatpush1.msra.mxu0 %v4026
        %4073 = vmatprep.subr.mxu0 0.0
        %4074 = vmatpush1.msra.mxu0 %v4025
        %4075 = vmatprep.subr.mxu0 0.0
        %4076 = vmatpush1.msra.mxu0 %v4024
        %4077 = vmatprep.subr.mxu0 0.0
        %4078 = vmatpush1.msra.mxu0 %v4023
        %4079 = vmatprep.subr.mxu0 0.0
        %4080 = vmatpush2.msra.mxu0 0.0
        %4081 = vmatprep.subr.mxu0 0.0
        %4082 = vmatpush2.msra.mxu0 0.0
        %4083 = vmatprep.subr.mxu0 0.0
        %4084 = vmatpush2.msra.mxu0 0.0
        %4085 = vmatprep.subr.mxu0 0.0
        %4086 = vmatpush2.msra.mxu0 0.0
        %4087 = vmatprep.subr.mxu0 0.0
        %4088 = vmatpush2.msra.mxu0 0.0
        %4089 = vmatprep.subr.mxu0 0.0
        %4090 = vmatpush2.msra.mxu0 0.0
        %4091 = vmatprep.subr.mxu0 0.0
        %4092 = vmatpush2.msra.mxu0 0.0
        %4093 = vmatprep.subr.mxu0 0.0
        %4094 = vmatpush2.msra.mxu0 0.0
        %4095 = vmatprep.subr.mxu0 0.0
        %4096 = vmatpush2.msra.mxu0 0.0
        %4097 = vmatprep.subr.mxu0 0.0
        %4098 = vmatpush2.msra.mxu0 0.0
        %4099 = vmatprep.subr.mxu0 0.0
        %4100 = vmatpush2.msra.mxu0 0.0
        %4101 = vmatprep.subr.mxu0 0.0
        %4102 = vmatpush2.msra.mxu0 0.0
        %4103 = vmatprep.subr.mxu0 0.0
        %4104 = vmatpush2.msra.mxu0 0.0
        %4105 = vmatprep.subr.mxu0 0.0
        %4106 = vmatpush2.msra.mxu0 0.0
        %4107 = vmatprep.subr.mxu0 0.0
        %4108 = vmatpush2.msra.mxu0 0.0
        %4109 = vmatprep.subr.mxu0 0.0
        %4110 = vmatpush2.msra.mxu0 0.0
        %4111 = vmatprep.mubr.f32.mxu0 0.0
        %4112 = vmatmul.mubr.f32.gmra.mxu0 %v3990
        %v4113 = vpop.f32.mrf.mxu0
        %v4114 = vadd.f32 %v4045, %v4113
        %v4115 = vpop.f32.mrf.mxu0
        %4116 = vmatprep.mubr.f32.mxu0 0.0
        %4117 = vmatmul.mubr.f32.gmra.mxu0 %v3991
        %v4118 = vpop.f32.mrf.mxu0
        %v4119 = vadd.f32 %v4045, %v4118
        %v4120 = vpop.f32.mrf.mxu0
        %4121 = vmatprep.mubr.f32.mxu0 0.0
        %4122 = vmatmul.mubr.f32.gmra.mxu0 %v3992
        %v4123 = vpop.f32.mrf.mxu0
        %v4124 = vadd.f32 %v4045, %v4123
        %v4125 = vpop.f32.mrf.mxu0
        %4126 = vmatprep.mubr.f32.mxu0 0.0
        %4127 = vmatmul.mubr.f32.gmra.mxu0 %v3993
        %v4128 = vpop.f32.mrf.mxu0
        %v4129 = vadd.f32 %v4045, %v4128
        %v4130 = vpop.f32.mrf.mxu0
        %4131 = vmatprep.mubr.f32.mxu0 0.0
        %4132 = vmatmul.mubr.f32.gmra.mxu0 %v3994
        %v4133 = vpop.f32.mrf.mxu0
        %v4134 = vadd.f32 %v4045, %v4133
        %v4135 = vpop.f32.mrf.mxu0
        %4136 = vmatprep.mubr.f32.mxu0 0.0
        %4137 = vmatmul.mubr.f32.gmra.mxu0 %v3995
        %v4138 = vpop.f32.mrf.mxu0
        %v4139 = vadd.f32 %v4045, %v4138
        %v4140 = vpop.f32.mrf.mxu0
        %4141 = vmatprep.mubr.f32.mxu0 0.0
        %4142 = vmatmul.mubr.f32.gmra.mxu0 %v3996
        %v4143 = vpop.f32.mrf.mxu0
        %v4144 = vadd.f32 %v4045, %v4143
        %v4145 = vpop.f32.mrf.mxu0
        %4146 = vmatprep.mubr.f32.mxu0 0.0
        %4147 = vmatmul.mubr.f32.gmra.mxu0 %v3997
        %v4148 = vpop.f32.mrf.mxu0
        %v4149 = vadd.f32 %v4045, %v4148
        %v4150 = vpop.f32.mrf.mxu0
        %4151 = vmatprep.mubr.f32.mxu0 0.0
        %4152 = vmatmul.mubr.f32.gmra.mxu0 %v3998
        %v4153 = vpop.f32.mrf.mxu0
        %v4154 = vadd.f32 %v4045, %v4153
        %v4155 = vpop.f32.mrf.mxu0
        %4156 = vmatprep.mubr.f32.mxu0 0.0
        %4157 = vmatmul.mubr.f32.gmra.mxu0 %v3999
        %v4158 = vpop.f32.mrf.mxu0
        %v4159 = vadd.f32 %v4045, %v4158
        %v4160 = vpop.f32.mrf.mxu0
        %4161 = vmatprep.mubr.f32.mxu0 0.0
        %4162 = vmatmul.mubr.f32.gmra.mxu0 %v4000
        %v4163 = vpop.f32.mrf.mxu0
        %v4164 = vadd.f32 %v4045, %v4163
        %v4165 = vpop.f32.mrf.mxu0
        %4166 = vmatprep.mubr.f32.mxu0 0.0
        %4167 = vmatmul.mubr.f32.gmra.mxu0 %v4001
        %v4168 = vpop.f32.mrf.mxu0
        %v4169 = vadd.f32 %v4045, %v4168
        %v4170 = vpop.f32.mrf.mxu0
        %4171 = vmatprep.mubr.f32.mxu0 0.0
        %4172 = vmatmul.mubr.f32.gmra.mxu0 %v4002
        %v4173 = vpop.f32.mrf.mxu0
        %v4174 = vadd.f32 %v4045, %v4173
        %v4175 = vpop.f32.mrf.mxu0
        %4176 = vmatprep.mubr.f32.mxu0 0.0
        %4177 = vmatmul.mubr.f32.gmra.mxu0 %v4003
        %v4178 = vpop.f32.mrf.mxu0
        %v4179 = vadd.f32 %v4045, %v4178
        %v4180 = vpop.f32.mrf.mxu0
        %4181 = vmatprep.mubr.f32.mxu0 0.0
        %4182 = vmatmul.mubr.f32.gmra.mxu0 %v4004
        %v4183 = vpop.f32.mrf.mxu0
        %v4184 = vadd.f32 %v4045, %v4183
        %v4185 = vpop.f32.mrf.mxu0
        %4186 = vmatprep.mubr.f32.mxu0 0.0
        %4187 = vmatmul.mubr.f32.gmra.mxu0 %v4005
        %v4188 = vpop.f32.mrf.mxu0
        %v4189 = vadd.f32 %v4045, %v4188
        %v4190 = vpop.f32.mrf.mxu0
        %4191 = vmatprep.mubr.f32.mxu0 0.0
        %4192 = vmatmul.mubr.f32.gmra.mxu0 %v4006
        %v4193 = vpop.f32.mrf.mxu0
        %v4194 = vadd.f32 %v4045, %v4193
        %v4195 = vpop.f32.mrf.mxu0
        %4196 = vmatprep.mubr.f32.mxu0 0.0
        %4197 = vmatmul.mubr.f32.gmra.mxu0 %v4007
        %v4198 = vpop.f32.mrf.mxu0
        %v4199 = vadd.f32 %v4045, %v4198
        %v4200 = vpop.f32.mrf.mxu0
        %4201 = vmatprep.mubr.f32.mxu0 0.0
        %4202 = vmatmul.mubr.f32.gmra.mxu0 %v4008
        %v4203 = vpop.f32.mrf.mxu0
        %v4204 = vadd.f32 %v4045, %v4203
        %v4205 = vpop.f32.mrf.mxu0
        %4206 = vmatprep.mubr.f32.mxu0 0.0
        %4207 = vmatmul.mubr.f32.gmra.mxu0 %v4009
        %v4208 = vpop.f32.mrf.mxu0
        %v4209 = vadd.f32 %v4045, %v4208
        %v4210 = vpop.f32.mrf.mxu0
        %4211 = vmatprep.mubr.f32.mxu0 0.0
        %4212 = vmatmul.mubr.f32.gmra.mxu0 %v4010
        %v4213 = vpop.f32.mrf.mxu0
        %v4214 = vadd.f32 %v4045, %v4213
        %v4215 = vpop.f32.mrf.mxu0
        %4216 = vmatprep.mubr.f32.mxu0 0.0
        %4217 = vmatmul.mubr.f32.gmra.mxu0 %v4011
        %v4218 = vpop.f32.mrf.mxu0
        %v4219 = vadd.f32 %v4045, %v4218
        %v4220 = vpop.f32.mrf.mxu0
        %4221 = vmatprep.mubr.f32.mxu0 0.0
        %4222 = vmatmul.mubr.f32.gmra.mxu0 %v4012
        %v4223 = vpop.f32.mrf.mxu0
        %v4224 = vadd.f32 %v4045, %v4223
        %v4225 = vpop.f32.mrf.mxu0
        %4226 = vmatprep.mubr.f32.mxu0 0.0
        %4227 = vmatmul.mubr.f32.gmra.mxu0 %v4013
        %v4228 = vpop.f32.mrf.mxu0
        %v4229 = vadd.f32 %v4045, %v4228
        %v4230 = vpop.f32.mrf.mxu0
        %4231 = vmatprep.mubr.f32.mxu0 0.0
        %4232 = vmatmul.mubr.f32.gmra.mxu0 %v4014
        %v4233 = vpop.f32.mrf.mxu0
        %v4234 = vadd.f32 %v4045, %v4233
        %v4235 = vpop.f32.mrf.mxu0
        %4236 = vmatprep.mubr.f32.mxu0 0.0
        %4237 = vmatmul.mubr.f32.gmra.mxu0 %v4015
        %v4238 = vpop.f32.mrf.mxu0
        %v4239 = vadd.f32 %v4045, %v4238
        %v4240 = vpop.f32.mrf.mxu0
        %4241 = vmatprep.mubr.f32.mxu0 0.0
        %4242 = vmatmul.mubr.f32.gmra.mxu0 %v4016
        %v4243 = vpop.f32.mrf.mxu0
        %v4244 = vadd.f32 %v4045, %v4243
        %v4245 = vpop.f32.mrf.mxu0
        %4246 = vmatprep.mubr.f32.mxu0 0.0
        %4247 = vmatmul.mubr.f32.gmra.mxu0 %v4017
        %v4248 = vpop.f32.mrf.mxu0
        %v4249 = vadd.f32 %v4045, %v4248
        %v4250 = vpop.f32.mrf.mxu0
        %4251 = vmatprep.mubr.f32.mxu0 0.0
        %4252 = vmatmul.mubr.f32.gmra.mxu0 %v4018
        %v4253 = vpop.f32.mrf.mxu0
        %v4254 = vadd.f32 %v4045, %v4253
        %v4255 = vpop.f32.mrf.mxu0
        %4256 = vmatprep.mubr.f32.mxu0 0.0
        %4257 = vmatmul.mubr.f32.gmra.mxu0 %v4019
        %v4258 = vpop.f32.mrf.mxu0
        %v4259 = vadd.f32 %v4045, %v4258
        %v4260 = vpop.f32.mrf.mxu0
        %4261 = vmatprep.mubr.f32.mxu0 0.0
        %4262 = vmatmul.mubr.f32.gmra.mxu0 %v4020
        %v4263 = vpop.f32.mrf.mxu0
        %v4264 = vadd.f32 %v4045, %v4263
        %v4265 = vpop.f32.mrf.mxu0
        %4266 = vmatprep.mubr.f32.mxu0 0.0
        %4267 = vmatmul.mubr.f32.gmra.mxu0 %v4021
        %v4268 = vpop.f32.mrf.mxu0
        %v4269 = vadd.f32 %v4045, %v4268
        %v4270 = vpop.f32.mrf.mxu0
        %4271 = vdwg.mxu0
        %v4272 = vmax.f32 %v4114, 0.0
        %v4273 = vmax.f32 %v4119, 0.0
        %v4274 = vmax.f32 %v4124, 0.0
        %v4275 = vmax.f32 %v4129, 0.0
        %v4276 = vmax.f32 %v4134, 0.0
        %v4277 = vmax.f32 %v4139, 0.0
        %v4278 = vmax.f32 %v4144, 0.0
        %v4279 = vmax.f32 %v4149, 0.0
        %v4280 = vmax.f32 %v4154, 0.0
        %v4281 = vmax.f32 %v4159, 0.0
        %v4282 = vmax.f32 %v4164, 0.0
        %v4283 = vmax.f32 %v4169, 0.0
        %v4284 = vmax.f32 %v4174, 0.0
        %v4285 = vmax.f32 %v4179, 0.0
        %v4286 = vmax.f32 %v4184, 0.0
        %v4287 = vmax.f32 %v4189, 0.0
        %v4288 = vmax.f32 %v4194, 0.0
        %v4289 = vmax.f32 %v4199, 0.0
        %v4290 = vmax.f32 %v4204, 0.0
        %v4291 = vmax.f32 %v4209, 0.0
        %v4292 = vmax.f32 %v4214, 0.0
        %v4293 = vmax.f32 %v4219, 0.0
        %v4294 = vmax.f32 %v4224, 0.0
        %v4295 = vmax.f32 %v4229, 0.0
        %v4296 = vmax.f32 %v4234, 0.0
        %v4297 = vmax.f32 %v4239, 0.0
        %v4298 = vmax.f32 %v4244, 0.0
        %v4299 = vmax.f32 %v4249, 0.0
        %v4300 = vmax.f32 %v4254, 0.0
        %v4301 = vmax.f32 %v4259, 0.0
        %v4302 = vmax.f32 %v4264, 0.0
        %v4303 = vmax.f32 %v4269, 0.0
        %v4304 = vlaneseq
        %v4305 = vshrl.u32 %v4304, 7
        %v4306 = vsub.s32 0, %v4305
        %v4307 = vrot.slane %v4272, %v4306
        %v4308 = vlaneseq
        %v4309 = vshrl.u32 %v4308, 7
        %v4310 = vsub.s32 0, %v4309
        %v4311 = vrot.slane %v4274, %v4310
        %v4312 = vlaneseq
        %v4313 = vshrl.u32 %v4312, 7
        %v4314 = vsub.s32 0, %v4313
        %v4315 = vrot.slane %v4276, %v4314
        %v4316 = vlaneseq
        %v4317 = vshrl.u32 %v4316, 7
        %v4318 = vsub.s32 0, %v4317
        %v4319 = vrot.slane %v4278, %v4318
        %v4320 = vlaneseq
        %v4321 = vshrl.u32 %v4320, 7
        %v4322 = vsub.s32 0, %v4321
        %v4323 = vrot.slane %v4280, %v4322
        %v4324 = vlaneseq
        %v4325 = vshrl.u32 %v4324, 7
        %v4326 = vsub.s32 0, %v4325
        %v4327 = vrot.slane %v4282, %v4326
        %v4328 = vlaneseq
        %v4329 = vshrl.u32 %v4328, 7
        %v4330 = vsub.s32 0, %v4329
        %v4331 = vrot.slane %v4284, %v4330
        %v4332 = vlaneseq
        %v4333 = vshrl.u32 %v4332, 7
        %v4334 = vsub.s32 0, %v4333
        %v4335 = vrot.slane %v4286, %v4334
        %v4336 = vlaneseq
        %v4337 = vshrl.u32 %v4336, 7
        %v4338 = vsub.s32 0, %v4337
        %v4339 = vrot.slane %v4288, %v4338
        %v4340 = vlaneseq
        %v4341 = vshrl.u32 %v4340, 7
        %v4342 = vsub.s32 0, %v4341
        %v4343 = vrot.slane %v4290, %v4342
        %v4344 = vlaneseq
        %v4345 = vshrl.u32 %v4344, 7
        %v4346 = vsub.s32 0, %v4345
        %v4347 = vrot.slane %v4292, %v4346
        %v4348 = vlaneseq
        %v4349 = vshrl.u32 %v4348, 7
        %v4350 = vsub.s32 0, %v4349
        %v4351 = vrot.slane %v4294, %v4350
        %v4352 = vlaneseq
        %v4353 = vshrl.u32 %v4352, 7
        %v4354 = vsub.s32 0, %v4353
        %v4355 = vrot.slane %v4296, %v4354
        %v4356 = vlaneseq
        %v4357 = vshrl.u32 %v4356, 7
        %v4358 = vsub.s32 0, %v4357
        %v4359 = vrot.slane %v4298, %v4358
        %v4360 = vlaneseq
        %v4361 = vshrl.u32 %v4360, 7
        %v4362 = vsub.s32 0, %v4361
        %v4363 = vrot.slane %v4300, %v4362
        %v4364 = vlaneseq
        %v4365 = vshrl.u32 %v4364, 7
        %v4366 = vsub.s32 0, %v4365
        %v4367 = vrot.slane %v4302, %v4366
        %4370 = vrot.lane.b32.xlu0 %v4272, 64
        %v4371 = vpop.permute.xlu0 %4370
        %4372 = vrot.lane.b32.xlu0 %v4273, 64
        %v4373 = vpop.permute.xlu0 %4372
        %v4376 = vmul.f32 %v4307, %v4371
        %v4377 = vmul.f32 %v4307, %v4373
        %v4378 = vmul.f32 %v4311, %v4371
        %v4379 = vmul.f32 %v4311, %v4373
        %v4380 = vmul.f32 %v4315, %v4371
        %v4381 = vmul.f32 %v4315, %v4373
        %v4382 = vmul.f32 %v4319, %v4371
        %v4383 = vmul.f32 %v4319, %v4373
        %v4384 = vmul.f32 %v4323, %v4371
        %v4385 = vmul.f32 %v4323, %v4373
        %v4386 = vmul.f32 %v4327, %v4371
        %v4387 = vmul.f32 %v4327, %v4373
        %v4388 = vmul.f32 %v4331, %v4371
        %v4389 = vmul.f32 %v4331, %v4373
        %v4390 = vmul.f32 %v4335, %v4371
        %v4391 = vmul.f32 %v4335, %v4373
        %v4392 = vmul.f32 %v4339, %v4371
        %v4393 = vmul.f32 %v4339, %v4373
        %v4394 = vmul.f32 %v4343, %v4371
        %v4395 = vmul.f32 %v4343, %v4373
        %v4396 = vmul.f32 %v4347, %v4371
        %v4397 = vmul.f32 %v4347, %v4373
        %v4398 = vmul.f32 %v4351, %v4371
        %v4399 = vmul.f32 %v4351, %v4373
        %v4400 = vmul.f32 %v4355, %v4371
        %v4401 = vmul.f32 %v4355, %v4373
        %v4402 = vmul.f32 %v4359, %v4371
        %v4403 = vmul.f32 %v4359, %v4373
        %v4404 = vmul.f32 %v4363, %v4371
        %v4405 = vmul.f32 %v4363, %v4373
        %v4406 = vmul.f32 %v4367, %v4371
        %v4407 = vmul.f32 %v4367, %v4373
        %v4408 = vlaneseq
        %v4409 = vshrl.u32 %v4408, 7
        %v4410 = vsub.s32 1, %v4409
        %v4411 = vrot.slane %v4272, %v4410
        %v4412 = vlaneseq
        %v4413 = vshrl.u32 %v4412, 7
        %v4414 = vsub.s32 1, %v4413
        %v4415 = vrot.slane %v4274, %v4414
        %v4416 = vlaneseq
        %v4417 = vshrl.u32 %v4416, 7
        %v4418 = vsub.s32 1, %v4417
        %v4419 = vrot.slane %v4276, %v4418
        %v4420 = vlaneseq
        %v4421 = vshrl.u32 %v4420, 7
        %v4422 = vsub.s32 1, %v4421
        %v4423 = vrot.slane %v4278, %v4422
        %v4424 = vlaneseq
        %v4425 = vshrl.u32 %v4424, 7
        %v4426 = vsub.s32 1, %v4425
        %v4427 = vrot.slane %v4280, %v4426
        %v4428 = vlaneseq
        %v4429 = vshrl.u32 %v4428, 7
        %v4430 = vsub.s32 1, %v4429
        %v4431 = vrot.slane %v4282, %v4430
        %v4432 = vlaneseq
        %v4433 = vshrl.u32 %v4432, 7
        %v4434 = vsub.s32 1, %v4433
        %v4435 = vrot.slane %v4284, %v4434
        %v4436 = vlaneseq
        %v4437 = vshrl.u32 %v4436, 7
        %v4438 = vsub.s32 1, %v4437
        %v4439 = vrot.slane %v4286, %v4438
        %v4440 = vlaneseq
        %v4441 = vshrl.u32 %v4440, 7
        %v4442 = vsub.s32 1, %v4441
        %v4443 = vrot.slane %v4288, %v4442
        %v4444 = vlaneseq
        %v4445 = vshrl.u32 %v4444, 7
        %v4446 = vsub.s32 1, %v4445
        %v4447 = vrot.slane %v4290, %v4446
        %v4448 = vlaneseq
        %v4449 = vshrl.u32 %v4448, 7
        %v4450 = vsub.s32 1, %v4449
        %v4451 = vrot.slane %v4292, %v4450
        %v4452 = vlaneseq
        %v4453 = vshrl.u32 %v4452, 7
        %v4454 = vsub.s32 1, %v4453
        %v4455 = vrot.slane %v4294, %v4454
        %v4456 = vlaneseq
        %v4457 = vshrl.u32 %v4456, 7
        %v4458 = vsub.s32 1, %v4457
        %v4459 = vrot.slane %v4296, %v4458
        %v4460 = vlaneseq
        %v4461 = vshrl.u32 %v4460, 7
        %v4462 = vsub.s32 1, %v4461
        %v4463 = vrot.slane %v4298, %v4462
        %v4464 = vlaneseq
        %v4465 = vshrl.u32 %v4464, 7
        %v4466 = vsub.s32 1, %v4465
        %v4467 = vrot.slane %v4300, %v4466
        %v4468 = vlaneseq
        %v4469 = vshrl.u32 %v4468, 7
        %v4470 = vsub.s32 1, %v4469
        %v4471 = vrot.slane %v4302, %v4470
        %4474 = vrot.lane.b32.xlu0 %v4274, 64
        %v4475 = vpop.permute.xlu0 %4474
        %4476 = vrot.lane.b32.xlu0 %v4275, 64
        %v4477 = vpop.permute.xlu0 %4476
        %v4480 = vmul.f32 %v4411, %v4475
        %v4481 = vmul.f32 %v4411, %v4477
        %v4482 = vmul.f32 %v4415, %v4475
        %v4483 = vmul.f32 %v4415, %v4477
        %v4484 = vmul.f32 %v4419, %v4475
        %v4485 = vmul.f32 %v4419, %v4477
        %v4486 = vmul.f32 %v4423, %v4475
        %v4487 = vmul.f32 %v4423, %v4477
        %v4488 = vmul.f32 %v4427, %v4475
        %v4489 = vmul.f32 %v4427, %v4477
        %v4490 = vmul.f32 %v4431, %v4475
        %v4491 = vmul.f32 %v4431, %v4477
        %v4492 = vmul.f32 %v4435, %v4475
        %v4493 = vmul.f32 %v4435, %v4477
        %v4494 = vmul.f32 %v4439, %v4475
        %v4495 = vmul.f32 %v4439, %v4477
        %v4496 = vmul.f32 %v4443, %v4475
        %v4497 = vmul.f32 %v4443, %v4477
        %v4498 = vmul.f32 %v4447, %v4475
        %v4499 = vmul.f32 %v4447, %v4477
        %v4500 = vmul.f32 %v4451, %v4475
        %v4501 = vmul.f32 %v4451, %v4477
        %v4502 = vmul.f32 %v4455, %v4475
        %v4503 = vmul.f32 %v4455, %v4477
        %v4504 = vmul.f32 %v4459, %v4475
        %v4505 = vmul.f32 %v4459, %v4477
        %v4506 = vmul.f32 %v4463, %v4475
        %v4507 = vmul.f32 %v4463, %v4477
        %v4508 = vmul.f32 %v4467, %v4475
        %v4509 = vmul.f32 %v4467, %v4477
        %v4510 = vmul.f32 %v4471, %v4475
        %v4511 = vmul.f32 %v4471, %v4477
        %v4512 = vadd.f32 %v4376, %v4480
        %v4513 = vadd.f32 %v4377, %v4481
        %v4514 = vadd.f32 %v4378, %v4482
        %v4515 = vadd.f32 %v4379, %v4483
        %v4516 = vadd.f32 %v4380, %v4484
        %v4517 = vadd.f32 %v4381, %v4485
        %v4518 = vadd.f32 %v4382, %v4486
        %v4519 = vadd.f32 %v4383, %v4487
        %v4520 = vadd.f32 %v4384, %v4488
        %v4521 = vadd.f32 %v4385, %v4489
        %v4522 = vadd.f32 %v4386, %v4490
        %v4523 = vadd.f32 %v4387, %v4491
        %v4524 = vadd.f32 %v4388, %v4492
        %v4525 = vadd.f32 %v4389, %v4493
        %v4526 = vadd.f32 %v4390, %v4494
        %v4527 = vadd.f32 %v4391, %v4495
        %v4528 = vadd.f32 %v4392, %v4496
        %v4529 = vadd.f32 %v4393, %v4497
        %v4530 = vadd.f32 %v4394, %v4498
        %v4531 = vadd.f32 %v4395, %v4499
        %v4532 = vadd.f32 %v4396, %v4500
        %v4533 = vadd.f32 %v4397, %v4501
        %v4534 = vadd.f32 %v4398, %v4502
        %v4535 = vadd.f32 %v4399, %v4503
        %v4536 = vadd.f32 %v4400, %v4504
        %v4537 = vadd.f32 %v4401, %v4505
        %v4538 = vadd.f32 %v4402, %v4506
        %v4539 = vadd.f32 %v4403, %v4507
        %v4540 = vadd.f32 %v4404, %v4508
        %v4541 = vadd.f32 %v4405, %v4509
        %v4542 = vadd.f32 %v4406, %v4510
        %v4543 = vadd.f32 %v4407, %v4511
        %v4544 = vlaneseq
        %v4545 = vshrl.u32 %v4544, 7
        %v4546 = vsub.s32 2, %v4545
        %v4547 = vrot.slane %v4272, %v4546
        %v4548 = vlaneseq
        %v4549 = vshrl.u32 %v4548, 7
        %v4550 = vsub.s32 2, %v4549
        %v4551 = vrot.slane %v4274, %v4550
        %v4552 = vlaneseq
        %v4553 = vshrl.u32 %v4552, 7
        %v4554 = vsub.s32 2, %v4553
        %v4555 = vrot.slane %v4276, %v4554
        %v4556 = vlaneseq
        %v4557 = vshrl.u32 %v4556, 7
        %v4558 = vsub.s32 2, %v4557
        %v4559 = vrot.slane %v4278, %v4558
        %v4560 = vlaneseq
        %v4561 = vshrl.u32 %v4560, 7
        %v4562 = vsub.s32 2, %v4561
        %v4563 = vrot.slane %v4280, %v4562
        %v4564 = vlaneseq
        %v4565 = vshrl.u32 %v4564, 7
        %v4566 = vsub.s32 2, %v4565
        %v4567 = vrot.slane %v4282, %v4566
        %v4568 = vlaneseq
        %v4569 = vshrl.u32 %v4568, 7
        %v4570 = vsub.s32 2, %v4569
        %v4571 = vrot.slane %v4284, %v4570
        %v4572 = vlaneseq
        %v4573 = vshrl.u32 %v4572, 7
        %v4574 = vsub.s32 2, %v4573
        %v4575 = vrot.slane %v4286, %v4574
        %v4576 = vlaneseq
        %v4577 = vshrl.u32 %v4576, 7
        %v4578 = vsub.s32 2, %v4577
        %v4579 = vrot.slane %v4288, %v4578
        %v4580 = vlaneseq
        %v4581 = vshrl.u32 %v4580, 7
        %v4582 = vsub.s32 2, %v4581
        %v4583 = vrot.slane %v4290, %v4582
        %v4584 = vlaneseq
        %v4585 = vshrl.u32 %v4584, 7
        %v4586 = vsub.s32 2, %v4585
        %v4587 = vrot.slane %v4292, %v4586
        %v4588 = vlaneseq
        %v4589 = vshrl.u32 %v4588, 7
        %v4590 = vsub.s32 2, %v4589
        %v4591 = vrot.slane %v4294, %v4590
        %v4592 = vlaneseq
        %v4593 = vshrl.u32 %v4592, 7
        %v4594 = vsub.s32 2, %v4593
        %v4595 = vrot.slane %v4296, %v4594
        %v4596 = vlaneseq
        %v4597 = vshrl.u32 %v4596, 7
        %v4598 = vsub.s32 2, %v4597
        %v4599 = vrot.slane %v4298, %v4598
        %v4600 = vlaneseq
        %v4601 = vshrl.u32 %v4600, 7
        %v4602 = vsub.s32 2, %v4601
        %v4603 = vrot.slane %v4300, %v4602
        %v4604 = vlaneseq
        %v4605 = vshrl.u32 %v4604, 7
        %v4606 = vsub.s32 2, %v4605
        %v4607 = vrot.slane %v4302, %v4606
        %4610 = vrot.lane.b32.xlu0 %v4276, 64
        %v4611 = vpop.permute.xlu0 %4610
        %4612 = vrot.lane.b32.xlu0 %v4277, 64
        %v4613 = vpop.permute.xlu0 %4612
        %v4616 = vmul.f32 %v4547, %v4611
        %v4617 = vmul.f32 %v4547, %v4613
        %v4618 = vmul.f32 %v4551, %v4611
        %v4619 = vmul.f32 %v4551, %v4613
        %v4620 = vmul.f32 %v4555, %v4611
        %v4621 = vmul.f32 %v4555, %v4613
        %v4622 = vmul.f32 %v4559, %v4611
        %v4623 = vmul.f32 %v4559, %v4613
        %v4624 = vmul.f32 %v4563, %v4611
        %v4625 = vmul.f32 %v4563, %v4613
        %v4626 = vmul.f32 %v4567, %v4611
        %v4627 = vmul.f32 %v4567, %v4613
        %v4628 = vmul.f32 %v4571, %v4611
        %v4629 = vmul.f32 %v4571, %v4613
        %v4630 = vmul.f32 %v4575, %v4611
        %v4631 = vmul.f32 %v4575, %v4613
        %v4632 = vmul.f32 %v4579, %v4611
        %v4633 = vmul.f32 %v4579, %v4613
        %v4634 = vmul.f32 %v4583, %v4611
        %v4635 = vmul.f32 %v4583, %v4613
        %v4636 = vmul.f32 %v4587, %v4611
        %v4637 = vmul.f32 %v4587, %v4613
        %v4638 = vmul.f32 %v4591, %v4611
        %v4639 = vmul.f32 %v4591, %v4613
        %v4640 = vmul.f32 %v4595, %v4611
        %v4641 = vmul.f32 %v4595, %v4613
        %v4642 = vmul.f32 %v4599, %v4611
        %v4643 = vmul.f32 %v4599, %v4613
        %v4644 = vmul.f32 %v4603, %v4611
        %v4645 = vmul.f32 %v4603, %v4613
        %v4646 = vmul.f32 %v4607, %v4611
        %v4647 = vmul.f32 %v4607, %v4613
        %v4648 = vadd.f32 %v4512, %v4616
        %v4649 = vadd.f32 %v4513, %v4617
        %v4650 = vadd.f32 %v4514, %v4618
        %v4651 = vadd.f32 %v4515, %v4619
        %v4652 = vadd.f32 %v4516, %v4620
        %v4653 = vadd.f32 %v4517, %v4621
        %v4654 = vadd.f32 %v4518, %v4622
        %v4655 = vadd.f32 %v4519, %v4623
        %v4656 = vadd.f32 %v4520, %v4624
        %v4657 = vadd.f32 %v4521, %v4625
        %v4658 = vadd.f32 %v4522, %v4626
        %v4659 = vadd.f32 %v4523, %v4627
        %v4660 = vadd.f32 %v4524, %v4628
        %v4661 = vadd.f32 %v4525, %v4629
        %v4662 = vadd.f32 %v4526, %v4630
        %v4663 = vadd.f32 %v4527, %v4631
        %v4664 = vadd.f32 %v4528, %v4632
        %v4665 = vadd.f32 %v4529, %v4633
        %v4666 = vadd.f32 %v4530, %v4634
        %v4667 = vadd.f32 %v4531, %v4635
        %v4668 = vadd.f32 %v4532, %v4636
        %v4669 = vadd.f32 %v4533, %v4637
        %v4670 = vadd.f32 %v4534, %v4638
        %v4671 = vadd.f32 %v4535, %v4639
        %v4672 = vadd.f32 %v4536, %v4640
        %v4673 = vadd.f32 %v4537, %v4641
        %v4674 = vadd.f32 %v4538, %v4642
        %v4675 = vadd.f32 %v4539, %v4643
        %v4676 = vadd.f32 %v4540, %v4644
        %v4677 = vadd.f32 %v4541, %v4645
        %v4678 = vadd.f32 %v4542, %v4646
        %v4679 = vadd.f32 %v4543, %v4647
        %v4680 = vlaneseq
        %v4681 = vshrl.u32 %v4680, 7
        %v4682 = vsub.s32 3, %v4681
        %v4683 = vrot.slane %v4272, %v4682
        %v4684 = vlaneseq
        %v4685 = vshrl.u32 %v4684, 7
        %v4686 = vsub.s32 3, %v4685
        %v4687 = vrot.slane %v4274, %v4686
        %v4688 = vlaneseq
        %v4689 = vshrl.u32 %v4688, 7
        %v4690 = vsub.s32 3, %v4689
        %v4691 = vrot.slane %v4276, %v4690
        %v4692 = vlaneseq
        %v4693 = vshrl.u32 %v4692, 7
        %v4694 = vsub.s32 3, %v4693
        %v4695 = vrot.slane %v4278, %v4694
        %v4696 = vlaneseq
        %v4697 = vshrl.u32 %v4696, 7
        %v4698 = vsub.s32 3, %v4697
        %v4699 = vrot.slane %v4280, %v4698
        %v4700 = vlaneseq
        %v4701 = vshrl.u32 %v4700, 7
        %v4702 = vsub.s32 3, %v4701
        %v4703 = vrot.slane %v4282, %v4702
        %v4704 = vlaneseq
        %v4705 = vshrl.u32 %v4704, 7
        %v4706 = vsub.s32 3, %v4705
        %v4707 = vrot.slane %v4284, %v4706
        %v4708 = vlaneseq
        %v4709 = vshrl.u32 %v4708, 7
        %v4710 = vsub.s32 3, %v4709
        %v4711 = vrot.slane %v4286, %v4710
        %v4712 = vlaneseq
        %v4713 = vshrl.u32 %v4712, 7
        %v4714 = vsub.s32 3, %v4713
        %v4715 = vrot.slane %v4288, %v4714
        %v4716 = vlaneseq
        %v4717 = vshrl.u32 %v4716, 7
        %v4718 = vsub.s32 3, %v4717
        %v4719 = vrot.slane %v4290, %v4718
        %v4720 = vlaneseq
        %v4721 = vshrl.u32 %v4720, 7
        %v4722 = vsub.s32 3, %v4721
        %v4723 = vrot.slane %v4292, %v4722
        %v4724 = vlaneseq
        %v4725 = vshrl.u32 %v4724, 7
        %v4726 = vsub.s32 3, %v4725
        %v4727 = vrot.slane %v4294, %v4726
        %v4728 = vlaneseq
        %v4729 = vshrl.u32 %v4728, 7
        %v4730 = vsub.s32 3, %v4729
        %v4731 = vrot.slane %v4296, %v4730
        %v4732 = vlaneseq
        %v4733 = vshrl.u32 %v4732, 7
        %v4734 = vsub.s32 3, %v4733
        %v4735 = vrot.slane %v4298, %v4734
        %v4736 = vlaneseq
        %v4737 = vshrl.u32 %v4736, 7
        %v4738 = vsub.s32 3, %v4737
        %v4739 = vrot.slane %v4300, %v4738
        %v4740 = vlaneseq
        %v4741 = vshrl.u32 %v4740, 7
        %v4742 = vsub.s32 3, %v4741
        %v4743 = vrot.slane %v4302, %v4742
        %4746 = vrot.lane.b32.xlu0 %v4278, 64
        %v4747 = vpop.permute.xlu0 %4746
        %4748 = vrot.lane.b32.xlu0 %v4279, 64
        %v4749 = vpop.permute.xlu0 %4748
        %v4752 = vmul.f32 %v4683, %v4747
        %v4753 = vmul.f32 %v4683, %v4749
        %v4754 = vmul.f32 %v4687, %v4747
        %v4755 = vmul.f32 %v4687, %v4749
        %v4756 = vmul.f32 %v4691, %v4747
        %v4757 = vmul.f32 %v4691, %v4749
        %v4758 = vmul.f32 %v4695, %v4747
        %v4759 = vmul.f32 %v4695, %v4749
        %v4760 = vmul.f32 %v4699, %v4747
        %v4761 = vmul.f32 %v4699, %v4749
        %v4762 = vmul.f32 %v4703, %v4747
        %v4763 = vmul.f32 %v4703, %v4749
        %v4764 = vmul.f32 %v4707, %v4747
        %v4765 = vmul.f32 %v4707, %v4749
        %v4766 = vmul.f32 %v4711, %v4747
        %v4767 = vmul.f32 %v4711, %v4749
        %v4768 = vmul.f32 %v4715, %v4747
        %v4769 = vmul.f32 %v4715, %v4749
        %v4770 = vmul.f32 %v4719, %v4747
        %v4771 = vmul.f32 %v4719, %v4749
        %v4772 = vmul.f32 %v4723, %v4747
        %v4773 = vmul.f32 %v4723, %v4749
        %v4774 = vmul.f32 %v4727, %v4747
        %v4775 = vmul.f32 %v4727, %v4749
        %v4776 = vmul.f32 %v4731, %v4747
        %v4777 = vmul.f32 %v4731, %v4749
        %v4778 = vmul.f32 %v4735, %v4747
        %v4779 = vmul.f32 %v4735, %v4749
        %v4780 = vmul.f32 %v4739, %v4747
        %v4781 = vmul.f32 %v4739, %v4749
        %v4782 = vmul.f32 %v4743, %v4747
        %v4783 = vmul.f32 %v4743, %v4749
        %v4784 = vadd.f32 %v4648, %v4752
        %v4785 = vadd.f32 %v4649, %v4753
        %v4786 = vadd.f32 %v4650, %v4754
        %v4787 = vadd.f32 %v4651, %v4755
        %v4788 = vadd.f32 %v4652, %v4756
        %v4789 = vadd.f32 %v4653, %v4757
        %v4790 = vadd.f32 %v4654, %v4758
        %v4791 = vadd.f32 %v4655, %v4759
        %v4792 = vadd.f32 %v4656, %v4760
        %v4793 = vadd.f32 %v4657, %v4761
        %v4794 = vadd.f32 %v4658, %v4762
        %v4795 = vadd.f32 %v4659, %v4763
        %v4796 = vadd.f32 %v4660, %v4764
        %v4797 = vadd.f32 %v4661, %v4765
        %v4798 = vadd.f32 %v4662, %v4766
        %v4799 = vadd.f32 %v4663, %v4767
        %v4800 = vadd.f32 %v4664, %v4768
        %v4801 = vadd.f32 %v4665, %v4769
        %v4802 = vadd.f32 %v4666, %v4770
        %v4803 = vadd.f32 %v4667, %v4771
        %v4804 = vadd.f32 %v4668, %v4772
        %v4805 = vadd.f32 %v4669, %v4773
        %v4806 = vadd.f32 %v4670, %v4774
        %v4807 = vadd.f32 %v4671, %v4775
        %v4808 = vadd.f32 %v4672, %v4776
        %v4809 = vadd.f32 %v4673, %v4777
        %v4810 = vadd.f32 %v4674, %v4778
        %v4811 = vadd.f32 %v4675, %v4779
        %v4812 = vadd.f32 %v4676, %v4780
        %v4813 = vadd.f32 %v4677, %v4781
        %v4814 = vadd.f32 %v4678, %v4782
        %v4815 = vadd.f32 %v4679, %v4783
        %v4816 = vlaneseq
        %v4817 = vshrl.u32 %v4816, 7
        %v4818 = vsub.s32 4, %v4817
        %v4819 = vrot.slane %v4272, %v4818
        %v4820 = vlaneseq
        %v4821 = vshrl.u32 %v4820, 7
        %v4822 = vsub.s32 4, %v4821
        %v4823 = vrot.slane %v4274, %v4822
        %v4824 = vlaneseq
        %v4825 = vshrl.u32 %v4824, 7
        %v4826 = vsub.s32 4, %v4825
        %v4827 = vrot.slane %v4276, %v4826
        %v4828 = vlaneseq
        %v4829 = vshrl.u32 %v4828, 7
        %v4830 = vsub.s32 4, %v4829
        %v4831 = vrot.slane %v4278, %v4830
        %v4832 = vlaneseq
        %v4833 = vshrl.u32 %v4832, 7
        %v4834 = vsub.s32 4, %v4833
        %v4835 = vrot.slane %v4280, %v4834
        %v4836 = vlaneseq
        %v4837 = vshrl.u32 %v4836, 7
        %v4838 = vsub.s32 4, %v4837
        %v4839 = vrot.slane %v4282, %v4838
        %v4840 = vlaneseq
        %v4841 = vshrl.u32 %v4840, 7
        %v4842 = vsub.s32 4, %v4841
        %v4843 = vrot.slane %v4284, %v4842
        %v4844 = vlaneseq
        %v4845 = vshrl.u32 %v4844, 7
        %v4846 = vsub.s32 4, %v4845
        %v4847 = vrot.slane %v4286, %v4846
        %v4848 = vlaneseq
        %v4849 = vshrl.u32 %v4848, 7
        %v4850 = vsub.s32 4, %v4849
        %v4851 = vrot.slane %v4288, %v4850
        %v4852 = vlaneseq
        %v4853 = vshrl.u32 %v4852, 7
        %v4854 = vsub.s32 4, %v4853
        %v4855 = vrot.slane %v4290, %v4854
        %v4856 = vlaneseq
        %v4857 = vshrl.u32 %v4856, 7
        %v4858 = vsub.s32 4, %v4857
        %v4859 = vrot.slane %v4292, %v4858
        %v4860 = vlaneseq
        %v4861 = vshrl.u32 %v4860, 7
        %v4862 = vsub.s32 4, %v4861
        %v4863 = vrot.slane %v4294, %v4862
        %v4864 = vlaneseq
        %v4865 = vshrl.u32 %v4864, 7
        %v4866 = vsub.s32 4, %v4865
        %v4867 = vrot.slane %v4296, %v4866
        %v4868 = vlaneseq
        %v4869 = vshrl.u32 %v4868, 7
        %v4870 = vsub.s32 4, %v4869
        %v4871 = vrot.slane %v4298, %v4870
        %v4872 = vlaneseq
        %v4873 = vshrl.u32 %v4872, 7
        %v4874 = vsub.s32 4, %v4873
        %v4875 = vrot.slane %v4300, %v4874
        %v4876 = vlaneseq
        %v4877 = vshrl.u32 %v4876, 7
        %v4878 = vsub.s32 4, %v4877
        %v4879 = vrot.slane %v4302, %v4878
        %4882 = vrot.lane.b32.xlu0 %v4280, 64
        %v4883 = vpop.permute.xlu0 %4882
        %4884 = vrot.lane.b32.xlu0 %v4281, 64
        %v4885 = vpop.permute.xlu0 %4884
        %v4888 = vmul.f32 %v4819, %v4883
        %v4889 = vmul.f32 %v4819, %v4885
        %v4890 = vmul.f32 %v4823, %v4883
        %v4891 = vmul.f32 %v4823, %v4885
        %v4892 = vmul.f32 %v4827, %v4883
        %v4893 = vmul.f32 %v4827, %v4885
        %v4894 = vmul.f32 %v4831, %v4883
        %v4895 = vmul.f32 %v4831, %v4885
        %v4896 = vmul.f32 %v4835, %v4883
        %v4897 = vmul.f32 %v4835, %v4885
        %v4898 = vmul.f32 %v4839, %v4883
        %v4899 = vmul.f32 %v4839, %v4885
        %v4900 = vmul.f32 %v4843, %v4883
        %v4901 = vmul.f32 %v4843, %v4885
        %v4902 = vmul.f32 %v4847, %v4883
        %v4903 = vmul.f32 %v4847, %v4885
        %v4904 = vmul.f32 %v4851, %v4883
        %v4905 = vmul.f32 %v4851, %v4885
        %v4906 = vmul.f32 %v4855, %v4883
        %v4907 = vmul.f32 %v4855, %v4885
        %v4908 = vmul.f32 %v4859, %v4883
        %v4909 = vmul.f32 %v4859, %v4885
        %v4910 = vmul.f32 %v4863, %v4883
        %v4911 = vmul.f32 %v4863, %v4885
        %v4912 = vmul.f32 %v4867, %v4883
        %v4913 = vmul.f32 %v4867, %v4885
        %v4914 = vmul.f32 %v4871, %v4883
        %v4915 = vmul.f32 %v4871, %v4885
        %v4916 = vmul.f32 %v4875, %v4883
        %v4917 = vmul.f32 %v4875, %v4885
        %v4918 = vmul.f32 %v4879, %v4883
        %v4919 = vmul.f32 %v4879, %v4885
        %v4920 = vadd.f32 %v4784, %v4888
        %v4921 = vadd.f32 %v4785, %v4889
        %v4922 = vadd.f32 %v4786, %v4890
        %v4923 = vadd.f32 %v4787, %v4891
        %v4924 = vadd.f32 %v4788, %v4892
        %v4925 = vadd.f32 %v4789, %v4893
        %v4926 = vadd.f32 %v4790, %v4894
        %v4927 = vadd.f32 %v4791, %v4895
        %v4928 = vadd.f32 %v4792, %v4896
        %v4929 = vadd.f32 %v4793, %v4897
        %v4930 = vadd.f32 %v4794, %v4898
        %v4931 = vadd.f32 %v4795, %v4899
        %v4932 = vadd.f32 %v4796, %v4900
        %v4933 = vadd.f32 %v4797, %v4901
        %v4934 = vadd.f32 %v4798, %v4902
        %v4935 = vadd.f32 %v4799, %v4903
        %v4936 = vadd.f32 %v4800, %v4904
        %v4937 = vadd.f32 %v4801, %v4905
        %v4938 = vadd.f32 %v4802, %v4906
        %v4939 = vadd.f32 %v4803, %v4907
        %v4940 = vadd.f32 %v4804, %v4908
        %v4941 = vadd.f32 %v4805, %v4909
        %v4942 = vadd.f32 %v4806, %v4910
        %v4943 = vadd.f32 %v4807, %v4911
        %v4944 = vadd.f32 %v4808, %v4912
        %v4945 = vadd.f32 %v4809, %v4913
        %v4946 = vadd.f32 %v4810, %v4914
        %v4947 = vadd.f32 %v4811, %v4915
        %v4948 = vadd.f32 %v4812, %v4916
        %v4949 = vadd.f32 %v4813, %v4917
        %v4950 = vadd.f32 %v4814, %v4918
        %v4951 = vadd.f32 %v4815, %v4919
        %v4952 = vlaneseq
        %v4953 = vshrl.u32 %v4952, 7
        %v4954 = vsub.s32 5, %v4953
        %v4955 = vrot.slane %v4272, %v4954
        %v4956 = vlaneseq
        %v4957 = vshrl.u32 %v4956, 7
        %v4958 = vsub.s32 5, %v4957
        %v4959 = vrot.slane %v4274, %v4958
        %v4960 = vlaneseq
        %v4961 = vshrl.u32 %v4960, 7
        %v4962 = vsub.s32 5, %v4961
        %v4963 = vrot.slane %v4276, %v4962
        %v4964 = vlaneseq
        %v4965 = vshrl.u32 %v4964, 7
        %v4966 = vsub.s32 5, %v4965
        %v4967 = vrot.slane %v4278, %v4966
        %v4968 = vlaneseq
        %v4969 = vshrl.u32 %v4968, 7
        %v4970 = vsub.s32 5, %v4969
        %v4971 = vrot.slane %v4280, %v4970
        %v4972 = vlaneseq
        %v4973 = vshrl.u32 %v4972, 7
        %v4974 = vsub.s32 5, %v4973
        %v4975 = vrot.slane %v4282, %v4974
        %v4976 = vlaneseq
        %v4977 = vshrl.u32 %v4976, 7
        %v4978 = vsub.s32 5, %v4977
        %v4979 = vrot.slane %v4284, %v4978
        %v4980 = vlaneseq
        %v4981 = vshrl.u32 %v4980, 7
        %v4982 = vsub.s32 5, %v4981
        %v4983 = vrot.slane %v4286, %v4982
        %v4984 = vlaneseq
        %v4985 = vshrl.u32 %v4984, 7
        %v4986 = vsub.s32 5, %v4985
        %v4987 = vrot.slane %v4288, %v4986
        %v4988 = vlaneseq
        %v4989 = vshrl.u32 %v4988, 7
        %v4990 = vsub.s32 5, %v4989
        %v4991 = vrot.slane %v4290, %v4990
        %v4992 = vlaneseq
        %v4993 = vshrl.u32 %v4992, 7
        %v4994 = vsub.s32 5, %v4993
        %v4995 = vrot.slane %v4292, %v4994
        %v4996 = vlaneseq
        %v4997 = vshrl.u32 %v4996, 7
        %v4998 = vsub.s32 5, %v4997
        %v4999 = vrot.slane %v4294, %v4998
        %v5000 = vlaneseq
        %v5001 = vshrl.u32 %v5000, 7
        %v5002 = vsub.s32 5, %v5001
        %v5003 = vrot.slane %v4296, %v5002
        %v5004 = vlaneseq
        %v5005 = vshrl.u32 %v5004, 7
        %v5006 = vsub.s32 5, %v5005
        %v5007 = vrot.slane %v4298, %v5006
        %v5008 = vlaneseq
        %v5009 = vshrl.u32 %v5008, 7
        %v5010 = vsub.s32 5, %v5009
        %v5011 = vrot.slane %v4300, %v5010
        %v5012 = vlaneseq
        %v5013 = vshrl.u32 %v5012, 7
        %v5014 = vsub.s32 5, %v5013
        %v5015 = vrot.slane %v4302, %v5014
        %5018 = vrot.lane.b32.xlu0 %v4282, 64
        %v5019 = vpop.permute.xlu0 %5018
        %5020 = vrot.lane.b32.xlu0 %v4283, 64
        %v5021 = vpop.permute.xlu0 %5020
        %v5024 = vmul.f32 %v4955, %v5019
        %v5025 = vmul.f32 %v4955, %v5021
        %v5026 = vmul.f32 %v4959, %v5019
        %v5027 = vmul.f32 %v4959, %v5021
        %v5028 = vmul.f32 %v4963, %v5019
        %v5029 = vmul.f32 %v4963, %v5021
        %v5030 = vmul.f32 %v4967, %v5019
        %v5031 = vmul.f32 %v4967, %v5021
        %v5032 = vmul.f32 %v4971, %v5019
        %v5033 = vmul.f32 %v4971, %v5021
        %v5034 = vmul.f32 %v4975, %v5019
        %v5035 = vmul.f32 %v4975, %v5021
        %v5036 = vmul.f32 %v4979, %v5019
        %v5037 = vmul.f32 %v4979, %v5021
        %v5038 = vmul.f32 %v4983, %v5019
        %v5039 = vmul.f32 %v4983, %v5021
        %v5040 = vmul.f32 %v4987, %v5019
        %v5041 = vmul.f32 %v4987, %v5021
        %v5042 = vmul.f32 %v4991, %v5019
        %v5043 = vmul.f32 %v4991, %v5021
        %v5044 = vmul.f32 %v4995, %v5019
        %v5045 = vmul.f32 %v4995, %v5021
        %v5046 = vmul.f32 %v4999, %v5019
        %v5047 = vmul.f32 %v4999, %v5021
        %v5048 = vmul.f32 %v5003, %v5019
        %v5049 = vmul.f32 %v5003, %v5021
        %v5050 = vmul.f32 %v5007, %v5019
        %v5051 = vmul.f32 %v5007, %v5021
        %v5052 = vmul.f32 %v5011, %v5019
        %v5053 = vmul.f32 %v5011, %v5021
        %v5054 = vmul.f32 %v5015, %v5019
        %v5055 = vmul.f32 %v5015, %v5021
        %v5056 = vadd.f32 %v4920, %v5024
        %v5057 = vadd.f32 %v4921, %v5025
        %v5058 = vadd.f32 %v4922, %v5026
        %v5059 = vadd.f32 %v4923, %v5027
        %v5060 = vadd.f32 %v4924, %v5028
        %v5061 = vadd.f32 %v4925, %v5029
        %v5062 = vadd.f32 %v4926, %v5030
        %v5063 = vadd.f32 %v4927, %v5031
        %v5064 = vadd.f32 %v4928, %v5032
        %v5065 = vadd.f32 %v4929, %v5033
        %v5066 = vadd.f32 %v4930, %v5034
        %v5067 = vadd.f32 %v4931, %v5035
        %v5068 = vadd.f32 %v4932, %v5036
        %v5069 = vadd.f32 %v4933, %v5037
        %v5070 = vadd.f32 %v4934, %v5038
        %v5071 = vadd.f32 %v4935, %v5039
        %v5072 = vadd.f32 %v4936, %v5040
        %v5073 = vadd.f32 %v4937, %v5041
        %v5074 = vadd.f32 %v4938, %v5042
        %v5075 = vadd.f32 %v4939, %v5043
        %v5076 = vadd.f32 %v4940, %v5044
        %v5077 = vadd.f32 %v4941, %v5045
        %v5078 = vadd.f32 %v4942, %v5046
        %v5079 = vadd.f32 %v4943, %v5047
        %v5080 = vadd.f32 %v4944, %v5048
        %v5081 = vadd.f32 %v4945, %v5049
        %v5082 = vadd.f32 %v4946, %v5050
        %v5083 = vadd.f32 %v4947, %v5051
        %v5084 = vadd.f32 %v4948, %v5052
        %v5085 = vadd.f32 %v4949, %v5053
        %v5086 = vadd.f32 %v4950, %v5054
        %v5087 = vadd.f32 %v4951, %v5055
        %v5088 = vlaneseq
        %v5089 = vshrl.u32 %v5088, 7
        %v5090 = vsub.s32 6, %v5089
        %v5091 = vrot.slane %v4272, %v5090
        %v5092 = vlaneseq
        %v5093 = vshrl.u32 %v5092, 7
        %v5094 = vsub.s32 6, %v5093
        %v5095 = vrot.slane %v4274, %v5094
        %v5096 = vlaneseq
        %v5097 = vshrl.u32 %v5096, 7
        %v5098 = vsub.s32 6, %v5097
        %v5099 = vrot.slane %v4276, %v5098
        %v5100 = vlaneseq
        %v5101 = vshrl.u32 %v5100, 7
        %v5102 = vsub.s32 6, %v5101
        %v5103 = vrot.slane %v4278, %v5102
        %v5104 = vlaneseq
        %v5105 = vshrl.u32 %v5104, 7
        %v5106 = vsub.s32 6, %v5105
        %v5107 = vrot.slane %v4280, %v5106
        %v5108 = vlaneseq
        %v5109 = vshrl.u32 %v5108, 7
        %v5110 = vsub.s32 6, %v5109
        %v5111 = vrot.slane %v4282, %v5110
        %v5112 = vlaneseq
        %v5113 = vshrl.u32 %v5112, 7
        %v5114 = vsub.s32 6, %v5113
        %v5115 = vrot.slane %v4284, %v5114
        %v5116 = vlaneseq
        %v5117 = vshrl.u32 %v5116, 7
        %v5118 = vsub.s32 6, %v5117
        %v5119 = vrot.slane %v4286, %v5118
        %v5120 = vlaneseq
        %v5121 = vshrl.u32 %v5120, 7
        %v5122 = vsub.s32 6, %v5121
        %v5123 = vrot.slane %v4288, %v5122
        %v5124 = vlaneseq
        %v5125 = vshrl.u32 %v5124, 7
        %v5126 = vsub.s32 6, %v5125
        %v5127 = vrot.slane %v4290, %v5126
        %v5128 = vlaneseq
        %v5129 = vshrl.u32 %v5128, 7
        %v5130 = vsub.s32 6, %v5129
        %v5131 = vrot.slane %v4292, %v5130
        %v5132 = vlaneseq
        %v5133 = vshrl.u32 %v5132, 7
        %v5134 = vsub.s32 6, %v5133
        %v5135 = vrot.slane %v4294, %v5134
        %v5136 = vlaneseq
        %v5137 = vshrl.u32 %v5136, 7
        %v5138 = vsub.s32 6, %v5137
        %v5139 = vrot.slane %v4296, %v5138
        %v5140 = vlaneseq
        %v5141 = vshrl.u32 %v5140, 7
        %v5142 = vsub.s32 6, %v5141
        %v5143 = vrot.slane %v4298, %v5142
        %v5144 = vlaneseq
        %v5145 = vshrl.u32 %v5144, 7
        %v5146 = vsub.s32 6, %v5145
        %v5147 = vrot.slane %v4300, %v5146
        %v5148 = vlaneseq
        %v5149 = vshrl.u32 %v5148, 7
        %v5150 = vsub.s32 6, %v5149
        %v5151 = vrot.slane %v4302, %v5150
        %5154 = vrot.lane.b32.xlu0 %v4284, 64
        %v5155 = vpop.permute.xlu0 %5154
        %5156 = vrot.lane.b32.xlu0 %v4285, 64
        %v5157 = vpop.permute.xlu0 %5156
        %v5160 = vmul.f32 %v5091, %v5155
        %v5161 = vmul.f32 %v5091, %v5157
        %v5162 = vmul.f32 %v5095, %v5155
        %v5163 = vmul.f32 %v5095, %v5157
        %v5164 = vmul.f32 %v5099, %v5155
        %v5165 = vmul.f32 %v5099, %v5157
        %v5166 = vmul.f32 %v5103, %v5155
        %v5167 = vmul.f32 %v5103, %v5157
        %v5168 = vmul.f32 %v5107, %v5155
        %v5169 = vmul.f32 %v5107, %v5157
        %v5170 = vmul.f32 %v5111, %v5155
        %v5171 = vmul.f32 %v5111, %v5157
        %v5172 = vmul.f32 %v5115, %v5155
        %v5173 = vmul.f32 %v5115, %v5157
        %v5174 = vmul.f32 %v5119, %v5155
        %v5175 = vmul.f32 %v5119, %v5157
        %v5176 = vmul.f32 %v5123, %v5155
        %v5177 = vmul.f32 %v5123, %v5157
        %v5178 = vmul.f32 %v5127, %v5155
        %v5179 = vmul.f32 %v5127, %v5157
        %v5180 = vmul.f32 %v5131, %v5155
        %v5181 = vmul.f32 %v5131, %v5157
        %v5182 = vmul.f32 %v5135, %v5155
        %v5183 = vmul.f32 %v5135, %v5157
        %v5184 = vmul.f32 %v5139, %v5155
        %v5185 = vmul.f32 %v5139, %v5157
        %v5186 = vmul.f32 %v5143, %v5155
        %v5187 = vmul.f32 %v5143, %v5157
        %v5188 = vmul.f32 %v5147, %v5155
        %v5189 = vmul.f32 %v5147, %v5157
        %v5190 = vmul.f32 %v5151, %v5155
        %v5191 = vmul.f32 %v5151, %v5157
        %v5192 = vadd.f32 %v5056, %v5160
        %v5193 = vadd.f32 %v5057, %v5161
        %v5194 = vadd.f32 %v5058, %v5162
        %v5195 = vadd.f32 %v5059, %v5163
        %v5196 = vadd.f32 %v5060, %v5164
        %v5197 = vadd.f32 %v5061, %v5165
        %v5198 = vadd.f32 %v5062, %v5166
        %v5199 = vadd.f32 %v5063, %v5167
        %v5200 = vadd.f32 %v5064, %v5168
        %v5201 = vadd.f32 %v5065, %v5169
        %v5202 = vadd.f32 %v5066, %v5170
        %v5203 = vadd.f32 %v5067, %v5171
        %v5204 = vadd.f32 %v5068, %v5172
        %v5205 = vadd.f32 %v5069, %v5173
        %v5206 = vadd.f32 %v5070, %v5174
        %v5207 = vadd.f32 %v5071, %v5175
        %v5208 = vadd.f32 %v5072, %v5176
        %v5209 = vadd.f32 %v5073, %v5177
        %v5210 = vadd.f32 %v5074, %v5178
        %v5211 = vadd.f32 %v5075, %v5179
        %v5212 = vadd.f32 %v5076, %v5180
        %v5213 = vadd.f32 %v5077, %v5181
        %v5214 = vadd.f32 %v5078, %v5182
        %v5215 = vadd.f32 %v5079, %v5183
        %v5216 = vadd.f32 %v5080, %v5184
        %v5217 = vadd.f32 %v5081, %v5185
        %v5218 = vadd.f32 %v5082, %v5186
        %v5219 = vadd.f32 %v5083, %v5187
        %v5220 = vadd.f32 %v5084, %v5188
        %v5221 = vadd.f32 %v5085, %v5189
        %v5222 = vadd.f32 %v5086, %v5190
        %v5223 = vadd.f32 %v5087, %v5191
        %v5224 = vlaneseq
        %v5225 = vshrl.u32 %v5224, 7
        %v5226 = vsub.s32 7, %v5225
        %v5227 = vrot.slane %v4272, %v5226
        %v5228 = vlaneseq
        %v5229 = vshrl.u32 %v5228, 7
        %v5230 = vsub.s32 7, %v5229
        %v5231 = vrot.slane %v4274, %v5230
        %v5232 = vlaneseq
        %v5233 = vshrl.u32 %v5232, 7
        %v5234 = vsub.s32 7, %v5233
        %v5235 = vrot.slane %v4276, %v5234
        %v5236 = vlaneseq
        %v5237 = vshrl.u32 %v5236, 7
        %v5238 = vsub.s32 7, %v5237
        %v5239 = vrot.slane %v4278, %v5238
        %v5240 = vlaneseq
        %v5241 = vshrl.u32 %v5240, 7
        %v5242 = vsub.s32 7, %v5241
        %v5243 = vrot.slane %v4280, %v5242
        %v5244 = vlaneseq
        %v5245 = vshrl.u32 %v5244, 7
        %v5246 = vsub.s32 7, %v5245
        %v5247 = vrot.slane %v4282, %v5246
        %v5248 = vlaneseq
        %v5249 = vshrl.u32 %v5248, 7
        %v5250 = vsub.s32 7, %v5249
        %v5251 = vrot.slane %v4284, %v5250
        %v5252 = vlaneseq
        %v5253 = vshrl.u32 %v5252, 7
        %v5254 = vsub.s32 7, %v5253
        %v5255 = vrot.slane %v4286, %v5254
        %v5256 = vlaneseq
        %v5257 = vshrl.u32 %v5256, 7
        %v5258 = vsub.s32 7, %v5257
        %v5259 = vrot.slane %v4288, %v5258
        %v5260 = vlaneseq
        %v5261 = vshrl.u32 %v5260, 7
        %v5262 = vsub.s32 7, %v5261
        %v5263 = vrot.slane %v4290, %v5262
        %v5264 = vlaneseq
        %v5265 = vshrl.u32 %v5264, 7
        %v5266 = vsub.s32 7, %v5265
        %v5267 = vrot.slane %v4292, %v5266
        %v5268 = vlaneseq
        %v5269 = vshrl.u32 %v5268, 7
        %v5270 = vsub.s32 7, %v5269
        %v5271 = vrot.slane %v4294, %v5270
        %v5272 = vlaneseq
        %v5273 = vshrl.u32 %v5272, 7
        %v5274 = vsub.s32 7, %v5273
        %v5275 = vrot.slane %v4296, %v5274
        %v5276 = vlaneseq
        %v5277 = vshrl.u32 %v5276, 7
        %v5278 = vsub.s32 7, %v5277
        %v5279 = vrot.slane %v4298, %v5278
        %v5280 = vlaneseq
        %v5281 = vshrl.u32 %v5280, 7
        %v5282 = vsub.s32 7, %v5281
        %v5283 = vrot.slane %v4300, %v5282
        %v5284 = vlaneseq
        %v5285 = vshrl.u32 %v5284, 7
        %v5286 = vsub.s32 7, %v5285
        %v5287 = vrot.slane %v4302, %v5286
        %5290 = vrot.lane.b32.xlu0 %v4286, 64
        %v5291 = vpop.permute.xlu0 %5290
        %5292 = vrot.lane.b32.xlu0 %v4287, 64
        %v5293 = vpop.permute.xlu0 %5292
        %v5296 = vmul.f32 %v5227, %v5291
        %v5297 = vmul.f32 %v5227, %v5293
        %v5298 = vmul.f32 %v5231, %v5291
        %v5299 = vmul.f32 %v5231, %v5293
        %v5300 = vmul.f32 %v5235, %v5291
        %v5301 = vmul.f32 %v5235, %v5293
        %v5302 = vmul.f32 %v5239, %v5291
        %v5303 = vmul.f32 %v5239, %v5293
        %v5304 = vmul.f32 %v5243, %v5291
        %v5305 = vmul.f32 %v5243, %v5293
        %v5306 = vmul.f32 %v5247, %v5291
        %v5307 = vmul.f32 %v5247, %v5293
        %v5308 = vmul.f32 %v5251, %v5291
        %v5309 = vmul.f32 %v5251, %v5293
        %v5310 = vmul.f32 %v5255, %v5291
        %v5311 = vmul.f32 %v5255, %v5293
        %v5312 = vmul.f32 %v5259, %v5291
        %v5313 = vmul.f32 %v5259, %v5293
        %v5314 = vmul.f32 %v5263, %v5291
        %v5315 = vmul.f32 %v5263, %v5293
        %v5316 = vmul.f32 %v5267, %v5291
        %v5317 = vmul.f32 %v5267, %v5293
        %v5318 = vmul.f32 %v5271, %v5291
        %v5319 = vmul.f32 %v5271, %v5293
        %v5320 = vmul.f32 %v5275, %v5291
        %v5321 = vmul.f32 %v5275, %v5293
        %v5322 = vmul.f32 %v5279, %v5291
        %v5323 = vmul.f32 %v5279, %v5293
        %v5324 = vmul.f32 %v5283, %v5291
        %v5325 = vmul.f32 %v5283, %v5293
        %v5326 = vmul.f32 %v5287, %v5291
        %v5327 = vmul.f32 %v5287, %v5293
        %v5328 = vadd.f32 %v5192, %v5296
        %v5329 = vadd.f32 %v5193, %v5297
        %v5330 = vadd.f32 %v5194, %v5298
        %v5331 = vadd.f32 %v5195, %v5299
        %v5332 = vadd.f32 %v5196, %v5300
        %v5333 = vadd.f32 %v5197, %v5301
        %v5334 = vadd.f32 %v5198, %v5302
        %v5335 = vadd.f32 %v5199, %v5303
        %v5336 = vadd.f32 %v5200, %v5304
        %v5337 = vadd.f32 %v5201, %v5305
        %v5338 = vadd.f32 %v5202, %v5306
        %v5339 = vadd.f32 %v5203, %v5307
        %v5340 = vadd.f32 %v5204, %v5308
        %v5341 = vadd.f32 %v5205, %v5309
        %v5342 = vadd.f32 %v5206, %v5310
        %v5343 = vadd.f32 %v5207, %v5311
        %v5344 = vadd.f32 %v5208, %v5312
        %v5345 = vadd.f32 %v5209, %v5313
        %v5346 = vadd.f32 %v5210, %v5314
        %v5347 = vadd.f32 %v5211, %v5315
        %v5348 = vadd.f32 %v5212, %v5316
        %v5349 = vadd.f32 %v5213, %v5317
        %v5350 = vadd.f32 %v5214, %v5318
        %v5351 = vadd.f32 %v5215, %v5319
        %v5352 = vadd.f32 %v5216, %v5320
        %v5353 = vadd.f32 %v5217, %v5321
        %v5354 = vadd.f32 %v5218, %v5322
        %v5355 = vadd.f32 %v5219, %v5323
        %v5356 = vadd.f32 %v5220, %v5324
        %v5357 = vadd.f32 %v5221, %v5325
        %v5358 = vadd.f32 %v5222, %v5326
        %v5359 = vadd.f32 %v5223, %v5327
        %v5360 = vlaneseq
        %v5361 = vshrl.u32 %v5360, 7
        %v5362 = vsub.s32 0, %v5361
        %v5363 = vrot.slane %v4273, %v5362
        %v5364 = vlaneseq
        %v5365 = vshrl.u32 %v5364, 7
        %v5366 = vsub.s32 0, %v5365
        %v5367 = vrot.slane %v4275, %v5366
        %v5368 = vlaneseq
        %v5369 = vshrl.u32 %v5368, 7
        %v5370 = vsub.s32 0, %v5369
        %v5371 = vrot.slane %v4277, %v5370
        %v5372 = vlaneseq
        %v5373 = vshrl.u32 %v5372, 7
        %v5374 = vsub.s32 0, %v5373
        %v5375 = vrot.slane %v4279, %v5374
        %v5376 = vlaneseq
        %v5377 = vshrl.u32 %v5376, 7
        %v5378 = vsub.s32 0, %v5377
        %v5379 = vrot.slane %v4281, %v5378
        %v5380 = vlaneseq
        %v5381 = vshrl.u32 %v5380, 7
        %v5382 = vsub.s32 0, %v5381
        %v5383 = vrot.slane %v4283, %v5382
        %v5384 = vlaneseq
        %v5385 = vshrl.u32 %v5384, 7
        %v5386 = vsub.s32 0, %v5385
        %v5387 = vrot.slane %v4285, %v5386
        %v5388 = vlaneseq
        %v5389 = vshrl.u32 %v5388, 7
        %v5390 = vsub.s32 0, %v5389
        %v5391 = vrot.slane %v4287, %v5390
        %v5392 = vlaneseq
        %v5393 = vshrl.u32 %v5392, 7
        %v5394 = vsub.s32 0, %v5393
        %v5395 = vrot.slane %v4289, %v5394
        %v5396 = vlaneseq
        %v5397 = vshrl.u32 %v5396, 7
        %v5398 = vsub.s32 0, %v5397
        %v5399 = vrot.slane %v4291, %v5398
        %v5400 = vlaneseq
        %v5401 = vshrl.u32 %v5400, 7
        %v5402 = vsub.s32 0, %v5401
        %v5403 = vrot.slane %v4293, %v5402
        %v5404 = vlaneseq
        %v5405 = vshrl.u32 %v5404, 7
        %v5406 = vsub.s32 0, %v5405
        %v5407 = vrot.slane %v4295, %v5406
        %v5408 = vlaneseq
        %v5409 = vshrl.u32 %v5408, 7
        %v5410 = vsub.s32 0, %v5409
        %v5411 = vrot.slane %v4297, %v5410
        %v5412 = vlaneseq
        %v5413 = vshrl.u32 %v5412, 7
        %v5414 = vsub.s32 0, %v5413
        %v5415 = vrot.slane %v4299, %v5414
        %v5416 = vlaneseq
        %v5417 = vshrl.u32 %v5416, 7
        %v5418 = vsub.s32 0, %v5417
        %v5419 = vrot.slane %v4301, %v5418
        %v5420 = vlaneseq
        %v5421 = vshrl.u32 %v5420, 7
        %v5422 = vsub.s32 0, %v5421
        %v5423 = vrot.slane %v4303, %v5422
        %5426 = vrot.lane.b32.xlu0 %v4288, 64
        %v5427 = vpop.permute.xlu0 %5426
        %5428 = vrot.lane.b32.xlu0 %v4289, 64
        %v5429 = vpop.permute.xlu0 %5428
        %v5432 = vmul.f32 %v5363, %v5427
        %v5433 = vmul.f32 %v5363, %v5429
        %v5434 = vmul.f32 %v5367, %v5427
        %v5435 = vmul.f32 %v5367, %v5429
        %v5436 = vmul.f32 %v5371, %v5427
        %v5437 = vmul.f32 %v5371, %v5429
        %v5438 = vmul.f32 %v5375, %v5427
        %v5439 = vmul.f32 %v5375, %v5429
        %v5440 = vmul.f32 %v5379, %v5427
        %v5441 = vmul.f32 %v5379, %v5429
        %v5442 = vmul.f32 %v5383, %v5427
        %v5443 = vmul.f32 %v5383, %v5429
        %v5444 = vmul.f32 %v5387, %v5427
        %v5445 = vmul.f32 %v5387, %v5429
        %v5446 = vmul.f32 %v5391, %v5427
        %v5447 = vmul.f32 %v5391, %v5429
        %v5448 = vmul.f32 %v5395, %v5427
        %v5449 = vmul.f32 %v5395, %v5429
        %v5450 = vmul.f32 %v5399, %v5427
        %v5451 = vmul.f32 %v5399, %v5429
        %v5452 = vmul.f32 %v5403, %v5427
        %v5453 = vmul.f32 %v5403, %v5429
        %v5454 = vmul.f32 %v5407, %v5427
        %v5455 = vmul.f32 %v5407, %v5429
        %v5456 = vmul.f32 %v5411, %v5427
        %v5457 = vmul.f32 %v5411, %v5429
        %v5458 = vmul.f32 %v5415, %v5427
        %v5459 = vmul.f32 %v5415, %v5429
        %v5460 = vmul.f32 %v5419, %v5427
        %v5461 = vmul.f32 %v5419, %v5429
        %v5462 = vmul.f32 %v5423, %v5427
        %v5463 = vmul.f32 %v5423, %v5429
        %v5464 = vadd.f32 %v5328, %v5432
        %v5465 = vadd.f32 %v5329, %v5433
        %v5466 = vadd.f32 %v5330, %v5434
        %v5467 = vadd.f32 %v5331, %v5435
        %v5468 = vadd.f32 %v5332, %v5436
        %v5469 = vadd.f32 %v5333, %v5437
        %v5470 = vadd.f32 %v5334, %v5438
        %v5471 = vadd.f32 %v5335, %v5439
        %v5472 = vadd.f32 %v5336, %v5440
        %v5473 = vadd.f32 %v5337, %v5441
        %v5474 = vadd.f32 %v5338, %v5442
        %v5475 = vadd.f32 %v5339, %v5443
        %v5476 = vadd.f32 %v5340, %v5444
        %v5477 = vadd.f32 %v5341, %v5445
        %v5478 = vadd.f32 %v5342, %v5446
        %v5479 = vadd.f32 %v5343, %v5447
        %v5480 = vadd.f32 %v5344, %v5448
        %v5481 = vadd.f32 %v5345, %v5449
        %v5482 = vadd.f32 %v5346, %v5450
        %v5483 = vadd.f32 %v5347, %v5451
        %v5484 = vadd.f32 %v5348, %v5452
        %v5485 = vadd.f32 %v5349, %v5453
        %v5486 = vadd.f32 %v5350, %v5454
        %v5487 = vadd.f32 %v5351, %v5455
        %v5488 = vadd.f32 %v5352, %v5456
        %v5489 = vadd.f32 %v5353, %v5457
        %v5490 = vadd.f32 %v5354, %v5458
        %v5491 = vadd.f32 %v5355, %v5459
        %v5492 = vadd.f32 %v5356, %v5460
        %v5493 = vadd.f32 %v5357, %v5461
        %v5494 = vadd.f32 %v5358, %v5462
        %v5495 = vadd.f32 %v5359, %v5463
        %v5496 = vlaneseq
        %v5497 = vshrl.u32 %v5496, 7
        %v5498 = vsub.s32 1, %v5497
        %v5499 = vrot.slane %v4273, %v5498
        %v5500 = vlaneseq
        %v5501 = vshrl.u32 %v5500, 7
        %v5502 = vsub.s32 1, %v5501
        %v5503 = vrot.slane %v4275, %v5502
        %v5504 = vlaneseq
        %v5505 = vshrl.u32 %v5504, 7
        %v5506 = vsub.s32 1, %v5505
        %v5507 = vrot.slane %v4277, %v5506
        %v5508 = vlaneseq
        %v5509 = vshrl.u32 %v5508, 7
        %v5510 = vsub.s32 1, %v5509
        %v5511 = vrot.slane %v4279, %v5510
        %v5512 = vlaneseq
        %v5513 = vshrl.u32 %v5512, 7
        %v5514 = vsub.s32 1, %v5513
        %v5515 = vrot.slane %v4281, %v5514
        %v5516 = vlaneseq
        %v5517 = vshrl.u32 %v5516, 7
        %v5518 = vsub.s32 1, %v5517
        %v5519 = vrot.slane %v4283, %v5518
        %v5520 = vlaneseq
        %v5521 = vshrl.u32 %v5520, 7
        %v5522 = vsub.s32 1, %v5521
        %v5523 = vrot.slane %v4285, %v5522
        %v5524 = vlaneseq
        %v5525 = vshrl.u32 %v5524, 7
        %v5526 = vsub.s32 1, %v5525
        %v5527 = vrot.slane %v4287, %v5526
        %v5528 = vlaneseq
        %v5529 = vshrl.u32 %v5528, 7
        %v5530 = vsub.s32 1, %v5529
        %v5531 = vrot.slane %v4289, %v5530
        %v5532 = vlaneseq
        %v5533 = vshrl.u32 %v5532, 7
        %v5534 = vsub.s32 1, %v5533
        %v5535 = vrot.slane %v4291, %v5534
        %v5536 = vlaneseq
        %v5537 = vshrl.u32 %v5536, 7
        %v5538 = vsub.s32 1, %v5537
        %v5539 = vrot.slane %v4293, %v5538
        %v5540 = vlaneseq
        %v5541 = vshrl.u32 %v5540, 7
        %v5542 = vsub.s32 1, %v5541
        %v5543 = vrot.slane %v4295, %v5542
        %v5544 = vlaneseq
        %v5545 = vshrl.u32 %v5544, 7
        %v5546 = vsub.s32 1, %v5545
        %v5547 = vrot.slane %v4297, %v5546
        %v5548 = vlaneseq
        %v5549 = vshrl.u32 %v5548, 7
        %v5550 = vsub.s32 1, %v5549
        %v5551 = vrot.slane %v4299, %v5550
        %v5552 = vlaneseq
        %v5553 = vshrl.u32 %v5552, 7
        %v5554 = vsub.s32 1, %v5553
        %v5555 = vrot.slane %v4301, %v5554
        %v5556 = vlaneseq
        %v5557 = vshrl.u32 %v5556, 7
        %v5558 = vsub.s32 1, %v5557
        %v5559 = vrot.slane %v4303, %v5558
        %5562 = vrot.lane.b32.xlu0 %v4290, 64
        %v5563 = vpop.permute.xlu0 %5562
        %5564 = vrot.lane.b32.xlu0 %v4291, 64
        %v5565 = vpop.permute.xlu0 %5564
        %v5568 = vmul.f32 %v5499, %v5563
        %v5569 = vmul.f32 %v5499, %v5565
        %v5570 = vmul.f32 %v5503, %v5563
        %v5571 = vmul.f32 %v5503, %v5565
        %v5572 = vmul.f32 %v5507, %v5563
        %v5573 = vmul.f32 %v5507, %v5565
        %v5574 = vmul.f32 %v5511, %v5563
        %v5575 = vmul.f32 %v5511, %v5565
        %v5576 = vmul.f32 %v5515, %v5563
        %v5577 = vmul.f32 %v5515, %v5565
        %v5578 = vmul.f32 %v5519, %v5563
        %v5579 = vmul.f32 %v5519, %v5565
        %v5580 = vmul.f32 %v5523, %v5563
        %v5581 = vmul.f32 %v5523, %v5565
        %v5582 = vmul.f32 %v5527, %v5563
        %v5583 = vmul.f32 %v5527, %v5565
        %v5584 = vmul.f32 %v5531, %v5563
        %v5585 = vmul.f32 %v5531, %v5565
        %v5586 = vmul.f32 %v5535, %v5563
        %v5587 = vmul.f32 %v5535, %v5565
        %v5588 = vmul.f32 %v5539, %v5563
        %v5589 = vmul.f32 %v5539, %v5565
        %v5590 = vmul.f32 %v5543, %v5563
        %v5591 = vmul.f32 %v5543, %v5565
        %v5592 = vmul.f32 %v5547, %v5563
        %v5593 = vmul.f32 %v5547, %v5565
        %v5594 = vmul.f32 %v5551, %v5563
        %v5595 = vmul.f32 %v5551, %v5565
        %v5596 = vmul.f32 %v5555, %v5563
        %v5597 = vmul.f32 %v5555, %v5565
        %v5598 = vmul.f32 %v5559, %v5563
        %v5599 = vmul.f32 %v5559, %v5565
        %v5600 = vadd.f32 %v5464, %v5568
        %v5601 = vadd.f32 %v5465, %v5569
        %v5602 = vadd.f32 %v5466, %v5570
        %v5603 = vadd.f32 %v5467, %v5571
        %v5604 = vadd.f32 %v5468, %v5572
        %v5605 = vadd.f32 %v5469, %v5573
        %v5606 = vadd.f32 %v5470, %v5574
        %v5607 = vadd.f32 %v5471, %v5575
        %v5608 = vadd.f32 %v5472, %v5576
        %v5609 = vadd.f32 %v5473, %v5577
        %v5610 = vadd.f32 %v5474, %v5578
        %v5611 = vadd.f32 %v5475, %v5579
        %v5612 = vadd.f32 %v5476, %v5580
        %v5613 = vadd.f32 %v5477, %v5581
        %v5614 = vadd.f32 %v5478, %v5582
        %v5615 = vadd.f32 %v5479, %v5583
        %v5616 = vadd.f32 %v5480, %v5584
        %v5617 = vadd.f32 %v5481, %v5585
        %v5618 = vadd.f32 %v5482, %v5586
        %v5619 = vadd.f32 %v5483, %v5587
        %v5620 = vadd.f32 %v5484, %v5588
        %v5621 = vadd.f32 %v5485, %v5589
        %v5622 = vadd.f32 %v5486, %v5590
        %v5623 = vadd.f32 %v5487, %v5591
        %v5624 = vadd.f32 %v5488, %v5592
        %v5625 = vadd.f32 %v5489, %v5593
        %v5626 = vadd.f32 %v5490, %v5594
        %v5627 = vadd.f32 %v5491, %v5595
        %v5628 = vadd.f32 %v5492, %v5596
        %v5629 = vadd.f32 %v5493, %v5597
        %v5630 = vadd.f32 %v5494, %v5598
        %v5631 = vadd.f32 %v5495, %v5599
        %v5632 = vlaneseq
        %v5633 = vshrl.u32 %v5632, 7
        %v5634 = vsub.s32 2, %v5633
        %v5635 = vrot.slane %v4273, %v5634
        %v5636 = vlaneseq
        %v5637 = vshrl.u32 %v5636, 7
        %v5638 = vsub.s32 2, %v5637
        %v5639 = vrot.slane %v4275, %v5638
        %v5640 = vlaneseq
        %v5641 = vshrl.u32 %v5640, 7
        %v5642 = vsub.s32 2, %v5641
        %v5643 = vrot.slane %v4277, %v5642
        %v5644 = vlaneseq
        %v5645 = vshrl.u32 %v5644, 7
        %v5646 = vsub.s32 2, %v5645
        %v5647 = vrot.slane %v4279, %v5646
        %v5648 = vlaneseq
        %v5649 = vshrl.u32 %v5648, 7
        %v5650 = vsub.s32 2, %v5649
        %v5651 = vrot.slane %v4281, %v5650
        %v5652 = vlaneseq
        %v5653 = vshrl.u32 %v5652, 7
        %v5654 = vsub.s32 2, %v5653
        %v5655 = vrot.slane %v4283, %v5654
        %v5656 = vlaneseq
        %v5657 = vshrl.u32 %v5656, 7
        %v5658 = vsub.s32 2, %v5657
        %v5659 = vrot.slane %v4285, %v5658
        %v5660 = vlaneseq
        %v5661 = vshrl.u32 %v5660, 7
        %v5662 = vsub.s32 2, %v5661
        %v5663 = vrot.slane %v4287, %v5662
        %v5664 = vlaneseq
        %v5665 = vshrl.u32 %v5664, 7
        %v5666 = vsub.s32 2, %v5665
        %v5667 = vrot.slane %v4289, %v5666
        %v5668 = vlaneseq
        %v5669 = vshrl.u32 %v5668, 7
        %v5670 = vsub.s32 2, %v5669
        %v5671 = vrot.slane %v4291, %v5670
        %v5672 = vlaneseq
        %v5673 = vshrl.u32 %v5672, 7
        %v5674 = vsub.s32 2, %v5673
        %v5675 = vrot.slane %v4293, %v5674
        %v5676 = vlaneseq
        %v5677 = vshrl.u32 %v5676, 7
        %v5678 = vsub.s32 2, %v5677
        %v5679 = vrot.slane %v4295, %v5678
        %v5680 = vlaneseq
        %v5681 = vshrl.u32 %v5680, 7
        %v5682 = vsub.s32 2, %v5681
        %v5683 = vrot.slane %v4297, %v5682
        %v5684 = vlaneseq
        %v5685 = vshrl.u32 %v5684, 7
        %v5686 = vsub.s32 2, %v5685
        %v5687 = vrot.slane %v4299, %v5686
        %v5688 = vlaneseq
        %v5689 = vshrl.u32 %v5688, 7
        %v5690 = vsub.s32 2, %v5689
        %v5691 = vrot.slane %v4301, %v5690
        %v5692 = vlaneseq
        %v5693 = vshrl.u32 %v5692, 7
        %v5694 = vsub.s32 2, %v5693
        %v5695 = vrot.slane %v4303, %v5694
        %5698 = vrot.lane.b32.xlu0 %v4292, 64
        %v5699 = vpop.permute.xlu0 %5698
        %5700 = vrot.lane.b32.xlu0 %v4293, 64
        %v5701 = vpop.permute.xlu0 %5700
        %v5704 = vmul.f32 %v5635, %v5699
        %v5705 = vmul.f32 %v5635, %v5701
        %v5706 = vmul.f32 %v5639, %v5699
        %v5707 = vmul.f32 %v5639, %v5701
        %v5708 = vmul.f32 %v5643, %v5699
        %v5709 = vmul.f32 %v5643, %v5701
        %v5710 = vmul.f32 %v5647, %v5699
        %v5711 = vmul.f32 %v5647, %v5701
        %v5712 = vmul.f32 %v5651, %v5699
        %v5713 = vmul.f32 %v5651, %v5701
        %v5714 = vmul.f32 %v5655, %v5699
        %v5715 = vmul.f32 %v5655, %v5701
        %v5716 = vmul.f32 %v5659, %v5699
        %v5717 = vmul.f32 %v5659, %v5701
        %v5718 = vmul.f32 %v5663, %v5699
        %v5719 = vmul.f32 %v5663, %v5701
        %v5720 = vmul.f32 %v5667, %v5699
        %v5721 = vmul.f32 %v5667, %v5701
        %v5722 = vmul.f32 %v5671, %v5699
        %v5723 = vmul.f32 %v5671, %v5701
        %v5724 = vmul.f32 %v5675, %v5699
        %v5725 = vmul.f32 %v5675, %v5701
        %v5726 = vmul.f32 %v5679, %v5699
        %v5727 = vmul.f32 %v5679, %v5701
        %v5728 = vmul.f32 %v5683, %v5699
        %v5729 = vmul.f32 %v5683, %v5701
        %v5730 = vmul.f32 %v5687, %v5699
        %v5731 = vmul.f32 %v5687, %v5701
        %v5732 = vmul.f32 %v5691, %v5699
        %v5733 = vmul.f32 %v5691, %v5701
        %v5734 = vmul.f32 %v5695, %v5699
        %v5735 = vmul.f32 %v5695, %v5701
        %v5736 = vadd.f32 %v5600, %v5704
        %v5737 = vadd.f32 %v5601, %v5705
        %v5738 = vadd.f32 %v5602, %v5706
        %v5739 = vadd.f32 %v5603, %v5707
        %v5740 = vadd.f32 %v5604, %v5708
        %v5741 = vadd.f32 %v5605, %v5709
        %v5742 = vadd.f32 %v5606, %v5710
        %v5743 = vadd.f32 %v5607, %v5711
        %v5744 = vadd.f32 %v5608, %v5712
        %v5745 = vadd.f32 %v5609, %v5713
        %v5746 = vadd.f32 %v5610, %v5714
        %v5747 = vadd.f32 %v5611, %v5715
        %v5748 = vadd.f32 %v5612, %v5716
        %v5749 = vadd.f32 %v5613, %v5717
        %v5750 = vadd.f32 %v5614, %v5718
        %v5751 = vadd.f32 %v5615, %v5719
        %v5752 = vadd.f32 %v5616, %v5720
        %v5753 = vadd.f32 %v5617, %v5721
        %v5754 = vadd.f32 %v5618, %v5722
        %v5755 = vadd.f32 %v5619, %v5723
        %v5756 = vadd.f32 %v5620, %v5724
        %v5757 = vadd.f32 %v5621, %v5725
        %v5758 = vadd.f32 %v5622, %v5726
        %v5759 = vadd.f32 %v5623, %v5727
        %v5760 = vadd.f32 %v5624, %v5728
        %v5761 = vadd.f32 %v5625, %v5729
        %v5762 = vadd.f32 %v5626, %v5730
        %v5763 = vadd.f32 %v5627, %v5731
        %v5764 = vadd.f32 %v5628, %v5732
        %v5765 = vadd.f32 %v5629, %v5733
        %v5766 = vadd.f32 %v5630, %v5734
        %v5767 = vadd.f32 %v5631, %v5735
        %v5768 = vlaneseq
        %v5769 = vshrl.u32 %v5768, 7
        %v5770 = vsub.s32 3, %v5769
        %v5771 = vrot.slane %v4273, %v5770
        %v5772 = vlaneseq
        %v5773 = vshrl.u32 %v5772, 7
        %v5774 = vsub.s32 3, %v5773
        %v5775 = vrot.slane %v4275, %v5774
        %v5776 = vlaneseq
        %v5777 = vshrl.u32 %v5776, 7
        %v5778 = vsub.s32 3, %v5777
        %v5779 = vrot.slane %v4277, %v5778
        %v5780 = vlaneseq
        %v5781 = vshrl.u32 %v5780, 7
        %v5782 = vsub.s32 3, %v5781
        %v5783 = vrot.slane %v4279, %v5782
        %v5784 = vlaneseq
        %v5785 = vshrl.u32 %v5784, 7
        %v5786 = vsub.s32 3, %v5785
        %v5787 = vrot.slane %v4281, %v5786
        %v5788 = vlaneseq
        %v5789 = vshrl.u32 %v5788, 7
        %v5790 = vsub.s32 3, %v5789
        %v5791 = vrot.slane %v4283, %v5790
        %v5792 = vlaneseq
        %v5793 = vshrl.u32 %v5792, 7
        %v5794 = vsub.s32 3, %v5793
        %v5795 = vrot.slane %v4285, %v5794
        %v5796 = vlaneseq
        %v5797 = vshrl.u32 %v5796, 7
        %v5798 = vsub.s32 3, %v5797
        %v5799 = vrot.slane %v4287, %v5798
        %v5800 = vlaneseq
        %v5801 = vshrl.u32 %v5800, 7
        %v5802 = vsub.s32 3, %v5801
        %v5803 = vrot.slane %v4289, %v5802
        %v5804 = vlaneseq
        %v5805 = vshrl.u32 %v5804, 7
        %v5806 = vsub.s32 3, %v5805
        %v5807 = vrot.slane %v4291, %v5806
        %v5808 = vlaneseq
        %v5809 = vshrl.u32 %v5808, 7
        %v5810 = vsub.s32 3, %v5809
        %v5811 = vrot.slane %v4293, %v5810
        %v5812 = vlaneseq
        %v5813 = vshrl.u32 %v5812, 7
        %v5814 = vsub.s32 3, %v5813
        %v5815 = vrot.slane %v4295, %v5814
        %v5816 = vlaneseq
        %v5817 = vshrl.u32 %v5816, 7
        %v5818 = vsub.s32 3, %v5817
        %v5819 = vrot.slane %v4297, %v5818
        %v5820 = vlaneseq
        %v5821 = vshrl.u32 %v5820, 7
        %v5822 = vsub.s32 3, %v5821
        %v5823 = vrot.slane %v4299, %v5822
        %v5824 = vlaneseq
        %v5825 = vshrl.u32 %v5824, 7
        %v5826 = vsub.s32 3, %v5825
        %v5827 = vrot.slane %v4301, %v5826
        %v5828 = vlaneseq
        %v5829 = vshrl.u32 %v5828, 7
        %v5830 = vsub.s32 3, %v5829
        %v5831 = vrot.slane %v4303, %v5830
        %5834 = vrot.lane.b32.xlu0 %v4294, 64
        %v5835 = vpop.permute.xlu0 %5834
        %5836 = vrot.lane.b32.xlu0 %v4295, 64
        %v5837 = vpop.permute.xlu0 %5836
        %v5840 = vmul.f32 %v5771, %v5835
        %v5841 = vmul.f32 %v5771, %v5837
        %v5842 = vmul.f32 %v5775, %v5835
        %v5843 = vmul.f32 %v5775, %v5837
        %v5844 = vmul.f32 %v5779, %v5835
        %v5845 = vmul.f32 %v5779, %v5837
        %v5846 = vmul.f32 %v5783, %v5835
        %v5847 = vmul.f32 %v5783, %v5837
        %v5848 = vmul.f32 %v5787, %v5835
        %v5849 = vmul.f32 %v5787, %v5837
        %v5850 = vmul.f32 %v5791, %v5835
        %v5851 = vmul.f32 %v5791, %v5837
        %v5852 = vmul.f32 %v5795, %v5835
        %v5853 = vmul.f32 %v5795, %v5837
        %v5854 = vmul.f32 %v5799, %v5835
        %v5855 = vmul.f32 %v5799, %v5837
        %v5856 = vmul.f32 %v5803, %v5835
        %v5857 = vmul.f32 %v5803, %v5837
        %v5858 = vmul.f32 %v5807, %v5835
        %v5859 = vmul.f32 %v5807, %v5837
        %v5860 = vmul.f32 %v5811, %v5835
        %v5861 = vmul.f32 %v5811, %v5837
        %v5862 = vmul.f32 %v5815, %v5835
        %v5863 = vmul.f32 %v5815, %v5837
        %v5864 = vmul.f32 %v5819, %v5835
        %v5865 = vmul.f32 %v5819, %v5837
        %v5866 = vmul.f32 %v5823, %v5835
        %v5867 = vmul.f32 %v5823, %v5837
        %v5868 = vmul.f32 %v5827, %v5835
        %v5869 = vmul.f32 %v5827, %v5837
        %v5870 = vmul.f32 %v5831, %v5835
        %v5871 = vmul.f32 %v5831, %v5837
        %v5872 = vadd.f32 %v5736, %v5840
        %v5873 = vadd.f32 %v5737, %v5841
        %v5874 = vadd.f32 %v5738, %v5842
        %v5875 = vadd.f32 %v5739, %v5843
        %v5876 = vadd.f32 %v5740, %v5844
        %v5877 = vadd.f32 %v5741, %v5845
        %v5878 = vadd.f32 %v5742, %v5846
        %v5879 = vadd.f32 %v5743, %v5847
        %v5880 = vadd.f32 %v5744, %v5848
        %v5881 = vadd.f32 %v5745, %v5849
        %v5882 = vadd.f32 %v5746, %v5850
        %v5883 = vadd.f32 %v5747, %v5851
        %v5884 = vadd.f32 %v5748, %v5852
        %v5885 = vadd.f32 %v5749, %v5853
        %v5886 = vadd.f32 %v5750, %v5854
        %v5887 = vadd.f32 %v5751, %v5855
        %v5888 = vadd.f32 %v5752, %v5856
        %v5889 = vadd.f32 %v5753, %v5857
        %v5890 = vadd.f32 %v5754, %v5858
        %v5891 = vadd.f32 %v5755, %v5859
        %v5892 = vadd.f32 %v5756, %v5860
        %v5893 = vadd.f32 %v5757, %v5861
        %v5894 = vadd.f32 %v5758, %v5862
        %v5895 = vadd.f32 %v5759, %v5863
        %v5896 = vadd.f32 %v5760, %v5864
        %v5897 = vadd.f32 %v5761, %v5865
        %v5898 = vadd.f32 %v5762, %v5866
        %v5899 = vadd.f32 %v5763, %v5867
        %v5900 = vadd.f32 %v5764, %v5868
        %v5901 = vadd.f32 %v5765, %v5869
        %v5902 = vadd.f32 %v5766, %v5870
        %v5903 = vadd.f32 %v5767, %v5871
        %v5904 = vlaneseq
        %v5905 = vshrl.u32 %v5904, 7
        %v5906 = vsub.s32 4, %v5905
        %v5907 = vrot.slane %v4273, %v5906
        %v5908 = vlaneseq
        %v5909 = vshrl.u32 %v5908, 7
        %v5910 = vsub.s32 4, %v5909
        %v5911 = vrot.slane %v4275, %v5910
        %v5912 = vlaneseq
        %v5913 = vshrl.u32 %v5912, 7
        %v5914 = vsub.s32 4, %v5913
        %v5915 = vrot.slane %v4277, %v5914
        %v5916 = vlaneseq
        %v5917 = vshrl.u32 %v5916, 7
        %v5918 = vsub.s32 4, %v5917
        %v5919 = vrot.slane %v4279, %v5918
        %v5920 = vlaneseq
        %v5921 = vshrl.u32 %v5920, 7
        %v5922 = vsub.s32 4, %v5921
        %v5923 = vrot.slane %v4281, %v5922
        %v5924 = vlaneseq
        %v5925 = vshrl.u32 %v5924, 7
        %v5926 = vsub.s32 4, %v5925
        %v5927 = vrot.slane %v4283, %v5926
        %v5928 = vlaneseq
        %v5929 = vshrl.u32 %v5928, 7
        %v5930 = vsub.s32 4, %v5929
        %v5931 = vrot.slane %v4285, %v5930
        %v5932 = vlaneseq
        %v5933 = vshrl.u32 %v5932, 7
        %v5934 = vsub.s32 4, %v5933
        %v5935 = vrot.slane %v4287, %v5934
        %v5936 = vlaneseq
        %v5937 = vshrl.u32 %v5936, 7
        %v5938 = vsub.s32 4, %v5937
        %v5939 = vrot.slane %v4289, %v5938
        %v5940 = vlaneseq
        %v5941 = vshrl.u32 %v5940, 7
        %v5942 = vsub.s32 4, %v5941
        %v5943 = vrot.slane %v4291, %v5942
        %v5944 = vlaneseq
        %v5945 = vshrl.u32 %v5944, 7
        %v5946 = vsub.s32 4, %v5945
        %v5947 = vrot.slane %v4293, %v5946
        %v5948 = vlaneseq
        %v5949 = vshrl.u32 %v5948, 7
        %v5950 = vsub.s32 4, %v5949
        %v5951 = vrot.slane %v4295, %v5950
        %v5952 = vlaneseq
        %v5953 = vshrl.u32 %v5952, 7
        %v5954 = vsub.s32 4, %v5953
        %v5955 = vrot.slane %v4297, %v5954
        %v5956 = vlaneseq
        %v5957 = vshrl.u32 %v5956, 7
        %v5958 = vsub.s32 4, %v5957
        %v5959 = vrot.slane %v4299, %v5958
        %v5960 = vlaneseq
        %v5961 = vshrl.u32 %v5960, 7
        %v5962 = vsub.s32 4, %v5961
        %v5963 = vrot.slane %v4301, %v5962
        %v5964 = vlaneseq
        %v5965 = vshrl.u32 %v5964, 7
        %v5966 = vsub.s32 4, %v5965
        %v5967 = vrot.slane %v4303, %v5966
        %5970 = vrot.lane.b32.xlu0 %v4296, 64
        %v5971 = vpop.permute.xlu0 %5970
        %5972 = vrot.lane.b32.xlu0 %v4297, 64
        %v5973 = vpop.permute.xlu0 %5972
        %v5976 = vmul.f32 %v5907, %v5971
        %v5977 = vmul.f32 %v5907, %v5973
        %v5978 = vmul.f32 %v5911, %v5971
        %v5979 = vmul.f32 %v5911, %v5973
        %v5980 = vmul.f32 %v5915, %v5971
        %v5981 = vmul.f32 %v5915, %v5973
        %v5982 = vmul.f32 %v5919, %v5971
        %v5983 = vmul.f32 %v5919, %v5973
        %v5984 = vmul.f32 %v5923, %v5971
        %v5985 = vmul.f32 %v5923, %v5973
        %v5986 = vmul.f32 %v5927, %v5971
        %v5987 = vmul.f32 %v5927, %v5973
        %v5988 = vmul.f32 %v5931, %v5971
        %v5989 = vmul.f32 %v5931, %v5973
        %v5990 = vmul.f32 %v5935, %v5971
        %v5991 = vmul.f32 %v5935, %v5973
        %v5992 = vmul.f32 %v5939, %v5971
        %v5993 = vmul.f32 %v5939, %v5973
        %v5994 = vmul.f32 %v5943, %v5971
        %v5995 = vmul.f32 %v5943, %v5973
        %v5996 = vmul.f32 %v5947, %v5971
        %v5997 = vmul.f32 %v5947, %v5973
        %v5998 = vmul.f32 %v5951, %v5971
        %v5999 = vmul.f32 %v5951, %v5973
        %v6000 = vmul.f32 %v5955, %v5971
        %v6001 = vmul.f32 %v5955, %v5973
        %v6002 = vmul.f32 %v5959, %v5971
        %v6003 = vmul.f32 %v5959, %v5973
        %v6004 = vmul.f32 %v5963, %v5971
        %v6005 = vmul.f32 %v5963, %v5973
        %v6006 = vmul.f32 %v5967, %v5971
        %v6007 = vmul.f32 %v5967, %v5973
        %v6008 = vadd.f32 %v5872, %v5976
        %v6009 = vadd.f32 %v5873, %v5977
        %v6010 = vadd.f32 %v5874, %v5978
        %v6011 = vadd.f32 %v5875, %v5979
        %v6012 = vadd.f32 %v5876, %v5980
        %v6013 = vadd.f32 %v5877, %v5981
        %v6014 = vadd.f32 %v5878, %v5982
        %v6015 = vadd.f32 %v5879, %v5983
        %v6016 = vadd.f32 %v5880, %v5984
        %v6017 = vadd.f32 %v5881, %v5985
        %v6018 = vadd.f32 %v5882, %v5986
        %v6019 = vadd.f32 %v5883, %v5987
        %v6020 = vadd.f32 %v5884, %v5988
        %v6021 = vadd.f32 %v5885, %v5989
        %v6022 = vadd.f32 %v5886, %v5990
        %v6023 = vadd.f32 %v5887, %v5991
        %v6024 = vadd.f32 %v5888, %v5992
        %v6025 = vadd.f32 %v5889, %v5993
        %v6026 = vadd.f32 %v5890, %v5994
        %v6027 = vadd.f32 %v5891, %v5995
        %v6028 = vadd.f32 %v5892, %v5996
        %v6029 = vadd.f32 %v5893, %v5997
        %v6030 = vadd.f32 %v5894, %v5998
        %v6031 = vadd.f32 %v5895, %v5999
        %v6032 = vadd.f32 %v5896, %v6000
        %v6033 = vadd.f32 %v5897, %v6001
        %v6034 = vadd.f32 %v5898, %v6002
        %v6035 = vadd.f32 %v5899, %v6003
        %v6036 = vadd.f32 %v5900, %v6004
        %v6037 = vadd.f32 %v5901, %v6005
        %v6038 = vadd.f32 %v5902, %v6006
        %v6039 = vadd.f32 %v5903, %v6007
        %v6040 = vlaneseq
        %v6041 = vshrl.u32 %v6040, 7
        %v6042 = vsub.s32 5, %v6041
        %v6043 = vrot.slane %v4273, %v6042
        %v6044 = vlaneseq
        %v6045 = vshrl.u32 %v6044, 7
        %v6046 = vsub.s32 5, %v6045
        %v6047 = vrot.slane %v4275, %v6046
        %v6048 = vlaneseq
        %v6049 = vshrl.u32 %v6048, 7
        %v6050 = vsub.s32 5, %v6049
        %v6051 = vrot.slane %v4277, %v6050
        %v6052 = vlaneseq
        %v6053 = vshrl.u32 %v6052, 7
        %v6054 = vsub.s32 5, %v6053
        %v6055 = vrot.slane %v4279, %v6054
        %v6056 = vlaneseq
        %v6057 = vshrl.u32 %v6056, 7
        %v6058 = vsub.s32 5, %v6057
        %v6059 = vrot.slane %v4281, %v6058
        %v6060 = vlaneseq
        %v6061 = vshrl.u32 %v6060, 7
        %v6062 = vsub.s32 5, %v6061
        %v6063 = vrot.slane %v4283, %v6062
        %v6064 = vlaneseq
        %v6065 = vshrl.u32 %v6064, 7
        %v6066 = vsub.s32 5, %v6065
        %v6067 = vrot.slane %v4285, %v6066
        %v6068 = vlaneseq
        %v6069 = vshrl.u32 %v6068, 7
        %v6070 = vsub.s32 5, %v6069
        %v6071 = vrot.slane %v4287, %v6070
        %v6072 = vlaneseq
        %v6073 = vshrl.u32 %v6072, 7
        %v6074 = vsub.s32 5, %v6073
        %v6075 = vrot.slane %v4289, %v6074
        %v6076 = vlaneseq
        %v6077 = vshrl.u32 %v6076, 7
        %v6078 = vsub.s32 5, %v6077
        %v6079 = vrot.slane %v4291, %v6078
        %v6080 = vlaneseq
        %v6081 = vshrl.u32 %v6080, 7
        %v6082 = vsub.s32 5, %v6081
        %v6083 = vrot.slane %v4293, %v6082
        %v6084 = vlaneseq
        %v6085 = vshrl.u32 %v6084, 7
        %v6086 = vsub.s32 5, %v6085
        %v6087 = vrot.slane %v4295, %v6086
        %v6088 = vlaneseq
        %v6089 = vshrl.u32 %v6088, 7
        %v6090 = vsub.s32 5, %v6089
        %v6091 = vrot.slane %v4297, %v6090
        %v6092 = vlaneseq
        %v6093 = vshrl.u32 %v6092, 7
        %v6094 = vsub.s32 5, %v6093
        %v6095 = vrot.slane %v4299, %v6094
        %v6096 = vlaneseq
        %v6097 = vshrl.u32 %v6096, 7
        %v6098 = vsub.s32 5, %v6097
        %v6099 = vrot.slane %v4301, %v6098
        %v6100 = vlaneseq
        %v6101 = vshrl.u32 %v6100, 7
        %v6102 = vsub.s32 5, %v6101
        %v6103 = vrot.slane %v4303, %v6102
        %6106 = vrot.lane.b32.xlu0 %v4298, 64
        %v6107 = vpop.permute.xlu0 %6106
        %6108 = vrot.lane.b32.xlu0 %v4299, 64
        %v6109 = vpop.permute.xlu0 %6108
        %v6112 = vmul.f32 %v6043, %v6107
        %v6113 = vmul.f32 %v6043, %v6109
        %v6114 = vmul.f32 %v6047, %v6107
        %v6115 = vmul.f32 %v6047, %v6109
        %v6116 = vmul.f32 %v6051, %v6107
        %v6117 = vmul.f32 %v6051, %v6109
        %v6118 = vmul.f32 %v6055, %v6107
        %v6119 = vmul.f32 %v6055, %v6109
        %v6120 = vmul.f32 %v6059, %v6107
        %v6121 = vmul.f32 %v6059, %v6109
        %v6122 = vmul.f32 %v6063, %v6107
        %v6123 = vmul.f32 %v6063, %v6109
        %v6124 = vmul.f32 %v6067, %v6107
        %v6125 = vmul.f32 %v6067, %v6109
        %v6126 = vmul.f32 %v6071, %v6107
        %v6127 = vmul.f32 %v6071, %v6109
        %v6128 = vmul.f32 %v6075, %v6107
        %v6129 = vmul.f32 %v6075, %v6109
        %v6130 = vmul.f32 %v6079, %v6107
        %v6131 = vmul.f32 %v6079, %v6109
        %v6132 = vmul.f32 %v6083, %v6107
        %v6133 = vmul.f32 %v6083, %v6109
        %v6134 = vmul.f32 %v6087, %v6107
        %v6135 = vmul.f32 %v6087, %v6109
        %v6136 = vmul.f32 %v6091, %v6107
        %v6137 = vmul.f32 %v6091, %v6109
        %v6138 = vmul.f32 %v6095, %v6107
        %v6139 = vmul.f32 %v6095, %v6109
        %v6140 = vmul.f32 %v6099, %v6107
        %v6141 = vmul.f32 %v6099, %v6109
        %v6142 = vmul.f32 %v6103, %v6107
        %v6143 = vmul.f32 %v6103, %v6109
        %v6144 = vadd.f32 %v6008, %v6112
        %v6145 = vadd.f32 %v6009, %v6113
        %v6146 = vadd.f32 %v6010, %v6114
        %v6147 = vadd.f32 %v6011, %v6115
        %v6148 = vadd.f32 %v6012, %v6116
        %v6149 = vadd.f32 %v6013, %v6117
        %v6150 = vadd.f32 %v6014, %v6118
        %v6151 = vadd.f32 %v6015, %v6119
        %v6152 = vadd.f32 %v6016, %v6120
        %v6153 = vadd.f32 %v6017, %v6121
        %v6154 = vadd.f32 %v6018, %v6122
        %v6155 = vadd.f32 %v6019, %v6123
        %v6156 = vadd.f32 %v6020, %v6124
        %v6157 = vadd.f32 %v6021, %v6125
        %v6158 = vadd.f32 %v6022, %v6126
        %v6159 = vadd.f32 %v6023, %v6127
        %v6160 = vadd.f32 %v6024, %v6128
        %v6161 = vadd.f32 %v6025, %v6129
        %v6162 = vadd.f32 %v6026, %v6130
        %v6163 = vadd.f32 %v6027, %v6131
        %v6164 = vadd.f32 %v6028, %v6132
        %v6165 = vadd.f32 %v6029, %v6133
        %v6166 = vadd.f32 %v6030, %v6134
        %v6167 = vadd.f32 %v6031, %v6135
        %v6168 = vadd.f32 %v6032, %v6136
        %v6169 = vadd.f32 %v6033, %v6137
        %v6170 = vadd.f32 %v6034, %v6138
        %v6171 = vadd.f32 %v6035, %v6139
        %v6172 = vadd.f32 %v6036, %v6140
        %v6173 = vadd.f32 %v6037, %v6141
        %v6174 = vadd.f32 %v6038, %v6142
        %v6175 = vadd.f32 %v6039, %v6143
        %v6176 = vlaneseq
        %v6177 = vshrl.u32 %v6176, 7
        %v6178 = vsub.s32 6, %v6177
        %v6179 = vrot.slane %v4273, %v6178
        %v6180 = vlaneseq
        %v6181 = vshrl.u32 %v6180, 7
        %v6182 = vsub.s32 6, %v6181
        %v6183 = vrot.slane %v4275, %v6182
        %v6184 = vlaneseq
        %v6185 = vshrl.u32 %v6184, 7
        %v6186 = vsub.s32 6, %v6185
        %v6187 = vrot.slane %v4277, %v6186
        %v6188 = vlaneseq
        %v6189 = vshrl.u32 %v6188, 7
        %v6190 = vsub.s32 6, %v6189
        %v6191 = vrot.slane %v4279, %v6190
        %v6192 = vlaneseq
        %v6193 = vshrl.u32 %v6192, 7
        %v6194 = vsub.s32 6, %v6193
        %v6195 = vrot.slane %v4281, %v6194
        %v6196 = vlaneseq
        %v6197 = vshrl.u32 %v6196, 7
        %v6198 = vsub.s32 6, %v6197
        %v6199 = vrot.slane %v4283, %v6198
        %v6200 = vlaneseq
        %v6201 = vshrl.u32 %v6200, 7
        %v6202 = vsub.s32 6, %v6201
        %v6203 = vrot.slane %v4285, %v6202
        %v6204 = vlaneseq
        %v6205 = vshrl.u32 %v6204, 7
        %v6206 = vsub.s32 6, %v6205
        %v6207 = vrot.slane %v4287, %v6206
        %v6208 = vlaneseq
        %v6209 = vshrl.u32 %v6208, 7
        %v6210 = vsub.s32 6, %v6209
        %v6211 = vrot.slane %v4289, %v6210
        %v6212 = vlaneseq
        %v6213 = vshrl.u32 %v6212, 7
        %v6214 = vsub.s32 6, %v6213
        %v6215 = vrot.slane %v4291, %v6214
        %v6216 = vlaneseq
        %v6217 = vshrl.u32 %v6216, 7
        %v6218 = vsub.s32 6, %v6217
        %v6219 = vrot.slane %v4293, %v6218
        %v6220 = vlaneseq
        %v6221 = vshrl.u32 %v6220, 7
        %v6222 = vsub.s32 6, %v6221
        %v6223 = vrot.slane %v4295, %v6222
        %v6224 = vlaneseq
        %v6225 = vshrl.u32 %v6224, 7
        %v6226 = vsub.s32 6, %v6225
        %v6227 = vrot.slane %v4297, %v6226
        %v6228 = vlaneseq
        %v6229 = vshrl.u32 %v6228, 7
        %v6230 = vsub.s32 6, %v6229
        %v6231 = vrot.slane %v4299, %v6230
        %v6232 = vlaneseq
        %v6233 = vshrl.u32 %v6232, 7
        %v6234 = vsub.s32 6, %v6233
        %v6235 = vrot.slane %v4301, %v6234
        %v6236 = vlaneseq
        %v6237 = vshrl.u32 %v6236, 7
        %v6238 = vsub.s32 6, %v6237
        %v6239 = vrot.slane %v4303, %v6238
        %6242 = vrot.lane.b32.xlu0 %v4300, 64
        %v6243 = vpop.permute.xlu0 %6242
        %6244 = vrot.lane.b32.xlu0 %v4301, 64
        %v6245 = vpop.permute.xlu0 %6244
        %v6248 = vmul.f32 %v6179, %v6243
        %v6249 = vmul.f32 %v6179, %v6245
        %v6250 = vmul.f32 %v6183, %v6243
        %v6251 = vmul.f32 %v6183, %v6245
        %v6252 = vmul.f32 %v6187, %v6243
        %v6253 = vmul.f32 %v6187, %v6245
        %v6254 = vmul.f32 %v6191, %v6243
        %v6255 = vmul.f32 %v6191, %v6245
        %v6256 = vmul.f32 %v6195, %v6243
        %v6257 = vmul.f32 %v6195, %v6245
        %v6258 = vmul.f32 %v6199, %v6243
        %v6259 = vmul.f32 %v6199, %v6245
        %v6260 = vmul.f32 %v6203, %v6243
        %v6261 = vmul.f32 %v6203, %v6245
        %v6262 = vmul.f32 %v6207, %v6243
        %v6263 = vmul.f32 %v6207, %v6245
        %v6264 = vmul.f32 %v6211, %v6243
        %v6265 = vmul.f32 %v6211, %v6245
        %v6266 = vmul.f32 %v6215, %v6243
        %v6267 = vmul.f32 %v6215, %v6245
        %v6268 = vmul.f32 %v6219, %v6243
        %v6269 = vmul.f32 %v6219, %v6245
        %v6270 = vmul.f32 %v6223, %v6243
        %v6271 = vmul.f32 %v6223, %v6245
        %v6272 = vmul.f32 %v6227, %v6243
        %v6273 = vmul.f32 %v6227, %v6245
        %v6274 = vmul.f32 %v6231, %v6243
        %v6275 = vmul.f32 %v6231, %v6245
        %v6276 = vmul.f32 %v6235, %v6243
        %v6277 = vmul.f32 %v6235, %v6245
        %v6278 = vmul.f32 %v6239, %v6243
        %v6279 = vmul.f32 %v6239, %v6245
        %v6280 = vadd.f32 %v6144, %v6248
        %v6281 = vadd.f32 %v6145, %v6249
        %v6282 = vadd.f32 %v6146, %v6250
        %v6283 = vadd.f32 %v6147, %v6251
        %v6284 = vadd.f32 %v6148, %v6252
        %v6285 = vadd.f32 %v6149, %v6253
        %v6286 = vadd.f32 %v6150, %v6254
        %v6287 = vadd.f32 %v6151, %v6255
        %v6288 = vadd.f32 %v6152, %v6256
        %v6289 = vadd.f32 %v6153, %v6257
        %v6290 = vadd.f32 %v6154, %v6258
        %v6291 = vadd.f32 %v6155, %v6259
        %v6292 = vadd.f32 %v6156, %v6260
        %v6293 = vadd.f32 %v6157, %v6261
        %v6294 = vadd.f32 %v6158, %v6262
        %v6295 = vadd.f32 %v6159, %v6263
        %v6296 = vadd.f32 %v6160, %v6264
        %v6297 = vadd.f32 %v6161, %v6265
        %v6298 = vadd.f32 %v6162, %v6266
        %v6299 = vadd.f32 %v6163, %v6267
        %v6300 = vadd.f32 %v6164, %v6268
        %v6301 = vadd.f32 %v6165, %v6269
        %v6302 = vadd.f32 %v6166, %v6270
        %v6303 = vadd.f32 %v6167, %v6271
        %v6304 = vadd.f32 %v6168, %v6272
        %v6305 = vadd.f32 %v6169, %v6273
        %v6306 = vadd.f32 %v6170, %v6274
        %v6307 = vadd.f32 %v6171, %v6275
        %v6308 = vadd.f32 %v6172, %v6276
        %v6309 = vadd.f32 %v6173, %v6277
        %v6310 = vadd.f32 %v6174, %v6278
        %v6311 = vadd.f32 %v6175, %v6279
        %v6312 = vlaneseq
        %v6313 = vshrl.u32 %v6312, 7
        %v6314 = vsub.s32 7, %v6313
        %v6315 = vrot.slane %v4273, %v6314
        %v6316 = vlaneseq
        %v6317 = vshrl.u32 %v6316, 7
        %v6318 = vsub.s32 7, %v6317
        %v6319 = vrot.slane %v4275, %v6318
        %v6320 = vlaneseq
        %v6321 = vshrl.u32 %v6320, 7
        %v6322 = vsub.s32 7, %v6321
        %v6323 = vrot.slane %v4277, %v6322
        %v6324 = vlaneseq
        %v6325 = vshrl.u32 %v6324, 7
        %v6326 = vsub.s32 7, %v6325
        %v6327 = vrot.slane %v4279, %v6326
        %v6328 = vlaneseq
        %v6329 = vshrl.u32 %v6328, 7
        %v6330 = vsub.s32 7, %v6329
        %v6331 = vrot.slane %v4281, %v6330
        %v6332 = vlaneseq
        %v6333 = vshrl.u32 %v6332, 7
        %v6334 = vsub.s32 7, %v6333
        %v6335 = vrot.slane %v4283, %v6334
        %v6336 = vlaneseq
        %v6337 = vshrl.u32 %v6336, 7
        %v6338 = vsub.s32 7, %v6337
        %v6339 = vrot.slane %v4285, %v6338
        %v6340 = vlaneseq
        %v6341 = vshrl.u32 %v6340, 7
        %v6342 = vsub.s32 7, %v6341
        %v6343 = vrot.slane %v4287, %v6342
        %v6344 = vlaneseq
        %v6345 = vshrl.u32 %v6344, 7
        %v6346 = vsub.s32 7, %v6345
        %v6347 = vrot.slane %v4289, %v6346
        %v6348 = vlaneseq
        %v6349 = vshrl.u32 %v6348, 7
        %v6350 = vsub.s32 7, %v6349
        %v6351 = vrot.slane %v4291, %v6350
        %v6352 = vlaneseq
        %v6353 = vshrl.u32 %v6352, 7
        %v6354 = vsub.s32 7, %v6353
        %v6355 = vrot.slane %v4293, %v6354
        %v6356 = vlaneseq
        %v6357 = vshrl.u32 %v6356, 7
        %v6358 = vsub.s32 7, %v6357
        %v6359 = vrot.slane %v4295, %v6358
        %v6360 = vlaneseq
        %v6361 = vshrl.u32 %v6360, 7
        %v6362 = vsub.s32 7, %v6361
        %v6363 = vrot.slane %v4297, %v6362
        %v6364 = vlaneseq
        %v6365 = vshrl.u32 %v6364, 7
        %v6366 = vsub.s32 7, %v6365
        %v6367 = vrot.slane %v4299, %v6366
        %v6368 = vlaneseq
        %v6369 = vshrl.u32 %v6368, 7
        %v6370 = vsub.s32 7, %v6369
        %v6371 = vrot.slane %v4301, %v6370
        %v6372 = vlaneseq
        %v6373 = vshrl.u32 %v6372, 7
        %v6374 = vsub.s32 7, %v6373
        %v6375 = vrot.slane %v4303, %v6374
        %6378 = vrot.lane.b32.xlu0 %v4302, 64
        %v6379 = vpop.permute.xlu0 %6378
        %6380 = vrot.lane.b32.xlu0 %v4303, 64
        %v6381 = vpop.permute.xlu0 %6380
        %v6384 = vmul.f32 %v6315, %v6379
        %v6385 = vmul.f32 %v6315, %v6381
        %v6386 = vmul.f32 %v6319, %v6379
        %v6387 = vmul.f32 %v6319, %v6381
        %v6388 = vmul.f32 %v6323, %v6379
        %v6389 = vmul.f32 %v6323, %v6381
        %v6390 = vmul.f32 %v6327, %v6379
        %v6391 = vmul.f32 %v6327, %v6381
        %v6392 = vmul.f32 %v6331, %v6379
        %v6393 = vmul.f32 %v6331, %v6381
        %v6394 = vmul.f32 %v6335, %v6379
        %v6395 = vmul.f32 %v6335, %v6381
        %v6396 = vmul.f32 %v6339, %v6379
        %v6397 = vmul.f32 %v6339, %v6381
        %v6398 = vmul.f32 %v6343, %v6379
        %v6399 = vmul.f32 %v6343, %v6381
        %v6400 = vmul.f32 %v6347, %v6379
        %v6401 = vmul.f32 %v6347, %v6381
        %v6402 = vmul.f32 %v6351, %v6379
        %v6403 = vmul.f32 %v6351, %v6381
        %v6404 = vmul.f32 %v6355, %v6379
        %v6405 = vmul.f32 %v6355, %v6381
        %v6406 = vmul.f32 %v6359, %v6379
        %v6407 = vmul.f32 %v6359, %v6381
        %v6408 = vmul.f32 %v6363, %v6379
        %v6409 = vmul.f32 %v6363, %v6381
        %v6410 = vmul.f32 %v6367, %v6379
        %v6411 = vmul.f32 %v6367, %v6381
        %v6412 = vmul.f32 %v6371, %v6379
        %v6413 = vmul.f32 %v6371, %v6381
        %v6414 = vmul.f32 %v6375, %v6379
        %v6415 = vmul.f32 %v6375, %v6381
        %v6416 = vadd.f32 %v6280, %v6384
        %v6417 = vadd.f32 %v6281, %v6385
        %v6418 = vadd.f32 %v6282, %v6386
        %v6419 = vadd.f32 %v6283, %v6387
        %v6420 = vadd.f32 %v6284, %v6388
        %v6421 = vadd.f32 %v6285, %v6389
        %v6422 = vadd.f32 %v6286, %v6390
        %v6423 = vadd.f32 %v6287, %v6391
        %v6424 = vadd.f32 %v6288, %v6392
        %v6425 = vadd.f32 %v6289, %v6393
        %v6426 = vadd.f32 %v6290, %v6394
        %v6427 = vadd.f32 %v6291, %v6395
        %v6428 = vadd.f32 %v6292, %v6396
        %v6429 = vadd.f32 %v6293, %v6397
        %v6430 = vadd.f32 %v6294, %v6398
        %v6431 = vadd.f32 %v6295, %v6399
        %v6432 = vadd.f32 %v6296, %v6400
        %v6433 = vadd.f32 %v6297, %v6401
        %v6434 = vadd.f32 %v6298, %v6402
        %v6435 = vadd.f32 %v6299, %v6403
        %v6436 = vadd.f32 %v6300, %v6404
        %v6437 = vadd.f32 %v6301, %v6405
        %v6438 = vadd.f32 %v6302, %v6406
        %v6439 = vadd.f32 %v6303, %v6407
        %v6440 = vadd.f32 %v6304, %v6408
        %v6441 = vadd.f32 %v6305, %v6409
        %v6442 = vadd.f32 %v6306, %v6410
        %v6443 = vadd.f32 %v6307, %v6411
        %v6444 = vadd.f32 %v6308, %v6412
        %v6445 = vadd.f32 %v6309, %v6413
        %v6446 = vadd.f32 %v6310, %v6414
        %v6447 = vadd.f32 %v6311, %v6415
        %s6448 = scalar_lea.vmem %s3, 128
        %v6449 = vld [vmem:[%s6448] sm:$0xff]
        %v6450 = vld [vmem:[%s6448 + $0x8] sm:$0xff]
        %v6451 = vld [vmem:[%s6448 + $0x10] sm:$0xff]
        %v6452 = vld [vmem:[%s6448 + $0x18] sm:$0xff]
        %v6453 = vld [vmem:[%s6448 + $0x20] sm:$0xff]
        %v6454 = vld [vmem:[%s6448 + $0x28] sm:$0xff]
        %v6455 = vld [vmem:[%s6448 + $0x30] sm:$0xff]
        %v6456 = vld [vmem:[%s6448 + $0x38] sm:$0xff]
        %s6457 = scalar_lea.vmem %s3, 192
        %v6458 = vld [vmem:[%s6457] sm:$0xff]
        %v6459 = vld [vmem:[%s6457 + $0x8] sm:$0xff]
        %v6460 = vld [vmem:[%s6457 + $0x10] sm:$0xff]
        %v6461 = vld [vmem:[%s6457 + $0x18] sm:$0xff]
        %v6462 = vld [vmem:[%s6457 + $0x20] sm:$0xff]
        %v6463 = vld [vmem:[%s6457 + $0x28] sm:$0xff]
        %v6464 = vld [vmem:[%s6457 + $0x30] sm:$0xff]
        %v6465 = vld [vmem:[%s6457 + $0x38] sm:$0xff]
        %s6466 = scalar_lea.vmem %s4, 1
        %v6467 = vld [vmem:[%s6466] sm:$0x1]
        %v6469 = vsel %vm270, %v6416, 0
        %v6472 = vsel %vm270, %v6417, 0
        %v6475 = vsel %vm270, %v6418, 0
        %v6478 = vsel %vm270, %v6419, 0
        %v6481 = vsel %vm270, %v6420, 0
        %v6484 = vsel %vm270, %v6421, 0
        %v6487 = vsel %vm270, %v6422, 0
        %v6490 = vsel %vm270, %v6423, 0
        %v6493 = vsel %vm270, %v6424, 0
        %v6496 = vsel %vm270, %v6425, 0
        %v6499 = vsel %vm270, %v6426, 0
        %v6502 = vsel %vm270, %v6427, 0
        %v6505 = vsel %vm270, %v6428, 0
        %v6508 = vsel %vm270, %v6429, 0
        %v6511 = vsel %vm270, %v6430, 0
        %v6514 = vsel %vm270, %v6431, 0
        %v6517 = vsel %vm270, %v6432, 0
        %v6520 = vsel %vm270, %v6433, 0
        %v6523 = vsel %vm270, %v6434, 0
        %v6526 = vsel %vm270, %v6435, 0
        %v6529 = vsel %vm270, %v6436, 0
        %v6532 = vsel %vm270, %v6437, 0
        %v6535 = vsel %vm270, %v6438, 0
        %v6538 = vsel %vm270, %v6439, 0
        %v6541 = vsel %vm270, %v6440, 0
        %v6544 = vsel %vm270, %v6441, 0
        %v6547 = vsel %vm270, %v6442, 0
        %v6550 = vsel %vm270, %v6443, 0
        %v6553 = vsel %vm270, %v6444, 0
        %v6556 = vsel %vm270, %v6445, 0
        %v6559 = vsel %vm270, %v6446, 0
        %v6562 = vsel %vm270, %v6447, 0
        %6564 = vmatprep.subr.mxu0 0.0
        %6565 = vmatpush1.msra.mxu0 0.0
        %6566 = vmatprep.subr.mxu0 0.0
        %6567 = vmatpush1.msra.mxu0 0.0
        %6568 = vmatprep.subr.mxu0 0.0
        %6569 = vmatpush1.msra.mxu0 0.0
        %6570 = vmatprep.subr.mxu0 0.0
        %6571 = vmatpush1.msra.mxu0 0.0
        %6572 = vmatprep.subr.mxu0 0.0
        %6573 = vmatpush1.msra.mxu0 0.0
        %6574 = vmatprep.subr.mxu0 0.0
        %6575 = vmatpush1.msra.mxu0 0.0
        %6576 = vmatprep.subr.mxu0 0.0
        %6577 = vmatpush1.msra.mxu0 0.0
        %6578 = vmatprep.subr.mxu0 0.0
        %6579 = vmatpush1.msra.mxu0 0.0
        %6580 = vmatprep.subr.mxu0 0.0
        %6581 = vmatpush1.msra.mxu0 %v6465
        %6582 = vmatprep.subr.mxu0 0.0
        %6583 = vmatpush1.msra.mxu0 %v6464
        %6584 = vmatprep.subr.mxu0 0.0
        %6585 = vmatpush1.msra.mxu0 %v6463
        %6586 = vmatprep.subr.mxu0 0.0
        %6587 = vmatpush1.msra.mxu0 %v6462
        %6588 = vmatprep.subr.mxu0 0.0
        %6589 = vmatpush1.msra.mxu0 %v6461
        %6590 = vmatprep.subr.mxu0 0.0
        %6591 = vmatpush1.msra.mxu0 %v6460
        %6592 = vmatprep.subr.mxu0 0.0
        %6593 = vmatpush1.msra.mxu0 %v6459
        %6594 = vmatprep.subr.mxu0 0.0
        %6595 = vmatpush1.msra.mxu0 %v6458
        %6596 = vmatprep.subr.mxu0 0.0
        %6597 = vmatpush2.msra.mxu0 0.0
        %6598 = vmatprep.subr.mxu0 0.0
        %6599 = vmatpush2.msra.mxu0 0.0
        %6600 = vmatprep.subr.mxu0 0.0
        %6601 = vmatpush2.msra.mxu0 0.0
        %6602 = vmatprep.subr.mxu0 0.0
        %6603 = vmatpush2.msra.mxu0 0.0
        %6604 = vmatprep.subr.mxu0 0.0
        %6605 = vmatpush2.msra.mxu0 0.0
        %6606 = vmatprep.subr.mxu0 0.0
        %6607 = vmatpush2.msra.mxu0 0.0
        %6608 = vmatprep.subr.mxu0 0.0
        %6609 = vmatpush2.msra.mxu0 0.0
        %6610 = vmatprep.subr.mxu0 0.0
        %6611 = vmatpush2.msra.mxu0 0.0
        %6612 = vmatprep.subr.mxu0 0.0
        %6613 = vmatpush2.msra.mxu0 0.0
        %6614 = vmatprep.subr.mxu0 0.0
        %6615 = vmatpush2.msra.mxu0 0.0
        %6616 = vmatprep.subr.mxu0 0.0
        %6617 = vmatpush2.msra.mxu0 0.0
        %6618 = vmatprep.subr.mxu0 0.0
        %6619 = vmatpush2.msra.mxu0 0.0
        %6620 = vmatprep.subr.mxu0 0.0
        %6621 = vmatpush2.msra.mxu0 0.0
        %6622 = vmatprep.subr.mxu0 0.0
        %6623 = vmatpush2.msra.mxu0 0.0
        %6624 = vmatprep.subr.mxu0 0.0
        %6625 = vmatpush2.msra.mxu0 0.0
        %6626 = vmatprep.subr.mxu0 0.0
        %6627 = vmatpush2.msra.mxu0 0.0
        %6628 = vmatprep.mubr.f32.mxu0 0.0
        %6629 = vmatmul.mubr.f32.gmra.mxu0 %v6469
        %v6630 = vpop.f32.mrf.mxu0
        %v6631 = vadd.f32 0.0, %v6630
        %v6632 = vpop.f32.mrf.mxu0
        %6633 = vmatprep.mubr.f32.mxu0 0.0
        %6634 = vmatmul.mubr.f32.gmra.mxu0 %v6472
        %v6635 = vpop.f32.mrf.mxu0
        %v6636 = vadd.f32 0.0, %v6635
        %v6637 = vpop.f32.mrf.mxu0
        %6638 = vmatprep.mubr.f32.mxu0 0.0
        %6639 = vmatmul.mubr.f32.gmra.mxu0 %v6475
        %v6640 = vpop.f32.mrf.mxu0
        %v6641 = vadd.f32 0.0, %v6640
        %v6642 = vpop.f32.mrf.mxu0
        %6643 = vmatprep.mubr.f32.mxu0 0.0
        %6644 = vmatmul.mubr.f32.gmra.mxu0 %v6478
        %v6645 = vpop.f32.mrf.mxu0
        %v6646 = vadd.f32 0.0, %v6645
        %v6647 = vpop.f32.mrf.mxu0
        %6648 = vmatprep.mubr.f32.mxu0 0.0
        %6649 = vmatmul.mubr.f32.gmra.mxu0 %v6481
        %v6650 = vpop.f32.mrf.mxu0
        %v6651 = vadd.f32 0.0, %v6650
        %v6652 = vpop.f32.mrf.mxu0
        %6653 = vmatprep.mubr.f32.mxu0 0.0
        %6654 = vmatmul.mubr.f32.gmra.mxu0 %v6484
        %v6655 = vpop.f32.mrf.mxu0
        %v6656 = vadd.f32 0.0, %v6655
        %v6657 = vpop.f32.mrf.mxu0
        %6658 = vmatprep.mubr.f32.mxu0 0.0
        %6659 = vmatmul.mubr.f32.gmra.mxu0 %v6487
        %v6660 = vpop.f32.mrf.mxu0
        %v6661 = vadd.f32 0.0, %v6660
        %v6662 = vpop.f32.mrf.mxu0
        %6663 = vmatprep.mubr.f32.mxu0 0.0
        %6664 = vmatmul.mubr.f32.gmra.mxu0 %v6490
        %v6665 = vpop.f32.mrf.mxu0
        %v6666 = vadd.f32 0.0, %v6665
        %v6667 = vpop.f32.mrf.mxu0
        %6668 = vmatprep.mubr.f32.mxu0 0.0
        %6669 = vmatmul.mubr.f32.gmra.mxu0 %v6493
        %v6670 = vpop.f32.mrf.mxu0
        %v6671 = vadd.f32 0.0, %v6670
        %v6672 = vpop.f32.mrf.mxu0
        %6673 = vmatprep.mubr.f32.mxu0 0.0
        %6674 = vmatmul.mubr.f32.gmra.mxu0 %v6496
        %v6675 = vpop.f32.mrf.mxu0
        %v6676 = vadd.f32 0.0, %v6675
        %v6677 = vpop.f32.mrf.mxu0
        %6678 = vmatprep.mubr.f32.mxu0 0.0
        %6679 = vmatmul.mubr.f32.gmra.mxu0 %v6499
        %v6680 = vpop.f32.mrf.mxu0
        %v6681 = vadd.f32 0.0, %v6680
        %v6682 = vpop.f32.mrf.mxu0
        %6683 = vmatprep.mubr.f32.mxu0 0.0
        %6684 = vmatmul.mubr.f32.gmra.mxu0 %v6502
        %v6685 = vpop.f32.mrf.mxu0
        %v6686 = vadd.f32 0.0, %v6685
        %v6687 = vpop.f32.mrf.mxu0
        %6688 = vmatprep.mubr.f32.mxu0 0.0
        %6689 = vmatmul.mubr.f32.gmra.mxu0 %v6505
        %v6690 = vpop.f32.mrf.mxu0
        %v6691 = vadd.f32 0.0, %v6690
        %v6692 = vpop.f32.mrf.mxu0
        %6693 = vmatprep.mubr.f32.mxu0 0.0
        %6694 = vmatmul.mubr.f32.gmra.mxu0 %v6508
        %v6695 = vpop.f32.mrf.mxu0
        %v6696 = vadd.f32 0.0, %v6695
        %v6697 = vpop.f32.mrf.mxu0
        %6698 = vmatprep.mubr.f32.mxu0 0.0
        %6699 = vmatmul.mubr.f32.gmra.mxu0 %v6511
        %v6700 = vpop.f32.mrf.mxu0
        %v6701 = vadd.f32 0.0, %v6700
        %v6702 = vpop.f32.mrf.mxu0
        %6703 = vmatprep.mubr.f32.mxu0 0.0
        %6704 = vmatmul.mubr.f32.gmra.mxu0 %v6514
        %v6705 = vpop.f32.mrf.mxu0
        %v6706 = vadd.f32 0.0, %v6705
        %v6707 = vpop.f32.mrf.mxu0
        %6708 = vmatprep.mubr.f32.mxu0 0.0
        %6709 = vmatmul.mubr.f32.gmra.mxu0 %v6517
        %v6710 = vpop.f32.mrf.mxu0
        %v6711 = vadd.f32 0.0, %v6710
        %v6712 = vpop.f32.mrf.mxu0
        %6713 = vmatprep.mubr.f32.mxu0 0.0
        %6714 = vmatmul.mubr.f32.gmra.mxu0 %v6520
        %v6715 = vpop.f32.mrf.mxu0
        %v6716 = vadd.f32 0.0, %v6715
        %v6717 = vpop.f32.mrf.mxu0
        %6718 = vmatprep.mubr.f32.mxu0 0.0
        %6719 = vmatmul.mubr.f32.gmra.mxu0 %v6523
        %v6720 = vpop.f32.mrf.mxu0
        %v6721 = vadd.f32 0.0, %v6720
        %v6722 = vpop.f32.mrf.mxu0
        %6723 = vmatprep.mubr.f32.mxu0 0.0
        %6724 = vmatmul.mubr.f32.gmra.mxu0 %v6526
        %v6725 = vpop.f32.mrf.mxu0
        %v6726 = vadd.f32 0.0, %v6725
        %v6727 = vpop.f32.mrf.mxu0
        %6728 = vmatprep.mubr.f32.mxu0 0.0
        %6729 = vmatmul.mubr.f32.gmra.mxu0 %v6529
        %v6730 = vpop.f32.mrf.mxu0
        %v6731 = vadd.f32 0.0, %v6730
        %v6732 = vpop.f32.mrf.mxu0
        %6733 = vmatprep.mubr.f32.mxu0 0.0
        %6734 = vmatmul.mubr.f32.gmra.mxu0 %v6532
        %v6735 = vpop.f32.mrf.mxu0
        %v6736 = vadd.f32 0.0, %v6735
        %v6737 = vpop.f32.mrf.mxu0
        %6738 = vmatprep.mubr.f32.mxu0 0.0
        %6739 = vmatmul.mubr.f32.gmra.mxu0 %v6535
        %v6740 = vpop.f32.mrf.mxu0
        %v6741 = vadd.f32 0.0, %v6740
        %v6742 = vpop.f32.mrf.mxu0
        %6743 = vmatprep.mubr.f32.mxu0 0.0
        %6744 = vmatmul.mubr.f32.gmra.mxu0 %v6538
        %v6745 = vpop.f32.mrf.mxu0
        %v6746 = vadd.f32 0.0, %v6745
        %v6747 = vpop.f32.mrf.mxu0
        %6748 = vmatprep.mubr.f32.mxu0 0.0
        %6749 = vmatmul.mubr.f32.gmra.mxu0 %v6541
        %v6750 = vpop.f32.mrf.mxu0
        %v6751 = vadd.f32 0.0, %v6750
        %v6752 = vpop.f32.mrf.mxu0
        %6753 = vmatprep.mubr.f32.mxu0 0.0
        %6754 = vmatmul.mubr.f32.gmra.mxu0 %v6544
        %v6755 = vpop.f32.mrf.mxu0
        %v6756 = vadd.f32 0.0, %v6755
        %v6757 = vpop.f32.mrf.mxu0
        %6758 = vmatprep.mubr.f32.mxu0 0.0
        %6759 = vmatmul.mubr.f32.gmra.mxu0 %v6547
        %v6760 = vpop.f32.mrf.mxu0
        %v6761 = vadd.f32 0.0, %v6760
        %v6762 = vpop.f32.mrf.mxu0
        %6763 = vmatprep.mubr.f32.mxu0 0.0
        %6764 = vmatmul.mubr.f32.gmra.mxu0 %v6550
        %v6765 = vpop.f32.mrf.mxu0
        %v6766 = vadd.f32 0.0, %v6765
        %v6767 = vpop.f32.mrf.mxu0
        %6768 = vmatprep.mubr.f32.mxu0 0.0
        %6769 = vmatmul.mubr.f32.gmra.mxu0 %v6553
        %v6770 = vpop.f32.mrf.mxu0
        %v6771 = vadd.f32 0.0, %v6770
        %v6772 = vpop.f32.mrf.mxu0
        %6773 = vmatprep.mubr.f32.mxu0 0.0
        %6774 = vmatmul.mubr.f32.gmra.mxu0 %v6556
        %v6775 = vpop.f32.mrf.mxu0
        %v6776 = vadd.f32 0.0, %v6775
        %v6777 = vpop.f32.mrf.mxu0
        %6778 = vmatprep.mubr.f32.mxu0 0.0
        %6779 = vmatmul.mubr.f32.gmra.mxu0 %v6559
        %v6780 = vpop.f32.mrf.mxu0
        %v6781 = vadd.f32 0.0, %v6780
        %v6782 = vpop.f32.mrf.mxu0
        %6783 = vmatprep.mubr.f32.mxu0 0.0
        %6784 = vmatmul.mubr.f32.gmra.mxu0 %v6562
        %v6785 = vpop.f32.mrf.mxu0
        %v6786 = vadd.f32 0.0, %v6785
        %v6787 = vpop.f32.mrf.mxu0
        %6788 = vdwg.mxu0
        %6789 = vmatprep.subr.mxu0 0.0
        %6790 = vmatpush1.msra.mxu0 0.0
        %6791 = vmatprep.subr.mxu0 0.0
        %6792 = vmatpush1.msra.mxu0 0.0
        %6793 = vmatprep.subr.mxu0 0.0
        %6794 = vmatpush1.msra.mxu0 0.0
        %6795 = vmatprep.subr.mxu0 0.0
        %6796 = vmatpush1.msra.mxu0 0.0
        %6797 = vmatprep.subr.mxu0 0.0
        %6798 = vmatpush1.msra.mxu0 0.0
        %6799 = vmatprep.subr.mxu0 0.0
        %6800 = vmatpush1.msra.mxu0 0.0
        %6801 = vmatprep.subr.mxu0 0.0
        %6802 = vmatpush1.msra.mxu0 0.0
        %6803 = vmatprep.subr.mxu0 0.0
        %6804 = vmatpush1.msra.mxu0 0.0
        %6805 = vmatprep.subr.mxu0 0.0
        %6806 = vmatpush1.msra.mxu0 %v6456
        %6807 = vmatprep.subr.mxu0 0.0
        %6808 = vmatpush1.msra.mxu0 %v6455
        %6809 = vmatprep.subr.mxu0 0.0
        %6810 = vmatpush1.msra.mxu0 %v6454
        %6811 = vmatprep.subr.mxu0 0.0
        %6812 = vmatpush1.msra.mxu0 %v6453
        %6813 = vmatprep.subr.mxu0 0.0
        %6814 = vmatpush1.msra.mxu0 %v6452
        %6815 = vmatprep.subr.mxu0 0.0
        %6816 = vmatpush1.msra.mxu0 %v6451
        %6817 = vmatprep.subr.mxu0 0.0
        %6818 = vmatpush1.msra.mxu0 %v6450
        %6819 = vmatprep.subr.mxu0 0.0
        %6820 = vmatpush1.msra.mxu0 %v6449
        %6821 = vmatprep.subr.mxu0 0.0
        %6822 = vmatpush2.msra.mxu0 0.0
        %6823 = vmatprep.subr.mxu0 0.0
        %6824 = vmatpush2.msra.mxu0 0.0
        %6825 = vmatprep.subr.mxu0 0.0
        %6826 = vmatpush2.msra.mxu0 0.0
        %6827 = vmatprep.subr.mxu0 0.0
        %6828 = vmatpush2.msra.mxu0 0.0
        %6829 = vmatprep.subr.mxu0 0.0
        %6830 = vmatpush2.msra.mxu0 0.0
        %6831 = vmatprep.subr.mxu0 0.0
        %6832 = vmatpush2.msra.mxu0 0.0
        %6833 = vmatprep.subr.mxu0 0.0
        %6834 = vmatpush2.msra.mxu0 0.0
        %6835 = vmatprep.subr.mxu0 0.0
        %6836 = vmatpush2.msra.mxu0 0.0
        %6837 = vmatprep.subr.mxu0 0.0
        %6838 = vmatpush2.msra.mxu0 0.0
        %6839 = vmatprep.subr.mxu0 0.0
        %6840 = vmatpush2.msra.mxu0 0.0
        %6841 = vmatprep.subr.mxu0 0.0
        %6842 = vmatpush2.msra.mxu0 0.0
        %6843 = vmatprep.subr.mxu0 0.0
        %6844 = vmatpush2.msra.mxu0 0.0
        %6845 = vmatprep.subr.mxu0 0.0
        %6846 = vmatpush2.msra.mxu0 0.0
        %6847 = vmatprep.subr.mxu0 0.0
        %6848 = vmatpush2.msra.mxu0 0.0
        %6849 = vmatprep.subr.mxu0 0.0
        %6850 = vmatpush2.msra.mxu0 0.0
        %6851 = vmatprep.subr.mxu0 0.0
        %6852 = vmatpush2.msra.mxu0 0.0
        %6853 = vmatprep.mubr.f32.mxu0 0.0
        %6854 = vmatmul.mubr.f32.gmra.mxu0 %v3670
        %v6855 = vpop.f32.mrf.mxu0
        %v6856 = vadd.f32 %v6631, %v6855
        %v6857 = vpop.f32.mrf.mxu0
        %6858 = vmatprep.mubr.f32.mxu0 0.0
        %6859 = vmatmul.mubr.f32.gmra.mxu0 %v3673
        %v6860 = vpop.f32.mrf.mxu0
        %v6861 = vadd.f32 %v6636, %v6860
        %v6862 = vpop.f32.mrf.mxu0
        %6863 = vmatprep.mubr.f32.mxu0 0.0
        %6864 = vmatmul.mubr.f32.gmra.mxu0 %v3676
        %v6865 = vpop.f32.mrf.mxu0
        %v6866 = vadd.f32 %v6641, %v6865
        %v6867 = vpop.f32.mrf.mxu0
        %6868 = vmatprep.mubr.f32.mxu0 0.0
        %6869 = vmatmul.mubr.f32.gmra.mxu0 %v3679
        %v6870 = vpop.f32.mrf.mxu0
        %v6871 = vadd.f32 %v6646, %v6870
        %v6872 = vpop.f32.mrf.mxu0
        %6873 = vmatprep.mubr.f32.mxu0 0.0
        %6874 = vmatmul.mubr.f32.gmra.mxu0 %v3682
        %v6875 = vpop.f32.mrf.mxu0
        %v6876 = vadd.f32 %v6651, %v6875
        %v6877 = vpop.f32.mrf.mxu0
        %6878 = vmatprep.mubr.f32.mxu0 0.0
        %6879 = vmatmul.mubr.f32.gmra.mxu0 %v3685
        %v6880 = vpop.f32.mrf.mxu0
        %v6881 = vadd.f32 %v6656, %v6880
        %v6882 = vpop.f32.mrf.mxu0
        %6883 = vmatprep.mubr.f32.mxu0 0.0
        %6884 = vmatmul.mubr.f32.gmra.mxu0 %v3688
        %v6885 = vpop.f32.mrf.mxu0
        %v6886 = vadd.f32 %v6661, %v6885
        %v6887 = vpop.f32.mrf.mxu0
        %6888 = vmatprep.mubr.f32.mxu0 0.0
        %6889 = vmatmul.mubr.f32.gmra.mxu0 %v3691
        %v6890 = vpop.f32.mrf.mxu0
        %v6891 = vadd.f32 %v6666, %v6890
        %v6892 = vpop.f32.mrf.mxu0
        %6893 = vmatprep.mubr.f32.mxu0 0.0
        %6894 = vmatmul.mubr.f32.gmra.mxu0 %v3694
        %v6895 = vpop.f32.mrf.mxu0
        %v6896 = vadd.f32 %v6671, %v6895
        %v6897 = vpop.f32.mrf.mxu0
        %6898 = vmatprep.mubr.f32.mxu0 0.0
        %6899 = vmatmul.mubr.f32.gmra.mxu0 %v3697
        %v6900 = vpop.f32.mrf.mxu0
        %v6901 = vadd.f32 %v6676, %v6900
        %v6902 = vpop.f32.mrf.mxu0
        %6903 = vmatprep.mubr.f32.mxu0 0.0
        %6904 = vmatmul.mubr.f32.gmra.mxu0 %v3700
        %v6905 = vpop.f32.mrf.mxu0
        %v6906 = vadd.f32 %v6681, %v6905
        %v6907 = vpop.f32.mrf.mxu0
        %6908 = vmatprep.mubr.f32.mxu0 0.0
        %6909 = vmatmul.mubr.f32.gmra.mxu0 %v3703
        %v6910 = vpop.f32.mrf.mxu0
        %v6911 = vadd.f32 %v6686, %v6910
        %v6912 = vpop.f32.mrf.mxu0
        %6913 = vmatprep.mubr.f32.mxu0 0.0
        %6914 = vmatmul.mubr.f32.gmra.mxu0 %v3706
        %v6915 = vpop.f32.mrf.mxu0
        %v6916 = vadd.f32 %v6691, %v6915
        %v6917 = vpop.f32.mrf.mxu0
        %6918 = vmatprep.mubr.f32.mxu0 0.0
        %6919 = vmatmul.mubr.f32.gmra.mxu0 %v3709
        %v6920 = vpop.f32.mrf.mxu0
        %v6921 = vadd.f32 %v6696, %v6920
        %v6922 = vpop.f32.mrf.mxu0
        %6923 = vmatprep.mubr.f32.mxu0 0.0
        %6924 = vmatmul.mubr.f32.gmra.mxu0 %v3712
        %v6925 = vpop.f32.mrf.mxu0
        %v6926 = vadd.f32 %v6701, %v6925
        %v6927 = vpop.f32.mrf.mxu0
        %6928 = vmatprep.mubr.f32.mxu0 0.0
        %6929 = vmatmul.mubr.f32.gmra.mxu0 %v3715
        %v6930 = vpop.f32.mrf.mxu0
        %v6931 = vadd.f32 %v6706, %v6930
        %v6932 = vpop.f32.mrf.mxu0
        %6933 = vmatprep.mubr.f32.mxu0 0.0
        %6934 = vmatmul.mubr.f32.gmra.mxu0 %v3718
        %v6935 = vpop.f32.mrf.mxu0
        %v6936 = vadd.f32 %v6711, %v6935
        %v6937 = vpop.f32.mrf.mxu0
        %6938 = vmatprep.mubr.f32.mxu0 0.0
        %6939 = vmatmul.mubr.f32.gmra.mxu0 %v3721
        %v6940 = vpop.f32.mrf.mxu0
        %v6941 = vadd.f32 %v6716, %v6940
        %v6942 = vpop.f32.mrf.mxu0
        %6943 = vmatprep.mubr.f32.mxu0 0.0
        %6944 = vmatmul.mubr.f32.gmra.mxu0 %v3724
        %v6945 = vpop.f32.mrf.mxu0
        %v6946 = vadd.f32 %v6721, %v6945
        %v6947 = vpop.f32.mrf.mxu0
        %6948 = vmatprep.mubr.f32.mxu0 0.0
        %6949 = vmatmul.mubr.f32.gmra.mxu0 %v3727
        %v6950 = vpop.f32.mrf.mxu0
        %v6951 = vadd.f32 %v6726, %v6950
        %v6952 = vpop.f32.mrf.mxu0
        %6953 = vmatprep.mubr.f32.mxu0 0.0
        %6954 = vmatmul.mubr.f32.gmra.mxu0 %v3730
        %v6955 = vpop.f32.mrf.mxu0
        %v6956 = vadd.f32 %v6731, %v6955
        %v6957 = vpop.f32.mrf.mxu0
        %6958 = vmatprep.mubr.f32.mxu0 0.0
        %6959 = vmatmul.mubr.f32.gmra.mxu0 %v3733
        %v6960 = vpop.f32.mrf.mxu0
        %v6961 = vadd.f32 %v6736, %v6960
        %v6962 = vpop.f32.mrf.mxu0
        %6963 = vmatprep.mubr.f32.mxu0 0.0
        %6964 = vmatmul.mubr.f32.gmra.mxu0 %v3736
        %v6965 = vpop.f32.mrf.mxu0
        %v6966 = vadd.f32 %v6741, %v6965
        %v6967 = vpop.f32.mrf.mxu0
        %6968 = vmatprep.mubr.f32.mxu0 0.0
        %6969 = vmatmul.mubr.f32.gmra.mxu0 %v3739
        %v6970 = vpop.f32.mrf.mxu0
        %v6971 = vadd.f32 %v6746, %v6970
        %v6972 = vpop.f32.mrf.mxu0
        %6973 = vmatprep.mubr.f32.mxu0 0.0
        %6974 = vmatmul.mubr.f32.gmra.mxu0 %v3742
        %v6975 = vpop.f32.mrf.mxu0
        %v6976 = vadd.f32 %v6751, %v6975
        %v6977 = vpop.f32.mrf.mxu0
        %6978 = vmatprep.mubr.f32.mxu0 0.0
        %6979 = vmatmul.mubr.f32.gmra.mxu0 %v3745
        %v6980 = vpop.f32.mrf.mxu0
        %v6981 = vadd.f32 %v6756, %v6980
        %v6982 = vpop.f32.mrf.mxu0
        %6983 = vmatprep.mubr.f32.mxu0 0.0
        %6984 = vmatmul.mubr.f32.gmra.mxu0 %v3748
        %v6985 = vpop.f32.mrf.mxu0
        %v6986 = vadd.f32 %v6761, %v6985
        %v6987 = vpop.f32.mrf.mxu0
        %6988 = vmatprep.mubr.f32.mxu0 0.0
        %6989 = vmatmul.mubr.f32.gmra.mxu0 %v3751
        %v6990 = vpop.f32.mrf.mxu0
        %v6991 = vadd.f32 %v6766, %v6990
        %v6992 = vpop.f32.mrf.mxu0
        %6993 = vmatprep.mubr.f32.mxu0 0.0
        %6994 = vmatmul.mubr.f32.gmra.mxu0 %v3754
        %v6995 = vpop.f32.mrf.mxu0
        %v6996 = vadd.f32 %v6771, %v6995
        %v6997 = vpop.f32.mrf.mxu0
        %6998 = vmatprep.mubr.f32.mxu0 0.0
        %6999 = vmatmul.mubr.f32.gmra.mxu0 %v3757
        %v7000 = vpop.f32.mrf.mxu0
        %v7001 = vadd.f32 %v6776, %v7000
        %v7002 = vpop.f32.mrf.mxu0
        %7003 = vmatprep.mubr.f32.mxu0 0.0
        %7004 = vmatmul.mubr.f32.gmra.mxu0 %v3760
        %v7005 = vpop.f32.mrf.mxu0
        %v7006 = vadd.f32 %v6781, %v7005
        %v7007 = vpop.f32.mrf.mxu0
        %7008 = vmatprep.mubr.f32.mxu0 0.0
        %7009 = vmatmul.mubr.f32.gmra.mxu0 %v3763
        %v7010 = vpop.f32.mrf.mxu0
        %v7011 = vadd.f32 %v6786, %v7010
        %v7012 = vpop.f32.mrf.mxu0
        %7013 = vdwg.mxu0
        %v7015 = vlaneseq
        %v7016 = vshrl.u32 %v7015, 7
        %v7017 = vsub.s32 0, %v7016
        %v7018 = vrot.slane %v6467, %v7017
        %v7020 = vadd.f32 %v6856, %v7018
        %v7021 = vadd.f32 %v6861, %v7018
        %v7022 = vadd.f32 %v6866, %v7018
        %v7023 = vadd.f32 %v6871, %v7018
        %v7024 = vadd.f32 %v6876, %v7018
        %v7025 = vadd.f32 %v6881, %v7018
        %v7026 = vadd.f32 %v6886, %v7018
        %v7027 = vadd.f32 %v6891, %v7018
        %v7028 = vadd.f32 %v6896, %v7018
        %v7029 = vadd.f32 %v6901, %v7018
        %v7030 = vadd.f32 %v6906, %v7018
        %v7031 = vadd.f32 %v6911, %v7018
        %v7032 = vadd.f32 %v6916, %v7018
        %v7033 = vadd.f32 %v6921, %v7018
        %v7034 = vadd.f32 %v6926, %v7018
        %v7035 = vadd.f32 %v6931, %v7018
        %v7036 = vadd.f32 %v6936, %v7018
        %v7037 = vadd.f32 %v6941, %v7018
        %v7038 = vadd.f32 %v6946, %v7018
        %v7039 = vadd.f32 %v6951, %v7018
        %v7040 = vadd.f32 %v6956, %v7018
        %v7041 = vadd.f32 %v6961, %v7018
        %v7042 = vadd.f32 %v6966, %v7018
        %v7043 = vadd.f32 %v6971, %v7018
        %v7044 = vadd.f32 %v6976, %v7018
        %v7045 = vadd.f32 %v6981, %v7018
        %v7046 = vadd.f32 %v6986, %v7018
        %v7047 = vadd.f32 %v6991, %v7018
        %v7048 = vadd.f32 %v6996, %v7018
        %v7049 = vadd.f32 %v7001, %v7018
        %v7050 = vadd.f32 %v7006, %v7018
        %v7051 = vadd.f32 %v7011, %v7018
        %s7052 = scalar_lea.vmem %s3, 256
        %v7053 = vld [vmem:[%s7052] sm:$0xff]
        %v7054 = vld [vmem:[%s7052 + $0x8] sm:$0xff]
        %v7055 = vld [vmem:[%s7052 + $0x10] sm:$0xff]
        %v7056 = vld [vmem:[%s7052 + $0x18] sm:$0xff]
        %v7057 = vld [vmem:[%s7052 + $0x20] sm:$0xff]
        %v7058 = vld [vmem:[%s7052 + $0x28] sm:$0xff]
        %v7059 = vld [vmem:[%s7052 + $0x30] sm:$0xff]
        %v7060 = vld [vmem:[%s7052 + $0x38] sm:$0xff]
        %s7061 = scalar_lea.vmem %s4, 2
        %v7062 = vld [vmem:[%s7061] sm:$0x1]
        %v7064 = vlaneseq
        %v7065 = vshrl.u32 %v7064, 7
        %v7066 = vsub.s32 0, %v7065
        %v7067 = vrot.slane %v7062, %v7066
        %v7070 = vsel %vm270, %v7020, 0
        %v7073 = vsel %vm270, %v7021, 0
        %v7076 = vsel %vm270, %v7022, 0
        %v7079 = vsel %vm270, %v7023, 0
        %v7082 = vsel %vm270, %v7024, 0
        %v7085 = vsel %vm270, %v7025, 0
        %v7088 = vsel %vm270, %v7026, 0
        %v7091 = vsel %vm270, %v7027, 0
        %v7094 = vsel %vm270, %v7028, 0
        %v7097 = vsel %vm270, %v7029, 0
        %v7100 = vsel %vm270, %v7030, 0
        %v7103 = vsel %vm270, %v7031, 0
        %v7106 = vsel %vm270, %v7032, 0
        %v7109 = vsel %vm270, %v7033, 0
        %v7112 = vsel %vm270, %v7034, 0
        %v7115 = vsel %vm270, %v7035, 0
        %v7118 = vsel %vm270, %v7036, 0
        %v7121 = vsel %vm270, %v7037, 0
        %v7124 = vsel %vm270, %v7038, 0
        %v7127 = vsel %vm270, %v7039, 0
        %v7130 = vsel %vm270, %v7040, 0
        %v7133 = vsel %vm270, %v7041, 0
        %v7136 = vsel %vm270, %v7042, 0
        %v7139 = vsel %vm270, %v7043, 0
        %v7142 = vsel %vm270, %v7044, 0
        %v7145 = vsel %vm270, %v7045, 0
        %v7148 = vsel %vm270, %v7046, 0
        %v7151 = vsel %vm270, %v7047, 0
        %v7154 = vsel %vm270, %v7048, 0
        %v7157 = vsel %vm270, %v7049, 0
        %v7160 = vsel %vm270, %v7050, 0
        %v7163 = vsel %vm270, %v7051, 0
        %7165 = vmatprep.subr.mxu0 0.0
        %7166 = vmatpush1.msra.mxu0 0.0
        %7167 = vmatprep.subr.mxu0 0.0
        %7168 = vmatpush1.msra.mxu0 0.0
        %7169 = vmatprep.subr.mxu0 0.0
        %7170 = vmatpush1.msra.mxu0 0.0
        %7171 = vmatprep.subr.mxu0 0.0
        %7172 = vmatpush1.msra.mxu0 0.0
        %7173 = vmatprep.subr.mxu0 0.0
        %7174 = vmatpush1.msra.mxu0 0.0
        %7175 = vmatprep.subr.mxu0 0.0
        %7176 = vmatpush1.msra.mxu0 0.0
        %7177 = vmatprep.subr.mxu0 0.0
        %7178 = vmatpush1.msra.mxu0 0.0
        %7179 = vmatprep.subr.mxu0 0.0
        %7180 = vmatpush1.msra.mxu0 0.0
        %7181 = vmatprep.subr.mxu0 0.0
        %7182 = vmatpush1.msra.mxu0 %v7060
        %7183 = vmatprep.subr.mxu0 0.0
        %7184 = vmatpush1.msra.mxu0 %v7059
        %7185 = vmatprep.subr.mxu0 0.0
        %7186 = vmatpush1.msra.mxu0 %v7058
        %7187 = vmatprep.subr.mxu0 0.0
        %7188 = vmatpush1.msra.mxu0 %v7057
        %7189 = vmatprep.subr.mxu0 0.0
        %7190 = vmatpush1.msra.mxu0 %v7056
        %7191 = vmatprep.subr.mxu0 0.0
        %7192 = vmatpush1.msra.mxu0 %v7055
        %7193 = vmatprep.subr.mxu0 0.0
        %7194 = vmatpush1.msra.mxu0 %v7054
        %7195 = vmatprep.subr.mxu0 0.0
        %7196 = vmatpush1.msra.mxu0 %v7053
        %7197 = vmatprep.subr.mxu0 0.0
        %7198 = vmatpush2.msra.mxu0 0.0
        %7199 = vmatprep.subr.mxu0 0.0
        %7200 = vmatpush2.msra.mxu0 0.0
        %7201 = vmatprep.subr.mxu0 0.0
        %7202 = vmatpush2.msra.mxu0 0.0
        %7203 = vmatprep.subr.mxu0 0.0
        %7204 = vmatpush2.msra.mxu0 0.0
        %7205 = vmatprep.subr.mxu0 0.0
        %7206 = vmatpush2.msra.mxu0 0.0
        %7207 = vmatprep.subr.mxu0 0.0
        %7208 = vmatpush2.msra.mxu0 0.0
        %7209 = vmatprep.subr.mxu0 0.0
        %7210 = vmatpush2.msra.mxu0 0.0
        %7211 = vmatprep.subr.mxu0 0.0
        %7212 = vmatpush2.msra.mxu0 0.0
        %7213 = vmatprep.subr.mxu0 0.0
        %7214 = vmatpush2.msra.mxu0 0.0
        %7215 = vmatprep.subr.mxu0 0.0
        %7216 = vmatpush2.msra.mxu0 0.0
        %7217 = vmatprep.subr.mxu0 0.0
        %7218 = vmatpush2.msra.mxu0 0.0
        %7219 = vmatprep.subr.mxu0 0.0
        %7220 = vmatpush2.msra.mxu0 0.0
        %7221 = vmatprep.subr.mxu0 0.0
        %7222 = vmatpush2.msra.mxu0 0.0
        %7223 = vmatprep.subr.mxu0 0.0
        %7224 = vmatpush2.msra.mxu0 0.0
        %7225 = vmatprep.subr.mxu0 0.0
        %7226 = vmatpush2.msra.mxu0 0.0
        %7227 = vmatprep.subr.mxu0 0.0
        %7228 = vmatpush2.msra.mxu0 0.0
        %7229 = vmatprep.mubr.f32.mxu0 0.0
        %7230 = vmatmul.mubr.f32.gmra.mxu0 %v7070
        %v7231 = vpop.f32.mrf.mxu0
        %v7232 = vadd.f32 %v7067, %v7231
        %v7233 = vpop.f32.mrf.mxu0
        %7234 = vmatprep.mubr.f32.mxu0 0.0
        %7235 = vmatmul.mubr.f32.gmra.mxu0 %v7073
        %v7236 = vpop.f32.mrf.mxu0
        %v7237 = vadd.f32 %v7067, %v7236
        %v7238 = vpop.f32.mrf.mxu0
        %7239 = vmatprep.mubr.f32.mxu0 0.0
        %7240 = vmatmul.mubr.f32.gmra.mxu0 %v7076
        %v7241 = vpop.f32.mrf.mxu0
        %v7242 = vadd.f32 %v7067, %v7241
        %v7243 = vpop.f32.mrf.mxu0
        %7244 = vmatprep.mubr.f32.mxu0 0.0
        %7245 = vmatmul.mubr.f32.gmra.mxu0 %v7079
        %v7246 = vpop.f32.mrf.mxu0
        %v7247 = vadd.f32 %v7067, %v7246
        %v7248 = vpop.f32.mrf.mxu0
        %7249 = vmatprep.mubr.f32.mxu0 0.0
        %7250 = vmatmul.mubr.f32.gmra.mxu0 %v7082
        %v7251 = vpop.f32.mrf.mxu0
        %v7252 = vadd.f32 %v7067, %v7251
        %v7253 = vpop.f32.mrf.mxu0
        %7254 = vmatprep.mubr.f32.mxu0 0.0
        %7255 = vmatmul.mubr.f32.gmra.mxu0 %v7085
        %v7256 = vpop.f32.mrf.mxu0
        %v7257 = vadd.f32 %v7067, %v7256
        %v7258 = vpop.f32.mrf.mxu0
        %7259 = vmatprep.mubr.f32.mxu0 0.0
        %7260 = vmatmul.mubr.f32.gmra.mxu0 %v7088
        %v7261 = vpop.f32.mrf.mxu0
        %v7262 = vadd.f32 %v7067, %v7261
        %v7263 = vpop.f32.mrf.mxu0
        %7264 = vmatprep.mubr.f32.mxu0 0.0
        %7265 = vmatmul.mubr.f32.gmra.mxu0 %v7091
        %v7266 = vpop.f32.mrf.mxu0
        %v7267 = vadd.f32 %v7067, %v7266
        %v7268 = vpop.f32.mrf.mxu0
        %7269 = vmatprep.mubr.f32.mxu0 0.0
        %7270 = vmatmul.mubr.f32.gmra.mxu0 %v7094
        %v7271 = vpop.f32.mrf.mxu0
        %v7272 = vadd.f32 %v7067, %v7271
        %v7273 = vpop.f32.mrf.mxu0
        %7274 = vmatprep.mubr.f32.mxu0 0.0
        %7275 = vmatmul.mubr.f32.gmra.mxu0 %v7097
        %v7276 = vpop.f32.mrf.mxu0
        %v7277 = vadd.f32 %v7067, %v7276
        %v7278 = vpop.f32.mrf.mxu0
        %7279 = vmatprep.mubr.f32.mxu0 0.0
        %7280 = vmatmul.mubr.f32.gmra.mxu0 %v7100
        %v7281 = vpop.f32.mrf.mxu0
        %v7282 = vadd.f32 %v7067, %v7281
        %v7283 = vpop.f32.mrf.mxu0
        %7284 = vmatprep.mubr.f32.mxu0 0.0
        %7285 = vmatmul.mubr.f32.gmra.mxu0 %v7103
        %v7286 = vpop.f32.mrf.mxu0
        %v7287 = vadd.f32 %v7067, %v7286
        %v7288 = vpop.f32.mrf.mxu0
        %7289 = vmatprep.mubr.f32.mxu0 0.0
        %7290 = vmatmul.mubr.f32.gmra.mxu0 %v7106
        %v7291 = vpop.f32.mrf.mxu0
        %v7292 = vadd.f32 %v7067, %v7291
        %v7293 = vpop.f32.mrf.mxu0
        %7294 = vmatprep.mubr.f32.mxu0 0.0
        %7295 = vmatmul.mubr.f32.gmra.mxu0 %v7109
        %v7296 = vpop.f32.mrf.mxu0
        %v7297 = vadd.f32 %v7067, %v7296
        %v7298 = vpop.f32.mrf.mxu0
        %7299 = vmatprep.mubr.f32.mxu0 0.0
        %7300 = vmatmul.mubr.f32.gmra.mxu0 %v7112
        %v7301 = vpop.f32.mrf.mxu0
        %v7302 = vadd.f32 %v7067, %v7301
        %v7303 = vpop.f32.mrf.mxu0
        %7304 = vmatprep.mubr.f32.mxu0 0.0
        %7305 = vmatmul.mubr.f32.gmra.mxu0 %v7115
        %v7306 = vpop.f32.mrf.mxu0
        %v7307 = vadd.f32 %v7067, %v7306
        %v7308 = vpop.f32.mrf.mxu0
        %7309 = vmatprep.mubr.f32.mxu0 0.0
        %7310 = vmatmul.mubr.f32.gmra.mxu0 %v7118
        %v7311 = vpop.f32.mrf.mxu0
        %v7312 = vadd.f32 %v7067, %v7311
        %v7313 = vpop.f32.mrf.mxu0
        %7314 = vmatprep.mubr.f32.mxu0 0.0
        %7315 = vmatmul.mubr.f32.gmra.mxu0 %v7121
        %v7316 = vpop.f32.mrf.mxu0
        %v7317 = vadd.f32 %v7067, %v7316
        %v7318 = vpop.f32.mrf.mxu0
        %7319 = vmatprep.mubr.f32.mxu0 0.0
        %7320 = vmatmul.mubr.f32.gmra.mxu0 %v7124
        %v7321 = vpop.f32.mrf.mxu0
        %v7322 = vadd.f32 %v7067, %v7321
        %v7323 = vpop.f32.mrf.mxu0
        %7324 = vmatprep.mubr.f32.mxu0 0.0
        %7325 = vmatmul.mubr.f32.gmra.mxu0 %v7127
        %v7326 = vpop.f32.mrf.mxu0
        %v7327 = vadd.f32 %v7067, %v7326
        %v7328 = vpop.f32.mrf.mxu0
        %7329 = vmatprep.mubr.f32.mxu0 0.0
        %7330 = vmatmul.mubr.f32.gmra.mxu0 %v7130
        %v7331 = vpop.f32.mrf.mxu0
        %v7332 = vadd.f32 %v7067, %v7331
        %v7333 = vpop.f32.mrf.mxu0
        %7334 = vmatprep.mubr.f32.mxu0 0.0
        %7335 = vmatmul.mubr.f32.gmra.mxu0 %v7133
        %v7336 = vpop.f32.mrf.mxu0
        %v7337 = vadd.f32 %v7067, %v7336
        %v7338 = vpop.f32.mrf.mxu0
        %7339 = vmatprep.mubr.f32.mxu0 0.0
        %7340 = vmatmul.mubr.f32.gmra.mxu0 %v7136
        %v7341 = vpop.f32.mrf.mxu0
        %v7342 = vadd.f32 %v7067, %v7341
        %v7343 = vpop.f32.mrf.mxu0
        %7344 = vmatprep.mubr.f32.mxu0 0.0
        %7345 = vmatmul.mubr.f32.gmra.mxu0 %v7139
        %v7346 = vpop.f32.mrf.mxu0
        %v7347 = vadd.f32 %v7067, %v7346
        %v7348 = vpop.f32.mrf.mxu0
        %7349 = vmatprep.mubr.f32.mxu0 0.0
        %7350 = vmatmul.mubr.f32.gmra.mxu0 %v7142
        %v7351 = vpop.f32.mrf.mxu0
        %v7352 = vadd.f32 %v7067, %v7351
        %v7353 = vpop.f32.mrf.mxu0
        %7354 = vmatprep.mubr.f32.mxu0 0.0
        %7355 = vmatmul.mubr.f32.gmra.mxu0 %v7145
        %v7356 = vpop.f32.mrf.mxu0
        %v7357 = vadd.f32 %v7067, %v7356
        %v7358 = vpop.f32.mrf.mxu0
        %7359 = vmatprep.mubr.f32.mxu0 0.0
        %7360 = vmatmul.mubr.f32.gmra.mxu0 %v7148
        %v7361 = vpop.f32.mrf.mxu0
        %v7362 = vadd.f32 %v7067, %v7361
        %v7363 = vpop.f32.mrf.mxu0
        %7364 = vmatprep.mubr.f32.mxu0 0.0
        %7365 = vmatmul.mubr.f32.gmra.mxu0 %v7151
        %v7366 = vpop.f32.mrf.mxu0
        %v7367 = vadd.f32 %v7067, %v7366
        %v7368 = vpop.f32.mrf.mxu0
        %7369 = vmatprep.mubr.f32.mxu0 0.0
        %7370 = vmatmul.mubr.f32.gmra.mxu0 %v7154
        %v7371 = vpop.f32.mrf.mxu0
        %v7372 = vadd.f32 %v7067, %v7371
        %v7373 = vpop.f32.mrf.mxu0
        %7374 = vmatprep.mubr.f32.mxu0 0.0
        %7375 = vmatmul.mubr.f32.gmra.mxu0 %v7157
        %v7376 = vpop.f32.mrf.mxu0
        %v7377 = vadd.f32 %v7067, %v7376
        %v7378 = vpop.f32.mrf.mxu0
        %7379 = vmatprep.mubr.f32.mxu0 0.0
        %7380 = vmatmul.mubr.f32.gmra.mxu0 %v7160
        %v7381 = vpop.f32.mrf.mxu0
        %v7382 = vadd.f32 %v7067, %v7381
        %v7383 = vpop.f32.mrf.mxu0
        %7384 = vmatprep.mubr.f32.mxu0 0.0
        %7385 = vmatmul.mubr.f32.gmra.mxu0 %v7163
        %v7386 = vpop.f32.mrf.mxu0
        %v7387 = vadd.f32 %v7067, %v7386
        %v7388 = vpop.f32.mrf.mxu0
        %7389 = vdwg.mxu0
        %v7390 = vmax.f32 %v7232, 0.0
        %v7391 = vmax.f32 %v7237, 0.0
        %v7392 = vmax.f32 %v7242, 0.0
        %v7393 = vmax.f32 %v7247, 0.0
        %v7394 = vmax.f32 %v7252, 0.0
        %v7395 = vmax.f32 %v7257, 0.0
        %v7396 = vmax.f32 %v7262, 0.0
        %v7397 = vmax.f32 %v7267, 0.0
        %v7398 = vmax.f32 %v7272, 0.0
        %v7399 = vmax.f32 %v7277, 0.0
        %v7400 = vmax.f32 %v7282, 0.0
        %v7401 = vmax.f32 %v7287, 0.0
        %v7402 = vmax.f32 %v7292, 0.0
        %v7403 = vmax.f32 %v7297, 0.0
        %v7404 = vmax.f32 %v7302, 0.0
        %v7405 = vmax.f32 %v7307, 0.0
        %v7406 = vmax.f32 %v7312, 0.0
        %v7407 = vmax.f32 %v7317, 0.0
        %v7408 = vmax.f32 %v7322, 0.0
        %v7409 = vmax.f32 %v7327, 0.0
        %v7410 = vmax.f32 %v7332, 0.0
        %v7411 = vmax.f32 %v7337, 0.0
        %v7412 = vmax.f32 %v7342, 0.0
        %v7413 = vmax.f32 %v7347, 0.0
        %v7414 = vmax.f32 %v7352, 0.0
        %v7415 = vmax.f32 %v7357, 0.0
        %v7416 = vmax.f32 %v7362, 0.0
        %v7417 = vmax.f32 %v7367, 0.0
        %v7418 = vmax.f32 %v7372, 0.0
        %v7419 = vmax.f32 %v7377, 0.0
        %v7420 = vmax.f32 %v7382, 0.0
        %v7421 = vmax.f32 %v7387, 0.0
        %s7422 = scalar_lea.vmem %s3, 320
        %v7423 = vld [vmem:[%s7422] sm:$0xff]
        %v7424 = vld [vmem:[%s7422 + $0x8] sm:$0xff]
        %v7425 = vld [vmem:[%s7422 + $0x10] sm:$0xff]
        %v7426 = vld [vmem:[%s7422 + $0x18] sm:$0xff]
        %v7427 = vld [vmem:[%s7422 + $0x20] sm:$0xff]
        %v7428 = vld [vmem:[%s7422 + $0x28] sm:$0xff]
        %v7429 = vld [vmem:[%s7422 + $0x30] sm:$0xff]
        %v7430 = vld [vmem:[%s7422 + $0x38] sm:$0xff]
        %s7431 = scalar_lea.vmem %s4, 3
        %v7432 = vld [vmem:[%s7431] sm:$0x1]
        %v7434 = vlaneseq
        %v7435 = vshrl.u32 %v7434, 7
        %v7436 = vsub.s32 0, %v7435
        %v7437 = vrot.slane %v7432, %v7436
        %v7440 = vsel %vm270, %v7390, 0
        %v7443 = vsel %vm270, %v7391, 0
        %v7446 = vsel %vm270, %v7392, 0
        %v7449 = vsel %vm270, %v7393, 0
        %v7452 = vsel %vm270, %v7394, 0
        %v7455 = vsel %vm270, %v7395, 0
        %v7458 = vsel %vm270, %v7396, 0
        %v7461 = vsel %vm270, %v7397, 0
        %v7464 = vsel %vm270, %v7398, 0
        %v7467 = vsel %vm270, %v7399, 0
        %v7470 = vsel %vm270, %v7400, 0
        %v7473 = vsel %vm270, %v7401, 0
        %v7476 = vsel %vm270, %v7402, 0
        %v7479 = vsel %vm270, %v7403, 0
        %v7482 = vsel %vm270, %v7404, 0
        %v7485 = vsel %vm270, %v7405, 0
        %v7488 = vsel %vm270, %v7406, 0
        %v7491 = vsel %vm270, %v7407, 0
        %v7494 = vsel %vm270, %v7408, 0
        %v7497 = vsel %vm270, %v7409, 0
        %v7500 = vsel %vm270, %v7410, 0
        %v7503 = vsel %vm270, %v7411, 0
        %v7506 = vsel %vm270, %v7412, 0
        %v7509 = vsel %vm270, %v7413, 0
        %v7512 = vsel %vm270, %v7414, 0
        %v7515 = vsel %vm270, %v7415, 0
        %v7518 = vsel %vm270, %v7416, 0
        %v7521 = vsel %vm270, %v7417, 0
        %v7524 = vsel %vm270, %v7418, 0
        %v7527 = vsel %vm270, %v7419, 0
        %v7530 = vsel %vm270, %v7420, 0
        %v7533 = vsel %vm270, %v7421, 0
        %7535 = vmatprep.subr.mxu0 0.0
        %7536 = vmatpush1.msra.mxu0 0.0
        %7537 = vmatprep.subr.mxu0 0.0
        %7538 = vmatpush1.msra.mxu0 0.0
        %7539 = vmatprep.subr.mxu0 0.0
        %7540 = vmatpush1.msra.mxu0 0.0
        %7541 = vmatprep.subr.mxu0 0.0
        %7542 = vmatpush1.msra.mxu0 0.0
        %7543 = vmatprep.subr.mxu0 0.0
        %7544 = vmatpush1.msra.mxu0 0.0
        %7545 = vmatprep.subr.mxu0 0.0
        %7546 = vmatpush1.msra.mxu0 0.0
        %7547 = vmatprep.subr.mxu0 0.0
        %7548 = vmatpush1.msra.mxu0 0.0
        %7549 = vmatprep.subr.mxu0 0.0
        %7550 = vmatpush1.msra.mxu0 0.0
        %7551 = vmatprep.subr.mxu0 0.0
        %7552 = vmatpush1.msra.mxu0 %v7430
        %7553 = vmatprep.subr.mxu0 0.0
        %7554 = vmatpush1.msra.mxu0 %v7429
        %7555 = vmatprep.subr.mxu0 0.0
        %7556 = vmatpush1.msra.mxu0 %v7428
        %7557 = vmatprep.subr.mxu0 0.0
        %7558 = vmatpush1.msra.mxu0 %v7427
        %7559 = vmatprep.subr.mxu0 0.0
        %7560 = vmatpush1.msra.mxu0 %v7426
        %7561 = vmatprep.subr.mxu0 0.0
        %7562 = vmatpush1.msra.mxu0 %v7425
        %7563 = vmatprep.subr.mxu0 0.0
        %7564 = vmatpush1.msra.mxu0 %v7424
        %7565 = vmatprep.subr.mxu0 0.0
        %7566 = vmatpush1.msra.mxu0 %v7423
        %7567 = vmatprep.subr.mxu0 0.0
        %7568 = vmatpush2.msra.mxu0 0.0
        %7569 = vmatprep.subr.mxu0 0.0
        %7570 = vmatpush2.msra.mxu0 0.0
        %7571 = vmatprep.subr.mxu0 0.0
        %7572 = vmatpush2.msra.mxu0 0.0
        %7573 = vmatprep.subr.mxu0 0.0
        %7574 = vmatpush2.msra.mxu0 0.0
        %7575 = vmatprep.subr.mxu0 0.0
        %7576 = vmatpush2.msra.mxu0 0.0
        %7577 = vmatprep.subr.mxu0 0.0
        %7578 = vmatpush2.msra.mxu0 0.0
        %7579 = vmatprep.subr.mxu0 0.0
        %7580 = vmatpush2.msra.mxu0 0.0
        %7581 = vmatprep.subr.mxu0 0.0
        %7582 = vmatpush2.msra.mxu0 0.0
        %7583 = vmatprep.subr.mxu0 0.0
        %7584 = vmatpush2.msra.mxu0 0.0
        %7585 = vmatprep.subr.mxu0 0.0
        %7586 = vmatpush2.msra.mxu0 0.0
        %7587 = vmatprep.subr.mxu0 0.0
        %7588 = vmatpush2.msra.mxu0 0.0
        %7589 = vmatprep.subr.mxu0 0.0
        %7590 = vmatpush2.msra.mxu0 0.0
        %7591 = vmatprep.subr.mxu0 0.0
        %7592 = vmatpush2.msra.mxu0 0.0
        %7593 = vmatprep.subr.mxu0 0.0
        %7594 = vmatpush2.msra.mxu0 0.0
        %7595 = vmatprep.subr.mxu0 0.0
        %7596 = vmatpush2.msra.mxu0 0.0
        %7597 = vmatprep.subr.mxu0 0.0
        %7598 = vmatpush2.msra.mxu0 0.0
        %7599 = vmatprep.mubr.f32.mxu0 0.0
        %7600 = vmatmul.mubr.f32.gmra.mxu0 %v7440
        %v7601 = vpop.f32.mrf.mxu0
        %v7602 = vadd.f32 %v7437, %v7601
        %v7603 = vpop.f32.mrf.mxu0
        %7604 = vmatprep.mubr.f32.mxu0 0.0
        %7605 = vmatmul.mubr.f32.gmra.mxu0 %v7443
        %v7606 = vpop.f32.mrf.mxu0
        %v7607 = vadd.f32 %v7437, %v7606
        %v7608 = vpop.f32.mrf.mxu0
        %7609 = vmatprep.mubr.f32.mxu0 0.0
        %7610 = vmatmul.mubr.f32.gmra.mxu0 %v7446
        %v7611 = vpop.f32.mrf.mxu0
        %v7612 = vadd.f32 %v7437, %v7611
        %v7613 = vpop.f32.mrf.mxu0
        %7614 = vmatprep.mubr.f32.mxu0 0.0
        %7615 = vmatmul.mubr.f32.gmra.mxu0 %v7449
        %v7616 = vpop.f32.mrf.mxu0
        %v7617 = vadd.f32 %v7437, %v7616
        %v7618 = vpop.f32.mrf.mxu0
        %7619 = vmatprep.mubr.f32.mxu0 0.0
        %7620 = vmatmul.mubr.f32.gmra.mxu0 %v7452
        %v7621 = vpop.f32.mrf.mxu0
        %v7622 = vadd.f32 %v7437, %v7621
        %v7623 = vpop.f32.mrf.mxu0
        %7624 = vmatprep.mubr.f32.mxu0 0.0
        %7625 = vmatmul.mubr.f32.gmra.mxu0 %v7455
        %v7626 = vpop.f32.mrf.mxu0
        %v7627 = vadd.f32 %v7437, %v7626
        %v7628 = vpop.f32.mrf.mxu0
        %7629 = vmatprep.mubr.f32.mxu0 0.0
        %7630 = vmatmul.mubr.f32.gmra.mxu0 %v7458
        %v7631 = vpop.f32.mrf.mxu0
        %v7632 = vadd.f32 %v7437, %v7631
        %v7633 = vpop.f32.mrf.mxu0
        %7634 = vmatprep.mubr.f32.mxu0 0.0
        %7635 = vmatmul.mubr.f32.gmra.mxu0 %v7461
        %v7636 = vpop.f32.mrf.mxu0
        %v7637 = vadd.f32 %v7437, %v7636
        %v7638 = vpop.f32.mrf.mxu0
        %7639 = vmatprep.mubr.f32.mxu0 0.0
        %7640 = vmatmul.mubr.f32.gmra.mxu0 %v7464
        %v7641 = vpop.f32.mrf.mxu0
        %v7642 = vadd.f32 %v7437, %v7641
        %v7643 = vpop.f32.mrf.mxu0
        %7644 = vmatprep.mubr.f32.mxu0 0.0
        %7645 = vmatmul.mubr.f32.gmra.mxu0 %v7467
        %v7646 = vpop.f32.mrf.mxu0
        %v7647 = vadd.f32 %v7437, %v7646
        %v7648 = vpop.f32.mrf.mxu0
        %7649 = vmatprep.mubr.f32.mxu0 0.0
        %7650 = vmatmul.mubr.f32.gmra.mxu0 %v7470
        %v7651 = vpop.f32.mrf.mxu0
        %v7652 = vadd.f32 %v7437, %v7651
        %v7653 = vpop.f32.mrf.mxu0
        %7654 = vmatprep.mubr.f32.mxu0 0.0
        %7655 = vmatmul.mubr.f32.gmra.mxu0 %v7473
        %v7656 = vpop.f32.mrf.mxu0
        %v7657 = vadd.f32 %v7437, %v7656
        %v7658 = vpop.f32.mrf.mxu0
        %7659 = vmatprep.mubr.f32.mxu0 0.0
        %7660 = vmatmul.mubr.f32.gmra.mxu0 %v7476
        %v7661 = vpop.f32.mrf.mxu0
        %v7662 = vadd.f32 %v7437, %v7661
        %v7663 = vpop.f32.mrf.mxu0
        %7664 = vmatprep.mubr.f32.mxu0 0.0
        %7665 = vmatmul.mubr.f32.gmra.mxu0 %v7479
        %v7666 = vpop.f32.mrf.mxu0
        %v7667 = vadd.f32 %v7437, %v7666
        %v7668 = vpop.f32.mrf.mxu0
        %7669 = vmatprep.mubr.f32.mxu0 0.0
        %7670 = vmatmul.mubr.f32.gmra.mxu0 %v7482
        %v7671 = vpop.f32.mrf.mxu0
        %v7672 = vadd.f32 %v7437, %v7671
        %v7673 = vpop.f32.mrf.mxu0
        %7674 = vmatprep.mubr.f32.mxu0 0.0
        %7675 = vmatmul.mubr.f32.gmra.mxu0 %v7485
        %v7676 = vpop.f32.mrf.mxu0
        %v7677 = vadd.f32 %v7437, %v7676
        %v7678 = vpop.f32.mrf.mxu0
        %7679 = vmatprep.mubr.f32.mxu0 0.0
        %7680 = vmatmul.mubr.f32.gmra.mxu0 %v7488
        %v7681 = vpop.f32.mrf.mxu0
        %v7682 = vadd.f32 %v7437, %v7681
        %v7683 = vpop.f32.mrf.mxu0
        %7684 = vmatprep.mubr.f32.mxu0 0.0
        %7685 = vmatmul.mubr.f32.gmra.mxu0 %v7491
        %v7686 = vpop.f32.mrf.mxu0
        %v7687 = vadd.f32 %v7437, %v7686
        %v7688 = vpop.f32.mrf.mxu0
        %7689 = vmatprep.mubr.f32.mxu0 0.0
        %7690 = vmatmul.mubr.f32.gmra.mxu0 %v7494
        %v7691 = vpop.f32.mrf.mxu0
        %v7692 = vadd.f32 %v7437, %v7691
        %v7693 = vpop.f32.mrf.mxu0
        %7694 = vmatprep.mubr.f32.mxu0 0.0
        %7695 = vmatmul.mubr.f32.gmra.mxu0 %v7497
        %v7696 = vpop.f32.mrf.mxu0
        %v7697 = vadd.f32 %v7437, %v7696
        %v7698 = vpop.f32.mrf.mxu0
        %7699 = vmatprep.mubr.f32.mxu0 0.0
        %7700 = vmatmul.mubr.f32.gmra.mxu0 %v7500
        %v7701 = vpop.f32.mrf.mxu0
        %v7702 = vadd.f32 %v7437, %v7701
        %v7703 = vpop.f32.mrf.mxu0
        %7704 = vmatprep.mubr.f32.mxu0 0.0
        %7705 = vmatmul.mubr.f32.gmra.mxu0 %v7503
        %v7706 = vpop.f32.mrf.mxu0
        %v7707 = vadd.f32 %v7437, %v7706
        %v7708 = vpop.f32.mrf.mxu0
        %7709 = vmatprep.mubr.f32.mxu0 0.0
        %7710 = vmatmul.mubr.f32.gmra.mxu0 %v7506
        %v7711 = vpop.f32.mrf.mxu0
        %v7712 = vadd.f32 %v7437, %v7711
        %v7713 = vpop.f32.mrf.mxu0
        %7714 = vmatprep.mubr.f32.mxu0 0.0
        %7715 = vmatmul.mubr.f32.gmra.mxu0 %v7509
        %v7716 = vpop.f32.mrf.mxu0
        %v7717 = vadd.f32 %v7437, %v7716
        %v7718 = vpop.f32.mrf.mxu0
        %7719 = vmatprep.mubr.f32.mxu0 0.0
        %7720 = vmatmul.mubr.f32.gmra.mxu0 %v7512
        %v7721 = vpop.f32.mrf.mxu0
        %v7722 = vadd.f32 %v7437, %v7721
        %v7723 = vpop.f32.mrf.mxu0
        %7724 = vmatprep.mubr.f32.mxu0 0.0
        %7725 = vmatmul.mubr.f32.gmra.mxu0 %v7515
        %v7726 = vpop.f32.mrf.mxu0
        %v7727 = vadd.f32 %v7437, %v7726
        %v7728 = vpop.f32.mrf.mxu0
        %7729 = vmatprep.mubr.f32.mxu0 0.0
        %7730 = vmatmul.mubr.f32.gmra.mxu0 %v7518
        %v7731 = vpop.f32.mrf.mxu0
        %v7732 = vadd.f32 %v7437, %v7731
        %v7733 = vpop.f32.mrf.mxu0
        %7734 = vmatprep.mubr.f32.mxu0 0.0
        %7735 = vmatmul.mubr.f32.gmra.mxu0 %v7521
        %v7736 = vpop.f32.mrf.mxu0
        %v7737 = vadd.f32 %v7437, %v7736
        %v7738 = vpop.f32.mrf.mxu0
        %7739 = vmatprep.mubr.f32.mxu0 0.0
        %7740 = vmatmul.mubr.f32.gmra.mxu0 %v7524
        %v7741 = vpop.f32.mrf.mxu0
        %v7742 = vadd.f32 %v7437, %v7741
        %v7743 = vpop.f32.mrf.mxu0
        %7744 = vmatprep.mubr.f32.mxu0 0.0
        %7745 = vmatmul.mubr.f32.gmra.mxu0 %v7527
        %v7746 = vpop.f32.mrf.mxu0
        %v7747 = vadd.f32 %v7437, %v7746
        %v7748 = vpop.f32.mrf.mxu0
        %7749 = vmatprep.mubr.f32.mxu0 0.0
        %7750 = vmatmul.mubr.f32.gmra.mxu0 %v7530
        %v7751 = vpop.f32.mrf.mxu0
        %v7752 = vadd.f32 %v7437, %v7751
        %v7753 = vpop.f32.mrf.mxu0
        %7754 = vmatprep.mubr.f32.mxu0 0.0
        %7755 = vmatmul.mubr.f32.gmra.mxu0 %v7533
        %v7756 = vpop.f32.mrf.mxu0
        %v7757 = vadd.f32 %v7437, %v7756
        %v7758 = vpop.f32.mrf.mxu0
        %7759 = vdwg.mxu0
        %v7760 = vmax.f32 %v7602, 0.0
        %v7761 = vmax.f32 %v7607, 0.0
        %v7762 = vmax.f32 %v7612, 0.0
        %v7763 = vmax.f32 %v7617, 0.0
        %v7764 = vmax.f32 %v7622, 0.0
        %v7765 = vmax.f32 %v7627, 0.0
        %v7766 = vmax.f32 %v7632, 0.0
        %v7767 = vmax.f32 %v7637, 0.0
        %v7768 = vmax.f32 %v7642, 0.0
        %v7769 = vmax.f32 %v7647, 0.0
        %v7770 = vmax.f32 %v7652, 0.0
        %v7771 = vmax.f32 %v7657, 0.0
        %v7772 = vmax.f32 %v7662, 0.0
        %v7773 = vmax.f32 %v7667, 0.0
        %v7774 = vmax.f32 %v7672, 0.0
        %v7775 = vmax.f32 %v7677, 0.0
        %v7776 = vmax.f32 %v7682, 0.0
        %v7777 = vmax.f32 %v7687, 0.0
        %v7778 = vmax.f32 %v7692, 0.0
        %v7779 = vmax.f32 %v7697, 0.0
        %v7780 = vmax.f32 %v7702, 0.0
        %v7781 = vmax.f32 %v7707, 0.0
        %v7782 = vmax.f32 %v7712, 0.0
        %v7783 = vmax.f32 %v7717, 0.0
        %v7784 = vmax.f32 %v7722, 0.0
        %v7785 = vmax.f32 %v7727, 0.0
        %v7786 = vmax.f32 %v7732, 0.0
        %v7787 = vmax.f32 %v7737, 0.0
        %v7788 = vmax.f32 %v7742, 0.0
        %v7789 = vmax.f32 %v7747, 0.0
        %v7790 = vmax.f32 %v7752, 0.0
        %v7791 = vmax.f32 %v7757, 0.0
        %v7792 = vlaneseq
        %v7793 = vshrl.u32 %v7792, 7
        %v7794 = vadd.s32 %v7793, 8
        %v7795 = vlaneseq
        %v7796 = vand.u32 %v7795, 127
        %vm7797 = vcmp.eq.s32.totalorder %v7793, %v7796
        %vm7798 = vcmp.eq.s32.totalorder %v7794, %v7796
        %v7799 = vsel %vm7797, 1, 0
        %v7800 = vsel %vm7798, 1, 0
        %v7801 = vcvt.s32.f32 %v7799
        %v7802 = vcvt.s32.f32 %v7800
        %v7803 = vlaneseq
        %v7804 = vshrl.u32 %v7803, 7
        %v7805 = vsub.s32 0, %v7804
        %v7806 = vrot.slane %v7801, %v7805
        %7808 = vbcast.lane.b32.xlu0 %v7806, 256
        %v7809 = vpop.permute.xlu0 %7808
        %s7811 = sor.u32 256, 8
        %7812 = vbcast.lane.b32.xlu0 %v7806, %s7811
        %v7813 = vpop.permute.xlu0 %7812
        %v7814 = vlaneseq
        %v7815 = vshrl.u32 %v7814, 7
        %v7816 = vsub.s32 1, %v7815
        %v7817 = vrot.slane %v7801, %v7816
        %7819 = vbcast.lane.b32.xlu0 %v7817, 256
        %v7820 = vpop.permute.xlu0 %7819
        %s7822 = sor.u32 256, 8
        %7823 = vbcast.lane.b32.xlu0 %v7817, %s7822
        %v7824 = vpop.permute.xlu0 %7823
        %v7825 = vlaneseq
        %v7826 = vshrl.u32 %v7825, 7
        %v7827 = vsub.s32 2, %v7826
        %v7828 = vrot.slane %v7801, %v7827
        %7830 = vbcast.lane.b32.xlu0 %v7828, 256
        %v7831 = vpop.permute.xlu0 %7830
        %s7833 = sor.u32 256, 8
        %7834 = vbcast.lane.b32.xlu0 %v7828, %s7833
        %v7835 = vpop.permute.xlu0 %7834
        %v7836 = vlaneseq
        %v7837 = vshrl.u32 %v7836, 7
        %v7838 = vsub.s32 3, %v7837
        %v7839 = vrot.slane %v7801, %v7838
        %7841 = vbcast.lane.b32.xlu0 %v7839, 256
        %v7842 = vpop.permute.xlu0 %7841
        %s7844 = sor.u32 256, 8
        %7845 = vbcast.lane.b32.xlu0 %v7839, %s7844
        %v7846 = vpop.permute.xlu0 %7845
        %v7847 = vlaneseq
        %v7848 = vshrl.u32 %v7847, 7
        %v7849 = vsub.s32 4, %v7848
        %v7850 = vrot.slane %v7801, %v7849
        %7852 = vbcast.lane.b32.xlu0 %v7850, 256
        %v7853 = vpop.permute.xlu0 %7852
        %s7855 = sor.u32 256, 8
        %7856 = vbcast.lane.b32.xlu0 %v7850, %s7855
        %v7857 = vpop.permute.xlu0 %7856
        %v7858 = vlaneseq
        %v7859 = vshrl.u32 %v7858, 7
        %v7860 = vsub.s32 5, %v7859
        %v7861 = vrot.slane %v7801, %v7860
        %7863 = vbcast.lane.b32.xlu0 %v7861, 256
        %v7864 = vpop.permute.xlu0 %7863
        %s7866 = sor.u32 256, 8
        %7867 = vbcast.lane.b32.xlu0 %v7861, %s7866
        %v7868 = vpop.permute.xlu0 %7867
        %v7869 = vlaneseq
        %v7870 = vshrl.u32 %v7869, 7
        %v7871 = vsub.s32 6, %v7870
        %v7872 = vrot.slane %v7801, %v7871
        %7874 = vbcast.lane.b32.xlu0 %v7872, 256
        %v7875 = vpop.permute.xlu0 %7874
        %s7877 = sor.u32 256, 8
        %7878 = vbcast.lane.b32.xlu0 %v7872, %s7877
        %v7879 = vpop.permute.xlu0 %7878
        %v7880 = vlaneseq
        %v7881 = vshrl.u32 %v7880, 7
        %v7882 = vsub.s32 7, %v7881
        %v7883 = vrot.slane %v7801, %v7882
        %7885 = vbcast.lane.b32.xlu0 %v7883, 256
        %v7886 = vpop.permute.xlu0 %7885
        %s7888 = sor.u32 256, 8
        %7889 = vbcast.lane.b32.xlu0 %v7883, %s7888
        %v7890 = vpop.permute.xlu0 %7889
        %v7891 = vlaneseq
        %v7892 = vshrl.u32 %v7891, 7
        %v7893 = vsub.s32 0, %v7892
        %v7894 = vrot.slane %v7802, %v7893
        %7896 = vbcast.lane.b32.xlu0 %v7894, 256
        %v7897 = vpop.permute.xlu0 %7896
        %s7899 = sor.u32 256, 8
        %7900 = vbcast.lane.b32.xlu0 %v7894, %s7899
        %v7901 = vpop.permute.xlu0 %7900
        %v7902 = vlaneseq
        %v7903 = vshrl.u32 %v7902, 7
        %v7904 = vsub.s32 1, %v7903
        %v7905 = vrot.slane %v7802, %v7904
        %7907 = vbcast.lane.b32.xlu0 %v7905, 256
        %v7908 = vpop.permute.xlu0 %7907
        %s7910 = sor.u32 256, 8
        %7911 = vbcast.lane.b32.xlu0 %v7905, %s7910
        %v7912 = vpop.permute.xlu0 %7911
        %v7913 = vlaneseq
        %v7914 = vshrl.u32 %v7913, 7
        %v7915 = vsub.s32 2, %v7914
        %v7916 = vrot.slane %v7802, %v7915
        %7918 = vbcast.lane.b32.xlu0 %v7916, 256
        %v7919 = vpop.permute.xlu0 %7918
        %s7921 = sor.u32 256, 8
        %7922 = vbcast.lane.b32.xlu0 %v7916, %s7921
        %v7923 = vpop.permute.xlu0 %7922
        %v7924 = vlaneseq
        %v7925 = vshrl.u32 %v7924, 7
        %v7926 = vsub.s32 3, %v7925
        %v7927 = vrot.slane %v7802, %v7926
        %7929 = vbcast.lane.b32.xlu0 %v7927, 256
        %v7930 = vpop.permute.xlu0 %7929
        %s7932 = sor.u32 256, 8
        %7933 = vbcast.lane.b32.xlu0 %v7927, %s7932
        %v7934 = vpop.permute.xlu0 %7933
        %v7935 = vlaneseq
        %v7936 = vshrl.u32 %v7935, 7
        %v7937 = vsub.s32 4, %v7936
        %v7938 = vrot.slane %v7802, %v7937
        %7940 = vbcast.lane.b32.xlu0 %v7938, 256
        %v7941 = vpop.permute.xlu0 %7940
        %s7943 = sor.u32 256, 8
        %7944 = vbcast.lane.b32.xlu0 %v7938, %s7943
        %v7945 = vpop.permute.xlu0 %7944
        %v7946 = vlaneseq
        %v7947 = vshrl.u32 %v7946, 7
        %v7948 = vsub.s32 5, %v7947
        %v7949 = vrot.slane %v7802, %v7948
        %7951 = vbcast.lane.b32.xlu0 %v7949, 256
        %v7952 = vpop.permute.xlu0 %7951
        %s7954 = sor.u32 256, 8
        %7955 = vbcast.lane.b32.xlu0 %v7949, %s7954
        %v7956 = vpop.permute.xlu0 %7955
        %v7957 = vlaneseq
        %v7958 = vshrl.u32 %v7957, 7
        %v7959 = vsub.s32 6, %v7958
        %v7960 = vrot.slane %v7802, %v7959
        %7962 = vbcast.lane.b32.xlu0 %v7960, 256
        %v7963 = vpop.permute.xlu0 %7962
        %s7965 = sor.u32 256, 8
        %7966 = vbcast.lane.b32.xlu0 %v7960, %s7965
        %v7967 = vpop.permute.xlu0 %7966
        %v7968 = vlaneseq
        %v7969 = vshrl.u32 %v7968, 7
        %v7970 = vsub.s32 7, %v7969
        %v7971 = vrot.slane %v7802, %v7970
        %7973 = vbcast.lane.b32.xlu0 %v7971, 256
        %v7974 = vpop.permute.xlu0 %7973
        %s7976 = sor.u32 256, 8
        %7977 = vbcast.lane.b32.xlu0 %v7971, %s7976
        %v7978 = vpop.permute.xlu0 %7977
        %v7979 = vmul.f32 %v7760, %v7809
        %v7980 = vmul.f32 %v7761, %v7813
        %v7981 = vmul.f32 %v7762, %v7820
        %v7982 = vmul.f32 %v7763, %v7824
        %v7983 = vmul.f32 %v7764, %v7831
        %v7984 = vmul.f32 %v7765, %v7835
        %v7985 = vmul.f32 %v7766, %v7842
        %v7986 = vmul.f32 %v7767, %v7846
        %v7987 = vmul.f32 %v7768, %v7853
        %v7988 = vmul.f32 %v7769, %v7857
        %v7989 = vmul.f32 %v7770, %v7864
        %v7990 = vmul.f32 %v7771, %v7868
        %v7991 = vmul.f32 %v7772, %v7875
        %v7992 = vmul.f32 %v7773, %v7879
        %v7993 = vmul.f32 %v7774, %v7886
        %v7994 = vmul.f32 %v7775, %v7890
        %v7995 = vmul.f32 %v7776, %v7897
        %v7996 = vmul.f32 %v7777, %v7901
        %v7997 = vmul.f32 %v7778, %v7908
        %v7998 = vmul.f32 %v7779, %v7912
        %v7999 = vmul.f32 %v7780, %v7919
        %v8000 = vmul.f32 %v7781, %v7923
        %v8001 = vmul.f32 %v7782, %v7930
        %v8002 = vmul.f32 %v7783, %v7934
        %v8003 = vmul.f32 %v7784, %v7941
        %v8004 = vmul.f32 %v7785, %v7945
        %v8005 = vmul.f32 %v7786, %v7952
        %v8006 = vmul.f32 %v7787, %v7956
        %v8007 = vmul.f32 %v7788, %v7963
        %v8008 = vmul.f32 %v7789, %v7967
        %v8009 = vmul.f32 %v7790, %v7974
        %v8010 = vmul.f32 %v7791, %v7978
        %v8011 = vsel %vm270, %v7979, 0.0
        %v8012 = vsel %vm270, %v7980, 0.0
        %v8013 = vadd.f32 %v8011, %v8012
        %v8014 = vrot.slane %v8013, 4
        %v8015 = vadd.f32 %v8013, %v8014
        %v8016 = vrot.slane %v8015, 2
        %v8017 = vadd.f32 %v8015, %v8016
        %v8018 = vrot.slane %v8017, 1
        %v8019 = vadd.f32 %v8017, %v8018
        %v8020 = vsel %vm270, %v7981, 0.0
        %v8021 = vsel %vm270, %v7982, 0.0
        %v8022 = vadd.f32 %v8020, %v8021
        %v8023 = vrot.slane %v8022, 4
        %v8024 = vadd.f32 %v8022, %v8023
        %v8025 = vrot.slane %v8024, 2
        %v8026 = vadd.f32 %v8024, %v8025
        %v8027 = vrot.slane %v8026, 1
        %v8028 = vadd.f32 %v8026, %v8027
        %v8029 = vsel %vm270, %v7983, 0.0
        %v8030 = vsel %vm270, %v7984, 0.0
        %v8031 = vadd.f32 %v8029, %v8030
        %v8032 = vrot.slane %v8031, 4
        %v8033 = vadd.f32 %v8031, %v8032
        %v8034 = vrot.slane %v8033, 2
        %v8035 = vadd.f32 %v8033, %v8034
        %v8036 = vrot.slane %v8035, 1
        %v8037 = vadd.f32 %v8035, %v8036
        %v8038 = vsel %vm270, %v7985, 0.0
        %v8039 = vsel %vm270, %v7986, 0.0
        %v8040 = vadd.f32 %v8038, %v8039
        %v8041 = vrot.slane %v8040, 4
        %v8042 = vadd.f32 %v8040, %v8041
        %v8043 = vrot.slane %v8042, 2
        %v8044 = vadd.f32 %v8042, %v8043
        %v8045 = vrot.slane %v8044, 1
        %v8046 = vadd.f32 %v8044, %v8045
        %v8047 = vsel %vm270, %v7987, 0.0
        %v8048 = vsel %vm270, %v7988, 0.0
        %v8049 = vadd.f32 %v8047, %v8048
        %v8050 = vrot.slane %v8049, 4
        %v8051 = vadd.f32 %v8049, %v8050
        %v8052 = vrot.slane %v8051, 2
        %v8053 = vadd.f32 %v8051, %v8052
        %v8054 = vrot.slane %v8053, 1
        %v8055 = vadd.f32 %v8053, %v8054
        %v8056 = vsel %vm270, %v7989, 0.0
        %v8057 = vsel %vm270, %v7990, 0.0
        %v8058 = vadd.f32 %v8056, %v8057
        %v8059 = vrot.slane %v8058, 4
        %v8060 = vadd.f32 %v8058, %v8059
        %v8061 = vrot.slane %v8060, 2
        %v8062 = vadd.f32 %v8060, %v8061
        %v8063 = vrot.slane %v8062, 1
        %v8064 = vadd.f32 %v8062, %v8063
        %v8065 = vsel %vm270, %v7991, 0.0
        %v8066 = vsel %vm270, %v7992, 0.0
        %v8067 = vadd.f32 %v8065, %v8066
        %v8068 = vrot.slane %v8067, 4
        %v8069 = vadd.f32 %v8067, %v8068
        %v8070 = vrot.slane %v8069, 2
        %v8071 = vadd.f32 %v8069, %v8070
        %v8072 = vrot.slane %v8071, 1
        %v8073 = vadd.f32 %v8071, %v8072
        %v8074 = vsel %vm270, %v7993, 0.0
        %v8075 = vsel %vm270, %v7994, 0.0
        %v8076 = vadd.f32 %v8074, %v8075
        %v8077 = vrot.slane %v8076, 4
        %v8078 = vadd.f32 %v8076, %v8077
        %v8079 = vrot.slane %v8078, 2
        %v8080 = vadd.f32 %v8078, %v8079
        %v8081 = vrot.slane %v8080, 1
        %v8082 = vadd.f32 %v8080, %v8081
        %v8083 = vsel %vm270, %v7995, 0.0
        %v8084 = vsel %vm270, %v7996, 0.0
        %v8085 = vadd.f32 %v8083, %v8084
        %v8086 = vrot.slane %v8085, 4
        %v8087 = vadd.f32 %v8085, %v8086
        %v8088 = vrot.slane %v8087, 2
        %v8089 = vadd.f32 %v8087, %v8088
        %v8090 = vrot.slane %v8089, 1
        %v8091 = vadd.f32 %v8089, %v8090
        %v8092 = vsel %vm270, %v7997, 0.0
        %v8093 = vsel %vm270, %v7998, 0.0
        %v8094 = vadd.f32 %v8092, %v8093
        %v8095 = vrot.slane %v8094, 4
        %v8096 = vadd.f32 %v8094, %v8095
        %v8097 = vrot.slane %v8096, 2
        %v8098 = vadd.f32 %v8096, %v8097
        %v8099 = vrot.slane %v8098, 1
        %v8100 = vadd.f32 %v8098, %v8099
        %v8101 = vsel %vm270, %v7999, 0.0
        %v8102 = vsel %vm270, %v8000, 0.0
        %v8103 = vadd.f32 %v8101, %v8102
        %v8104 = vrot.slane %v8103, 4
        %v8105 = vadd.f32 %v8103, %v8104
        %v8106 = vrot.slane %v8105, 2
        %v8107 = vadd.f32 %v8105, %v8106
        %v8108 = vrot.slane %v8107, 1
        %v8109 = vadd.f32 %v8107, %v8108
        %v8110 = vsel %vm270, %v8001, 0.0
        %v8111 = vsel %vm270, %v8002, 0.0
        %v8112 = vadd.f32 %v8110, %v8111
        %v8113 = vrot.slane %v8112, 4
        %v8114 = vadd.f32 %v8112, %v8113
        %v8115 = vrot.slane %v8114, 2
        %v8116 = vadd.f32 %v8114, %v8115
        %v8117 = vrot.slane %v8116, 1
        %v8118 = vadd.f32 %v8116, %v8117
        %v8119 = vsel %vm270, %v8003, 0.0
        %v8120 = vsel %vm270, %v8004, 0.0
        %v8121 = vadd.f32 %v8119, %v8120
        %v8122 = vrot.slane %v8121, 4
        %v8123 = vadd.f32 %v8121, %v8122
        %v8124 = vrot.slane %v8123, 2
        %v8125 = vadd.f32 %v8123, %v8124
        %v8126 = vrot.slane %v8125, 1
        %v8127 = vadd.f32 %v8125, %v8126
        %v8128 = vsel %vm270, %v8005, 0.0
        %v8129 = vsel %vm270, %v8006, 0.0
        %v8130 = vadd.f32 %v8128, %v8129
        %v8131 = vrot.slane %v8130, 4
        %v8132 = vadd.f32 %v8130, %v8131
        %v8133 = vrot.slane %v8132, 2
        %v8134 = vadd.f32 %v8132, %v8133
        %v8135 = vrot.slane %v8134, 1
        %v8136 = vadd.f32 %v8134, %v8135
        %v8137 = vsel %vm270, %v8007, 0.0
        %v8138 = vsel %vm270, %v8008, 0.0
        %v8139 = vadd.f32 %v8137, %v8138
        %v8140 = vrot.slane %v8139, 4
        %v8141 = vadd.f32 %v8139, %v8140
        %v8142 = vrot.slane %v8141, 2
        %v8143 = vadd.f32 %v8141, %v8142
        %v8144 = vrot.slane %v8143, 1
        %v8145 = vadd.f32 %v8143, %v8144
        %v8146 = vsel %vm270, %v8009, 0.0
        %v8147 = vsel %vm270, %v8010, 0.0
        %v8148 = vadd.f32 %v8146, %v8147
        %v8149 = vrot.slane %v8148, 4
        %v8150 = vadd.f32 %v8148, %v8149
        %v8151 = vrot.slane %v8150, 2
        %v8152 = vadd.f32 %v8150, %v8151
        %v8153 = vrot.slane %v8152, 1
        %v8154 = vadd.f32 %v8152, %v8153
        %vm8171 = vcmask 1041409
        %v8172 = vsel %vm8171, %v8028, %v8019
        %vm8173 = vcmask 1042434
        %v8174 = vsel %vm8173, %v8037, %v8172
        %vm8175 = vcmask 1043459
        %v8176 = vsel %vm8175, %v8046, %v8174
        %vm8177 = vcmask 1044484
        %v8178 = vsel %vm8177, %v8055, %v8176
        %vm8179 = vcmask 1045509
        %v8180 = vsel %vm8179, %v8064, %v8178
        %vm8181 = vcmask 1046534
        %v8182 = vsel %vm8181, %v8073, %v8180
        %vm8183 = vcmask 1047559
        %v8184 = vsel %vm8183, %v8082, %v8182
        %v8185 = vsel %vm8171, %v8100, %v8091
        %v8186 = vsel %vm8173, %v8109, %v8185
        %v8187 = vsel %vm8175, %v8118, %v8186
        %v8188 = vsel %vm8177, %v8127, %v8187
        %v8189 = vsel %vm8179, %v8136, %v8188
        %v8190 = vsel %vm8181, %v8145, %v8189
        %v8191 = vsel %vm8183, %v8154, %v8190
        %8192 = vrot.lane.b32.xlu0 %v8184, 96
        %v8193 = vpop.permute.xlu0 %8192
        %8194 = vrot.lane.b32.xlu0 %v8191, 96
        %v8195 = vpop.permute.xlu0 %8194
        %vm8196 = vcmask 261120
        %v8197 = vsel %vm8196, %v8184, 0
        %v8199 = vsel %vm8196, %v8191, 0
        %v8201 = vsel %vm8196, %v8193, 0
        %v8203 = vsel %vm8196, %v8195, 0
        %8205 = vmatprep.subr.mxu0 0.0
        %8206 = vmatpush1.xpose.msra.mxu0 0.0
        %8207 = vmatprep.subr.mxu0 0.0
        %8208 = vmatpush1.xpose.msra.mxu0 0.0
        %8209 = vmatprep.subr.mxu0 0.0
        %8210 = vmatpush1.xpose.msra.mxu0 0.0
        %8211 = vmatprep.subr.mxu0 0.0
        %8212 = vmatpush1.xpose.msra.mxu0 0.0
        %8213 = vmatprep.subr.mxu0 0.0
        %8214 = vmatpush1.xpose.msra.mxu0 0.0
        %8215 = vmatprep.subr.mxu0 0.0
        %8216 = vmatpush1.xpose.msra.mxu0 0.0
        %8217 = vmatprep.subr.mxu0 0.0
        %8218 = vmatpush1.xpose.msra.mxu0 0.0
        %8219 = vmatprep.subr.mxu0 0.0
        %8220 = vmatpush1.xpose.msra.mxu0 0.0
        %8221 = vmatprep.subr.mxu0 0.0
        %8222 = vmatpush1.xpose.msra.mxu0 0.0
        %8223 = vmatprep.subr.mxu0 0.0
        %8224 = vmatpush1.xpose.msra.mxu0 0.0
        %8225 = vmatprep.subr.mxu0 0.0
        %8226 = vmatpush1.xpose.msra.mxu0 0.0
        %8227 = vmatprep.subr.mxu0 0.0
        %8228 = vmatpush1.xpose.msra.mxu0 0.0
        %8229 = vmatprep.subr.mxu0 0.0
        %8230 = vmatpush1.xpose.msra.mxu0 0.0
        %8231 = vmatprep.subr.mxu0 0.0
        %8232 = vmatpush1.xpose.msra.mxu0 0.0
        %8233 = vmatprep.subr.mxu0 0.0
        %8234 = vmatpush1.xpose.msra.mxu0 %v8203
        %8235 = vmatprep.subr.mxu0 0.0
        %8236 = vmatpush1.xpose.msra.mxu0 %v8201
        %8237 = vmatprep.subr.mxu0 0.0
        %8238 = vmatpush2.xpose.msra.mxu0 0.0
        %8239 = vmatprep.subr.mxu0 0.0
        %8240 = vmatpush2.xpose.msra.mxu0 0.0
        %8241 = vmatprep.subr.mxu0 0.0
        %8242 = vmatpush2.xpose.msra.mxu0 0.0
        %8243 = vmatprep.subr.mxu0 0.0
        %8244 = vmatpush2.xpose.msra.mxu0 0.0
        %8245 = vmatprep.subr.mxu0 0.0
        %8246 = vmatpush2.xpose.msra.mxu0 0.0
        %8247 = vmatprep.subr.mxu0 0.0
        %8248 = vmatpush2.xpose.msra.mxu0 0.0
        %8249 = vmatprep.subr.mxu0 0.0
        %8250 = vmatpush2.xpose.msra.mxu0 0.0
        %8251 = vmatprep.subr.mxu0 0.0
        %8252 = vmatpush2.xpose.msra.mxu0 0.0
        %8253 = vmatprep.subr.mxu0 0.0
        %8254 = vmatpush2.xpose.msra.mxu0 0.0
        %8255 = vmatprep.subr.mxu0 0.0
        %8256 = vmatpush2.xpose.msra.mxu0 0.0
        %8257 = vmatprep.subr.mxu0 0.0
        %8258 = vmatpush2.xpose.msra.mxu0 0.0
        %8259 = vmatprep.subr.mxu0 0.0
        %8260 = vmatpush2.xpose.msra.mxu0 0.0
        %8261 = vmatprep.subr.mxu0 0.0
        %8262 = vmatpush2.xpose.msra.mxu0 0.0
        %8263 = vmatprep.subr.mxu0 0.0
        %8264 = vmatpush2.xpose.msra.mxu0 0.0
        %8265 = vmatprep.subr.mxu0 0.0
        %8266 = vmatpush2.xpose.msra.mxu0 0.0
        %8267 = vmatprep.subr.mxu0 0.0
        %8268 = vmatpush2.xpose.msra.mxu0 0.0
        %8269 = vmatprep.mubr.f32.mxu0 0.0
        %8270 = vmatmul.mubr.f32.gmra.mxu0 %v8197
        %v8271 = vpop.f32.mrf.mxu0
        %v8272 = vadd.f32 0.0, %v8271
        %v8273 = vpop.f32.mrf.mxu0
        %8274 = vmatprep.mubr.f32.mxu0 0.0
        %8275 = vmatmul.mubr.f32.gmra.mxu0 %v8199
        %v8276 = vpop.f32.mrf.mxu0
        %v8277 = vadd.f32 0.0, %v8276
        %v8278 = vpop.f32.mrf.mxu0
        %8279 = vdwg.mxu0
        %vm8280 = vcmask 130048
        %8281 = vst.msk [vmem:[%s217] sm:$0xff] %vm8280, %v8272
        %8282 = vst.msk [vmem:[%s217 + $0x8] sm:$0xff] %vm8280, %v8277
        %s8283 = sand.u32 %s137, 1
        %s8284 = scalar_lea.sflag [#allocation3], %s8283
        %s8285 = sand.u32 %s137, 1
        %s8286 = smul.addr %s8285, 16
        %s8287 = scalar_lea.vmem [#allocation2], %s8286
        // Predicated region
        $region41: #{siamese_forward.1} parent=39 // pred_check
          %p8288 = pneg %p147
        $region42: #{siamese_forward.1} parent=39 // pred_check_branch
          %8290 = sbr.rel (%p8288) target = $region44
        $region43: #{siamese_forward.1} parent=39 // pred_region
          %s8292 = ssub.s32 256, 256
          %8293 = vsyncadd %s8284, %s8292
          %s8294 = smul.addr %s19, 2
          %s8295 = smul.addr %s8294, 128
          %s8296 = scalar_lea.hbm %s5, %s8295
          %s8297 = sshll.u32 %s8287, 4
          %s8298 = int_to_ptr.vmem [resolvable:$true] %s8297
          %8303 = dma.vmem_to_hbm [thread:$0]  %s8298, 256, %s8296, %s8284, 128, 128, 8
        $region44: #{siamese_forward.1} parent=39 // pred_fallthru
          _
      $region40: #{siamese_forward.1} parent=5 // pred_fallthru
        _
      %p8304 = scmp.le.s32.totalorder 2, %s14
      // Predicated region
      $region45: #{siamese_forward.1} parent=5 // pred_check
        %p8305 = pneg %p8304
      $region46: #{siamese_forward.1} parent=5 // pred_check_branch
        %8307 = sbr.rel (%p8305) target = $region48
      $region47: #{siamese_forward.1} parent=5 // pred_region
        %s8308 = ssub.s32 %s14, 2
        // Predicated region
        $region49: #{siamese_forward.1} parent=47 // pred_check
          %p8309 = pneg %p153
        $region50: #{siamese_forward.1} parent=47 // pred_check_branch
          %8311 = sbr.rel (%p8309) target = $region52
        $region51: #{siamese_forward.1} parent=47 // pred_region
          %s8312 = sand.u32 %s138, 1
          %s8313 = scalar_lea.sflag [#allocation3], %s8312
          %s8314 = sand.u32 %s138, 1
          %s8315 = smul.addr %s8314, 16
          %s8316 = scalar_lea.vmem [#allocation2], %s8315
          %8317 = dma.done %s8313, 256
        $region52: #{siamese_forward.1} parent=47 // pred_fallthru
          _
      $region48: #{siamese_forward.1} parent=5 // pred_fallthru
        _
    $region6: #{siamese_forward.1} parent=1 // loop_footer
      %s18 = sadd.s32 1, %s14
    $region7: #{siamese_forward.1} parent=1 // loop_footer_branch
      %13 = sbr.rel target = $region3
    $region8: #{siamese_forward.1} parent=1 // loop_exit
      _
    %8318 = vsyncpa [#allocation3], 1
    %s8319 = scalar_lea.sflag [#allocation3], 1
    %8320 = vsyncpa %s8319, 1

</llo_original>
